<compile_context>
chip_gen: v5e
topology: v5e:2x2
jax: 0.10.0
libtpu: 0.0.40
codegen_flags: <defaults>
</compile_context>

<pallas_src>
import jax
import jax.numpy as jnp
from jax import lax
from jax.experimental import pallas as pl
from jax.experimental.pallas import tpu as pltpu


# ----------------------------------------------------------------------------
# Fused LSTM layer kernel:
#   grid = (batch_tiles [parallel], time_chunks [arbitrary])
#   per grid step:
#     1. one chunk GEMM  x_chunk @ W_ih^T + b   -> VMEM gate scratch  (MXU, bf16 in / f32 acc)
#     2. unrolled recurrence over t_chunk steps: gates += h @ W_hh^T, gate nonlinearities,
#        c/h update (all f32), optional bf16 sequence writeback
#     3. at the last time chunk: write h_T / c_T, and for the last layer compute
#        sigmoid(fc(h_T)) in-kernel (lane reduction on the XLU).
# ----------------------------------------------------------------------------
def _make_lstm_layer_kernel(t_chunk, hidden_dim, emit_seq, fuse_fc, seq_len, seq_pad):
    H = hidden_dim
    needs_mask = (seq_pad != seq_len)

    def kernel(x_ref, h0_ref, c0_ref, wih_ref, whh_ref, b_ref, *rest):
        idx = 0
        if fuse_fc:
            fcw_ref = rest[idx]; idx += 1
            fcb_ref = rest[idx]; idx += 1
        if emit_seq:
            out_ref = rest[idx]; idx += 1
        hT_ref = rest[idx]; idx += 1
        cT_ref = rest[idx]; idx += 1
        if fuse_fc:
            sig_ref = rest[idx]; idx += 1
        h_s, c_s, g_s = rest[idx], rest[idx + 1], rest[idx + 2]

        t = pl.program_id(1)
        b_tile = h0_ref.shape[0]
        din = x_ref.shape[-1]

        @pl.when(t == 0)
        def _():
            h_s[...] = h0_ref[...]
            c_s[...] = c0_ref[...]

        # (1) fused input projection for the whole time chunk (one large MXU GEMM).
        x2d = x_ref[...].reshape(t_chunk * b_tile, din)
        g_s[...] = (jnp.dot(x2d, wih_ref[...], preferred_element_type=jnp.float32)
                    + b_ref[...]).reshape(t_chunk, b_tile, 4 * H)

        # (2) serial recurrence: only h @ W_hh^T remains on the critical path.
        def step(i, carry):
            h, c = carry
            gates = g_s[i] + jnp.dot(h.astype(whh_ref.dtype), whh_ref[...],
                                     preferred_element_type=jnp.float32)
            i_g = jax.nn.sigmoid(gates[:, 0 * H:1 * H])
            f_g = jax.nn.sigmoid(gates[:, 1 * H:2 * H])
            g_g = jnp.tanh(gates[:, 2 * H:3 * H])
            o_g = jax.nn.sigmoid(gates[:, 3 * H:4 * H])
            c_new = f_g * c + i_g * g_g
            h_new = o_g * jnp.tanh(c_new)
            if needs_mask:  # padded tail timesteps: keep previous state
                valid = (t * t_chunk + i) < seq_len
                c_new = jnp.where(valid, c_new, c)
                h_new = jnp.where(valid, h_new, h)
            if emit_seq:
                out_ref[i] = h_new.astype(out_ref.dtype)
            return h_new, c_new

        h, c = lax.fori_loop(0, t_chunk, step, (h_s[...], c_s[...]), unroll=True)
        h_s[...] = h
        c_s[...] = c

        # (3) epilogue at the last time chunk.
        @pl.when(t == pl.num_programs(1) - 1)
        def _():
            hT_ref[...] = h
            cT_ref[...] = c
            if fuse_fc:
                y = jnp.sum(h * fcw_ref[...], axis=-1, keepdims=True) + fcb_ref[...]
                sig_ref[...] = jax.nn.sigmoid(y)

    return kernel


def _estimate_vmem_bytes(t_chunk, b_tile, din, H, emit_seq, fuse_fc):
    G4 = 4 * H
    db = 2  # double-buffered pipelined blocks
    total = 0
    total += db * t_chunk * b_tile * din * 2          # x chunk (bf16)
    total += db * 2 * b_tile * H * 4                  # h0 / c0
    total += db * (din + H) * G4 * 2                  # W_ih^T, W_hh^T (bf16, resident)
    total += db * G4 * 4                              # bias
    if fuse_fc:
        total += db * (H + 1) * 4 + db * b_tile * 4   # fc weights + sig out
    if emit_seq:
        total += db * t_chunk * b_tile * H * 2        # sequence out (bf16)
    total += db * 2 * b_tile * H * 4                  # h_T / c_T out
    total += 2 * b_tile * H * 4                       # h/c scratch
    total += t_chunk * b_tile * G4 * 4                # gate scratch (f32)
    return total


def lstm_layer(x, h0, c0, w_ih_t_bf16, w_hh_t_bf16, bias, *, fc_w, fc_b,
               b_tile, t_chunk, seq_len, emit_seq):
    """x: (S_pad, Bp, Din) bf16; h0/c0: (Bp, H) f32; weights pre-transposed.
    Returns ([seq bf16 (S_pad,Bp,H)], hT f32, cT f32, [sig f32 (Bp,1)])."""
    S_pad, Bp, Din = x.shape
    H = w_hh_t_bf16.shape[0]
    G4 = 4 * H
    grid = (Bp // b_tile, S_pad // t_chunk)
    fuse_fc = fc_w is not None

    in_specs = [
        pl.BlockSpec((t_chunk, b_tile, Din), lambda b, t: (t, b, 0)),  # x chunk (bf16)
        pl.BlockSpec((b_tile, H), lambda b, t: (b, 0)),                # h0
        pl.BlockSpec((b_tile, H), lambda b, t: (b, 0)),                # c0
        pl.BlockSpec((Din, G4), lambda b, t: (0, 0)),                  # W_ih^T (bf16, resident)
        pl.BlockSpec((H, G4), lambda b, t: (0, 0)),                    # W_hh^T (bf16, resident)
        pl.BlockSpec((1, G4), lambda b, t: (0, 0)),                    # bias (f32)
    ]
    inputs = [x, h0, c0, w_ih_t_bf16, w_hh_t_bf16, bias]
    if fuse_fc:
        in_specs += [pl.BlockSpec((1, H), lambda b, t: (0, 0)),
                     pl.BlockSpec((1, 1), lambda b, t: (0, 0))]
        inputs += [fc_w, fc_b]

    out_shapes, out_specs = [], []
    if emit_seq:
        out_shapes.append(jax.ShapeDtypeStruct((S_pad, Bp, H), jnp.bfloat16))
        out_specs.append(pl.BlockSpec((t_chunk, b_tile, H), lambda b, t: (t, b, 0)))
    out_shapes += [jax.ShapeDtypeStruct((Bp, H), jnp.float32),
                   jax.ShapeDtypeStruct((Bp, H), jnp.float32)]
    out_specs += [pl.BlockSpec((b_tile, H), lambda b, t: (b, 0)),
                  pl.BlockSpec((b_tile, H), lambda b, t: (b, 0))]
    if fuse_fc:
        out_shapes.append(jax.ShapeDtypeStruct((Bp, 1), jnp.float32))
        out_specs.append(pl.BlockSpec((b_tile, 1), lambda b, t: (b, 0)))

    est = _estimate_vmem_bytes(t_chunk, b_tile, Din, H, emit_seq, fuse_fc)
    vmem_limit = min(64 << 20, max(32 << 20, int(1.5 * est) + (4 << 20)))

    return pl.pallas_call(
        _make_lstm_layer_kernel(t_chunk, H, emit_seq, fuse_fc, seq_len, S_pad),
        out_shape=tuple(out_shapes),
        grid_spec=pltpu.PrefetchScalarGridSpec(
            num_scalar_prefetch=0,
            grid=grid,
            in_specs=in_specs,
            out_specs=out_specs,
            scratch_shapes=[pltpu.VMEM((b_tile, H), jnp.float32),   # h carry
                            pltpu.VMEM((b_tile, H), jnp.float32),   # c carry
                            pltpu.VMEM((t_chunk, b_tile, G4), jnp.float32)],  # gate chunk
        ),
        compiler_params=pltpu.CompilerParams(
            dimension_semantics=("parallel", "arbitrary"),
            vmem_limit_bytes=vmem_limit),
    )(*inputs)


# ----------------------------------------------------------------------------
# Tiling helpers.
# ----------------------------------------------------------------------------
def _choose_batch_tiling(batch, b_tile_max=128):
    b_up = -(-batch // 8) * 8
    b_tile = min(b_tile_max, b_up)
    if -(-b_up // b_tile) < 2:
        # v7x megacore: expose >=2 parallel batch tiles so both TensorCores get work.
        if b_up >= 16:
            b_tile = max(8, ((b_up // 2) + 7) // 8 * 8)
        else:
            b_up = 2 * b_tile          # tiny batch: pad rows (cheap) to get 2 tiles
    b_pad = -(-b_up // b_tile) * b_tile
    return b_tile, b_pad


def _choose_time_chunk(S, b_tile, din, H, t_chunk_max=16):
    t_chunk = max(1, min(t_chunk_max, 16, S))   # <=16 so the inner loop is always unrolled
    # Shrink if the footprint would crowd v7x's 64 MiB VMEM.
    while t_chunk > 4 and _estimate_vmem_bytes(t_chunk, b_tile, din, H, True, True) > (40 << 20):
        t_chunk = max(4, t_chunk // 2)
    return t_chunk


# ----------------------------------------------------------------------------
# Forward pass (glue in plain JAX, hot path in Pallas).
# ----------------------------------------------------------------------------
def sentiment_rnn_forward(tokens, hidden, params, *, b_tile_max=128, t_chunk_max=16):
    """tokens: (B, S) int32; hidden: (h0, c0) each (n_layers, B, H)."""
    h0_all, c0_all = hidden
    B, S = tokens.shape
    n_layers = len(params["lstm"])
    H = params["lstm"][0]["w_hh_t"].shape[0]
    E = params["embedding"].shape[1]

    b_tile, Bp = _choose_batch_tiling(B, b_tile_max)
    t_chunk = _choose_time_chunk(S, b_tile, max(E, H), H, t_chunk_max)
    S_pad = -(-S // t_chunk) * t_chunk

    # Time-major token gather in bf16; padded rows/steps are inert and sliced away.
    tokens_tm = tokens.T                                            # (S, B)
    pad_b = Bp - B
    if pad_b:
        tokens_tm = jnp.pad(tokens_tm, ((0, 0), (0, pad_b)))
        h0_all = jnp.pad(h0_all, ((0, 0), (0, pad_b), (0, 0)))
        c0_all = jnp.pad(c0_all, ((0, 0), (0, pad_b), (0, 0)))
    if S_pad != S:
        tokens_tm = jnp.pad(tokens_tm, ((0, S_pad - S), (0, 0)))

    emb_bf16 = params["embedding"].astype(jnp.bfloat16)
    # Embedding lookup (gather) — left to XLA (DMA-bound gather).
    x = jnp.take(emb_bf16, tokens_tm, axis=0)                       # (S_pad, Bp, E) bf16

    hT_list, cT_list, sig_pad = [], [], None
    for l, lp in enumerate(params["lstm"]):
        last = (l == n_layers - 1)
        outs = lstm_layer(
            x, h0_all[l], c0_all[l],
            lp["w_ih_t"].astype(jnp.bfloat16), lp["w_hh_t"].astype(jnp.bfloat16), lp["b"],
            fc_w=params["fc_w"] if last else None,
            fc_b=params["fc_b"] if last else None,
            b_tile=b_tile, t_chunk=t_chunk, seq_len=S, emit_seq=not last)
        if last:
            hT, cT, sig_pad = outs      # last layer: no (S,B,H) slab, fc+sigmoid fused in
        else:
            x, hT, cT = outs            # bf16 sequence feeds the next layer directly
        hT_list.append(hT)
        cT_list.append(cT)
        # TODO(synk): inter-layer LSTM dropout (p=0.5) and nn.Dropout are train-mode only;
        # eval mode = identity (matches module.eval()).

    # sig.view(B, S)[:, -1] == sigmoid(fc(h_T of last layer)); computed in-kernel above.
    sig_out = sig_pad[:B, 0]
    h_n = jnp.stack(hT_list, axis=0)[:, :B, :]
    c_n = jnp.stack(cT_list, axis=0)[:, :B, :]
    return sig_out, (h_n, c_n)


# ----------------------------------------------------------------------------
# Deterministic parameter init + pure-JAX (f32) reference for sanity check.
# ----------------------------------------------------------------------------
def init_params(key, vocab_size, embedding_dim, hidden_dim, n_layers, output_size):
    keys = jax.random.split(key, 3 + 4 * n_layers)
    scale = 0.1
    params = {
        "embedding": scale * jax.random.normal(keys[0], (vocab_size, embedding_dim), jnp.float32),
        "lstm": [],
        "fc_w": scale * jax.random.normal(keys[1], (output_size, hidden_dim), jnp.float32),
        "fc_b": scale * jax.random.normal(keys[2], (1, output_size), jnp.float32),
    }
    for l in range(n_layers):
        in_dim = embedding_dim if l == 0 else hidden_dim
        k = keys[3 + 4 * l: 3 + 4 * (l + 1)]
        w_ih = scale * jax.random.normal(k[0], (4 * hidden_dim, in_dim), jnp.float32)
        w_hh = scale * jax.random.normal(k[1], (4 * hidden_dim, hidden_dim), jnp.float32)
        b_ih = scale * jax.random.normal(k[2], (4 * hidden_dim,), jnp.float32)
        b_hh = scale * jax.random.normal(k[3], (4 * hidden_dim,), jnp.float32)
        params["lstm"].append({
            "w_ih_t": w_ih.T,                       # (in_dim, 4H) f32 master copy
            "w_hh_t": w_hh.T,                       # (H, 4H)     f32 master copy
            "b": (b_ih + b_hh).reshape(1, -1),      # (1, 4H)
        })
    return params


def reference_forward(tokens, hidden, params):
    h0_all, c0_all = hidden
    B, S = tokens.shape
    x = jnp.take(params["embedding"], tokens, axis=0)  # (B, S, E)
    hT_list, cT_list = [], []
    for l, lp in enumerate(params["lstm"]):
        H = lp["w_hh_t"].shape[0]
        h, c = h0_all[l], c0_all[l]
        outs = []
        for t in range(S):
            g = x[:, t, :] @ lp["w_ih_t"] + h @ lp["w_hh_t"] + lp["b"]
            i = jax.nn.sigmoid(g[:, 0:H]); f = jax.nn.sigmoid(g[:, H:2 * H])
            gg = jnp.tanh(g[:, 2 * H:3 * H]); o = jax.nn.sigmoid(g[:, 3 * H:4 * H])
            c = f * c + i * gg
            h = o * jnp.tanh(c)
            outs.append(h)
        x = jnp.stack(outs, axis=1)
        hT_list.append(h); cT_list.append(c)
    lstm_out = x.reshape(B * S, -1)
    sig = jax.nn.sigmoid(lstm_out @ params["fc_w"].T + params["fc_b"]).reshape(B, -1)
    return sig[:, -1], (jnp.stack(hT_list), jnp.stack(cT_list))


if __name__ == "__main__":
    # Small shapes consistent with the module (scaled down from 400/256),
    # chosen 128-lane aligned so gate slices / stores are vreg-dense.
    vocab_size, output_size = 50, 1
    embedding_dim, hidden_dim, n_layers = 128, 128, 2
    batch, seq = 2, 8

    key = jax.random.PRNGKey(0)
    kp, kx = jax.random.split(key)
    params = init_params(kp, vocab_size, embedding_dim, hidden_dim, n_layers, output_size)

    tokens = jax.random.randint(kx, (batch, seq), 0, vocab_size, dtype=jnp.int32)
    hidden = (jnp.zeros((n_layers, batch, hidden_dim), jnp.float32),
              jnp.zeros((n_layers, batch, hidden_dim), jnp.float32))

    fwd = jax.jit(sentiment_rnn_forward)
    sig_out, hidden_out = fwd(tokens, hidden, params)
    jax.block_until_ready((sig_out, hidden_out))

    # Sanity check against pure-f32 JAX reference (kernel uses bf16 MXU operands and a bf16
    # inter-layer sequence, f32 accumulation/elementwise -> loosened tolerance).
    ref_sig, (ref_h, ref_c) = reference_forward(tokens, hidden, params)
    assert jnp.allclose(sig_out, ref_sig, atol=2e-2), "sig_out mismatch"
    assert jnp.allclose(hidden_out[0], ref_h, atol=2e-2), "h_n mismatch"
    assert jnp.allclose(hidden_out[1], ref_c, atol=2e-2), "c_n mismatch"

    print("KERNEL_OK")
</pallas_src>

<mosaic_0001>
module attributes {stable_mosaic.version = 11 : i64} {
  func.func @kernel(%arg0: i32, %arg1: i32, %arg2: memref<8x8x128xbf16, #tpu.memory_space<vmem>>, %arg3: memref<8x128xf32, #tpu.memory_space<vmem>>, %arg4: memref<8x128xf32, #tpu.memory_space<vmem>>, %arg5: memref<128x512xbf16, #tpu.memory_space<vmem>>, %arg6: memref<128x512xbf16, #tpu.memory_space<vmem>>, %arg7: memref<1x512xf32, #tpu.memory_space<vmem>>, %arg8: memref<1x128xf32, #tpu.memory_space<vmem>>, %arg9: memref<1x1xf32, #tpu.memory_space<vmem>>, %arg10: memref<8x128xf32, #tpu.memory_space<vmem>>, %arg11: memref<8x128xf32, #tpu.memory_space<vmem>>, %arg12: memref<8x1xf32, #tpu.memory_space<vmem>>, %arg13: memref<8x128xf32, #tpu.memory_space<vmem>>, %arg14: memref<8x128xf32, #tpu.memory_space<vmem>>, %arg15: memref<8x8x512xf32, #tpu.memory_space<vmem>>) attributes {dimension_semantics = [#tpu.dimension_semantics<parallel>, #tpu.dimension_semantics<arbitrary>], iteration_bounds = array<i64: 2, 1>, scalar_prefetch = 0 : i64, scratch_operands = 3 : i64, tpu.core_type = #tpu.core_type<tc>, window_params = [{transform_indices = @transform_0, window_bounds = array<i64: 8, 8, 128>}, {transform_indices = @transform_1, window_bounds = array<i64: 8, 128>}, {transform_indices = @transform_2, window_bounds = array<i64: 8, 128>}, {pipeline_mode = #tpu.pipeline_mode<synchronous>, transform_indices = @transform_3, window_bounds = array<i64: 128, 512>}, {pipeline_mode = #tpu.pipeline_mode<synchronous>, transform_indices = @transform_4, window_bounds = array<i64: 128, 512>}, {pipeline_mode = #tpu.pipeline_mode<synchronous>, transform_indices = @transform_5, window_bounds = array<i64: 1, 512>}, {pipeline_mode = #tpu.pipeline_mode<synchronous>, transform_indices = @transform_6, window_bounds = array<i64: 1, 128>}, {pipeline_mode = #tpu.pipeline_mode<synchronous>, transform_indices = @transform_7, window_bounds = array<i64: 1, 1>}, {transform_indices = @transform_8, window_bounds = array<i64: 8, 128>}, {transform_indices = @transform_9, window_bounds = array<i64: 8, 128>}, {transform_indices = @transform_10, window_bounds = array<i64: 8, 1>}]} {
    %c0_i32 = arith.constant 0 : i32
    %0 = arith.cmpi eq, %arg1, %c0_i32 : i32
    %1 = arith.extui %0 : i1 to i32
    %c0_i32_0 = arith.constant 0 : i32
    %2 = arith.cmpi ne, %1, %c0_i32_0 : i32
    scf.if %2 {
      %c0_85 = arith.constant 0 : index
      %c0_86 = arith.constant 0 : index
      %275 = vector.load %arg3[%c0_85, %c0_86] : memref<8x128xf32, #tpu.memory_space<vmem>>, vector<8x128xf32>
      %c0_87 = arith.constant 0 : index
      %c0_88 = arith.constant 0 : index
      %276 = vector.load %arg13[%c0_87, %c0_88] : memref<8x128xf32, #tpu.memory_space<vmem>>, vector<8x128xf32>
      tpu.vector_store %arg13[%c0_87, %c0_88], %275 {strides = array<i32>} : memref<8x128xf32, #tpu.memory_space<vmem>>, vector<8x128xf32>,
      %c0_89 = arith.constant 0 : index
      %c0_90 = arith.constant 0 : index
      %277 = vector.load %arg4[%c0_89, %c0_90] : memref<8x128xf32, #tpu.memory_space<vmem>>, vector<8x128xf32>
      %c0_91 = arith.constant 0 : index
      %c0_92 = arith.constant 0 : index
      %278 = vector.load %arg14[%c0_91, %c0_92] : memref<8x128xf32, #tpu.memory_space<vmem>>, vector<8x128xf32>
      tpu.vector_store %arg14[%c0_91, %c0_92], %277 {strides = array<i32>} : memref<8x128xf32, #tpu.memory_space<vmem>>, vector<8x128xf32>,
    } else {
    }
    %c0 = arith.constant 0 : index
    %c0_1 = arith.constant 0 : index
    %c0_2 = arith.constant 0 : index
    %3 = vector.load %arg2[%c0, %c0_1, %c0_2] : memref<8x8x128xbf16, #tpu.memory_space<vmem>>, vector<8x8x128xbf16>
    %4 = vector.shape_cast %3 : vector<8x8x128xbf16> to vector<64x128xbf16>
    %c0_3 = arith.constant 0 : index
    %c0_4 = arith.constant 0 : index
    %5 = vector.load %arg5[%c0_3, %c0_4] : memref<128x512xbf16, #tpu.memory_space<vmem>>, vector<128x512xbf16>
    %cst = arith.constant dense<0.000000e+00> : vector<64x512xf32>
    %6 = tpu.matmul %4, %5, %cst {dimension_numbers = #tpu.dot_dimension_numbers<[1], [0], [0], [1], [0, 0, 1, 1], [], []>} : vector<64x128xbf16>, vector<128x512xbf16>, vector<64x512xf32> -> vector<64x512xf32>
    %c0_5 = arith.constant 0 : index
    %c0_6 = arith.constant 0 : index
    %7 = vector.load %arg7[%c0_5, %c0_6] : memref<1x512xf32, #tpu.memory_space<vmem>>, vector<1x512xf32>
    %8 = vector.broadcast %7 : vector<1x512xf32> to vector<64x512xf32>
    %9 = arith.addf %6, %8 : vector<64x512xf32>
    %10 = vector.shape_cast %9 : vector<64x512xf32> to vector<8x8x512xf32>
    %c0_7 = arith.constant 0 : index
    %c0_8 = arith.constant 0 : index
    %c0_9 = arith.constant 0 : index
    %11 = vector.load %arg15[%c0_7, %c0_8, %c0_9] : memref<8x8x512xf32, #tpu.memory_space<vmem>>, vector<8x8x512xf32>
    tpu.vector_store %arg15[%c0_7, %c0_8, %c0_9], %10 {strides = array<i32>} : memref<8x8x512xf32, #tpu.memory_space<vmem>>, vector<8x8x512xf32>,
    %c0_10 = arith.constant 0 : index
    %c0_11 = arith.constant 0 : index
    %12 = vector.load %arg13[%c0_10, %c0_11] : memref<8x128xf32, #tpu.memory_space<vmem>>, vector<8x128xf32>
    %c0_12 = arith.constant 0 : index
    %c0_13 = arith.constant 0 : index
    %13 = vector.load %arg14[%c0_12, %c0_13] : memref<8x128xf32, #tpu.memory_space<vmem>>, vector<8x128xf32>
    %c0_i32_14 = arith.constant 0 : i32
    %14 = arith.index_cast %c0_i32_14 : i32 to index
    %c0_15 = arith.constant 0 : index
    %c0_16 = arith.constant 0 : index
    %15 = vector.load %arg15[%14, %c0_15, %c0_16] : memref<8x8x512xf32, #tpu.memory_space<vmem>>, vector<1x8x512xf32>
    %16 = vector.shape_cast %15 : vector<1x8x512xf32> to vector<8x512xf32>
    %17 = arith.truncf %12 : vector<8x128xf32> to vector<8x128xbf16>
    %c0_17 = arith.constant 0 : index
    %c0_18 = arith.constant 0 : index
    %18 = vector.load %arg6[%c0_17, %c0_18] : memref<128x512xbf16, #tpu.memory_space<vmem>>, vector<128x512xbf16>
    %cst_19 = arith.constant dense<0.000000e+00> : vector<8x512xf32>
    %19 = tpu.matmul %17, %18, %cst_19 {dimension_numbers = #tpu.dot_dimension_numbers<[1], [0], [0], [1], [0, 0, 1, 1], [], []>} : vector<8x128xbf16>, vector<128x512xbf16>, vector<8x512xf32> -> vector<8x512xf32>
    %20 = arith.addf %16, %19 : vector<8x512xf32>
    %21 = vector.extract_strided_slice %20 {offsets = [0, 0], sizes = [8, 128], strides = [1, 1]} : vector<8x512xf32> to vector<8x128xf32>
    %22 = arith.negf %21 : vector<8x128xf32>
    %23 = math.exp %22 : vector<8x128xf32>
    %cst_20 = arith.constant 1.000000e+00 : f32
    %24 = vector.broadcast %cst_20 : f32 to vector<8x128xf32>
    %25 = arith.addf %24, %23 : vector<8x128xf32>
    %26 = arith.divf %24, %25 : vector<8x128xf32>
    %27 = vector.extract_strided_slice %20 {offsets = [0, 128], sizes = [8, 128], strides = [1, 1]} : vector<8x512xf32> to vector<8x128xf32>
    %28 = arith.negf %27 : vector<8x128xf32>
    %29 = math.exp %28 : vector<8x128xf32>
    %cst_21 = arith.constant 1.000000e+00 : f32
    %30 = vector.broadcast %cst_21 : f32 to vector<8x128xf32>
    %31 = arith.addf %30, %29 : vector<8x128xf32>
    %32 = arith.divf %30, %31 : vector<8x128xf32>
    %33 = vector.extract_strided_slice %20 {offsets = [0, 256], sizes = [8, 128], strides = [1, 1]} : vector<8x512xf32> to vector<8x128xf32>
    %34 = math.tanh %33 : vector<8x128xf32>
    %35 = vector.extract_strided_slice %20 {offsets = [0, 384], sizes = [8, 128], strides = [1, 1]} : vector<8x512xf32> to vector<8x128xf32>
    %36 = arith.negf %35 : vector<8x128xf32>
    %37 = math.exp %36 : vector<8x128xf32>
    %cst_22 = arith.constant 1.000000e+00 : f32
    %38 = vector.broadcast %cst_22 : f32 to vector<8x128xf32>
    %39 = arith.addf %38, %37 : vector<8x128xf32>
    %40 = arith.divf %38, %39 : vector<8x128xf32>
    %41 = arith.mulf %32, %13 : vector<8x128xf32>
    %42 = arith.mulf %26, %34 : vector<8x128xf32>
    %43 = arith.addf %41, %42 : vector<8x128xf32>
    %44 = math.tanh %43 : vector<8x128xf32>
    %45 = arith.mulf %40, %44 : vector<8x128xf32>
    %c1_i32 = arith.constant 1 : i32
    %46 = arith.index_cast %c1_i32 : i32 to index
    %c0_23 = arith.constant 0 : index
    %c0_24 = arith.constant 0 : index
    %47 = vector.load %arg15[%46, %c0_23, %c0_24] : memref<8x8x512xf32, #tpu.memory_space<vmem>>, vector<1x8x512xf32>
    %48 = vector.shape_cast %47 : vector<1x8x512xf32> to vector<8x512xf32>
    %49 = arith.truncf %45 : vector<8x128xf32> to vector<8x128xbf16>
    %c0_25 = arith.constant 0 : index
    %c0_26 = arith.constant 0 : index
    %50 = vector.load %arg6[%c0_25, %c0_26] : memref<128x512xbf16, #tpu.memory_space<vmem>>, vector<128x512xbf16>
    %cst_27 = arith.constant dense<0.000000e+00> : vector<8x512xf32>
    %51 = tpu.matmul %49, %50, %cst_27 {dimension_numbers = #tpu.dot_dimension_numbers<[1], [0], [0], [1], [0, 0, 1, 1], [], []>} : vector<8x128xbf16>, vector<128x512xbf16>, vector<8x512xf32> -> vector<8x512xf32>
    %52 = arith.addf %48, %51 : vector<8x512xf32>
    %53 = vector.extract_strided_slice %52 {offsets = [0, 0], sizes = [8, 128], strides = [1, 1]} : vector<8x512xf32> to vector<8x128xf32>
    %54 = arith.negf %53 : vector<8x128xf32>
    %55 = math.exp %54 : vector<8x128xf32>
    %cst_28 = arith.constant 1.000000e+00 : f32
    %56 = vector.broadcast %cst_28 : f32 to vector<8x128xf32>
    %57 = arith.addf %56, %55 : vector<8x128xf32>
    %58 = arith.divf %56, %57 : vector<8x128xf32>
    %59 = vector.extract_strided_slice %52 {offsets = [0, 128], sizes = [8, 128], strides = [1, 1]} : vector<8x512xf32> to vector<8x128xf32>
    %60 = arith.negf %59 : vector<8x128xf32>
    %61 = math.exp %60 : vector<8x128xf32>
    %cst_29 = arith.constant 1.000000e+00 : f32
    %62 = vector.broadcast %cst_29 : f32 to vector<8x128xf32>
    %63 = arith.addf %62, %61 : vector<8x128xf32>
    %64 = arith.divf %62, %63 : vector<8x128xf32>
    %65 = vector.extract_strided_slice %52 {offsets = [0, 256], sizes = [8, 128], strides = [1, 1]} : vector<8x512xf32> to vector<8x128xf32>
    %66 = math.tanh %65 : vector<8x128xf32>
    %67 = vector.extract_strided_slice %52 {offsets = [0, 384], sizes = [8, 128], strides = [1, 1]} : vector<8x512xf32> to vector<8x128xf32>
    %68 = arith.negf %67 : vector<8x128xf32>
    %69 = math.exp %68 : vector<8x128xf32>
    %cst_30 = arith.constant 1.000000e+00 : f32
    %70 = vector.broadcast %cst_30 : f32 to vector<8x128xf32>
    %71 = arith.addf %70, %69 : vector<8x128xf32>
    %72 = arith.divf %70, %71 : vector<8x128xf32>
    %73 = arith.mulf %64, %43 : vector<8x128xf32>
    %74 = arith.mulf %58, %66 : vector<8x128xf32>
    %75 = arith.addf %73, %74 : vector<8x128xf32>
    %76 = math.tanh %75 : vector<8x128xf32>
    %77 = arith.mulf %72, %76 : vector<8x128xf32>
    %c2_i32 = arith.constant 2 : i32
    %78 = arith.index_cast %c2_i32 : i32 to index
    %c0_31 = arith.constant 0 : index
    %c0_32 = arith.constant 0 : index
    %79 = vector.load %arg15[%78, %c0_31, %c0_32] : memref<8x8x512xf32, #tpu.memory_space<vmem>>, vector<1x8x512xf32>
    %80 = vector.shape_cast %79 : vector<1x8x512xf32> to vector<8x512xf32>
    %81 = arith.truncf %77 : vector<8x128xf32> to vector<8x128xbf16>
    %c0_33 = arith.constant 0 : index
    %c0_34 = arith.constant 0 : index
    %82 = vector.load %arg6[%c0_33, %c0_34] : memref<128x512xbf16, #tpu.memory_space<vmem>>, vector<128x512xbf16>
    %cst_35 = arith.constant dense<0.000000e+00> : vector<8x512xf32>
    %83 = tpu.matmul %81, %82, %cst_35 {dimension_numbers = #tpu.dot_dimension_numbers<[1], [0], [0], [1], [0, 0, 1, 1], [], []>} : vector<8x128xbf16>, vector<128x512xbf16>, vector<8x512xf32> -> vector<8x512xf32>
    %84 = arith.addf %80, %83 : vector<8x512xf32>
    %85 = vector.extract_strided_slice %84 {offsets = [0, 0], sizes = [8, 128], strides = [1, 1]} : vector<8x512xf32> to vector<8x128xf32>
    %86 = arith.negf %85 : vector<8x128xf32>
    %87 = math.exp %86 : vector<8x128xf32>
    %cst_36 = arith.constant 1.000000e+00 : f32
    %88 = vector.broadcast %cst_36 : f32 to vector<8x128xf32>
    %89 = arith.addf %88, %87 : vector<8x128xf32>
    %90 = arith.divf %88, %89 : vector<8x128xf32>
    %91 = vector.extract_strided_slice %84 {offsets = [0, 128], sizes = [8, 128], strides = [1, 1]} : vector<8x512xf32> to vector<8x128xf32>
    %92 = arith.negf %91 : vector<8x128xf32>
    %93 = math.exp %92 : vector<8x128xf32>
    %cst_37 = arith.constant 1.000000e+00 : f32
    %94 = vector.broadcast %cst_37 : f32 to vector<8x128xf32>
    %95 = arith.addf %94, %93 : vector<8x128xf32>
    %96 = arith.divf %94, %95 : vector<8x128xf32>
    %97 = vector.extract_strided_slice %84 {offsets = [0, 256], sizes = [8, 128], strides = [1, 1]} : vector<8x512xf32> to vector<8x128xf32>
    %98 = math.tanh %97 : vector<8x128xf32>
    %99 = vector.extract_strided_slice %84 {offsets = [0, 384], sizes = [8, 128], strides = [1, 1]} : vector<8x512xf32> to vector<8x128xf32>
    %100 = arith.negf %99 : vector<8x128xf32>
    %101 = math.exp %100 : vector<8x128xf32>
    %cst_38 = arith.constant 1.000000e+00 : f32
    %102 = vector.broadcast %cst_38 : f32 to vector<8x128xf32>
    %103 = arith.addf %102, %101 : vector<8x128xf32>
    %104 = arith.divf %102, %103 : vector<8x128xf32>
    %105 = arith.mulf %96, %75 : vector<8x128xf32>
    %106 = arith.mulf %90, %98 : vector<8x128xf32>
    %107 = arith.addf %105, %106 : vector<8x128xf32>
    %108 = math.tanh %107 : vector<8x128xf32>
    %109 = arith.mulf %104, %108 : vector<8x128xf32>
    %c3_i32 = arith.constant 3 : i32
    %110 = arith.index_cast %c3_i32 : i32 to index
    %c0_39 = arith.constant 0 : index
    %c0_40 = arith.constant 0 : index
    %111 = vector.load %arg15[%110, %c0_39, %c0_40] : memref<8x8x512xf32, #tpu.memory_space<vmem>>, vector<1x8x512xf32>
    %112 = vector.shape_cast %111 : vector<1x8x512xf32> to vector<8x512xf32>
    %113 = arith.truncf %109 : vector<8x128xf32> to vector<8x128xbf16>
    %c0_41 = arith.constant 0 : index
    %c0_42 = arith.constant 0 : index
    %114 = vector.load %arg6[%c0_41, %c0_42] : memref<128x512xbf16, #tpu.memory_space<vmem>>, vector<128x512xbf16>
    %cst_43 = arith.constant dense<0.000000e+00> : vector<8x512xf32>
    %115 = tpu.matmul %113, %114, %cst_43 {dimension_numbers = #tpu.dot_dimension_numbers<[1], [0], [0], [1], [0, 0, 1, 1], [], []>} : vector<8x128xbf16>, vector<128x512xbf16>, vector<8x512xf32> -> vector<8x512xf32>
    %116 = arith.addf %112, %115 : vector<8x512xf32>
    %117 = vector.extract_strided_slice %116 {offsets = [0, 0], sizes = [8, 128], strides = [1, 1]} : vector<8x512xf32> to vector<8x128xf32>
    %118 = arith.negf %117 : vector<8x128xf32>
    %119 = math.exp %118 : vector<8x128xf32>
    %cst_44 = arith.constant 1.000000e+00 : f32
    %120 = vector.broadcast %cst_44 : f32 to vector<8x128xf32>
    %121 = arith.addf %120, %119 : vector<8x128xf32>
    %122 = arith.divf %120, %121 : vector<8x128xf32>
    %123 = vector.extract_strided_slice %116 {offsets = [0, 128], sizes = [8, 128], strides = [1, 1]} : vector<8x512xf32> to vector<8x128xf32>
    %124 = arith.negf %123 : vector<8x128xf32>
    %125 = math.exp %124 : vector<8x128xf32>
    %cst_45 = arith.constant 1.000000e+00 : f32
    %126 = vector.broadcast %cst_45 : f32 to vector<8x128xf32>
    %127 = arith.addf %126, %125 : vector<8x128xf32>
    %128 = arith.divf %126, %127 : vector<8x128xf32>
    %129 = vector.extract_strided_slice %116 {offsets = [0, 256], sizes = [8, 128], strides = [1, 1]} : vector<8x512xf32> to vector<8x128xf32>
    %130 = math.tanh %129 : vector<8x128xf32>
    %131 = vector.extract_strided_slice %116 {offsets = [0, 384], sizes = [8, 128], strides = [1, 1]} : vector<8x512xf32> to vector<8x128xf32>
    %132 = arith.negf %131 : vector<8x128xf32>
    %133 = math.exp %132 : vector<8x128xf32>
    %cst_46 = arith.constant 1.000000e+00 : f32
    %134 = vector.broadcast %cst_46 : f32 to vector<8x128xf32>
    %135 = arith.addf %134, %133 : vector<8x128xf32>
    %136 = arith.divf %134, %135 : vector<8x128xf32>
    %137 = arith.mulf %128, %107 : vector<8x128xf32>
    %138 = arith.mulf %122, %130 : vector<8x128xf32>
    %139 = arith.addf %137, %138 : vector<8x128xf32>
    %140 = math.tanh %139 : vector<8x128xf32>
    %141 = arith.mulf %136, %140 : vector<8x128xf32>
    %c4_i32 = arith.constant 4 : i32
    %142 = arith.index_cast %c4_i32 : i32 to index
    %c0_47 = arith.constant 0 : index
    %c0_48 = arith.constant 0 : index
    %143 = vector.load %arg15[%142, %c0_47, %c0_48] : memref<8x8x512xf32, #tpu.memory_space<vmem>>, vector<1x8x512xf32>
    %144 = vector.shape_cast %143 : vector<1x8x512xf32> to vector<8x512xf32>
    %145 = arith.truncf %141 : vector<8x128xf32> to vector<8x128xbf16>
    %c0_49 = arith.constant 0 : index
    %c0_50 = arith.constant 0 : index
    %146 = vector.load %arg6[%c0_49, %c0_50] : memref<128x512xbf16, #tpu.memory_space<vmem>>, vector<128x512xbf16>
    %cst_51 = arith.constant dense<0.000000e+00> : vector<8x512xf32>
    %147 = tpu.matmul %145, %146, %cst_51 {dimension_numbers = #tpu.dot_dimension_numbers<[1], [0], [0], [1], [0, 0, 1, 1], [], []>} : vector<8x128xbf16>, vector<128x512xbf16>, vector<8x512xf32> -> vector<8x512xf32>
    %148 = arith.addf %144, %147 : vector<8x512xf32>
    %149 = vector.extract_strided_slice %148 {offsets = [0, 0], sizes = [8, 128], strides = [1, 1]} : vector<8x512xf32> to vector<8x128xf32>
    %150 = arith.negf %149 : vector<8x128xf32>
    %151 = math.exp %150 : vector<8x128xf32>
    %cst_52 = arith.constant 1.000000e+00 : f32
    %152 = vector.broadcast %cst_52 : f32 to vector<8x128xf32>
    %153 = arith.addf %152, %151 : vector<8x128xf32>
    %154 = arith.divf %152, %153 : vector<8x128xf32>
    %155 = vector.extract_strided_slice %148 {offsets = [0, 128], sizes = [8, 128], strides = [1, 1]} : vector<8x512xf32> to vector<8x128xf32>
    %156 = arith.negf %155 : vector<8x128xf32>
    %157 = math.exp %156 : vector<8x128xf32>
    %cst_53 = arith.constant 1.000000e+00 : f32
    %158 = vector.broadcast %cst_53 : f32 to vector<8x128xf32>
    %159 = arith.addf %158, %157 : vector<8x128xf32>
    %160 = arith.divf %158, %159 : vector<8x128xf32>
    %161 = vector.extract_strided_slice %148 {offsets = [0, 256], sizes = [8, 128], strides = [1, 1]} : vector<8x512xf32> to vector<8x128xf32>
    %162 = math.tanh %161 : vector<8x128xf32>
    %163 = vector.extract_strided_slice %148 {offsets = [0, 384], sizes = [8, 128], strides = [1, 1]} : vector<8x512xf32> to vector<8x128xf32>
    %164 = arith.negf %163 : vector<8x128xf32>
    %165 = math.exp %164 : vector<8x128xf32>
    %cst_54 = arith.constant 1.000000e+00 : f32
    %166 = vector.broadcast %cst_54 : f32 to vector<8x128xf32>
    %167 = arith.addf %166, %165 : vector<8x128xf32>
    %168 = arith.divf %166, %167 : vector<8x128xf32>
    %169 = arith.mulf %160, %139 : vector<8x128xf32>
    %170 = arith.mulf %154, %162 : vector<8x128xf32>
    %171 = arith.addf %169, %170 : vector<8x128xf32>
    %172 = math.tanh %171 : vector<8x128xf32>
    %173 = arith.mulf %168, %172 : vector<8x128xf32>
    %c5_i32 = arith.constant 5 : i32
    %174 = arith.index_cast %c5_i32 : i32 to index
    %c0_55 = arith.constant 0 : index
    %c0_56 = arith.constant 0 : index
    %175 = vector.load %arg15[%174, %c0_55, %c0_56] : memref<8x8x512xf32, #tpu.memory_space<vmem>>, vector<1x8x512xf32>
    %176 = vector.shape_cast %175 : vector<1x8x512xf32> to vector<8x512xf32>
    %177 = arith.truncf %173 : vector<8x128xf32> to vector<8x128xbf16>
    %c0_57 = arith.constant 0 : index
    %c0_58 = arith.constant 0 : index
    %178 = vector.load %arg6[%c0_57, %c0_58] : memref<128x512xbf16, #tpu.memory_space<vmem>>, vector<128x512xbf16>
    %cst_59 = arith.constant dense<0.000000e+00> : vector<8x512xf32>
    %179 = tpu.matmul %177, %178, %cst_59 {dimension_numbers = #tpu.dot_dimension_numbers<[1], [0], [0], [1], [0, 0, 1, 1], [], []>} : vector<8x128xbf16>, vector<128x512xbf16>, vector<8x512xf32> -> vector<8x512xf32>
    %180 = arith.addf %176, %179 : vector<8x512xf32>
    %181 = vector.extract_strided_slice %180 {offsets = [0, 0], sizes = [8, 128], strides = [1, 1]} : vector<8x512xf32> to vector<8x128xf32>
    %182 = arith.negf %181 : vector<8x128xf32>
    %183 = math.exp %182 : vector<8x128xf32>
    %cst_60 = arith.constant 1.000000e+00 : f32
    %184 = vector.broadcast %cst_60 : f32 to vector<8x128xf32>
    %185 = arith.addf %184, %183 : vector<8x128xf32>
    %186 = arith.divf %184, %185 : vector<8x128xf32>
    %187 = vector.extract_strided_slice %180 {offsets = [0, 128], sizes = [8, 128], strides = [1, 1]} : vector<8x512xf32> to vector<8x128xf32>
    %188 = arith.negf %187 : vector<8x128xf32>
    %189 = math.exp %188 : vector<8x128xf32>
    %cst_61 = arith.constant 1.000000e+00 : f32
    %190 = vector.broadcast %cst_61 : f32 to vector<8x128xf32>
    %191 = arith.addf %190, %189 : vector<8x128xf32>
    %192 = arith.divf %190, %191 : vector<8x128xf32>
    %193 = vector.extract_strided_slice %180 {offsets = [0, 256], sizes = [8, 128], strides = [1, 1]} : vector<8x512xf32> to vector<8x128xf32>
    %194 = math.tanh %193 : vector<8x128xf32>
    %195 = vector.extract_strided_slice %180 {offsets = [0, 384], sizes = [8, 128], strides = [1, 1]} : vector<8x512xf32> to vector<8x128xf32>
    %196 = arith.negf %195 : vector<8x128xf32>
    %197 = math.exp %196 : vector<8x128xf32>
    %cst_62 = arith.constant 1.000000e+00 : f32
    %198 = vector.broadcast %cst_62 : f32 to vector<8x128xf32>
    %199 = arith.addf %198, %197 : vector<8x128xf32>
    %200 = arith.divf %198, %199 : vector<8x128xf32>
    %201 = arith.mulf %192, %171 : vector<8x128xf32>
    %202 = arith.mulf %186, %194 : vector<8x128xf32>
    %203 = arith.addf %201, %202 : vector<8x128xf32>
    %204 = math.tanh %203 : vector<8x128xf32>
    %205 = arith.mulf %200, %204 : vector<8x128xf32>
    %c6_i32 = arith.constant 6 : i32
    %206 = arith.index_cast %c6_i32 : i32 to index
    %c0_63 = arith.constant 0 : index
    %c0_64 = arith.constant 0 : index
    %207 = vector.load %arg15[%206, %c0_63, %c0_64] : memref<8x8x512xf32, #tpu.memory_space<vmem>>, vector<1x8x512xf32>
    %208 = vector.shape_cast %207 : vector<1x8x512xf32> to vector<8x512xf32>
    %209 = arith.truncf %205 : vector<8x128xf32> to vector<8x128xbf16>
    %c0_65 = arith.constant 0 : index
    %c0_66 = arith.constant 0 : index
    %210 = vector.load %arg6[%c0_65, %c0_66] : memref<128x512xbf16, #tpu.memory_space<vmem>>, vector<128x512xbf16>
    %cst_67 = arith.constant dense<0.000000e+00> : vector<8x512xf32>
    %211 = tpu.matmul %209, %210, %cst_67 {dimension_numbers = #tpu.dot_dimension_numbers<[1], [0], [0], [1], [0, 0, 1, 1], [], []>} : vector<8x128xbf16>, vector<128x512xbf16>, vector<8x512xf32> -> vector<8x512xf32>
    %212 = arith.addf %208, %211 : vector<8x512xf32>
    %213 = vector.extract_strided_slice %212 {offsets = [0, 0], sizes = [8, 128], strides = [1, 1]} : vector<8x512xf32> to vector<8x128xf32>
    %214 = arith.negf %213 : vector<8x128xf32>
    %215 = math.exp %214 : vector<8x128xf32>
    %cst_68 = arith.constant 1.000000e+00 : f32
    %216 = vector.broadcast %cst_68 : f32 to vector<8x128xf32>
    %217 = arith.addf %216, %215 : vector<8x128xf32>
    %218 = arith.divf %216, %217 : vector<8x128xf32>
    %219 = vector.extract_strided_slice %212 {offsets = [0, 128], sizes = [8, 128], strides = [1, 1]} : vector<8x512xf32> to vector<8x128xf32>
    %220 = arith.negf %219 : vector<8x128xf32>
    %221 = math.exp %220 : vector<8x128xf32>
    %cst_69 = arith.constant 1.000000e+00 : f32
    %222 = vector.broadcast %cst_69 : f32 to vector<8x128xf32>
    %223 = arith.addf %222, %221 : vector<8x128xf32>
    %224 = arith.divf %222, %223 : vector<8x128xf32>
    %225 = vector.extract_strided_slice %212 {offsets = [0, 256], sizes = [8, 128], strides = [1, 1]} : vector<8x512xf32> to vector<8x128xf32>
    %226 = math.tanh %225 : vector<8x128xf32>
    %227 = vector.extract_strided_slice %212 {offsets = [0, 384], sizes = [8, 128], strides = [1, 1]} : vector<8x512xf32> to vector<8x128xf32>
    %228 = arith.negf %227 : vector<8x128xf32>
    %229 = math.exp %228 : vector<8x128xf32>
    %cst_70 = arith.constant 1.000000e+00 : f32
    %230 = vector.broadcast %cst_70 : f32 to vector<8x128xf32>
    %231 = arith.addf %230, %229 : vector<8x128xf32>
    %232 = arith.divf %230, %231 : vector<8x128xf32>
    %233 = arith.mulf %224, %203 : vector<8x128xf32>
    %234 = arith.mulf %218, %226 : vector<8x128xf32>
    %235 = arith.addf %233, %234 : vector<8x128xf32>
    %236 = math.tanh %235 : vector<8x128xf32>
    %237 = arith.mulf %232, %236 : vector<8x128xf32>
    %c7_i32 = arith.constant 7 : i32
    %238 = arith.index_cast %c7_i32 : i32 to index
    %c0_71 = arith.constant 0 : index
    %c0_72 = arith.constant 0 : index
    %239 = vector.load %arg15[%238, %c0_71, %c0_72] : memref<8x8x512xf32, #tpu.memory_space<vmem>>, vector<1x8x512xf32>
    %240 = vector.shape_cast %239 : vector<1x8x512xf32> to vector<8x512xf32>
    %241 = arith.truncf %237 : vector<8x128xf32> to vector<8x128xbf16>
    %c0_73 = arith.constant 0 : index
    %c0_74 = arith.constant 0 : index
    %242 = vector.load %arg6[%c0_73, %c0_74] : memref<128x512xbf16, #tpu.memory_space<vmem>>, vector<128x512xbf16>
    %cst_75 = arith.constant dense<0.000000e+00> : vector<8x512xf32>
    %243 = tpu.matmul %241, %242, %cst_75 {dimension_numbers = #tpu.dot_dimension_numbers<[1], [0], [0], [1], [0, 0, 1, 1], [], []>} : vector<8x128xbf16>, vector<128x512xbf16>, vector<8x512xf32> -> vector<8x512xf32>
    %244 = arith.addf %240, %243 : vector<8x512xf32>
    %245 = vector.extract_strided_slice %244 {offsets = [0, 0], sizes = [8, 128], strides = [1, 1]} : vector<8x512xf32> to vector<8x128xf32>
    %246 = arith.negf %245 : vector<8x128xf32>
    %247 = math.exp %246 : vector<8x128xf32>
    %cst_76 = arith.constant 1.000000e+00 : f32
    %248 = vector.broadcast %cst_76 : f32 to vector<8x128xf32>
    %249 = arith.addf %248, %247 : vector<8x128xf32>
    %250 = arith.divf %248, %249 : vector<8x128xf32>
    %251 = vector.extract_strided_slice %244 {offsets = [0, 128], sizes = [8, 128], strides = [1, 1]} : vector<8x512xf32> to vector<8x128xf32>
    %252 = arith.negf %251 : vector<8x128xf32>
    %253 = math.exp %252 : vector<8x128xf32>
    %cst_77 = arith.constant 1.000000e+00 : f32
    %254 = vector.broadcast %cst_77 : f32 to vector<8x128xf32>
    %255 = arith.addf %254, %253 : vector<8x128xf32>
    %256 = arith.divf %254, %255 : vector<8x128xf32>
    %257 = vector.extract_strided_slice %244 {offsets = [0, 256], sizes = [8, 128], strides = [1, 1]} : vector<8x512xf32> to vector<8x128xf32>
    %258 = math.tanh %257 : vector<8x128xf32>
    %259 = vector.extract_strided_slice %244 {offsets = [0, 384], sizes = [8, 128], strides = [1, 1]} : vector<8x512xf32> to vector<8x128xf32>
    %260 = arith.negf %259 : vector<8x128xf32>
    %261 = math.exp %260 : vector<8x128xf32>
    %cst_78 = arith.constant 1.000000e+00 : f32
    %262 = vector.broadcast %cst_78 : f32 to vector<8x128xf32>
    %263 = arith.addf %262, %261 : vector<8x128xf32>
    %264 = arith.divf %262, %263 : vector<8x128xf32>
    %265 = arith.mulf %256, %235 : vector<8x128xf32>
    %266 = arith.mulf %250, %258 : vector<8x128xf32>
    %267 = arith.addf %265, %266 : vector<8x128xf32>
    %268 = math.tanh %267 : vector<8x128xf32>
    %269 = arith.mulf %264, %268 : vector<8x128xf32>
    %c8_i32 = arith.constant 8 : i32
    %c0_79 = arith.constant 0 : index
    %c0_80 = arith.constant 0 : index
    %270 = vector.load %arg13[%c0_79, %c0_80] : memref<8x128xf32, #tpu.memory_space<vmem>>, vector<8x128xf32>
    tpu.vector_store %arg13[%c0_79, %c0_80], %269 {strides = array<i32>} : memref<8x128xf32, #tpu.memory_space<vmem>>, vector<8x128xf32>,
    %c0_81 = arith.constant 0 : index
    %c0_82 = arith.constant 0 : index
    %271 = vector.load %arg14[%c0_81, %c0_82] : memref<8x128xf32, #tpu.memory_space<vmem>>, vector<8x128xf32>
    tpu.vector_store %arg14[%c0_81, %c0_82], %267 {strides = array<i32>} : memref<8x128xf32, #tpu.memory_space<vmem>>, vector<8x128xf32>,
    %c0_i32_83 = arith.constant 0 : i32
    %272 = arith.cmpi eq, %arg1, %c0_i32_83 : i32
    %273 = arith.extui %272 : i1 to i32
    %c0_i32_84 = arith.constant 0 : i32
    %274 = arith.cmpi ne, %273, %c0_i32_84 : i32
    scf.if %274 {
      %c0_85 = arith.constant 0 : index
      %c0_86 = arith.constant 0 : index
      %275 = vector.load %arg10[%c0_85, %c0_86] : memref<8x128xf32, #tpu.memory_space<vmem>>, vector<8x128xf32>
      tpu.vector_store %arg10[%c0_85, %c0_86], %269 {strides = array<i32>} : memref<8x128xf32, #tpu.memory_space<vmem>>, vector<8x128xf32>,
      %c0_87 = arith.constant 0 : index
      %c0_88 = arith.constant 0 : index
      %276 = vector.load %arg11[%c0_87, %c0_88] : memref<8x128xf32, #tpu.memory_space<vmem>>, vector<8x128xf32>
      tpu.vector_store %arg11[%c0_87, %c0_88], %267 {strides = array<i32>} : memref<8x128xf32, #tpu.memory_space<vmem>>, vector<8x128xf32>,
      %c0_89 = arith.constant 0 : index
      %c0_90 = arith.constant 0 : index
      %277 = vector.load %arg8[%c0_89, %c0_90] : memref<1x128xf32, #tpu.memory_space<vmem>>, vector<1x128xf32>
      %278 = vector.broadcast %277 : vector<1x128xf32> to vector<8x128xf32>
      %279 = arith.mulf %269, %278 : vector<8x128xf32>
      %cst_91 = arith.constant dense<0.000000e+00> : vector<8xf32>
      %280 = vector.multi_reduction <add>, %279, %cst_91 [1] : vector<8x128xf32> to vector<8xf32>
      %281 = vector.shape_cast %280 : vector<8xf32> to vector<8x1xf32>
      %c0_92 = arith.constant 0 : index
      %c0_93 = arith.constant 0 : index
      %282 = vector.load %arg9[%c0_92, %c0_93] : memref<1x1xf32, #tpu.memory_space<vmem>>, vector<1x1xf32>
      %283 = vector.broadcast %282 : vector<1x1xf32> to vector<8x1xf32>
      %284 = arith.addf %281, %283 : vector<8x1xf32>
      %285 = arith.negf %284 : vector<8x1xf32>
      %286 = math.exp %285 : vector<8x1xf32>
      %cst_94 = arith.constant 1.000000e+00 : f32
      %287 = vector.broadcast %cst_94 : f32 to vector<8x1xf32>
      %288 = arith.addf %287, %286 : vector<8x1xf32>
      %289 = arith.divf %287, %288 : vector<8x1xf32>
      %c0_95 = arith.constant 0 : index
      %c0_96 = arith.constant 0 : index
      %290 = vector.load %arg12[%c0_95, %c0_96] : memref<8x1xf32, #tpu.memory_space<vmem>>, vector<8x1xf32>
      tpu.vector_store %arg12[%c0_95, %c0_96], %289 {strides = array<i32>} : memref<8x1xf32, #tpu.memory_space<vmem>>, vector<8x1xf32>,
    } else {
    }
    return
  }
  func.func @transform_0(%arg0: i32, %arg1: i32) -> (i32, i32, i32) {
    %c0_i32 = arith.constant 0 : i32
    %c0_i32_0 = arith.constant 0 : i32
    return %arg1, %arg0, %c0_i32 : i32, i32, i32
  }
  func.func @transform_1(%arg0: i32, %arg1: i32) -> (i32, i32) {
    %c0_i32 = arith.constant 0 : i32
    %c0_i32_0 = arith.constant 0 : i32
    return %arg0, %c0_i32 : i32, i32
  }
  func.func @transform_2(%arg0: i32, %arg1: i32) -> (i32, i32) {
    %c0_i32 = arith.constant 0 : i32
    %c0_i32_0 = arith.constant 0 : i32
    return %arg0, %c0_i32 : i32, i32
  }
  func.func @transform_3(%arg0: i32, %arg1: i32) -> (i32, i32) {
    %c0_i32 = arith.constant 0 : i32
    %c0_i32_0 = arith.constant 0 : i32
    %c0_i32_1 = arith.constant 0 : i32
    return %c0_i32, %c0_i32_0 : i32, i32
  }
  func.func @transform_4(%arg0: i32, %arg1: i32) -> (i32, i32) {
    %c0_i32 = arith.constant 0 : i32
    %c0_i32_0 = arith.constant 0 : i32
    %c0_i32_1 = arith.constant 0 : i32
    return %c0_i32, %c0_i32_0 : i32, i32
  }
  func.func @transform_5(%arg0: i32, %arg1: i32) -> (i32, i32) {
    %c0_i32 = arith.constant 0 : i32
    %c0_i32_0 = arith.constant 0 : i32
    %c0_i32_1 = arith.constant 0 : i32
    return %c0_i32, %c0_i32_0 : i32, i32
  }
  func.func @transform_6(%arg0: i32, %arg1: i32) -> (i32, i32) {
    %c0_i32 = arith.constant 0 : i32
    %c0_i32_0 = arith.constant 0 : i32
    %c0_i32_1 = arith.constant 0 : i32
    return %c0_i32, %c0_i32_0 : i32, i32
  }
  func.func @transform_7(%arg0: i32, %arg1: i32) -> (i32, i32) {
    %c0_i32 = arith.constant 0 : i32
    %c0_i32_0 = arith.constant 0 : i32
    %c0_i32_1 = arith.constant 0 : i32
    return %c0_i32, %c0_i32_0 : i32, i32
  }
  func.func @transform_8(%arg0: i32, %arg1: i32) -> (i32, i32) {
    %c0_i32 = arith.constant 0 : i32
    %c0_i32_0 = arith.constant 0 : i32
    return %arg0, %c0_i32 : i32, i32
  }
  func.func @transform_9(%arg0: i32, %arg1: i32) -> (i32, i32) {
    %c0_i32 = arith.constant 0 : i32
    %c0_i32_0 = arith.constant 0 : i32
    return %arg0, %c0_i32 : i32, i32
  }
  func.func @transform_10(%arg0: i32, %arg1: i32) -> (i32, i32) {
    %c0_i32 = arith.constant 0 : i32
    %c0_i32_0 = arith.constant 0 : i32
    return %arg0, %c0_i32 : i32, i32
  }
}

module attributes {stable_mosaic.version = 11 : i64} {
  func.func @kernel(%arg0: i32, %arg1: i32, %arg2: memref<8x8x128xbf16, #tpu.memory_space<vmem>>, %arg3: memref<8x128xf32, #tpu.memory_space<vmem>>, %arg4: memref<8x128xf32, #tpu.memory_space<vmem>>, %arg5: memref<128x512xbf16, #tpu.memory_space<vmem>>, %arg6: memref<128x512xbf16, #tpu.memory_space<vmem>>, %arg7: memref<1x512xf32, #tpu.memory_space<vmem>>, %arg8: memref<8x8x128xbf16, #tpu.memory_space<vmem>>, %arg9: memref<8x128xf32, #tpu.memory_space<vmem>>, %arg10: memref<8x128xf32, #tpu.memory_space<vmem>>, %arg11: memref<8x128xf32, #tpu.memory_space<vmem>>, %arg12: memref<8x128xf32, #tpu.memory_space<vmem>>, %arg13: memref<8x8x512xf32, #tpu.memory_space<vmem>>) attributes {dimension_semantics = [#tpu.dimension_semantics<parallel>, #tpu.dimension_semantics<arbitrary>], iteration_bounds = array<i64: 2, 1>, scalar_prefetch = 0 : i64, scratch_operands = 3 : i64, tpu.core_type = #tpu.core_type<tc>, window_params = [{transform_indices = @transform_0, window_bounds = array<i64: 8, 8, 128>}, {transform_indices = @transform_1, window_bounds = array<i64: 8, 128>}, {transform_indices = @transform_2, window_bounds = array<i64: 8, 128>}, {pipeline_mode = #tpu.pipeline_mode<synchronous>, transform_indices = @transform_3, window_bounds = array<i64: 128, 512>}, {pipeline_mode = #tpu.pipeline_mode<synchronous>, transform_indices = @transform_4, window_bounds = array<i64: 128, 512>}, {pipeline_mode = #tpu.pipeline_mode<synchronous>, transform_indices = @transform_5, window_bounds = array<i64: 1, 512>}, {transform_indices = @transform_6, window_bounds = array<i64: 8, 8, 128>}, {transform_indices = @transform_7, window_bounds = array<i64: 8, 128>}, {transform_indices = @transform_8, window_bounds = array<i64: 8, 128>}]} {
    %c0_i32 = arith.constant 0 : i32
    %0 = arith.cmpi eq, %arg1, %c0_i32 : i32
    %1 = arith.extui %0 : i1 to i32
    %c0_i32_0 = arith.constant 0 : i32
    %2 = arith.cmpi ne, %1, %c0_i32_0 : i32
    scf.if %2 {
      %c0_101 = arith.constant 0 : index
      %c0_102 = arith.constant 0 : index
      %315 = vector.load %arg3[%c0_101, %c0_102] : memref<8x128xf32, #tpu.memory_space<vmem>>, vector<8x128xf32>
      %c0_103 = arith.constant 0 : index
      %c0_104 = arith.constant 0 : index
      %316 = vector.load %arg11[%c0_103, %c0_104] : memref<8x128xf32, #tpu.memory_space<vmem>>, vector<8x128xf32>
      tpu.vector_store %arg11[%c0_103, %c0_104], %315 {strides = array<i32>} : memref<8x128xf32, #tpu.memory_space<vmem>>, vector<8x128xf32>,
      %c0_105 = arith.constant 0 : index
      %c0_106 = arith.constant 0 : index
      %317 = vector.load %arg4[%c0_105, %c0_106] : memref<8x128xf32, #tpu.memory_space<vmem>>, vector<8x128xf32>
      %c0_107 = arith.constant 0 : index
      %c0_108 = arith.constant 0 : index
      %318 = vector.load %arg12[%c0_107, %c0_108] : memref<8x128xf32, #tpu.memory_space<vmem>>, vector<8x128xf32>
      tpu.vector_store %arg12[%c0_107, %c0_108], %317 {strides = array<i32>} : memref<8x128xf32, #tpu.memory_space<vmem>>, vector<8x128xf32>,
    } else {
    }
    %c0 = arith.constant 0 : index
    %c0_1 = arith.constant 0 : index
    %c0_2 = arith.constant 0 : index
    %3 = vector.load %arg2[%c0, %c0_1, %c0_2] : memref<8x8x128xbf16, #tpu.memory_space<vmem>>, vector<8x8x128xbf16>
    %4 = vector.shape_cast %3 : vector<8x8x128xbf16> to vector<64x128xbf16>
    %c0_3 = arith.constant 0 : index
    %c0_4 = arith.constant 0 : index
    %5 = vector.load %arg5[%c0_3, %c0_4] : memref<128x512xbf16, #tpu.memory_space<vmem>>, vector<128x512xbf16>
    %cst = arith.constant dense<0.000000e+00> : vector<64x512xf32>
    %6 = tpu.matmul %4, %5, %cst {dimension_numbers = #tpu.dot_dimension_numbers<[1], [0], [0], [1], [0, 0, 1, 1], [], []>} : vector<64x128xbf16>, vector<128x512xbf16>, vector<64x512xf32> -> vector<64x512xf32>
    %c0_5 = arith.constant 0 : index
    %c0_6 = arith.constant 0 : index
    %7 = vector.load %arg7[%c0_5, %c0_6] : memref<1x512xf32, #tpu.memory_space<vmem>>, vector<1x512xf32>
    %8 = vector.broadcast %7 : vector<1x512xf32> to vector<64x512xf32>
    %9 = arith.addf %6, %8 : vector<64x512xf32>
    %10 = vector.shape_cast %9 : vector<64x512xf32> to vector<8x8x512xf32>
    %c0_7 = arith.constant 0 : index
    %c0_8 = arith.constant 0 : index
    %c0_9 = arith.constant 0 : index
    %11 = vector.load %arg13[%c0_7, %c0_8, %c0_9] : memref<8x8x512xf32, #tpu.memory_space<vmem>>, vector<8x8x512xf32>
    tpu.vector_store %arg13[%c0_7, %c0_8, %c0_9], %10 {strides = array<i32>} : memref<8x8x512xf32, #tpu.memory_space<vmem>>, vector<8x8x512xf32>,
    %c0_10 = arith.constant 0 : index
    %c0_11 = arith.constant 0 : index
    %12 = vector.load %arg11[%c0_10, %c0_11] : memref<8x128xf32, #tpu.memory_space<vmem>>, vector<8x128xf32>
    %c0_12 = arith.constant 0 : index
    %c0_13 = arith.constant 0 : index
    %13 = vector.load %arg12[%c0_12, %c0_13] : memref<8x128xf32, #tpu.memory_space<vmem>>, vector<8x128xf32>
    %c0_i32_14 = arith.constant 0 : i32
    %14 = arith.index_cast %c0_i32_14 : i32 to index
    %c0_15 = arith.constant 0 : index
    %c0_16 = arith.constant 0 : index
    %15 = vector.load %arg13[%14, %c0_15, %c0_16] : memref<8x8x512xf32, #tpu.memory_space<vmem>>, vector<1x8x512xf32>
    %16 = vector.shape_cast %15 : vector<1x8x512xf32> to vector<8x512xf32>
    %17 = arith.truncf %12 : vector<8x128xf32> to vector<8x128xbf16>
    %c0_17 = arith.constant 0 : index
    %c0_18 = arith.constant 0 : index
    %18 = vector.load %arg6[%c0_17, %c0_18] : memref<128x512xbf16, #tpu.memory_space<vmem>>, vector<128x512xbf16>
    %cst_19 = arith.constant dense<0.000000e+00> : vector<8x512xf32>
    %19 = tpu.matmul %17, %18, %cst_19 {dimension_numbers = #tpu.dot_dimension_numbers<[1], [0], [0], [1], [0, 0, 1, 1], [], []>} : vector<8x128xbf16>, vector<128x512xbf16>, vector<8x512xf32> -> vector<8x512xf32>
    %20 = arith.addf %16, %19 : vector<8x512xf32>
    %21 = vector.extract_strided_slice %20 {offsets = [0, 0], sizes = [8, 128], strides = [1, 1]} : vector<8x512xf32> to vector<8x128xf32>
    %22 = arith.negf %21 : vector<8x128xf32>
    %23 = math.exp %22 : vector<8x128xf32>
    %cst_20 = arith.constant 1.000000e+00 : f32
    %24 = vector.broadcast %cst_20 : f32 to vector<8x128xf32>
    %25 = arith.addf %24, %23 : vector<8x128xf32>
    %26 = arith.divf %24, %25 : vector<8x128xf32>
    %27 = vector.extract_strided_slice %20 {offsets = [0, 128], sizes = [8, 128], strides = [1, 1]} : vector<8x512xf32> to vector<8x128xf32>
    %28 = arith.negf %27 : vector<8x128xf32>
    %29 = math.exp %28 : vector<8x128xf32>
    %cst_21 = arith.constant 1.000000e+00 : f32
    %30 = vector.broadcast %cst_21 : f32 to vector<8x128xf32>
    %31 = arith.addf %30, %29 : vector<8x128xf32>
    %32 = arith.divf %30, %31 : vector<8x128xf32>
    %33 = vector.extract_strided_slice %20 {offsets = [0, 256], sizes = [8, 128], strides = [1, 1]} : vector<8x512xf32> to vector<8x128xf32>
    %34 = math.tanh %33 : vector<8x128xf32>
    %35 = vector.extract_strided_slice %20 {offsets = [0, 384], sizes = [8, 128], strides = [1, 1]} : vector<8x512xf32> to vector<8x128xf32>
    %36 = arith.negf %35 : vector<8x128xf32>
    %37 = math.exp %36 : vector<8x128xf32>
    %cst_22 = arith.constant 1.000000e+00 : f32
    %38 = vector.broadcast %cst_22 : f32 to vector<8x128xf32>
    %39 = arith.addf %38, %37 : vector<8x128xf32>
    %40 = arith.divf %38, %39 : vector<8x128xf32>
    %41 = arith.mulf %32, %13 : vector<8x128xf32>
    %42 = arith.mulf %26, %34 : vector<8x128xf32>
    %43 = arith.addf %41, %42 : vector<8x128xf32>
    %44 = math.tanh %43 : vector<8x128xf32>
    %45 = arith.mulf %40, %44 : vector<8x128xf32>
    %46 = arith.truncf %45 : vector<8x128xf32> to vector<8x128xbf16>
    %47 = arith.index_cast %c0_i32_14 : i32 to index
    %c0_23 = arith.constant 0 : index
    %c0_24 = arith.constant 0 : index
    %48 = vector.load %arg8[%47, %c0_23, %c0_24] : memref<8x8x128xbf16, #tpu.memory_space<vmem>>, vector<1x8x128xbf16>
    %49 = vector.shape_cast %48 : vector<1x8x128xbf16> to vector<8x128xbf16>
    %50 = vector.shape_cast %46 : vector<8x128xbf16> to vector<1x8x128xbf16>
    tpu.vector_store %arg8[%47, %c0_23, %c0_24], %50 {strides = array<i32>} : memref<8x8x128xbf16, #tpu.memory_space<vmem>>, vector<1x8x128xbf16>,
    %c1_i32 = arith.constant 1 : i32
    %51 = arith.index_cast %c1_i32 : i32 to index
    %c0_25 = arith.constant 0 : index
    %c0_26 = arith.constant 0 : index
    %52 = vector.load %arg13[%51, %c0_25, %c0_26] : memref<8x8x512xf32, #tpu.memory_space<vmem>>, vector<1x8x512xf32>
    %53 = vector.shape_cast %52 : vector<1x8x512xf32> to vector<8x512xf32>
    %54 = arith.truncf %45 : vector<8x128xf32> to vector<8x128xbf16>
    %c0_27 = arith.constant 0 : index
    %c0_28 = arith.constant 0 : index
    %55 = vector.load %arg6[%c0_27, %c0_28] : memref<128x512xbf16, #tpu.memory_space<vmem>>, vector<128x512xbf16>
    %cst_29 = arith.constant dense<0.000000e+00> : vector<8x512xf32>
    %56 = tpu.matmul %54, %55, %cst_29 {dimension_numbers = #tpu.dot_dimension_numbers<[1], [0], [0], [1], [0, 0, 1, 1], [], []>} : vector<8x128xbf16>, vector<128x512xbf16>, vector<8x512xf32> -> vector<8x512xf32>
    %57 = arith.addf %53, %56 : vector<8x512xf32>
    %58 = vector.extract_strided_slice %57 {offsets = [0, 0], sizes = [8, 128], strides = [1, 1]} : vector<8x512xf32> to vector<8x128xf32>
    %59 = arith.negf %58 : vector<8x128xf32>
    %60 = math.exp %59 : vector<8x128xf32>
    %cst_30 = arith.constant 1.000000e+00 : f32
    %61 = vector.broadcast %cst_30 : f32 to vector<8x128xf32>
    %62 = arith.addf %61, %60 : vector<8x128xf32>
    %63 = arith.divf %61, %62 : vector<8x128xf32>
    %64 = vector.extract_strided_slice %57 {offsets = [0, 128], sizes = [8, 128], strides = [1, 1]} : vector<8x512xf32> to vector<8x128xf32>
    %65 = arith.negf %64 : vector<8x128xf32>
    %66 = math.exp %65 : vector<8x128xf32>
    %cst_31 = arith.constant 1.000000e+00 : f32
    %67 = vector.broadcast %cst_31 : f32 to vector<8x128xf32>
    %68 = arith.addf %67, %66 : vector<8x128xf32>
    %69 = arith.divf %67, %68 : vector<8x128xf32>
    %70 = vector.extract_strided_slice %57 {offsets = [0, 256], sizes = [8, 128], strides = [1, 1]} : vector<8x512xf32> to vector<8x128xf32>
    %71 = math.tanh %70 : vector<8x128xf32>
    %72 = vector.extract_strided_slice %57 {offsets = [0, 384], sizes = [8, 128], strides = [1, 1]} : vector<8x512xf32> to vector<8x128xf32>
    %73 = arith.negf %72 : vector<8x128xf32>
    %74 = math.exp %73 : vector<8x128xf32>
    %cst_32 = arith.constant 1.000000e+00 : f32
    %75 = vector.broadcast %cst_32 : f32 to vector<8x128xf32>
    %76 = arith.addf %75, %74 : vector<8x128xf32>
    %77 = arith.divf %75, %76 : vector<8x128xf32>
    %78 = arith.mulf %69, %43 : vector<8x128xf32>
    %79 = arith.mulf %63, %71 : vector<8x128xf32>
    %80 = arith.addf %78, %79 : vector<8x128xf32>
    %81 = math.tanh %80 : vector<8x128xf32>
    %82 = arith.mulf %77, %81 : vector<8x128xf32>
    %83 = arith.truncf %82 : vector<8x128xf32> to vector<8x128xbf16>
    %84 = arith.index_cast %c1_i32 : i32 to index
    %c0_33 = arith.constant 0 : index
    %c0_34 = arith.constant 0 : index
    %85 = vector.load %arg8[%84, %c0_33, %c0_34] : memref<8x8x128xbf16, #tpu.memory_space<vmem>>, vector<1x8x128xbf16>
    %86 = vector.shape_cast %85 : vector<1x8x128xbf16> to vector<8x128xbf16>
    %87 = vector.shape_cast %83 : vector<8x128xbf16> to vector<1x8x128xbf16>
    tpu.vector_store %arg8[%84, %c0_33, %c0_34], %87 {strides = array<i32>} : memref<8x8x128xbf16, #tpu.memory_space<vmem>>, vector<1x8x128xbf16>,
    %c2_i32 = arith.constant 2 : i32
    %88 = arith.index_cast %c2_i32 : i32 to index
    %c0_35 = arith.constant 0 : index
    %c0_36 = arith.constant 0 : index
    %89 = vector.load %arg13[%88, %c0_35, %c0_36] : memref<8x8x512xf32, #tpu.memory_space<vmem>>, vector<1x8x512xf32>
    %90 = vector.shape_cast %89 : vector<1x8x512xf32> to vector<8x512xf32>
    %91 = arith.truncf %82 : vector<8x128xf32> to vector<8x128xbf16>
    %c0_37 = arith.constant 0 : index
    %c0_38 = arith.constant 0 : index
    %92 = vector.load %arg6[%c0_37, %c0_38] : memref<128x512xbf16, #tpu.memory_space<vmem>>, vector<128x512xbf16>
    %cst_39 = arith.constant dense<0.000000e+00> : vector<8x512xf32>
    %93 = tpu.matmul %91, %92, %cst_39 {dimension_numbers = #tpu.dot_dimension_numbers<[1], [0], [0], [1], [0, 0, 1, 1], [], []>} : vector<8x128xbf16>, vector<128x512xbf16>, vector<8x512xf32> -> vector<8x512xf32>
    %94 = arith.addf %90, %93 : vector<8x512xf32>
    %95 = vector.extract_strided_slice %94 {offsets = [0, 0], sizes = [8, 128], strides = [1, 1]} : vector<8x512xf32> to vector<8x128xf32>
    %96 = arith.negf %95 : vector<8x128xf32>
    %97 = math.exp %96 : vector<8x128xf32>
    %cst_40 = arith.constant 1.000000e+00 : f32
    %98 = vector.broadcast %cst_40 : f32 to vector<8x128xf32>
    %99 = arith.addf %98, %97 : vector<8x128xf32>
    %100 = arith.divf %98, %99 : vector<8x128xf32>
    %101 = vector.extract_strided_slice %94 {offsets = [0, 128], sizes = [8, 128], strides = [1, 1]} : vector<8x512xf32> to vector<8x128xf32>
    %102 = arith.negf %101 : vector<8x128xf32>
    %103 = math.exp %102 : vector<8x128xf32>
    %cst_41 = arith.constant 1.000000e+00 : f32
    %104 = vector.broadcast %cst_41 : f32 to vector<8x128xf32>
    %105 = arith.addf %104, %103 : vector<8x128xf32>
    %106 = arith.divf %104, %105 : vector<8x128xf32>
    %107 = vector.extract_strided_slice %94 {offsets = [0, 256], sizes = [8, 128], strides = [1, 1]} : vector<8x512xf32> to vector<8x128xf32>
    %108 = math.tanh %107 : vector<8x128xf32>
    %109 = vector.extract_strided_slice %94 {offsets = [0, 384], sizes = [8, 128], strides = [1, 1]} : vector<8x512xf32> to vector<8x128xf32>
    %110 = arith.negf %109 : vector<8x128xf32>
    %111 = math.exp %110 : vector<8x128xf32>
    %cst_42 = arith.constant 1.000000e+00 : f32
    %112 = vector.broadcast %cst_42 : f32 to vector<8x128xf32>
    %113 = arith.addf %112, %111 : vector<8x128xf32>
    %114 = arith.divf %112, %113 : vector<8x128xf32>
    %115 = arith.mulf %106, %80 : vector<8x128xf32>
    %116 = arith.mulf %100, %108 : vector<8x128xf32>
    %117 = arith.addf %115, %116 : vector<8x128xf32>
    %118 = math.tanh %117 : vector<8x128xf32>
    %119 = arith.mulf %114, %118 : vector<8x128xf32>
    %120 = arith.truncf %119 : vector<8x128xf32> to vector<8x128xbf16>
    %121 = arith.index_cast %c2_i32 : i32 to index
    %c0_43 = arith.constant 0 : index
    %c0_44 = arith.constant 0 : index
    %122 = vector.load %arg8[%121, %c0_43, %c0_44] : memref<8x8x128xbf16, #tpu.memory_space<vmem>>, vector<1x8x128xbf16>
    %123 = vector.shape_cast %122 : vector<1x8x128xbf16> to vector<8x128xbf16>
    %124 = vector.shape_cast %120 : vector<8x128xbf16> to vector<1x8x128xbf16>
    tpu.vector_store %arg8[%121, %c0_43, %c0_44], %124 {strides = array<i32>} : memref<8x8x128xbf16, #tpu.memory_space<vmem>>, vector<1x8x128xbf16>,
    %c3_i32 = arith.constant 3 : i32
    %125 = arith.index_cast %c3_i32 : i32 to index
    %c0_45 = arith.constant 0 : index
    %c0_46 = arith.constant 0 : index
    %126 = vector.load %arg13[%125, %c0_45, %c0_46] : memref<8x8x512xf32, #tpu.memory_space<vmem>>, vector<1x8x512xf32>
    %127 = vector.shape_cast %126 : vector<1x8x512xf32> to vector<8x512xf32>
    %128 = arith.truncf %119 : vector<8x128xf32> to vector<8x128xbf16>
    %c0_47 = arith.constant 0 : index
    %c0_48 = arith.constant 0 : index
    %129 = vector.load %arg6[%c0_47, %c0_48] : memref<128x512xbf16, #tpu.memory_space<vmem>>, vector<128x512xbf16>
    %cst_49 = arith.constant dense<0.000000e+00> : vector<8x512xf32>
    %130 = tpu.matmul %128, %129, %cst_49 {dimension_numbers = #tpu.dot_dimension_numbers<[1], [0], [0], [1], [0, 0, 1, 1], [], []>} : vector<8x128xbf16>, vector<128x512xbf16>, vector<8x512xf32> -> vector<8x512xf32>
    %131 = arith.addf %127, %130 : vector<8x512xf32>
    %132 = vector.extract_strided_slice %131 {offsets = [0, 0], sizes = [8, 128], strides = [1, 1]} : vector<8x512xf32> to vector<8x128xf32>
    %133 = arith.negf %132 : vector<8x128xf32>
    %134 = math.exp %133 : vector<8x128xf32>
    %cst_50 = arith.constant 1.000000e+00 : f32
    %135 = vector.broadcast %cst_50 : f32 to vector<8x128xf32>
    %136 = arith.addf %135, %134 : vector<8x128xf32>
    %137 = arith.divf %135, %136 : vector<8x128xf32>
    %138 = vector.extract_strided_slice %131 {offsets = [0, 128], sizes = [8, 128], strides = [1, 1]} : vector<8x512xf32> to vector<8x128xf32>
    %139 = arith.negf %138 : vector<8x128xf32>
    %140 = math.exp %139 : vector<8x128xf32>
    %cst_51 = arith.constant 1.000000e+00 : f32
    %141 = vector.broadcast %cst_51 : f32 to vector<8x128xf32>
    %142 = arith.addf %141, %140 : vector<8x128xf32>
    %143 = arith.divf %141, %142 : vector<8x128xf32>
    %144 = vector.extract_strided_slice %131 {offsets = [0, 256], sizes = [8, 128], strides = [1, 1]} : vector<8x512xf32> to vector<8x128xf32>
    %145 = math.tanh %144 : vector<8x128xf32>
    %146 = vector.extract_strided_slice %131 {offsets = [0, 384], sizes = [8, 128], strides = [1, 1]} : vector<8x512xf32> to vector<8x128xf32>
    %147 = arith.negf %146 : vector<8x128xf32>
    %148 = math.exp %147 : vector<8x128xf32>
    %cst_52 = arith.constant 1.000000e+00 : f32
    %149 = vector.broadcast %cst_52 : f32 to vector<8x128xf32>
    %150 = arith.addf %149, %148 : vector<8x128xf32>
    %151 = arith.divf %149, %150 : vector<8x128xf32>
    %152 = arith.mulf %143, %117 : vector<8x128xf32>
    %153 = arith.mulf %137, %145 : vector<8x128xf32>
    %154 = arith.addf %152, %153 : vector<8x128xf32>
    %155 = math.tanh %154 : vector<8x128xf32>
    %156 = arith.mulf %151, %155 : vector<8x128xf32>
    %157 = arith.truncf %156 : vector<8x128xf32> to vector<8x128xbf16>
    %158 = arith.index_cast %c3_i32 : i32 to index
    %c0_53 = arith.constant 0 : index
    %c0_54 = arith.constant 0 : index
    %159 = vector.load %arg8[%158, %c0_53, %c0_54] : memref<8x8x128xbf16, #tpu.memory_space<vmem>>, vector<1x8x128xbf16>
    %160 = vector.shape_cast %159 : vector<1x8x128xbf16> to vector<8x128xbf16>
    %161 = vector.shape_cast %157 : vector<8x128xbf16> to vector<1x8x128xbf16>
    tpu.vector_store %arg8[%158, %c0_53, %c0_54], %161 {strides = array<i32>} : memref<8x8x128xbf16, #tpu.memory_space<vmem>>, vector<1x8x128xbf16>,
    %c4_i32 = arith.constant 4 : i32
    %162 = arith.index_cast %c4_i32 : i32 to index
    %c0_55 = arith.constant 0 : index
    %c0_56 = arith.constant 0 : index
    %163 = vector.load %arg13[%162, %c0_55, %c0_56] : memref<8x8x512xf32, #tpu.memory_space<vmem>>, vector<1x8x512xf32>
    %164 = vector.shape_cast %163 : vector<1x8x512xf32> to vector<8x512xf32>
    %165 = arith.truncf %156 : vector<8x128xf32> to vector<8x128xbf16>
    %c0_57 = arith.constant 0 : index
    %c0_58 = arith.constant 0 : index
    %166 = vector.load %arg6[%c0_57, %c0_58] : memref<128x512xbf16, #tpu.memory_space<vmem>>, vector<128x512xbf16>
    %cst_59 = arith.constant dense<0.000000e+00> : vector<8x512xf32>
    %167 = tpu.matmul %165, %166, %cst_59 {dimension_numbers = #tpu.dot_dimension_numbers<[1], [0], [0], [1], [0, 0, 1, 1], [], []>} : vector<8x128xbf16>, vector<128x512xbf16>, vector<8x512xf32> -> vector<8x512xf32>
    %168 = arith.addf %164, %167 : vector<8x512xf32>
    %169 = vector.extract_strided_slice %168 {offsets = [0, 0], sizes = [8, 128], strides = [1, 1]} : vector<8x512xf32> to vector<8x128xf32>
    %170 = arith.negf %169 : vector<8x128xf32>
    %171 = math.exp %170 : vector<8x128xf32>
    %cst_60 = arith.constant 1.000000e+00 : f32
    %172 = vector.broadcast %cst_60 : f32 to vector<8x128xf32>
    %173 = arith.addf %172, %171 : vector<8x128xf32>
    %174 = arith.divf %172, %173 : vector<8x128xf32>
    %175 = vector.extract_strided_slice %168 {offsets = [0, 128], sizes = [8, 128], strides = [1, 1]} : vector<8x512xf32> to vector<8x128xf32>
    %176 = arith.negf %175 : vector<8x128xf32>
    %177 = math.exp %176 : vector<8x128xf32>
    %cst_61 = arith.constant 1.000000e+00 : f32
    %178 = vector.broadcast %cst_61 : f32 to vector<8x128xf32>
    %179 = arith.addf %178, %177 : vector<8x128xf32>
    %180 = arith.divf %178, %179 : vector<8x128xf32>
    %181 = vector.extract_strided_slice %168 {offsets = [0, 256], sizes = [8, 128], strides = [1, 1]} : vector<8x512xf32> to vector<8x128xf32>
    %182 = math.tanh %181 : vector<8x128xf32>
    %183 = vector.extract_strided_slice %168 {offsets = [0, 384], sizes = [8, 128], strides = [1, 1]} : vector<8x512xf32> to vector<8x128xf32>
    %184 = arith.negf %183 : vector<8x128xf32>
    %185 = math.exp %184 : vector<8x128xf32>
    %cst_62 = arith.constant 1.000000e+00 : f32
    %186 = vector.broadcast %cst_62 : f32 to vector<8x128xf32>
    %187 = arith.addf %186, %185 : vector<8x128xf32>
    %188 = arith.divf %186, %187 : vector<8x128xf32>
    %189 = arith.mulf %180, %154 : vector<8x128xf32>
    %190 = arith.mulf %174, %182 : vector<8x128xf32>
    %191 = arith.addf %189, %190 : vector<8x128xf32>
    %192 = math.tanh %191 : vector<8x128xf32>
    %193 = arith.mulf %188, %192 : vector<8x128xf32>
    %194 = arith.truncf %193 : vector<8x128xf32> to vector<8x128xbf16>
    %195 = arith.index_cast %c4_i32 : i32 to index
    %c0_63 = arith.constant 0 : index
    %c0_64 = arith.constant 0 : index
    %196 = vector.load %arg8[%195, %c0_63, %c0_64] : memref<8x8x128xbf16, #tpu.memory_space<vmem>>, vector<1x8x128xbf16>
    %197 = vector.shape_cast %196 : vector<1x8x128xbf16> to vector<8x128xbf16>
    %198 = vector.shape_cast %194 : vector<8x128xbf16> to vector<1x8x128xbf16>
    tpu.vector_store %arg8[%195, %c0_63, %c0_64], %198 {strides = array<i32>} : memref<8x8x128xbf16, #tpu.memory_space<vmem>>, vector<1x8x128xbf16>,
    %c5_i32 = arith.constant 5 : i32
    %199 = arith.index_cast %c5_i32 : i32 to index
    %c0_65 = arith.constant 0 : index
    %c0_66 = arith.constant 0 : index
    %200 = vector.load %arg13[%199, %c0_65, %c0_66] : memref<8x8x512xf32, #tpu.memory_space<vmem>>, vector<1x8x512xf32>
    %201 = vector.shape_cast %200 : vector<1x8x512xf32> to vector<8x512xf32>
    %202 = arith.truncf %193 : vector<8x128xf32> to vector<8x128xbf16>
    %c0_67 = arith.constant 0 : index
    %c0_68 = arith.constant 0 : index
    %203 = vector.load %arg6[%c0_67, %c0_68] : memref<128x512xbf16, #tpu.memory_space<vmem>>, vector<128x512xbf16>
    %cst_69 = arith.constant dense<0.000000e+00> : vector<8x512xf32>
    %204 = tpu.matmul %202, %203, %cst_69 {dimension_numbers = #tpu.dot_dimension_numbers<[1], [0], [0], [1], [0, 0, 1, 1], [], []>} : vector<8x128xbf16>, vector<128x512xbf16>, vector<8x512xf32> -> vector<8x512xf32>
    %205 = arith.addf %201, %204 : vector<8x512xf32>
    %206 = vector.extract_strided_slice %205 {offsets = [0, 0], sizes = [8, 128], strides = [1, 1]} : vector<8x512xf32> to vector<8x128xf32>
    %207 = arith.negf %206 : vector<8x128xf32>
    %208 = math.exp %207 : vector<8x128xf32>
    %cst_70 = arith.constant 1.000000e+00 : f32
    %209 = vector.broadcast %cst_70 : f32 to vector<8x128xf32>
    %210 = arith.addf %209, %208 : vector<8x128xf32>
    %211 = arith.divf %209, %210 : vector<8x128xf32>
    %212 = vector.extract_strided_slice %205 {offsets = [0, 128], sizes = [8, 128], strides = [1, 1]} : vector<8x512xf32> to vector<8x128xf32>
    %213 = arith.negf %212 : vector<8x128xf32>
    %214 = math.exp %213 : vector<8x128xf32>
    %cst_71 = arith.constant 1.000000e+00 : f32
    %215 = vector.broadcast %cst_71 : f32 to vector<8x128xf32>
    %216 = arith.addf %215, %214 : vector<8x128xf32>
    %217 = arith.divf %215, %216 : vector<8x128xf32>
    %218 = vector.extract_strided_slice %205 {offsets = [0, 256], sizes = [8, 128], strides = [1, 1]} : vector<8x512xf32> to vector<8x128xf32>
    %219 = math.tanh %218 : vector<8x128xf32>
    %220 = vector.extract_strided_slice %205 {offsets = [0, 384], sizes = [8, 128], strides = [1, 1]} : vector<8x512xf32> to vector<8x128xf32>
    %221 = arith.negf %220 : vector<8x128xf32>
    %222 = math.exp %221 : vector<8x128xf32>
    %cst_72 = arith.constant 1.000000e+00 : f32
    %223 = vector.broadcast %cst_72 : f32 to vector<8x128xf32>
    %224 = arith.addf %223, %222 : vector<8x128xf32>
    %225 = arith.divf %223, %224 : vector<8x128xf32>
    %226 = arith.mulf %217, %191 : vector<8x128xf32>
    %227 = arith.mulf %211, %219 : vector<8x128xf32>
    %228 = arith.addf %226, %227 : vector<8x128xf32>
    %229 = math.tanh %228 : vector<8x128xf32>
    %230 = arith.mulf %225, %229 : vector<8x128xf32>
    %231 = arith.truncf %230 : vector<8x128xf32> to vector<8x128xbf16>
    %232 = arith.index_cast %c5_i32 : i32 to index
    %c0_73 = arith.constant 0 : index
    %c0_74 = arith.constant 0 : index
    %233 = vector.load %arg8[%232, %c0_73, %c0_74] : memref<8x8x128xbf16, #tpu.memory_space<vmem>>, vector<1x8x128xbf16>
    %234 = vector.shape_cast %233 : vector<1x8x128xbf16> to vector<8x128xbf16>
    %235 = vector.shape_cast %231 : vector<8x128xbf16> to vector<1x8x128xbf16>
    tpu.vector_store %arg8[%232, %c0_73, %c0_74], %235 {strides = array<i32>} : memref<8x8x128xbf16, #tpu.memory_space<vmem>>, vector<1x8x128xbf16>,
    %c6_i32 = arith.constant 6 : i32
    %236 = arith.index_cast %c6_i32 : i32 to index
    %c0_75 = arith.constant 0 : index
    %c0_76 = arith.constant 0 : index
    %237 = vector.load %arg13[%236, %c0_75, %c0_76] : memref<8x8x512xf32, #tpu.memory_space<vmem>>, vector<1x8x512xf32>
    %238 = vector.shape_cast %237 : vector<1x8x512xf32> to vector<8x512xf32>
    %239 = arith.truncf %230 : vector<8x128xf32> to vector<8x128xbf16>
    %c0_77 = arith.constant 0 : index
    %c0_78 = arith.constant 0 : index
    %240 = vector.load %arg6[%c0_77, %c0_78] : memref<128x512xbf16, #tpu.memory_space<vmem>>, vector<128x512xbf16>
    %cst_79 = arith.constant dense<0.000000e+00> : vector<8x512xf32>
    %241 = tpu.matmul %239, %240, %cst_79 {dimension_numbers = #tpu.dot_dimension_numbers<[1], [0], [0], [1], [0, 0, 1, 1], [], []>} : vector<8x128xbf16>, vector<128x512xbf16>, vector<8x512xf32> -> vector<8x512xf32>
    %242 = arith.addf %238, %241 : vector<8x512xf32>
    %243 = vector.extract_strided_slice %242 {offsets = [0, 0], sizes = [8, 128], strides = [1, 1]} : vector<8x512xf32> to vector<8x128xf32>
    %244 = arith.negf %243 : vector<8x128xf32>
    %245 = math.exp %244 : vector<8x128xf32>
    %cst_80 = arith.constant 1.000000e+00 : f32
    %246 = vector.broadcast %cst_80 : f32 to vector<8x128xf32>
    %247 = arith.addf %246, %245 : vector<8x128xf32>
    %248 = arith.divf %246, %247 : vector<8x128xf32>
    %249 = vector.extract_strided_slice %242 {offsets = [0, 128], sizes = [8, 128], strides = [1, 1]} : vector<8x512xf32> to vector<8x128xf32>
    %250 = arith.negf %249 : vector<8x128xf32>
    %251 = math.exp %250 : vector<8x128xf32>
    %cst_81 = arith.constant 1.000000e+00 : f32
    %252 = vector.broadcast %cst_81 : f32 to vector<8x128xf32>
    %253 = arith.addf %252, %251 : vector<8x128xf32>
    %254 = arith.divf %252, %253 : vector<8x128xf32>
    %255 = vector.extract_strided_slice %242 {offsets = [0, 256], sizes = [8, 128], strides = [1, 1]} : vector<8x512xf32> to vector<8x128xf32>
    %256 = math.tanh %255 : vector<8x128xf32>
    %257 = vector.extract_strided_slice %242 {offsets = [0, 384], sizes = [8, 128], strides = [1, 1]} : vector<8x512xf32> to vector<8x128xf32>
    %258 = arith.negf %257 : vector<8x128xf32>
    %259 = math.exp %258 : vector<8x128xf32>
    %cst_82 = arith.constant 1.000000e+00 : f32
    %260 = vector.broadcast %cst_82 : f32 to vector<8x128xf32>
    %261 = arith.addf %260, %259 : vector<8x128xf32>
    %262 = arith.divf %260, %261 : vector<8x128xf32>
    %263 = arith.mulf %254, %228 : vector<8x128xf32>
    %264 = arith.mulf %248, %256 : vector<8x128xf32>
    %265 = arith.addf %263, %264 : vector<8x128xf32>
    %266 = math.tanh %265 : vector<8x128xf32>
    %267 = arith.mulf %262, %266 : vector<8x128xf32>
    %268 = arith.truncf %267 : vector<8x128xf32> to vector<8x128xbf16>
    %269 = arith.index_cast %c6_i32 : i32 to index
    %c0_83 = arith.constant 0 : index
    %c0_84 = arith.constant 0 : index
    %270 = vector.load %arg8[%269, %c0_83, %c0_84] : memref<8x8x128xbf16, #tpu.memory_space<vmem>>, vector<1x8x128xbf16>
    %271 = vector.shape_cast %270 : vector<1x8x128xbf16> to vector<8x128xbf16>
    %272 = vector.shape_cast %268 : vector<8x128xbf16> to vector<1x8x128xbf16>
    tpu.vector_store %arg8[%269, %c0_83, %c0_84], %272 {strides = array<i32>} : memref<8x8x128xbf16, #tpu.memory_space<vmem>>, vector<1x8x128xbf16>,
    %c7_i32 = arith.constant 7 : i32
    %273 = arith.index_cast %c7_i32 : i32 to index
    %c0_85 = arith.constant 0 : index
    %c0_86 = arith.constant 0 : index
    %274 = vector.load %arg13[%273, %c0_85, %c0_86] : memref<8x8x512xf32, #tpu.memory_space<vmem>>, vector<1x8x512xf32>
    %275 = vector.shape_cast %274 : vector<1x8x512xf32> to vector<8x512xf32>
    %276 = arith.truncf %267 : vector<8x128xf32> to vector<8x128xbf16>
    %c0_87 = arith.constant 0 : index
    %c0_88 = arith.constant 0 : index
    %277 = vector.load %arg6[%c0_87, %c0_88] : memref<128x512xbf16, #tpu.memory_space<vmem>>, vector<128x512xbf16>
    %cst_89 = arith.constant dense<0.000000e+00> : vector<8x512xf32>
    %278 = tpu.matmul %276, %277, %cst_89 {dimension_numbers = #tpu.dot_dimension_numbers<[1], [0], [0], [1], [0, 0, 1, 1], [], []>} : vector<8x128xbf16>, vector<128x512xbf16>, vector<8x512xf32> -> vector<8x512xf32>
    %279 = arith.addf %275, %278 : vector<8x512xf32>
    %280 = vector.extract_strided_slice %279 {offsets = [0, 0], sizes = [8, 128], strides = [1, 1]} : vector<8x512xf32> to vector<8x128xf32>
    %281 = arith.negf %280 : vector<8x128xf32>
    %282 = math.exp %281 : vector<8x128xf32>
    %cst_90 = arith.constant 1.000000e+00 : f32
    %283 = vector.broadcast %cst_90 : f32 to vector<8x128xf32>
    %284 = arith.addf %283, %282 : vector<8x128xf32>
    %285 = arith.divf %283, %284 : vector<8x128xf32>
    %286 = vector.extract_strided_slice %279 {offsets = [0, 128], sizes = [8, 128], strides = [1, 1]} : vector<8x512xf32> to vector<8x128xf32>
    %287 = arith.negf %286 : vector<8x128xf32>
    %288 = math.exp %287 : vector<8x128xf32>
    %cst_91 = arith.constant 1.000000e+00 : f32
    %289 = vector.broadcast %cst_91 : f32 to vector<8x128xf32>
    %290 = arith.addf %289, %288 : vector<8x128xf32>
    %291 = arith.divf %289, %290 : vector<8x128xf32>
    %292 = vector.extract_strided_slice %279 {offsets = [0, 256], sizes = [8, 128], strides = [1, 1]} : vector<8x512xf32> to vector<8x128xf32>
    %293 = math.tanh %292 : vector<8x128xf32>
    %294 = vector.extract_strided_slice %279 {offsets = [0, 384], sizes = [8, 128], strides = [1, 1]} : vector<8x512xf32> to vector<8x128xf32>
    %295 = arith.negf %294 : vector<8x128xf32>
    %296 = math.exp %295 : vector<8x128xf32>
    %cst_92 = arith.constant 1.000000e+00 : f32
    %297 = vector.broadcast %cst_92 : f32 to vector<8x128xf32>
    %298 = arith.addf %297, %296 : vector<8x128xf32>
    %299 = arith.divf %297, %298 : vector<8x128xf32>
    %300 = arith.mulf %291, %265 : vector<8x128xf32>
    %301 = arith.mulf %285, %293 : vector<8x128xf32>
    %302 = arith.addf %300, %301 : vector<8x128xf32>
    %303 = math.tanh %302 : vector<8x128xf32>
    %304 = arith.mulf %299, %303 : vector<8x128xf32>
    %305 = arith.truncf %304 : vector<8x128xf32> to vector<8x128xbf16>
    %306 = arith.index_cast %c7_i32 : i32 to index
    %c0_93 = arith.constant 0 : index
    %c0_94 = arith.constant 0 : index
    %307 = vector.load %arg8[%306, %c0_93, %c0_94] : memref<8x8x128xbf16, #tpu.memory_space<vmem>>, vector<1x8x128xbf16>
    %308 = vector.shape_cast %307 : vector<1x8x128xbf16> to vector<8x128xbf16>
    %309 = vector.shape_cast %305 : vector<8x128xbf16> to vector<1x8x128xbf16>
    tpu.vector_store %arg8[%306, %c0_93, %c0_94], %309 {strides = array<i32>} : memref<8x8x128xbf16, #tpu.memory_space<vmem>>, vector<1x8x128xbf16>,
    %c8_i32 = arith.constant 8 : i32
    %c0_95 = arith.constant 0 : index
    %c0_96 = arith.constant 0 : index
    %310 = vector.load %arg11[%c0_95, %c0_96] : memref<8x128xf32, #tpu.memory_space<vmem>>, vector<8x128xf32>
    tpu.vector_store %arg11[%c0_95, %c0_96], %304 {strides = array<i32>} : memref<8x128xf32, #tpu.memory_space<vmem>>, vector<8x128xf32>,
    %c0_97 = arith.constant 0 : index
    %c0_98 = arith.constant 0 : index
    %311 = vector.load %arg12[%c0_97, %c0_98] : memref<8x128xf32, #tpu.memory_space<vmem>>, vector<8x128xf32>
    tpu.vector_store %arg12[%c0_97, %c0_98], %302 {strides = array<i32>} : memref<8x128xf32, #tpu.memory_space<vmem>>, vector<8x128xf32>,
    %c0_i32_99 = arith.constant 0 : i32
    %312 = arith.cmpi eq, %arg1, %c0_i32_99 : i32
    %313 = arith.extui %312 : i1 to i32
    %c0_i32_100 = arith.constant 0 : i32
    %314 = arith.cmpi ne, %313, %c0_i32_100 : i32
    scf.if %314 {
      %c0_101 = arith.constant 0 : index
      %c0_102 = arith.constant 0 : index
      %315 = vector.load %arg9[%c0_101, %c0_102] : memref<8x128xf32, #tpu.memory_space<vmem>>, vector<8x128xf32>
      tpu.vector_store %arg9[%c0_101, %c0_102], %304 {strides = array<i32>} : memref<8x128xf32, #tpu.memory_space<vmem>>, vector<8x128xf32>,
      %c0_103 = arith.constant 0 : index
      %c0_104 = arith.constant 0 : index
      %316 = vector.load %arg10[%c0_103, %c0_104] : memref<8x128xf32, #tpu.memory_space<vmem>>, vector<8x128xf32>
      tpu.vector_store %arg10[%c0_103, %c0_104], %302 {strides = array<i32>} : memref<8x128xf32, #tpu.memory_space<vmem>>, vector<8x128xf32>,
    } else {
    }
    return
  }
  func.func @transform_0(%arg0: i32, %arg1: i32) -> (i32, i32, i32) {
    %c0_i32 = arith.constant 0 : i32
    %c0_i32_0 = arith.constant 0 : i32
    return %arg1, %arg0, %c0_i32 : i32, i32, i32
  }
  func.func @transform_1(%arg0: i32, %arg1: i32) -> (i32, i32) {
    %c0_i32 = arith.constant 0 : i32
    %c0_i32_0 = arith.constant 0 : i32
    return %arg0, %c0_i32 : i32, i32
  }
  func.func @transform_2(%arg0: i32, %arg1: i32) -> (i32, i32) {
    %c0_i32 = arith.constant 0 : i32
    %c0_i32_0 = arith.constant 0 : i32
    return %arg0, %c0_i32 : i32, i32
  }
  func.func @transform_3(%arg0: i32, %arg1: i32) -> (i32, i32) {
    %c0_i32 = arith.constant 0 : i32
    %c0_i32_0 = arith.constant 0 : i32
    %c0_i32_1 = arith.constant 0 : i32
    return %c0_i32, %c0_i32_0 : i32, i32
  }
  func.func @transform_4(%arg0: i32, %arg1: i32) -> (i32, i32) {
    %c0_i32 = arith.constant 0 : i32
    %c0_i32_0 = arith.constant 0 : i32
    %c0_i32_1 = arith.constant 0 : i32
    return %c0_i32, %c0_i32_0 : i32, i32
  }
  func.func @transform_5(%arg0: i32, %arg1: i32) -> (i32, i32) {
    %c0_i32 = arith.constant 0 : i32
    %c0_i32_0 = arith.constant 0 : i32
    %c0_i32_1 = arith.constant 0 : i32
    return %c0_i32, %c0_i32_0 : i32, i32
  }
  func.func @transform_6(%arg0: i32, %arg1: i32) -> (i32, i32, i32) {
    %c0_i32 = arith.constant 0 : i32
    %c0_i32_0 = arith.constant 0 : i32
    return %arg1, %arg0, %c0_i32 : i32, i32, i32
  }
  func.func @transform_7(%arg0: i32, %arg1: i32) -> (i32, i32) {
    %c0_i32 = arith.constant 0 : i32
    %c0_i32_0 = arith.constant 0 : i32
    return %arg0, %c0_i32 : i32, i32
  }
  func.func @transform_8(%arg0: i32, %arg1: i32) -> (i32, i32) {
    %c0_i32 = arith.constant 0 : i32
    %c0_i32_0 = arith.constant 0 : i32
    return %arg0, %c0_i32 : i32, i32
  }
}

</mosaic_0001>

<llo_original>
// kernel: sentiment_rnn_forward.3
$region0: #{sentiment_rnn_forward.3}
  #allocation0 [shape = 'u32[]', space=smem, size = 0x4, offset = 0x4, fixed_abs, tag = 'smem constant byte address 0x4 - core index']
  #allocation1 [shape = 'u32[72,128]{1,0:T(1,128)}', space=vmem, size = 0x9000, scoped, tag = 'internal scratch']
  #allocation2 [shape = 'f32[8,128]{1,0:T(8,128)}', space=vmem, size = 0x1000, scoped, tag = 'scratch operand']
  #allocation3 [shape = 'f32[8,128]{1,0:T(8,128)}', space=vmem, size = 0x1000, scoped, tag = 'scratch operand']
  #allocation4 [shape = 'f32[8,8,512]{2,1,0:T(8,128)}', space=vmem, size = 0x20000, scoped, tag = 'scratch operand']
  #allocation5 [shape = 'f32[1,1]{1,0:T(1,128)S(1)}', space=vmem, size = 0x200, scoped, tag = 'scoped memory for sentiment_rnn_forward.3']
  %s0 = inlined_call_operand.vmem [shape: bf16[8,16,128], index: 0, kind: input, shape index: {}]
  %s1 = inlined_call_operand.vmem [shape: f32[16,128], index: 1, kind: input, shape index: {}]
  %s2 = inlined_call_operand.vmem [shape: f32[16,128], index: 2, kind: input, shape index: {}]
  %s3 = inlined_call_operand.vmem [shape: bf16[128,512], index: 3, kind: input, shape index: {}]
  %s4 = inlined_call_operand.vmem [shape: bf16[128,512], index: 4, kind: input, shape index: {}]
  %s5 = inlined_call_operand.vmem [shape: f32[1,512], index: 5, kind: input, shape index: {}]
  %s6 = inlined_call_operand.vmem [shape: f32[1,128], index: 6, kind: input, shape index: {}]
  %s7 = inlined_call_operand.<no memory space> [shape: f32[1,1], index: 7, kind: input, shape index: {}]
  %s8 = inlined_call_operand.vmem [shape: f32[16,128], index: 8, kind: output, shape index: {0}]
  %s9 = inlined_call_operand.vmem [shape: f32[16,128], index: 9, kind: output, shape index: {1}]
  %s10 = inlined_call_operand.vmem [shape: f32[16,1], index: 10, kind: output, shape index: {2}]
  %11 = xla_tuple %s8, %s9, %s10
  %s12 = sld [smem:[#allocation0]]
  $region130: #{sentiment_rnn_forward.3} parent=0
    _
  %s14 = ssub.s32 1, %s12
  %s15 = scalar_select 0, %s14, %s12
  %v16 = vstv %s7
  %17 = vst [vmem:[#allocation5] sm:$0x1] %v16
  $region1: #{sentiment_rnn_forward.3} parent=0
    #allocation6 [shape = 'u8[32768]{0}', space=vmem, size = 0x8000, scoped, tag = 'input window, operand 0']
    loop: start=0, step=1, limit=4
    $region2: #{sentiment_rnn_forward.3} parent=1 // loop_pre_header
      _
    $region3: #{sentiment_rnn_forward.3} parent=1 // loop_header
      %s19 = sphi 0, %s23
      %p20 = scmp.ge.s32.totalorder %s19, 4
      %s26 = sphi 0, %s38
      %s27 = sphi 0, %s34
      %s28 = sphi 0, %s26
      %s29 = sphi 0, %s27
      %s30 = sphi 0, %s28
      %s31 = sphi 0, %s29
      %s43 = sphi 0, %s45
      %s46 = sphi 0, %s43
      %s47 = sphi 0, %s46
      %s63 = sphi 0, %s47
      %s69 = sphi 0, %s71
      %s72 = sphi 0, %s69
      %s73 = sphi 0, %s72
      %s89 = sphi 0, %s73
      %s95 = sphi 0, %s97
      %s98 = sphi 0, %s95
      %s99 = sphi 0, %s98
      %s115 = sphi 0, %s99
      %s119 = sphi 0, %s119
      %s121 = sphi 0, %s119
      %s122 = sphi 0, %s121
      %s136 = sphi 0, %s122
      %s140 = sphi 0, %s140
      %s142 = sphi 0, %s140
      %s143 = sphi 0, %s142
      %s157 = sphi 0, %s143
      %s161 = sphi 0, %s161
      %s163 = sphi 0, %s161
      %s164 = sphi 0, %s163
      %s178 = sphi 0, %s164
      %s182 = sphi 0, %s182
      %s184 = sphi 0, %s182
      %s185 = sphi 0, %s184
      %s199 = sphi 0, %s185
      %s203 = sphi 0, %s203
      %s205 = sphi 0, %s203
      %s206 = sphi 0, %s205
      %s220 = sphi 0, %s206
      %s226 = sphi 0, %s228
      %s229 = sphi 0, %s226
      %s230 = sphi 0, %s229
      %s246 = sphi 0, %s230
      %s252 = sphi 0, %s254
      %s255 = sphi 0, %s252
      %s256 = sphi 0, %s255
      %s272 = sphi 0, %s256
      %s278 = sphi 0, %s280
      %s281 = sphi 0, %s278
      %s282 = sphi 0, %s281
      %s298 = sphi 0, %s282
    $region4: #{sentiment_rnn_forward.3} parent=1 // loop_header_branch
      %22 = sbr.rel (%p20) target = $region8
    $region5: #{sentiment_rnn_forward.3} parent=1 // loop_body
      %s24 = ssub.s32 %s19, 1
      %s25 = ssub.s32 %s19, 2
      %s32 = sadd.s32 1, %s27
      %p33 = scmp.ge.s32.totalorder %s32, 1
      %s34 = scalar_select %p33, 0, %s32
      %s35 = sadd.s32 1, %s26
      %s36 = scalar_select %p33, %s35, %s26
      %p37 = scmp.ge.s32.totalorder %s36, 2
      %s38 = scalar_select %p37, 0, %s36
      %s39 = ssub.s32 %s27, %s34
      %s40 = ssub.s32 %s26, %s38
      %s41 = sor.u32 %s39, %s40
      %p42 = scmp.eq.s32.totalorder %s41, 0
      %s44 = sadd.s32 %s43, 1
      %s45 = scalar_select %p42, %s43, %s44
      %p48 = pneg %p42
      %p49 = scmp.eq.s32.totalorder %s19, 1
      %p50 = por %p48, %p49
      %p51 = scmp.ne.s32.totalorder %s43, %s46
      %p52 = scmp.eq.s32.totalorder %s19, 0
      %p53 = por %p51, %p52
      %p54 = scmp.ne.s32.totalorder %s43, %s46
      %p55 = scmp.eq.s32.totalorder %s24, 1
      %p56 = por %p54, %p55
      %p57 = scmp.ne.s32.totalorder %s46, %s47
      %p58 = scmp.eq.s32.totalorder %s24, 0
      %p59 = por %p57, %p58
      %p60 = scmp.ne.s32.totalorder %s46, %s47
      %p61 = scmp.eq.s32.totalorder %s25, 1
      %p62 = por %p60, %p61
      %p64 = scmp.ne.s32.totalorder %s47, %s63
      %p65 = scmp.eq.s32.totalorder %s25, 0
      %p66 = por %p64, %p65
      %s67 = ssub.s32 %s26, %s38
      %p68 = scmp.eq.s32.totalorder %s67, 0
      %s70 = sadd.s32 %s69, 1
      %s71 = scalar_select %p68, %s69, %s70
      %p74 = pneg %p68
      %p75 = scmp.eq.s32.totalorder %s19, 1
      %p76 = por %p74, %p75
      %p77 = scmp.ne.s32.totalorder %s69, %s72
      %p78 = scmp.eq.s32.totalorder %s19, 0
      %p79 = por %p77, %p78
      %p80 = scmp.ne.s32.totalorder %s69, %s72
      %p81 = scmp.eq.s32.totalorder %s24, 1
      %p82 = por %p80, %p81
      %p83 = scmp.ne.s32.totalorder %s72, %s73
      %p84 = scmp.eq.s32.totalorder %s24, 0
      %p85 = por %p83, %p84
      %p86 = scmp.ne.s32.totalorder %s72, %s73
      %p87 = scmp.eq.s32.totalorder %s25, 1
      %p88 = por %p86, %p87
      %p90 = scmp.ne.s32.totalorder %s73, %s89
      %p91 = scmp.eq.s32.totalorder %s25, 0
      %p92 = por %p90, %p91
      %s93 = ssub.s32 %s26, %s38
      %p94 = scmp.eq.s32.totalorder %s93, 0
      %s96 = sadd.s32 %s95, 1
      %s97 = scalar_select %p94, %s95, %s96
      %p100 = pneg %p94
      %p101 = scmp.eq.s32.totalorder %s19, 1
      %p102 = por %p100, %p101
      %p103 = scmp.ne.s32.totalorder %s95, %s98
      %p104 = scmp.eq.s32.totalorder %s19, 0
      %p105 = por %p103, %p104
      %p106 = scmp.ne.s32.totalorder %s95, %s98
      %p107 = scmp.eq.s32.totalorder %s24, 1
      %p108 = por %p106, %p107
      %p109 = scmp.ne.s32.totalorder %s98, %s99
      %p110 = scmp.eq.s32.totalorder %s24, 0
      %p111 = por %p109, %p110
      %p112 = scmp.ne.s32.totalorder %s98, %s99
      %p113 = scmp.eq.s32.totalorder %s25, 1
      %p114 = por %p112, %p113
      %p116 = scmp.ne.s32.totalorder %s99, %s115
      %p117 = scmp.eq.s32.totalorder %s25, 0
      %p118 = por %p116, %p117
      %s120 = sadd.s32 %s119, 1
      %p123 = scmp.eq.s32.totalorder %s19, 1
      %p124 = scmp.ne.s32.totalorder %s119, %s121
      %p125 = scmp.eq.s32.totalorder %s19, 0
      %p126 = por %p124, %p125
      %p127 = scmp.ne.s32.totalorder %s119, %s121
      %p128 = scmp.eq.s32.totalorder %s24, 1
      %p129 = por %p127, %p128
      %p130 = scmp.ne.s32.totalorder %s121, %s122
      %p131 = scmp.eq.s32.totalorder %s24, 0
      %p132 = por %p130, %p131
      %p133 = scmp.ne.s32.totalorder %s121, %s122
      %p134 = scmp.eq.s32.totalorder %s25, 1
      %p135 = por %p133, %p134
      %p137 = scmp.ne.s32.totalorder %s122, %s136
      %p138 = scmp.eq.s32.totalorder %s25, 0
      %p139 = por %p137, %p138
      %s141 = sadd.s32 %s140, 1
      %p144 = scmp.eq.s32.totalorder %s19, 1
      %p145 = scmp.ne.s32.totalorder %s140, %s142
      %p146 = scmp.eq.s32.totalorder %s19, 0
      %p147 = por %p145, %p146
      %p148 = scmp.ne.s32.totalorder %s140, %s142
      %p149 = scmp.eq.s32.totalorder %s24, 1
      %p150 = por %p148, %p149
      %p151 = scmp.ne.s32.totalorder %s142, %s143
      %p152 = scmp.eq.s32.totalorder %s24, 0
      %p153 = por %p151, %p152
      %p154 = scmp.ne.s32.totalorder %s142, %s143
      %p155 = scmp.eq.s32.totalorder %s25, 1
      %p156 = por %p154, %p155
      %p158 = scmp.ne.s32.totalorder %s143, %s157
      %p159 = scmp.eq.s32.totalorder %s25, 0
      %p160 = por %p158, %p159
      %s162 = sadd.s32 %s161, 1
      %p165 = scmp.eq.s32.totalorder %s19, 1
      %p166 = scmp.ne.s32.totalorder %s161, %s163
      %p167 = scmp.eq.s32.totalorder %s19, 0
      %p168 = por %p166, %p167
      %p169 = scmp.ne.s32.totalorder %s161, %s163
      %p170 = scmp.eq.s32.totalorder %s24, 1
      %p171 = por %p169, %p170
      %p172 = scmp.ne.s32.totalorder %s163, %s164
      %p173 = scmp.eq.s32.totalorder %s24, 0
      %p174 = por %p172, %p173
      %p175 = scmp.ne.s32.totalorder %s163, %s164
      %p176 = scmp.eq.s32.totalorder %s25, 1
      %p177 = por %p175, %p176
      %p179 = scmp.ne.s32.totalorder %s164, %s178
      %p180 = scmp.eq.s32.totalorder %s25, 0
      %p181 = por %p179, %p180
      %s183 = sadd.s32 %s182, 1
      %p186 = scmp.eq.s32.totalorder %s19, 1
      %p187 = scmp.ne.s32.totalorder %s182, %s184
      %p188 = scmp.eq.s32.totalorder %s19, 0
      %p189 = por %p187, %p188
      %p190 = scmp.ne.s32.totalorder %s182, %s184
      %p191 = scmp.eq.s32.totalorder %s24, 1
      %p192 = por %p190, %p191
      %p193 = scmp.ne.s32.totalorder %s184, %s185
      %p194 = scmp.eq.s32.totalorder %s24, 0
      %p195 = por %p193, %p194
      %p196 = scmp.ne.s32.totalorder %s184, %s185
      %p197 = scmp.eq.s32.totalorder %s25, 1
      %p198 = por %p196, %p197
      %p200 = scmp.ne.s32.totalorder %s185, %s199
      %p201 = scmp.eq.s32.totalorder %s25, 0
      %p202 = por %p200, %p201
      %s204 = sadd.s32 %s203, 1
      %p207 = scmp.eq.s32.totalorder %s19, 1
      %p208 = scmp.ne.s32.totalorder %s203, %s205
      %p209 = scmp.eq.s32.totalorder %s19, 0
      %p210 = por %p208, %p209
      %p211 = scmp.ne.s32.totalorder %s203, %s205
      %p212 = scmp.eq.s32.totalorder %s24, 1
      %p213 = por %p211, %p212
      %p214 = scmp.ne.s32.totalorder %s205, %s206
      %p215 = scmp.eq.s32.totalorder %s24, 0
      %p216 = por %p214, %p215
      %p217 = scmp.ne.s32.totalorder %s205, %s206
      %p218 = scmp.eq.s32.totalorder %s25, 1
      %p219 = por %p217, %p218
      %p221 = scmp.ne.s32.totalorder %s206, %s220
      %p222 = scmp.eq.s32.totalorder %s25, 0
      %p223 = por %p221, %p222
      %s224 = ssub.s32 %s26, %s38
      %p225 = scmp.eq.s32.totalorder %s224, 0
      %s227 = sadd.s32 %s226, 1
      %s228 = scalar_select %p225, %s226, %s227
      %p231 = pneg %p225
      %p232 = scmp.eq.s32.totalorder %s19, 1
      %p233 = por %p231, %p232
      %p234 = scmp.ne.s32.totalorder %s226, %s229
      %p235 = scmp.eq.s32.totalorder %s19, 0
      %p236 = por %p234, %p235
      %p237 = scmp.ne.s32.totalorder %s226, %s229
      %p238 = scmp.eq.s32.totalorder %s24, 1
      %p239 = por %p237, %p238
      %p240 = scmp.ne.s32.totalorder %s229, %s230
      %p241 = scmp.eq.s32.totalorder %s24, 0
      %p242 = por %p240, %p241
      %p243 = scmp.ne.s32.totalorder %s229, %s230
      %p244 = scmp.eq.s32.totalorder %s25, 1
      %p245 = por %p243, %p244
      %p247 = scmp.ne.s32.totalorder %s230, %s246
      %p248 = scmp.eq.s32.totalorder %s25, 0
      %p249 = por %p247, %p248
      %s250 = ssub.s32 %s26, %s38
      %p251 = scmp.eq.s32.totalorder %s250, 0
      %s253 = sadd.s32 %s252, 1
      %s254 = scalar_select %p251, %s252, %s253
      %p257 = pneg %p251
      %p258 = scmp.eq.s32.totalorder %s19, 1
      %p259 = por %p257, %p258
      %p260 = scmp.ne.s32.totalorder %s252, %s255
      %p261 = scmp.eq.s32.totalorder %s19, 0
      %p262 = por %p260, %p261
      %p263 = scmp.ne.s32.totalorder %s252, %s255
      %p264 = scmp.eq.s32.totalorder %s24, 1
      %p265 = por %p263, %p264
      %p266 = scmp.ne.s32.totalorder %s255, %s256
      %p267 = scmp.eq.s32.totalorder %s24, 0
      %p268 = por %p266, %p267
      %p269 = scmp.ne.s32.totalorder %s255, %s256
      %p270 = scmp.eq.s32.totalorder %s25, 1
      %p271 = por %p269, %p270
      %p273 = scmp.ne.s32.totalorder %s256, %s272
      %p274 = scmp.eq.s32.totalorder %s25, 0
      %p275 = por %p273, %p274
      %s276 = ssub.s32 %s26, %s38
      %p277 = scmp.eq.s32.totalorder %s276, 0
      %s279 = sadd.s32 %s278, 1
      %s280 = scalar_select %p277, %s278, %s279
      %p283 = pneg %p277
      %p284 = scmp.eq.s32.totalorder %s19, 1
      %p285 = por %p283, %p284
      %p286 = scmp.ne.s32.totalorder %s278, %s281
      %p287 = scmp.eq.s32.totalorder %s19, 0
      %p288 = por %p286, %p287
      %p289 = scmp.ne.s32.totalorder %s278, %s281
      %p290 = scmp.eq.s32.totalorder %s24, 1
      %p291 = por %p289, %p290
      %p292 = scmp.ne.s32.totalorder %s281, %s282
      %p293 = scmp.eq.s32.totalorder %s24, 0
      %p294 = por %p292, %p293
      %p295 = scmp.ne.s32.totalorder %s281, %s282
      %p296 = scmp.eq.s32.totalorder %s25, 1
      %p297 = por %p295, %p296
      %p299 = scmp.ne.s32.totalorder %s282, %s298
      %p300 = scmp.eq.s32.totalorder %s25, 0
      %p301 = por %p299, %p300
      %p302 = scmp.le.s32.totalorder 1, %s19
      %p303 = scmp.lt.s32.totalorder %s19, 3
      %p304 = pnand %p302, %p303
      %p305 = pneg %p304
      // Predicated region
      $region9: #{sentiment_rnn_forward.3} parent=5 // pred_check
        _
      $region10: #{sentiment_rnn_forward.3} parent=5 // pred_check_branch
        %307 = sbr.rel (%p304) target = $region12
      $region11: #{sentiment_rnn_forward.3} parent=5 // pred_region
        %s308 = ssub.s32 %s19, 1
        // Predicated region
        $region13: #{sentiment_rnn_forward.3} parent=11 // pred_check
          %p309 = pneg %p132
        $region14: #{sentiment_rnn_forward.3} parent=11 // pred_check_branch
          %311 = sbr.rel (%p309) target = $region16
        $region15: #{sentiment_rnn_forward.3} parent=11 // pred_region
          _
        $region16: #{sentiment_rnn_forward.3} parent=11 // pred_fallthru
          _
        // Predicated region
        $region17: #{sentiment_rnn_forward.3} parent=11 // pred_check
          %p312 = pneg %p153
        $region18: #{sentiment_rnn_forward.3} parent=11 // pred_check_branch
          %314 = sbr.rel (%p312) target = $region20
        $region19: #{sentiment_rnn_forward.3} parent=11 // pred_region
          _
        $region20: #{sentiment_rnn_forward.3} parent=11 // pred_fallthru
          _
        // Predicated region
        $region21: #{sentiment_rnn_forward.3} parent=11 // pred_check
          %p315 = pneg %p174
        $region22: #{sentiment_rnn_forward.3} parent=11 // pred_check_branch
          %317 = sbr.rel (%p315) target = $region24
        $region23: #{sentiment_rnn_forward.3} parent=11 // pred_region
          _
        $region24: #{sentiment_rnn_forward.3} parent=11 // pred_fallthru
          _
        // Predicated region
        $region25: #{sentiment_rnn_forward.3} parent=11 // pred_check
          %p318 = pneg %p195
        $region26: #{sentiment_rnn_forward.3} parent=11 // pred_check_branch
          %320 = sbr.rel (%p318) target = $region28
        $region27: #{sentiment_rnn_forward.3} parent=11 // pred_region
          _
        $region28: #{sentiment_rnn_forward.3} parent=11 // pred_fallthru
          _
        // Predicated region
        $region29: #{sentiment_rnn_forward.3} parent=11 // pred_check
          %p321 = pneg %p216
        $region30: #{sentiment_rnn_forward.3} parent=11 // pred_check_branch
          %323 = sbr.rel (%p321) target = $region32
        $region31: #{sentiment_rnn_forward.3} parent=11 // pred_region
          _
        $region32: #{sentiment_rnn_forward.3} parent=11 // pred_fallthru
          _
      $region12: #{sentiment_rnn_forward.3} parent=5 // pred_fallthru
        _
      %p324 = scmp.lt.s32.totalorder %s19, 2
      // Predicated region
      $region33: #{sentiment_rnn_forward.3} parent=5 // pred_check
        %p325 = pneg %p324
      $region34: #{sentiment_rnn_forward.3} parent=5 // pred_check_branch
        %327 = sbr.rel (%p325) target = $region36
      $region35: #{sentiment_rnn_forward.3} parent=5 // pred_region
        // Predicated region
        $region37: #{sentiment_rnn_forward.3} parent=35 // pred_check
          %p328 = pneg %p53
        $region38: #{sentiment_rnn_forward.3} parent=35 // pred_check_branch
          %330 = sbr.rel (%p328) target = $region40
        $region39: #{sentiment_rnn_forward.3} parent=35 // pred_region
          %s331 = sand.u32 %s43, 1
          %s332 = sand.u32 %s43, 1
          %s333 = smul.addr %s332, 32
          %s334 = scalar_lea.vmem [#allocation6], %s333
          %s335 = smul.u32 8, %s27
          %s336 = smul.addr %s335, 2
          %s337 = sadd.s32 %s26, %s336
          %s338 = smul.addr %s337, 4
          %s339 = scalar_lea.vmem %s0, %s338
          // Predicated region
          $region41: #{sentiment_rnn_forward.3} parent=39 // pred_check
            _
          $region42: #{sentiment_rnn_forward.3} parent=39 // pred_check_branch
            %341 = sbr.rel (0) target = $region44
          $region43: #{sentiment_rnn_forward.3} parent=39 // pred_region
            // Predicated region
            $region45: #{sentiment_rnn_forward.3} parent=43 // pred_check
              _
            $region46: #{sentiment_rnn_forward.3} parent=43 // pred_check_branch
              %343 = sbr.rel target = $region48
            $region47: #{sentiment_rnn_forward.3} parent=43 // pred_region
              // Predicated region
              $region60: #{sentiment_rnn_forward.3} parent=47 // pred_check
                _
              $region61: #{sentiment_rnn_forward.3} parent=47 // pred_check_branch
                %373 = sbr.rel (0) target = $region63
              $region62: #{sentiment_rnn_forward.3} parent=47 // pred_region
                loop: start=0, step=1, limit=1
                $region64: #{sentiment_rnn_forward.3} parent=62 // loop_pre_header
                  _
                $region65: #{sentiment_rnn_forward.3} parent=62 // loop_header
                  %s375 = sphi 0, %s379
                  %p376 = scmp.ge.s32.totalorder %s375, 1
                  %s380 = sphi %s339, %s339
                  %s381 = sphi %s334, %s334
                $region66: #{sentiment_rnn_forward.3} parent=62 // loop_header_branch
                  %378 = sbr.rel (%p376) target = $region70
                $region67: #{sentiment_rnn_forward.3} parent=62 // loop_body
                  _
                $region68: #{sentiment_rnn_forward.3} parent=62 // loop_footer
                  %s379 = sadd.s32 1, %s375
                $region69: #{sentiment_rnn_forward.3} parent=62 // loop_footer_branch
                  %374 = sbr.rel target = $region65
                $region70: #{sentiment_rnn_forward.3} parent=62 // loop_exit
                  _
                %s383 = ssub.s32 16, 1
                loop: start=0, step=1, limit=1
                $region71: #{sentiment_rnn_forward.3} parent=62 // loop_pre_header
                  _
                $region72: #{sentiment_rnn_forward.3} parent=62 // loop_header
                  %s385 = sphi 0, %s389
                  %p386 = scmp.ge.s32.totalorder %s385, 1
                  %s390 = sphi %s339, %s339
                  %s391 = sphi %s334, %s334
                $region73: #{sentiment_rnn_forward.3} parent=62 // loop_header_branch
                  %388 = sbr.rel (%p386) target = $region77
                $region74: #{sentiment_rnn_forward.3} parent=62 // loop_body
                  %v392 = vld [vmem:[%s390] sm:%s383]
                  %393 = vst [vmem:[%s391] sm:%s383] %v392
                  %v394 = vld [vmem:[%s390 + $0x8] sm:%s383]
                  %395 = vst [vmem:[%s391 + $0x4] sm:%s383] %v394
                  %v396 = vld [vmem:[%s390 + $0x10] sm:%s383]
                  %397 = vst [vmem:[%s391 + $0x8] sm:%s383] %v396
                  %v398 = vld [vmem:[%s390 + $0x18] sm:%s383]
                  %399 = vst [vmem:[%s391 + $0xc] sm:%s383] %v398
                  %v400 = vld [vmem:[%s390 + $0x20] sm:%s383]
                  %401 = vst [vmem:[%s391 + $0x10] sm:%s383] %v400
                  %v402 = vld [vmem:[%s390 + $0x28] sm:%s383]
                  %403 = vst [vmem:[%s391 + $0x14] sm:%s383] %v402
                  %v404 = vld [vmem:[%s390 + $0x30] sm:%s383]
                  %405 = vst [vmem:[%s391 + $0x18] sm:%s383] %v404
                  %v406 = vld [vmem:[%s390 + $0x38] sm:%s383]
                  %407 = vst [vmem:[%s391 + $0x1c] sm:%s383] %v406
                $region75: #{sentiment_rnn_forward.3} parent=62 // loop_footer
                  %s389 = sadd.s32 1, %s385
                $region76: #{sentiment_rnn_forward.3} parent=62 // loop_footer_branch
                  %384 = sbr.rel target = $region72
                $region77: #{sentiment_rnn_forward.3} parent=62 // loop_exit
                  _
              $region63: #{sentiment_rnn_forward.3} parent=47 // pred_fallthru
                _
            $region48: #{sentiment_rnn_forward.3} parent=43 // pred_fallthru
              _
            // Predicated region
            $region49: #{sentiment_rnn_forward.3} parent=43 // pred_check
              _
            $region50: #{sentiment_rnn_forward.3} parent=43 // pred_check_branch
              %345 = sbr.rel (0) target = $region52
            $region51: #{sentiment_rnn_forward.3} parent=43 // pred_region
              %s347 = ssub.s32 16, 1
              loop: start=0, step=1, limit=1
              $region53: #{sentiment_rnn_forward.3} parent=51 // loop_pre_header
                _
              $region54: #{sentiment_rnn_forward.3} parent=51 // loop_header
                %s349 = sphi 0, %s353
                %p350 = scmp.ge.s32.totalorder %s349, 1
                %s354 = sphi %s339, %s339
                %s355 = sphi %s334, %s334
              $region55: #{sentiment_rnn_forward.3} parent=51 // loop_header_branch
                %352 = sbr.rel (%p350) target = $region59
              $region56: #{sentiment_rnn_forward.3} parent=51 // loop_body
                %v356 = vld [vmem:[%s354] sm:%s347]
                %357 = vst [vmem:[%s355] sm:%s347] %v356
                %v358 = vld [vmem:[%s354 + $0x8] sm:%s347]
                %359 = vst [vmem:[%s355 + $0x4] sm:%s347] %v358
                %v360 = vld [vmem:[%s354 + $0x10] sm:%s347]
                %361 = vst [vmem:[%s355 + $0x8] sm:%s347] %v360
                %v362 = vld [vmem:[%s354 + $0x18] sm:%s347]
                %363 = vst [vmem:[%s355 + $0xc] sm:%s347] %v362
                %v364 = vld [vmem:[%s354 + $0x20] sm:%s347]
                %365 = vst [vmem:[%s355 + $0x10] sm:%s347] %v364
                %v366 = vld [vmem:[%s354 + $0x28] sm:%s347]
                %367 = vst [vmem:[%s355 + $0x14] sm:%s347] %v366
                %v368 = vld [vmem:[%s354 + $0x30] sm:%s347]
                %369 = vst [vmem:[%s355 + $0x18] sm:%s347] %v368
                %v370 = vld [vmem:[%s354 + $0x38] sm:%s347]
                %371 = vst [vmem:[%s355 + $0x1c] sm:%s347] %v370
              $region57: #{sentiment_rnn_forward.3} parent=51 // loop_footer
                %s353 = sadd.s32 1, %s349
              $region58: #{sentiment_rnn_forward.3} parent=51 // loop_footer_branch
                %348 = sbr.rel target = $region54
              $region59: #{sentiment_rnn_forward.3} parent=51 // loop_exit
                _
            $region52: #{sentiment_rnn_forward.3} parent=43 // pred_fallthru
              _
          $region44: #{sentiment_rnn_forward.3} parent=39 // pred_fallthru
            _
          %408 = vnop
        $region40: #{sentiment_rnn_forward.3} parent=35 // pred_fallthru
          _
        // Predicated region
        $region78: #{sentiment_rnn_forward.3} parent=35 // pred_check
          %p409 = pneg %p79
        $region79: #{sentiment_rnn_forward.3} parent=35 // pred_check_branch
          %411 = sbr.rel (%p409) target = $region81
        $region80: #{sentiment_rnn_forward.3} parent=35 // pred_region
          %p412 = scmp.lt.s32.totalorder %s26, 1
          %s413 = scalar_select %p412, %s26, 1
          %s414 = smul.addr %s413, 8
          %s415 = scalar_lea.vmem %s1, %s414
        $region81: #{sentiment_rnn_forward.3} parent=35 // pred_fallthru
          _
        // Predicated region
        $region82: #{sentiment_rnn_forward.3} parent=35 // pred_check
          %p416 = pneg %p105
        $region83: #{sentiment_rnn_forward.3} parent=35 // pred_check_branch
          %418 = sbr.rel (%p416) target = $region85
        $region84: #{sentiment_rnn_forward.3} parent=35 // pred_region
          %p419 = scmp.lt.s32.totalorder %s26, 1
          %s420 = scalar_select %p419, %s26, 1
          %s421 = smul.addr %s420, 8
          %s422 = scalar_lea.vmem %s2, %s421
        $region85: #{sentiment_rnn_forward.3} parent=35 // pred_fallthru
          _
      $region36: #{sentiment_rnn_forward.3} parent=5 // pred_fallthru
        _
      %p423 = scmp.le.s32.totalorder 1, %s19
      %p424 = scmp.lt.s32.totalorder %s19, 3
      %p425 = pnand %p423, %p424
      %p426 = pneg %p425
      // Predicated region
      $region86: #{sentiment_rnn_forward.3} parent=5 // pred_check
        _
      $region87: #{sentiment_rnn_forward.3} parent=5 // pred_check_branch
        %428 = sbr.rel (%p425) target = $region89
      $region88: #{sentiment_rnn_forward.3} parent=5 // pred_region
        %s429 = ssub.s32 %s19, 1
        %s430 = sand.u32 %s46, 1
        %s431 = sand.u32 %s46, 1
        %s432 = smul.addr %s431, 32
        %s433 = scalar_lea.vmem [#allocation6], %s432
        // Predicated region
        $region90: #{sentiment_rnn_forward.3} parent=88 // pred_check
          %p434 = pneg %p59
        $region91: #{sentiment_rnn_forward.3} parent=88 // pred_check_branch
          %436 = sbr.rel (%p434) target = $region93
        $region92: #{sentiment_rnn_forward.3} parent=88 // pred_region
          _
        $region93: #{sentiment_rnn_forward.3} parent=88 // pred_fallthru
          _
        %s437 = sand.u32 %s46, 1
        %s438 = sand.u32 %s46, 1
        %s439 = smul.addr %s438, 32
        %s440 = scalar_lea.vmem [#allocation6], %s439
        %p441 = pneg %p59
        %p442 = pneg %p56
        %p443 = scmp.lt.s32.totalorder %s28, 1
        %s444 = scalar_select %p443, %s28, 1
        %s445 = smul.addr %s444, 8
        %s446 = scalar_lea.vmem %s1, %s445
        %p447 = pneg %p85
        %p448 = pneg %p82
        %p449 = scmp.lt.s32.totalorder %s28, 1
        %s450 = scalar_select %p449, %s28, 1
        %s451 = smul.addr %s450, 8
        %s452 = scalar_lea.vmem %s2, %s451
        %p453 = pneg %p111
        %p454 = pneg %p108
        %p455 = pneg %p132
        %p456 = pneg %p129
        %p457 = pneg %p153
        %p458 = pneg %p150
        %p459 = pneg %p174
        %p460 = pneg %p171
        %p461 = pneg %p195
        %p462 = pneg %p192
        %p463 = pneg %p216
        %p464 = pneg %p213
        %p465 = pneg %p242
        %p466 = pneg %p239
        %p467 = scmp.lt.s32.totalorder %s28, 1
        %s468 = scalar_select %p467, %s28, 1
        %s469 = smul.addr %s468, 8
        %s470 = scalar_lea.vmem %s8, %s469
        %p471 = pneg %p268
        %p472 = pneg %p265
        %p473 = scmp.lt.s32.totalorder %s28, 1
        %s474 = scalar_select %p473, %s28, 1
        %s475 = smul.addr %s474, 8
        %s476 = scalar_lea.vmem %s9, %s475
        %p477 = pneg %p294
        %p478 = pneg %p291
        %p479 = scmp.lt.s32.totalorder %s28, 1
        %s480 = scalar_select %p479, %s28, 1
        %s481 = smul.addr %s480, 8
        %s482 = scalar_lea.vmem %s10, %s481
        %s483 = smul.u32 8, %s29
        %p484 = scmp.lt.s32.totalorder %s28, 1
        %s485 = scalar_select %p484, %s28, 1
        %s486 = smul.addr %s485, 8
        %s487 = scalar_lea.vmem %s1, %s486
        %p488 = scmp.lt.s32.totalorder %s28, 1
        %s489 = scalar_select %p488, %s28, 1
        %s490 = smul.addr %s489, 8
        %s491 = scalar_lea.vmem %s2, %s490
        %p492 = scmp.lt.s32.totalorder %s28, 1
        %s493 = scalar_select %p492, %s28, 1
        %s494 = smul.addr %s493, 8
        %s495 = scalar_lea.vmem %s8, %s494
        %p496 = scmp.lt.s32.totalorder %s28, 1
        %s497 = scalar_select %p496, %s28, 1
        %s498 = smul.addr %s497, 8
        %s499 = scalar_lea.vmem %s9, %s498
        %p500 = scmp.lt.s32.totalorder %s28, 1
        %s501 = scalar_select %p500, %s28, 1
        %s502 = smul.addr %s501, 8
        %s503 = scalar_lea.vmem %s10, %s502
        %p504 = scmp.eq.s32.totalorder %s29, 0
        // Predicated region
        $region94: #{sentiment_rnn_forward.3} parent=88 // pred_check
          %p505 = pneg %p504
        $region95: #{sentiment_rnn_forward.3} parent=88 // pred_check_branch
          %507 = sbr.rel (%p505) target = $region97
        $region96: #{sentiment_rnn_forward.3} parent=88 // pred_region
          %v508 = vld [vmem:[%s487] sm:$0xff]
          %509 = vst [vmem:[#allocation2] sm:$0xff] %v508
          %v510 = vld [vmem:[%s491] sm:$0xff]
          %511 = vst [vmem:[#allocation3] sm:$0xff] %v510
        $region97: #{sentiment_rnn_forward.3} parent=88 // pred_fallthru
          _
        %v512 = vld [vmem:[%s433] sm:$0xf]
        %v513 = vld [vmem:[%s433 + $0x4] sm:$0xf]
        %v514 = vld [vmem:[%s433 + $0x8] sm:$0xf]
        %v515 = vld [vmem:[%s433 + $0xc] sm:$0xf]
        %v516 = vld [vmem:[%s433 + $0x10] sm:$0xf]
        %v517 = vld [vmem:[%s433 + $0x14] sm:$0xf]
        %v518 = vld [vmem:[%s433 + $0x18] sm:$0xf]
        %v519 = vld [vmem:[%s433 + $0x1c] sm:$0xf]
        %v520 = vld [vmem:[%s3] sm:$0xff]
        %v521 = vld [vmem:[%s3 + $0x8] sm:$0xff]
        %v522 = vld [vmem:[%s3 + $0x10] sm:$0xff]
        %v523 = vld [vmem:[%s3 + $0x18] sm:$0xff]
        %v524 = vld [vmem:[%s3 + $0x20] sm:$0xff]
        %v525 = vld [vmem:[%s3 + $0x28] sm:$0xff]
        %v526 = vld [vmem:[%s3 + $0x30] sm:$0xff]
        %v527 = vld [vmem:[%s3 + $0x38] sm:$0xff]
        %v528 = vld [vmem:[%s3 + $0x40] sm:$0xff]
        %v529 = vld [vmem:[%s3 + $0x48] sm:$0xff]
        %v530 = vld [vmem:[%s3 + $0x50] sm:$0xff]
        %v531 = vld [vmem:[%s3 + $0x58] sm:$0xff]
        %v532 = vld [vmem:[%s3 + $0x60] sm:$0xff]
        %v533 = vld [vmem:[%s3 + $0x68] sm:$0xff]
        %v534 = vld [vmem:[%s3 + $0x70] sm:$0xff]
        %v535 = vld [vmem:[%s3 + $0x78] sm:$0xff]
        %v536 = vld [vmem:[%s3 + $0x80] sm:$0xff]
        %v537 = vld [vmem:[%s3 + $0x88] sm:$0xff]
        %v538 = vld [vmem:[%s3 + $0x90] sm:$0xff]
        %v539 = vld [vmem:[%s3 + $0x98] sm:$0xff]
        %v540 = vld [vmem:[%s3 + $0xa0] sm:$0xff]
        %v541 = vld [vmem:[%s3 + $0xa8] sm:$0xff]
        %v542 = vld [vmem:[%s3 + $0xb0] sm:$0xff]
        %v543 = vld [vmem:[%s3 + $0xb8] sm:$0xff]
        %v544 = vld [vmem:[%s3 + $0xc0] sm:$0xff]
        %v545 = vld [vmem:[%s3 + $0xc8] sm:$0xff]
        %v546 = vld [vmem:[%s3 + $0xd0] sm:$0xff]
        %v547 = vld [vmem:[%s3 + $0xd8] sm:$0xff]
        %v548 = vld [vmem:[%s3 + $0xe0] sm:$0xff]
        %v549 = vld [vmem:[%s3 + $0xe8] sm:$0xff]
        %v550 = vld [vmem:[%s3 + $0xf0] sm:$0xff]
        %v551 = vld [vmem:[%s3 + $0xf8] sm:$0xff]
        %v552 = vld [vmem:[%s5] sm:$0xf]
        %v554 = vperm.slane %v552, 0
        %v555 = vperm.slane %v552, 1
        %v556 = vperm.slane %v552, 2
        %v557 = vperm.slane %v552, 3
        %v570 = vunpack.c.l.b16 %v512
        %v571 = vunpack.c.l.b16 %v513
        %v572 = vunpack.c.l.b16 %v514
        %v573 = vunpack.c.l.b16 %v515
        %v574 = vunpack.c.l.b16 %v516
        %v575 = vunpack.c.l.b16 %v517
        %v576 = vunpack.c.l.b16 %v518
        %v577 = vunpack.c.l.b16 %v519
        %v578 = vpack.c.b16 %v571, %v570
        %v579 = vpack.c.b16 %v573, %v572
        %v580 = vpack.c.b16 %v575, %v574
        %v581 = vpack.c.b16 %v577, %v576
        %v618 = vunpack.c.l.b16 %v520
        %v619 = vunpack.c.h.b16 %v520
        %v620 = vunpack.c.l.b16 %v521
        %v621 = vunpack.c.h.b16 %v521
        %v622 = vunpack.c.l.b16 %v522
        %v623 = vunpack.c.h.b16 %v522
        %v624 = vunpack.c.l.b16 %v523
        %v625 = vunpack.c.h.b16 %v523
        %v626 = vunpack.c.l.b16 %v524
        %v627 = vunpack.c.h.b16 %v524
        %v628 = vunpack.c.l.b16 %v525
        %v629 = vunpack.c.h.b16 %v525
        %v630 = vunpack.c.l.b16 %v526
        %v631 = vunpack.c.h.b16 %v526
        %v632 = vunpack.c.l.b16 %v527
        %v633 = vunpack.c.h.b16 %v527
        %v634 = vunpack.c.l.b16 %v528
        %v635 = vunpack.c.h.b16 %v528
        %v636 = vunpack.c.l.b16 %v529
        %v637 = vunpack.c.h.b16 %v529
        %v638 = vunpack.c.l.b16 %v530
        %v639 = vunpack.c.h.b16 %v530
        %v640 = vunpack.c.l.b16 %v531
        %v641 = vunpack.c.h.b16 %v531
        %v642 = vunpack.c.l.b16 %v532
        %v643 = vunpack.c.h.b16 %v532
        %v644 = vunpack.c.l.b16 %v533
        %v645 = vunpack.c.h.b16 %v533
        %v646 = vunpack.c.l.b16 %v534
        %v647 = vunpack.c.h.b16 %v534
        %v648 = vunpack.c.l.b16 %v535
        %v649 = vunpack.c.h.b16 %v535
        %v650 = vunpack.c.l.b16 %v536
        %v651 = vunpack.c.h.b16 %v536
        %v652 = vunpack.c.l.b16 %v537
        %v653 = vunpack.c.h.b16 %v537
        %v654 = vunpack.c.l.b16 %v538
        %v655 = vunpack.c.h.b16 %v538
        %v656 = vunpack.c.l.b16 %v539
        %v657 = vunpack.c.h.b16 %v539
        %v658 = vunpack.c.l.b16 %v540
        %v659 = vunpack.c.h.b16 %v540
        %v660 = vunpack.c.l.b16 %v541
        %v661 = vunpack.c.h.b16 %v541
        %v662 = vunpack.c.l.b16 %v542
        %v663 = vunpack.c.h.b16 %v542
        %v664 = vunpack.c.l.b16 %v543
        %v665 = vunpack.c.h.b16 %v543
        %v666 = vunpack.c.l.b16 %v544
        %v667 = vunpack.c.h.b16 %v544
        %v668 = vunpack.c.l.b16 %v545
        %v669 = vunpack.c.h.b16 %v545
        %v670 = vunpack.c.l.b16 %v546
        %v671 = vunpack.c.h.b16 %v546
        %v672 = vunpack.c.l.b16 %v547
        %v673 = vunpack.c.h.b16 %v547
        %v674 = vunpack.c.l.b16 %v548
        %v675 = vunpack.c.h.b16 %v548
        %v676 = vunpack.c.l.b16 %v549
        %v677 = vunpack.c.h.b16 %v549
        %v678 = vunpack.c.l.b16 %v550
        %v679 = vunpack.c.h.b16 %v550
        %v680 = vunpack.c.l.b16 %v551
        %v681 = vunpack.c.h.b16 %v551
        %v682 = vpack.c.b16 %v622, %v618
        %v683 = vpack.c.b16 %v623, %v619
        %v684 = vpack.c.b16 %v624, %v620
        %v685 = vpack.c.b16 %v625, %v621
        %v686 = vpack.c.b16 %v630, %v626
        %v687 = vpack.c.b16 %v631, %v627
        %v688 = vpack.c.b16 %v632, %v628
        %v689 = vpack.c.b16 %v633, %v629
        %v690 = vpack.c.b16 %v638, %v634
        %v691 = vpack.c.b16 %v639, %v635
        %v692 = vpack.c.b16 %v640, %v636
        %v693 = vpack.c.b16 %v641, %v637
        %v694 = vpack.c.b16 %v646, %v642
        %v695 = vpack.c.b16 %v647, %v643
        %v696 = vpack.c.b16 %v648, %v644
        %v697 = vpack.c.b16 %v649, %v645
        %v698 = vpack.c.b16 %v654, %v650
        %v699 = vpack.c.b16 %v655, %v651
        %v700 = vpack.c.b16 %v656, %v652
        %v701 = vpack.c.b16 %v657, %v653
        %v702 = vpack.c.b16 %v662, %v658
        %v703 = vpack.c.b16 %v663, %v659
        %v704 = vpack.c.b16 %v664, %v660
        %v705 = vpack.c.b16 %v665, %v661
        %v706 = vpack.c.b16 %v670, %v666
        %v707 = vpack.c.b16 %v671, %v667
        %v708 = vpack.c.b16 %v672, %v668
        %v709 = vpack.c.b16 %v673, %v669
        %v710 = vpack.c.b16 %v678, %v674
        %v711 = vpack.c.b16 %v679, %v675
        %v712 = vpack.c.b16 %v680, %v676
        %v713 = vpack.c.b16 %v681, %v677
        %746 = vmatpush.bf16.msra.mxu0 %v710
        %747 = vmatpush.bf16.msra.mxu0 %v706
        %748 = vmatpush.bf16.msra.mxu0 %v702
        %749 = vmatpush.bf16.msra.mxu0 %v698
        %750 = vmatpush.bf16.msra.mxu0 %v694
        %751 = vmatpush.bf16.msra.mxu0 %v690
        %752 = vmatpush.bf16.msra.mxu0 %v686
        %753 = vmatpush.bf16.msra.mxu0 %v682
        %754 = vmatmul.bf16.gmra.mxu0 %v578
        %v755 = vpop.f32.mrf.mxu0
        %v756 = vadd.f32 %v554, %v755
        %v757 = vpop.f32.mrf.mxu0
        %v758 = vadd.f32 %v554, %v757
        %759 = vmatmul.bf16.gmra.mxu0 %v579
        %v760 = vpop.f32.mrf.mxu0
        %v761 = vadd.f32 %v554, %v760
        %v762 = vpop.f32.mrf.mxu0
        %v763 = vadd.f32 %v554, %v762
        %764 = vmatmul.bf16.gmra.mxu0 %v580
        %v765 = vpop.f32.mrf.mxu0
        %v766 = vadd.f32 %v554, %v765
        %v767 = vpop.f32.mrf.mxu0
        %v768 = vadd.f32 %v554, %v767
        %769 = vmatmul.bf16.gmra.mxu0 %v581
        %v770 = vpop.f32.mrf.mxu0
        %v771 = vadd.f32 %v554, %v770
        %v772 = vpop.f32.mrf.mxu0
        %v773 = vadd.f32 %v554, %v772
        %774 = vdwg.mxu0
        %775 = vmatpush.bf16.msra.mxu0 %v711
        %776 = vmatpush.bf16.msra.mxu0 %v707
        %777 = vmatpush.bf16.msra.mxu0 %v703
        %778 = vmatpush.bf16.msra.mxu0 %v699
        %779 = vmatpush.bf16.msra.mxu0 %v695
        %780 = vmatpush.bf16.msra.mxu0 %v691
        %781 = vmatpush.bf16.msra.mxu0 %v687
        %782 = vmatpush.bf16.msra.mxu0 %v683
        %783 = vmatmul.bf16.gmra.mxu0 %v578
        %v784 = vpop.f32.mrf.mxu0
        %v785 = vadd.f32 %v555, %v784
        %v786 = vpop.f32.mrf.mxu0
        %v787 = vadd.f32 %v555, %v786
        %788 = vmatmul.bf16.gmra.mxu0 %v579
        %v789 = vpop.f32.mrf.mxu0
        %v790 = vadd.f32 %v555, %v789
        %v791 = vpop.f32.mrf.mxu0
        %v792 = vadd.f32 %v555, %v791
        %793 = vmatmul.bf16.gmra.mxu0 %v580
        %v794 = vpop.f32.mrf.mxu0
        %v795 = vadd.f32 %v555, %v794
        %v796 = vpop.f32.mrf.mxu0
        %v797 = vadd.f32 %v555, %v796
        %798 = vmatmul.bf16.gmra.mxu0 %v581
        %v799 = vpop.f32.mrf.mxu0
        %v800 = vadd.f32 %v555, %v799
        %v801 = vpop.f32.mrf.mxu0
        %v802 = vadd.f32 %v555, %v801
        %803 = vdwg.mxu0
        %804 = vmatpush.bf16.msra.mxu0 %v712
        %805 = vmatpush.bf16.msra.mxu0 %v708
        %806 = vmatpush.bf16.msra.mxu0 %v704
        %807 = vmatpush.bf16.msra.mxu0 %v700
        %808 = vmatpush.bf16.msra.mxu0 %v696
        %809 = vmatpush.bf16.msra.mxu0 %v692
        %810 = vmatpush.bf16.msra.mxu0 %v688
        %811 = vmatpush.bf16.msra.mxu0 %v684
        %812 = vmatmul.bf16.gmra.mxu0 %v578
        %v813 = vpop.f32.mrf.mxu0
        %v814 = vadd.f32 %v556, %v813
        %v815 = vpop.f32.mrf.mxu0
        %v816 = vadd.f32 %v556, %v815
        %817 = vmatmul.bf16.gmra.mxu0 %v579
        %v818 = vpop.f32.mrf.mxu0
        %v819 = vadd.f32 %v556, %v818
        %v820 = vpop.f32.mrf.mxu0
        %v821 = vadd.f32 %v556, %v820
        %822 = vmatmul.bf16.gmra.mxu0 %v580
        %v823 = vpop.f32.mrf.mxu0
        %v824 = vadd.f32 %v556, %v823
        %v825 = vpop.f32.mrf.mxu0
        %v826 = vadd.f32 %v556, %v825
        %827 = vmatmul.bf16.gmra.mxu0 %v581
        %v828 = vpop.f32.mrf.mxu0
        %v829 = vadd.f32 %v556, %v828
        %v830 = vpop.f32.mrf.mxu0
        %v831 = vadd.f32 %v556, %v830
        %832 = vdwg.mxu0
        %833 = vmatpush.bf16.msra.mxu0 %v713
        %834 = vmatpush.bf16.msra.mxu0 %v709
        %835 = vmatpush.bf16.msra.mxu0 %v705
        %836 = vmatpush.bf16.msra.mxu0 %v701
        %837 = vmatpush.bf16.msra.mxu0 %v697
        %838 = vmatpush.bf16.msra.mxu0 %v693
        %839 = vmatpush.bf16.msra.mxu0 %v689
        %840 = vmatpush.bf16.msra.mxu0 %v685
        %841 = vmatmul.bf16.gmra.mxu0 %v578
        %v842 = vpop.f32.mrf.mxu0
        %v843 = vadd.f32 %v557, %v842
        %v844 = vpop.f32.mrf.mxu0
        %v845 = vadd.f32 %v557, %v844
        %846 = vmatmul.bf16.gmra.mxu0 %v579
        %v847 = vpop.f32.mrf.mxu0
        %v848 = vadd.f32 %v557, %v847
        %v849 = vpop.f32.mrf.mxu0
        %v850 = vadd.f32 %v557, %v849
        %851 = vmatmul.bf16.gmra.mxu0 %v580
        %v852 = vpop.f32.mrf.mxu0
        %v853 = vadd.f32 %v557, %v852
        %v854 = vpop.f32.mrf.mxu0
        %v855 = vadd.f32 %v557, %v854
        %856 = vmatmul.bf16.gmra.mxu0 %v581
        %v857 = vpop.f32.mrf.mxu0
        %v858 = vadd.f32 %v557, %v857
        %v859 = vpop.f32.mrf.mxu0
        %v860 = vadd.f32 %v557, %v859
        %861 = vdwg.mxu0
        %862 = vst [vmem:[#allocation4] sm:$0xff] %v756
        %863 = vst [vmem:[#allocation4 + $0x8] sm:$0xff] %v785
        %864 = vst [vmem:[#allocation4 + $0x10] sm:$0xff] %v814
        %865 = vst [vmem:[#allocation4 + $0x18] sm:$0xff] %v843
        %866 = vst [vmem:[#allocation4 + $0x20] sm:$0xff] %v758
        %867 = vst [vmem:[#allocation4 + $0x28] sm:$0xff] %v787
        %868 = vst [vmem:[#allocation4 + $0x30] sm:$0xff] %v816
        %869 = vst [vmem:[#allocation4 + $0x38] sm:$0xff] %v845
        %870 = vst [vmem:[#allocation4 + $0x40] sm:$0xff] %v761
        %871 = vst [vmem:[#allocation4 + $0x48] sm:$0xff] %v790
        %872 = vst [vmem:[#allocation4 + $0x50] sm:$0xff] %v819
        %873 = vst [vmem:[#allocation4 + $0x58] sm:$0xff] %v848
        %874 = vst [vmem:[#allocation4 + $0x60] sm:$0xff] %v763
        %875 = vst [vmem:[#allocation4 + $0x68] sm:$0xff] %v792
        %876 = vst [vmem:[#allocation4 + $0x70] sm:$0xff] %v821
        %877 = vst [vmem:[#allocation4 + $0x78] sm:$0xff] %v850
        %878 = vst [vmem:[#allocation4 + $0x80] sm:$0xff] %v766
        %879 = vst [vmem:[#allocation4 + $0x88] sm:$0xff] %v795
        %880 = vst [vmem:[#allocation4 + $0x90] sm:$0xff] %v824
        %881 = vst [vmem:[#allocation4 + $0x98] sm:$0xff] %v853
        %882 = vst [vmem:[#allocation4 + $0xa0] sm:$0xff] %v768
        %883 = vst [vmem:[#allocation4 + $0xa8] sm:$0xff] %v797
        %884 = vst [vmem:[#allocation4 + $0xb0] sm:$0xff] %v826
        %885 = vst [vmem:[#allocation4 + $0xb8] sm:$0xff] %v855
        %886 = vst [vmem:[#allocation4 + $0xc0] sm:$0xff] %v771
        %887 = vst [vmem:[#allocation4 + $0xc8] sm:$0xff] %v800
        %888 = vst [vmem:[#allocation4 + $0xd0] sm:$0xff] %v829
        %889 = vst [vmem:[#allocation4 + $0xd8] sm:$0xff] %v858
        %890 = vst [vmem:[#allocation4 + $0xe0] sm:$0xff] %v773
        %891 = vst [vmem:[#allocation4 + $0xe8] sm:$0xff] %v802
        %892 = vst [vmem:[#allocation4 + $0xf0] sm:$0xff] %v831
        %893 = vst [vmem:[#allocation4 + $0xf8] sm:$0xff] %v860
        %v894 = vld [vmem:[#allocation2] sm:$0xff]
        %v895 = vld [vmem:[#allocation3] sm:$0xff]
        %v896 = vld [vmem:[#allocation4] sm:$0xff]
        %v897 = vld [vmem:[#allocation4 + $0x8] sm:$0xff]
        %v898 = vld [vmem:[#allocation4 + $0x10] sm:$0xff]
        %v899 = vld [vmem:[#allocation4 + $0x18] sm:$0xff]
        %v900 = vpack.c.bf16 %v894, %v894
        %v901 = vld [vmem:[%s4] sm:$0xff]
        %v902 = vld [vmem:[%s4 + $0x8] sm:$0xff]
        %v903 = vld [vmem:[%s4 + $0x10] sm:$0xff]
        %v904 = vld [vmem:[%s4 + $0x18] sm:$0xff]
        %v905 = vld [vmem:[%s4 + $0x20] sm:$0xff]
        %v906 = vld [vmem:[%s4 + $0x28] sm:$0xff]
        %v907 = vld [vmem:[%s4 + $0x30] sm:$0xff]
        %v908 = vld [vmem:[%s4 + $0x38] sm:$0xff]
        %v909 = vld [vmem:[%s4 + $0x40] sm:$0xff]
        %v910 = vld [vmem:[%s4 + $0x48] sm:$0xff]
        %v911 = vld [vmem:[%s4 + $0x50] sm:$0xff]
        %v912 = vld [vmem:[%s4 + $0x58] sm:$0xff]
        %v913 = vld [vmem:[%s4 + $0x60] sm:$0xff]
        %v914 = vld [vmem:[%s4 + $0x68] sm:$0xff]
        %v915 = vld [vmem:[%s4 + $0x70] sm:$0xff]
        %v916 = vld [vmem:[%s4 + $0x78] sm:$0xff]
        %v917 = vld [vmem:[%s4 + $0x80] sm:$0xff]
        %v918 = vld [vmem:[%s4 + $0x88] sm:$0xff]
        %v919 = vld [vmem:[%s4 + $0x90] sm:$0xff]
        %v920 = vld [vmem:[%s4 + $0x98] sm:$0xff]
        %v921 = vld [vmem:[%s4 + $0xa0] sm:$0xff]
        %v922 = vld [vmem:[%s4 + $0xa8] sm:$0xff]
        %v923 = vld [vmem:[%s4 + $0xb0] sm:$0xff]
        %v924 = vld [vmem:[%s4 + $0xb8] sm:$0xff]
        %v925 = vld [vmem:[%s4 + $0xc0] sm:$0xff]
        %v926 = vld [vmem:[%s4 + $0xc8] sm:$0xff]
        %v927 = vld [vmem:[%s4 + $0xd0] sm:$0xff]
        %v928 = vld [vmem:[%s4 + $0xd8] sm:$0xff]
        %v929 = vld [vmem:[%s4 + $0xe0] sm:$0xff]
        %v930 = vld [vmem:[%s4 + $0xe8] sm:$0xff]
        %v931 = vld [vmem:[%s4 + $0xf0] sm:$0xff]
        %v932 = vld [vmem:[%s4 + $0xf8] sm:$0xff]
        %v965 = vunpack.c.l.b16 %v901
        %v966 = vunpack.c.h.b16 %v901
        %v967 = vunpack.c.l.b16 %v902
        %v968 = vunpack.c.h.b16 %v902
        %v969 = vunpack.c.l.b16 %v903
        %v970 = vunpack.c.h.b16 %v903
        %v971 = vunpack.c.l.b16 %v904
        %v972 = vunpack.c.h.b16 %v904
        %v973 = vunpack.c.l.b16 %v905
        %v974 = vunpack.c.h.b16 %v905
        %v975 = vunpack.c.l.b16 %v906
        %v976 = vunpack.c.h.b16 %v906
        %v977 = vunpack.c.l.b16 %v907
        %v978 = vunpack.c.h.b16 %v907
        %v979 = vunpack.c.l.b16 %v908
        %v980 = vunpack.c.h.b16 %v908
        %v981 = vunpack.c.l.b16 %v909
        %v982 = vunpack.c.h.b16 %v909
        %v983 = vunpack.c.l.b16 %v910
        %v984 = vunpack.c.h.b16 %v910
        %v985 = vunpack.c.l.b16 %v911
        %v986 = vunpack.c.h.b16 %v911
        %v987 = vunpack.c.l.b16 %v912
        %v988 = vunpack.c.h.b16 %v912
        %v989 = vunpack.c.l.b16 %v913
        %v990 = vunpack.c.h.b16 %v913
        %v991 = vunpack.c.l.b16 %v914
        %v992 = vunpack.c.h.b16 %v914
        %v993 = vunpack.c.l.b16 %v915
        %v994 = vunpack.c.h.b16 %v915
        %v995 = vunpack.c.l.b16 %v916
        %v996 = vunpack.c.h.b16 %v916
        %v997 = vunpack.c.l.b16 %v917
        %v998 = vunpack.c.h.b16 %v917
        %v999 = vunpack.c.l.b16 %v918
        %v1000 = vunpack.c.h.b16 %v918
        %v1001 = vunpack.c.l.b16 %v919
        %v1002 = vunpack.c.h.b16 %v919
        %v1003 = vunpack.c.l.b16 %v920
        %v1004 = vunpack.c.h.b16 %v920
        %v1005 = vunpack.c.l.b16 %v921
        %v1006 = vunpack.c.h.b16 %v921
        %v1007 = vunpack.c.l.b16 %v922
        %v1008 = vunpack.c.h.b16 %v922
        %v1009 = vunpack.c.l.b16 %v923
        %v1010 = vunpack.c.h.b16 %v923
        %v1011 = vunpack.c.l.b16 %v924
        %v1012 = vunpack.c.h.b16 %v924
        %v1013 = vunpack.c.l.b16 %v925
        %v1014 = vunpack.c.h.b16 %v925
        %v1015 = vunpack.c.l.b16 %v926
        %v1016 = vunpack.c.h.b16 %v926
        %v1017 = vunpack.c.l.b16 %v927
        %v1018 = vunpack.c.h.b16 %v927
        %v1019 = vunpack.c.l.b16 %v928
        %v1020 = vunpack.c.h.b16 %v928
        %v1021 = vunpack.c.l.b16 %v929
        %v1022 = vunpack.c.h.b16 %v929
        %v1023 = vunpack.c.l.b16 %v930
        %v1024 = vunpack.c.h.b16 %v930
        %v1025 = vunpack.c.l.b16 %v931
        %v1026 = vunpack.c.h.b16 %v931
        %v1027 = vunpack.c.l.b16 %v932
        %v1028 = vunpack.c.h.b16 %v932
        %v1029 = vpack.c.b16 %v969, %v965
        %v1030 = vpack.c.b16 %v970, %v966
        %v1031 = vpack.c.b16 %v971, %v967
        %v1032 = vpack.c.b16 %v972, %v968
        %v1033 = vpack.c.b16 %v977, %v973
        %v1034 = vpack.c.b16 %v978, %v974
        %v1035 = vpack.c.b16 %v979, %v975
        %v1036 = vpack.c.b16 %v980, %v976
        %v1037 = vpack.c.b16 %v985, %v981
        %v1038 = vpack.c.b16 %v986, %v982
        %v1039 = vpack.c.b16 %v987, %v983
        %v1040 = vpack.c.b16 %v988, %v984
        %v1041 = vpack.c.b16 %v993, %v989
        %v1042 = vpack.c.b16 %v994, %v990
        %v1043 = vpack.c.b16 %v995, %v991
        %v1044 = vpack.c.b16 %v996, %v992
        %v1045 = vpack.c.b16 %v1001, %v997
        %v1046 = vpack.c.b16 %v1002, %v998
        %v1047 = vpack.c.b16 %v1003, %v999
        %v1048 = vpack.c.b16 %v1004, %v1000
        %v1049 = vpack.c.b16 %v1009, %v1005
        %v1050 = vpack.c.b16 %v1010, %v1006
        %v1051 = vpack.c.b16 %v1011, %v1007
        %v1052 = vpack.c.b16 %v1012, %v1008
        %v1053 = vpack.c.b16 %v1017, %v1013
        %v1054 = vpack.c.b16 %v1018, %v1014
        %v1055 = vpack.c.b16 %v1019, %v1015
        %v1056 = vpack.c.b16 %v1020, %v1016
        %v1057 = vpack.c.b16 %v1025, %v1021
        %v1058 = vpack.c.b16 %v1026, %v1022
        %v1059 = vpack.c.b16 %v1027, %v1023
        %v1060 = vpack.c.b16 %v1028, %v1024
        %1093 = vmatpush.bf16.msra.mxu0 %v1057
        %1094 = vmatpush.bf16.msra.mxu0 %v1053
        %1095 = vmatpush.bf16.msra.mxu0 %v1049
        %1096 = vmatpush.bf16.msra.mxu0 %v1045
        %1097 = vmatpush.bf16.msra.mxu0 %v1041
        %1098 = vmatpush.bf16.msra.mxu0 %v1037
        %1099 = vmatpush.bf16.msra.mxu0 %v1033
        %1100 = vmatpush.bf16.msra.mxu0 %v1029
        %1101 = vmatmul.bf16.gmra.mxu0 %v900
        %v1102 = vpop.f32.mrf.mxu0
        %v1103 = vadd.f32 0.0, %v1102
        %v1104 = vpop.f32.mrf.mxu0
        %1105 = vdwg.mxu0
        %1106 = vmatpush.bf16.msra.mxu0 %v1058
        %1107 = vmatpush.bf16.msra.mxu0 %v1054
        %1108 = vmatpush.bf16.msra.mxu0 %v1050
        %1109 = vmatpush.bf16.msra.mxu0 %v1046
        %1110 = vmatpush.bf16.msra.mxu0 %v1042
        %1111 = vmatpush.bf16.msra.mxu0 %v1038
        %1112 = vmatpush.bf16.msra.mxu0 %v1034
        %1113 = vmatpush.bf16.msra.mxu0 %v1030
        %1114 = vmatmul.bf16.gmra.mxu0 %v900
        %v1115 = vpop.f32.mrf.mxu0
        %v1116 = vadd.f32 0.0, %v1115
        %v1117 = vpop.f32.mrf.mxu0
        %1118 = vdwg.mxu0
        %1119 = vmatpush.bf16.msra.mxu0 %v1059
        %1120 = vmatpush.bf16.msra.mxu0 %v1055
        %1121 = vmatpush.bf16.msra.mxu0 %v1051
        %1122 = vmatpush.bf16.msra.mxu0 %v1047
        %1123 = vmatpush.bf16.msra.mxu0 %v1043
        %1124 = vmatpush.bf16.msra.mxu0 %v1039
        %1125 = vmatpush.bf16.msra.mxu0 %v1035
        %1126 = vmatpush.bf16.msra.mxu0 %v1031
        %1127 = vmatmul.bf16.gmra.mxu0 %v900
        %v1128 = vpop.f32.mrf.mxu0
        %v1129 = vadd.f32 0.0, %v1128
        %v1130 = vpop.f32.mrf.mxu0
        %1131 = vdwg.mxu0
        %1132 = vmatpush.bf16.msra.mxu0 %v1060
        %1133 = vmatpush.bf16.msra.mxu0 %v1056
        %1134 = vmatpush.bf16.msra.mxu0 %v1052
        %1135 = vmatpush.bf16.msra.mxu0 %v1048
        %1136 = vmatpush.bf16.msra.mxu0 %v1044
        %1137 = vmatpush.bf16.msra.mxu0 %v1040
        %1138 = vmatpush.bf16.msra.mxu0 %v1036
        %1139 = vmatpush.bf16.msra.mxu0 %v1032
        %1140 = vmatmul.bf16.gmra.mxu0 %v900
        %v1141 = vpop.f32.mrf.mxu0
        %v1142 = vadd.f32 0.0, %v1141
        %v1143 = vpop.f32.mrf.mxu0
        %1144 = vdwg.mxu0
        %v1145 = vadd.f32 %v896, %v1103
        %v1146 = vadd.f32 %v897, %v1116
        %v1147 = vadd.f32 %v898, %v1129
        %v1148 = vadd.f32 %v899, %v1142
        %v1149 = vxor.u32 %v1145, 2147483648
        %v1150 = vmul.f32 %v1149, 1.442695
        %v1151 = vpow.pop %v1150
        %v1152 = vadd.f32 %v1151, 1.0
        %v1153 = vrcp.pop %v1152
        %v1154 = vmul.f32 %v1152, %v1153
        %v1155 = vsub.f32 1.0, %v1154
        %v1156 = vmul.f32 %v1153, %v1155
        %v1157 = vadd.f32 %v1153, %v1156
        %vm1158 = vweird.f32 %v1152
        %vm1159 = vweird.f32 %v1153
        %vm1160 = vmor %vm1158, %vm1159
        %v1161 = vsel %vm1160, %v1153, %v1157
        %v1162 = vand.u32 2147483647, %v1152
        %vm1163 = vcmp.eq.f32.partialorder %v1162, 8.507059e+37
        %v1164 = vand.u32 %v1152, 2147483648
        %v1165 = vor.u32 1.1754944e-38, %v1164
        %v1166 = vsel %vm1163, %v1165, %v1161
        %v1167 = vmul.f32 1.0, %v1166
        %v1168 = vxor.u32 %v1146, 2147483648
        %v1169 = vmul.f32 %v1168, 1.442695
        %v1170 = vpow.pop %v1169
        %v1171 = vadd.f32 %v1170, 1.0
        %v1172 = vrcp.pop %v1171
        %v1173 = vmul.f32 %v1171, %v1172
        %v1174 = vsub.f32 1.0, %v1173
        %v1175 = vmul.f32 %v1172, %v1174
        %v1176 = vadd.f32 %v1172, %v1175
        %vm1177 = vweird.f32 %v1171
        %vm1178 = vweird.f32 %v1172
        %vm1179 = vmor %vm1177, %vm1178
        %v1180 = vsel %vm1179, %v1172, %v1176
        %v1181 = vand.u32 2147483647, %v1171
        %vm1182 = vcmp.eq.f32.partialorder %v1181, 8.507059e+37
        %v1183 = vand.u32 %v1171, 2147483648
        %v1184 = vor.u32 1.1754944e-38, %v1183
        %v1185 = vsel %vm1182, %v1184, %v1180
        %v1186 = vmul.f32 1.0, %v1185
        %v1187 = vtanh.pop %v1147
        %v1188 = vxor.u32 %v1148, 2147483648
        %v1189 = vmul.f32 %v1188, 1.442695
        %v1190 = vpow.pop %v1189
        %v1191 = vadd.f32 %v1190, 1.0
        %v1192 = vrcp.pop %v1191
        %v1193 = vmul.f32 %v1191, %v1192
        %v1194 = vsub.f32 1.0, %v1193
        %v1195 = vmul.f32 %v1192, %v1194
        %v1196 = vadd.f32 %v1192, %v1195
        %vm1197 = vweird.f32 %v1191
        %vm1198 = vweird.f32 %v1192
        %vm1199 = vmor %vm1197, %vm1198
        %v1200 = vsel %vm1199, %v1192, %v1196
        %v1201 = vand.u32 2147483647, %v1191
        %vm1202 = vcmp.eq.f32.partialorder %v1201, 8.507059e+37
        %v1203 = vand.u32 %v1191, 2147483648
        %v1204 = vor.u32 1.1754944e-38, %v1203
        %v1205 = vsel %vm1202, %v1204, %v1200
        %v1206 = vmul.f32 1.0, %v1205
        %v1207 = vmul.f32 %v1186, %v895
        %v1208 = vmul.f32 %v1167, %v1187
        %v1209 = vadd.f32 %v1207, %v1208
        %v1210 = vtanh.pop %v1209
        %v1211 = vmul.f32 %v1206, %v1210
        %s1212 = scalar_lea.vmem [#allocation4], 32
        %v1213 = vld [vmem:[%s1212] sm:$0xff]
        %v1214 = vld [vmem:[%s1212 + $0x8] sm:$0xff]
        %v1215 = vld [vmem:[%s1212 + $0x10] sm:$0xff]
        %v1216 = vld [vmem:[%s1212 + $0x18] sm:$0xff]
        %v1217 = vpack.c.bf16 %v1211, %v1211
        %1218 = vmatpush.bf16.msra.mxu0 %v1057
        %1219 = vmatpush.bf16.msra.mxu0 %v1053
        %1220 = vmatpush.bf16.msra.mxu0 %v1049
        %1221 = vmatpush.bf16.msra.mxu0 %v1045
        %1222 = vmatpush.bf16.msra.mxu0 %v1041
        %1223 = vmatpush.bf16.msra.mxu0 %v1037
        %1224 = vmatpush.bf16.msra.mxu0 %v1033
        %1225 = vmatpush.bf16.msra.mxu0 %v1029
        %1226 = vmatmul.bf16.gmra.mxu0 %v1217
        %v1227 = vpop.f32.mrf.mxu0
        %v1228 = vadd.f32 0.0, %v1227
        %v1229 = vpop.f32.mrf.mxu0
        %1230 = vdwg.mxu0
        %1231 = vmatpush.bf16.msra.mxu0 %v1058
        %1232 = vmatpush.bf16.msra.mxu0 %v1054
        %1233 = vmatpush.bf16.msra.mxu0 %v1050
        %1234 = vmatpush.bf16.msra.mxu0 %v1046
        %1235 = vmatpush.bf16.msra.mxu0 %v1042
        %1236 = vmatpush.bf16.msra.mxu0 %v1038
        %1237 = vmatpush.bf16.msra.mxu0 %v1034
        %1238 = vmatpush.bf16.msra.mxu0 %v1030
        %1239 = vmatmul.bf16.gmra.mxu0 %v1217
        %v1240 = vpop.f32.mrf.mxu0
        %v1241 = vadd.f32 0.0, %v1240
        %v1242 = vpop.f32.mrf.mxu0
        %1243 = vdwg.mxu0
        %1244 = vmatpush.bf16.msra.mxu0 %v1059
        %1245 = vmatpush.bf16.msra.mxu0 %v1055
        %1246 = vmatpush.bf16.msra.mxu0 %v1051
        %1247 = vmatpush.bf16.msra.mxu0 %v1047
        %1248 = vmatpush.bf16.msra.mxu0 %v1043
        %1249 = vmatpush.bf16.msra.mxu0 %v1039
        %1250 = vmatpush.bf16.msra.mxu0 %v1035
        %1251 = vmatpush.bf16.msra.mxu0 %v1031
        %1252 = vmatmul.bf16.gmra.mxu0 %v1217
        %v1253 = vpop.f32.mrf.mxu0
        %v1254 = vadd.f32 0.0, %v1253
        %v1255 = vpop.f32.mrf.mxu0
        %1256 = vdwg.mxu0
        %1257 = vmatpush.bf16.msra.mxu0 %v1060
        %1258 = vmatpush.bf16.msra.mxu0 %v1056
        %1259 = vmatpush.bf16.msra.mxu0 %v1052
        %1260 = vmatpush.bf16.msra.mxu0 %v1048
        %1261 = vmatpush.bf16.msra.mxu0 %v1044
        %1262 = vmatpush.bf16.msra.mxu0 %v1040
        %1263 = vmatpush.bf16.msra.mxu0 %v1036
        %1264 = vmatpush.bf16.msra.mxu0 %v1032
        %1265 = vmatmul.bf16.gmra.mxu0 %v1217
        %v1266 = vpop.f32.mrf.mxu0
        %v1267 = vadd.f32 0.0, %v1266
        %v1268 = vpop.f32.mrf.mxu0
        %1269 = vdwg.mxu0
        %v1270 = vadd.f32 %v1213, %v1228
        %v1271 = vadd.f32 %v1214, %v1241
        %v1272 = vadd.f32 %v1215, %v1254
        %v1273 = vadd.f32 %v1216, %v1267
        %v1274 = vxor.u32 %v1270, 2147483648
        %v1275 = vmul.f32 %v1274, 1.442695
        %v1276 = vpow.pop %v1275
        %v1277 = vadd.f32 %v1276, 1.0
        %v1278 = vrcp.pop %v1277
        %v1279 = vmul.f32 %v1277, %v1278
        %v1280 = vsub.f32 1.0, %v1279
        %v1281 = vmul.f32 %v1278, %v1280
        %v1282 = vadd.f32 %v1278, %v1281
        %vm1283 = vweird.f32 %v1277
        %vm1284 = vweird.f32 %v1278
        %vm1285 = vmor %vm1283, %vm1284
        %v1286 = vsel %vm1285, %v1278, %v1282
        %v1287 = vand.u32 2147483647, %v1277
        %vm1288 = vcmp.eq.f32.partialorder %v1287, 8.507059e+37
        %v1289 = vand.u32 %v1277, 2147483648
        %v1290 = vor.u32 1.1754944e-38, %v1289
        %v1291 = vsel %vm1288, %v1290, %v1286
        %v1292 = vmul.f32 1.0, %v1291
        %v1293 = vxor.u32 %v1271, 2147483648
        %v1294 = vmul.f32 %v1293, 1.442695
        %v1295 = vpow.pop %v1294
        %v1296 = vadd.f32 %v1295, 1.0
        %v1297 = vrcp.pop %v1296
        %v1298 = vmul.f32 %v1296, %v1297
        %v1299 = vsub.f32 1.0, %v1298
        %v1300 = vmul.f32 %v1297, %v1299
        %v1301 = vadd.f32 %v1297, %v1300
        %vm1302 = vweird.f32 %v1296
        %vm1303 = vweird.f32 %v1297
        %vm1304 = vmor %vm1302, %vm1303
        %v1305 = vsel %vm1304, %v1297, %v1301
        %v1306 = vand.u32 2147483647, %v1296
        %vm1307 = vcmp.eq.f32.partialorder %v1306, 8.507059e+37
        %v1308 = vand.u32 %v1296, 2147483648
        %v1309 = vor.u32 1.1754944e-38, %v1308
        %v1310 = vsel %vm1307, %v1309, %v1305
        %v1311 = vmul.f32 1.0, %v1310
        %v1312 = vtanh.pop %v1272
        %v1313 = vxor.u32 %v1273, 2147483648
        %v1314 = vmul.f32 %v1313, 1.442695
        %v1315 = vpow.pop %v1314
        %v1316 = vadd.f32 %v1315, 1.0
        %v1317 = vrcp.pop %v1316
        %v1318 = vmul.f32 %v1316, %v1317
        %v1319 = vsub.f32 1.0, %v1318
        %v1320 = vmul.f32 %v1317, %v1319
        %v1321 = vadd.f32 %v1317, %v1320
        %vm1322 = vweird.f32 %v1316
        %vm1323 = vweird.f32 %v1317
        %vm1324 = vmor %vm1322, %vm1323
        %v1325 = vsel %vm1324, %v1317, %v1321
        %v1326 = vand.u32 2147483647, %v1316
        %vm1327 = vcmp.eq.f32.partialorder %v1326, 8.507059e+37
        %v1328 = vand.u32 %v1316, 2147483648
        %v1329 = vor.u32 1.1754944e-38, %v1328
        %v1330 = vsel %vm1327, %v1329, %v1325
        %v1331 = vmul.f32 1.0, %v1330
        %v1332 = vmul.f32 %v1311, %v1209
        %v1333 = vmul.f32 %v1292, %v1312
        %v1334 = vadd.f32 %v1332, %v1333
        %v1335 = vtanh.pop %v1334
        %v1336 = vmul.f32 %v1331, %v1335
        %s1337 = scalar_lea.vmem [#allocation4], 64
        %v1338 = vld [vmem:[%s1337] sm:$0xff]
        %v1339 = vld [vmem:[%s1337 + $0x8] sm:$0xff]
        %v1340 = vld [vmem:[%s1337 + $0x10] sm:$0xff]
        %v1341 = vld [vmem:[%s1337 + $0x18] sm:$0xff]
        %v1342 = vpack.c.bf16 %v1336, %v1336
        %1343 = vmatpush.bf16.msra.mxu0 %v1057
        %1344 = vmatpush.bf16.msra.mxu0 %v1053
        %1345 = vmatpush.bf16.msra.mxu0 %v1049
        %1346 = vmatpush.bf16.msra.mxu0 %v1045
        %1347 = vmatpush.bf16.msra.mxu0 %v1041
        %1348 = vmatpush.bf16.msra.mxu0 %v1037
        %1349 = vmatpush.bf16.msra.mxu0 %v1033
        %1350 = vmatpush.bf16.msra.mxu0 %v1029
        %1351 = vmatmul.bf16.gmra.mxu0 %v1342
        %v1352 = vpop.f32.mrf.mxu0
        %v1353 = vadd.f32 0.0, %v1352
        %v1354 = vpop.f32.mrf.mxu0
        %1355 = vdwg.mxu0
        %1356 = vmatpush.bf16.msra.mxu0 %v1058
        %1357 = vmatpush.bf16.msra.mxu0 %v1054
        %1358 = vmatpush.bf16.msra.mxu0 %v1050
        %1359 = vmatpush.bf16.msra.mxu0 %v1046
        %1360 = vmatpush.bf16.msra.mxu0 %v1042
        %1361 = vmatpush.bf16.msra.mxu0 %v1038
        %1362 = vmatpush.bf16.msra.mxu0 %v1034
        %1363 = vmatpush.bf16.msra.mxu0 %v1030
        %1364 = vmatmul.bf16.gmra.mxu0 %v1342
        %v1365 = vpop.f32.mrf.mxu0
        %v1366 = vadd.f32 0.0, %v1365
        %v1367 = vpop.f32.mrf.mxu0
        %1368 = vdwg.mxu0
        %1369 = vmatpush.bf16.msra.mxu0 %v1059
        %1370 = vmatpush.bf16.msra.mxu0 %v1055
        %1371 = vmatpush.bf16.msra.mxu0 %v1051
        %1372 = vmatpush.bf16.msra.mxu0 %v1047
        %1373 = vmatpush.bf16.msra.mxu0 %v1043
        %1374 = vmatpush.bf16.msra.mxu0 %v1039
        %1375 = vmatpush.bf16.msra.mxu0 %v1035
        %1376 = vmatpush.bf16.msra.mxu0 %v1031
        %1377 = vmatmul.bf16.gmra.mxu0 %v1342
        %v1378 = vpop.f32.mrf.mxu0
        %v1379 = vadd.f32 0.0, %v1378
        %v1380 = vpop.f32.mrf.mxu0
        %1381 = vdwg.mxu0
        %1382 = vmatpush.bf16.msra.mxu0 %v1060
        %1383 = vmatpush.bf16.msra.mxu0 %v1056
        %1384 = vmatpush.bf16.msra.mxu0 %v1052
        %1385 = vmatpush.bf16.msra.mxu0 %v1048
        %1386 = vmatpush.bf16.msra.mxu0 %v1044
        %1387 = vmatpush.bf16.msra.mxu0 %v1040
        %1388 = vmatpush.bf16.msra.mxu0 %v1036
        %1389 = vmatpush.bf16.msra.mxu0 %v1032
        %1390 = vmatmul.bf16.gmra.mxu0 %v1342
        %v1391 = vpop.f32.mrf.mxu0
        %v1392 = vadd.f32 0.0, %v1391
        %v1393 = vpop.f32.mrf.mxu0
        %1394 = vdwg.mxu0
        %v1395 = vadd.f32 %v1338, %v1353
        %v1396 = vadd.f32 %v1339, %v1366
        %v1397 = vadd.f32 %v1340, %v1379
        %v1398 = vadd.f32 %v1341, %v1392
        %v1399 = vxor.u32 %v1395, 2147483648
        %v1400 = vmul.f32 %v1399, 1.442695
        %v1401 = vpow.pop %v1400
        %v1402 = vadd.f32 %v1401, 1.0
        %v1403 = vrcp.pop %v1402
        %v1404 = vmul.f32 %v1402, %v1403
        %v1405 = vsub.f32 1.0, %v1404
        %v1406 = vmul.f32 %v1403, %v1405
        %v1407 = vadd.f32 %v1403, %v1406
        %vm1408 = vweird.f32 %v1402
        %vm1409 = vweird.f32 %v1403
        %vm1410 = vmor %vm1408, %vm1409
        %v1411 = vsel %vm1410, %v1403, %v1407
        %v1412 = vand.u32 2147483647, %v1402
        %vm1413 = vcmp.eq.f32.partialorder %v1412, 8.507059e+37
        %v1414 = vand.u32 %v1402, 2147483648
        %v1415 = vor.u32 1.1754944e-38, %v1414
        %v1416 = vsel %vm1413, %v1415, %v1411
        %v1417 = vmul.f32 1.0, %v1416
        %v1418 = vxor.u32 %v1396, 2147483648
        %v1419 = vmul.f32 %v1418, 1.442695
        %v1420 = vpow.pop %v1419
        %v1421 = vadd.f32 %v1420, 1.0
        %v1422 = vrcp.pop %v1421
        %v1423 = vmul.f32 %v1421, %v1422
        %v1424 = vsub.f32 1.0, %v1423
        %v1425 = vmul.f32 %v1422, %v1424
        %v1426 = vadd.f32 %v1422, %v1425
        %vm1427 = vweird.f32 %v1421
        %vm1428 = vweird.f32 %v1422
        %vm1429 = vmor %vm1427, %vm1428
        %v1430 = vsel %vm1429, %v1422, %v1426
        %v1431 = vand.u32 2147483647, %v1421
        %vm1432 = vcmp.eq.f32.partialorder %v1431, 8.507059e+37
        %v1433 = vand.u32 %v1421, 2147483648
        %v1434 = vor.u32 1.1754944e-38, %v1433
        %v1435 = vsel %vm1432, %v1434, %v1430
        %v1436 = vmul.f32 1.0, %v1435
        %v1437 = vtanh.pop %v1397
        %v1438 = vxor.u32 %v1398, 2147483648
        %v1439 = vmul.f32 %v1438, 1.442695
        %v1440 = vpow.pop %v1439
        %v1441 = vadd.f32 %v1440, 1.0
        %v1442 = vrcp.pop %v1441
        %v1443 = vmul.f32 %v1441, %v1442
        %v1444 = vsub.f32 1.0, %v1443
        %v1445 = vmul.f32 %v1442, %v1444
        %v1446 = vadd.f32 %v1442, %v1445
        %vm1447 = vweird.f32 %v1441
        %vm1448 = vweird.f32 %v1442
        %vm1449 = vmor %vm1447, %vm1448
        %v1450 = vsel %vm1449, %v1442, %v1446
        %v1451 = vand.u32 2147483647, %v1441
        %vm1452 = vcmp.eq.f32.partialorder %v1451, 8.507059e+37
        %v1453 = vand.u32 %v1441, 2147483648
        %v1454 = vor.u32 1.1754944e-38, %v1453
        %v1455 = vsel %vm1452, %v1454, %v1450
        %v1456 = vmul.f32 1.0, %v1455
        %v1457 = vmul.f32 %v1436, %v1334
        %v1458 = vmul.f32 %v1417, %v1437
        %v1459 = vadd.f32 %v1457, %v1458
        %v1460 = vtanh.pop %v1459
        %v1461 = vmul.f32 %v1456, %v1460
        %s1462 = scalar_lea.vmem [#allocation4], 96
        %v1463 = vld [vmem:[%s1462] sm:$0xff]
        %v1464 = vld [vmem:[%s1462 + $0x8] sm:$0xff]
        %v1465 = vld [vmem:[%s1462 + $0x10] sm:$0xff]
        %v1466 = vld [vmem:[%s1462 + $0x18] sm:$0xff]
        %v1467 = vpack.c.bf16 %v1461, %v1461
        %1468 = vmatpush.bf16.msra.mxu0 %v1057
        %1469 = vmatpush.bf16.msra.mxu0 %v1053
        %1470 = vmatpush.bf16.msra.mxu0 %v1049
        %1471 = vmatpush.bf16.msra.mxu0 %v1045
        %1472 = vmatpush.bf16.msra.mxu0 %v1041
        %1473 = vmatpush.bf16.msra.mxu0 %v1037
        %1474 = vmatpush.bf16.msra.mxu0 %v1033
        %1475 = vmatpush.bf16.msra.mxu0 %v1029
        %1476 = vmatmul.bf16.gmra.mxu0 %v1467
        %v1477 = vpop.f32.mrf.mxu0
        %v1478 = vadd.f32 0.0, %v1477
        %v1479 = vpop.f32.mrf.mxu0
        %1480 = vdwg.mxu0
        %1481 = vmatpush.bf16.msra.mxu0 %v1058
        %1482 = vmatpush.bf16.msra.mxu0 %v1054
        %1483 = vmatpush.bf16.msra.mxu0 %v1050
        %1484 = vmatpush.bf16.msra.mxu0 %v1046
        %1485 = vmatpush.bf16.msra.mxu0 %v1042
        %1486 = vmatpush.bf16.msra.mxu0 %v1038
        %1487 = vmatpush.bf16.msra.mxu0 %v1034
        %1488 = vmatpush.bf16.msra.mxu0 %v1030
        %1489 = vmatmul.bf16.gmra.mxu0 %v1467
        %v1490 = vpop.f32.mrf.mxu0
        %v1491 = vadd.f32 0.0, %v1490
        %v1492 = vpop.f32.mrf.mxu0
        %1493 = vdwg.mxu0
        %1494 = vmatpush.bf16.msra.mxu0 %v1059
        %1495 = vmatpush.bf16.msra.mxu0 %v1055
        %1496 = vmatpush.bf16.msra.mxu0 %v1051
        %1497 = vmatpush.bf16.msra.mxu0 %v1047
        %1498 = vmatpush.bf16.msra.mxu0 %v1043
        %1499 = vmatpush.bf16.msra.mxu0 %v1039
        %1500 = vmatpush.bf16.msra.mxu0 %v1035
        %1501 = vmatpush.bf16.msra.mxu0 %v1031
        %1502 = vmatmul.bf16.gmra.mxu0 %v1467
        %v1503 = vpop.f32.mrf.mxu0
        %v1504 = vadd.f32 0.0, %v1503
        %v1505 = vpop.f32.mrf.mxu0
        %1506 = vdwg.mxu0
        %1507 = vmatpush.bf16.msra.mxu0 %v1060
        %1508 = vmatpush.bf16.msra.mxu0 %v1056
        %1509 = vmatpush.bf16.msra.mxu0 %v1052
        %1510 = vmatpush.bf16.msra.mxu0 %v1048
        %1511 = vmatpush.bf16.msra.mxu0 %v1044
        %1512 = vmatpush.bf16.msra.mxu0 %v1040
        %1513 = vmatpush.bf16.msra.mxu0 %v1036
        %1514 = vmatpush.bf16.msra.mxu0 %v1032
        %1515 = vmatmul.bf16.gmra.mxu0 %v1467
        %v1516 = vpop.f32.mrf.mxu0
        %v1517 = vadd.f32 0.0, %v1516
        %v1518 = vpop.f32.mrf.mxu0
        %1519 = vdwg.mxu0
        %v1520 = vadd.f32 %v1463, %v1478
        %v1521 = vadd.f32 %v1464, %v1491
        %v1522 = vadd.f32 %v1465, %v1504
        %v1523 = vadd.f32 %v1466, %v1517
        %v1524 = vxor.u32 %v1520, 2147483648
        %v1525 = vmul.f32 %v1524, 1.442695
        %v1526 = vpow.pop %v1525
        %v1527 = vadd.f32 %v1526, 1.0
        %v1528 = vrcp.pop %v1527
        %v1529 = vmul.f32 %v1527, %v1528
        %v1530 = vsub.f32 1.0, %v1529
        %v1531 = vmul.f32 %v1528, %v1530
        %v1532 = vadd.f32 %v1528, %v1531
        %vm1533 = vweird.f32 %v1527
        %vm1534 = vweird.f32 %v1528
        %vm1535 = vmor %vm1533, %vm1534
        %v1536 = vsel %vm1535, %v1528, %v1532
        %v1537 = vand.u32 2147483647, %v1527
        %vm1538 = vcmp.eq.f32.partialorder %v1537, 8.507059e+37
        %v1539 = vand.u32 %v1527, 2147483648
        %v1540 = vor.u32 1.1754944e-38, %v1539
        %v1541 = vsel %vm1538, %v1540, %v1536
        %v1542 = vmul.f32 1.0, %v1541
        %v1543 = vxor.u32 %v1521, 2147483648
        %v1544 = vmul.f32 %v1543, 1.442695
        %v1545 = vpow.pop %v1544
        %v1546 = vadd.f32 %v1545, 1.0
        %v1547 = vrcp.pop %v1546
        %v1548 = vmul.f32 %v1546, %v1547
        %v1549 = vsub.f32 1.0, %v1548
        %v1550 = vmul.f32 %v1547, %v1549
        %v1551 = vadd.f32 %v1547, %v1550
        %vm1552 = vweird.f32 %v1546
        %vm1553 = vweird.f32 %v1547
        %vm1554 = vmor %vm1552, %vm1553
        %v1555 = vsel %vm1554, %v1547, %v1551
        %v1556 = vand.u32 2147483647, %v1546
        %vm1557 = vcmp.eq.f32.partialorder %v1556, 8.507059e+37
        %v1558 = vand.u32 %v1546, 2147483648
        %v1559 = vor.u32 1.1754944e-38, %v1558
        %v1560 = vsel %vm1557, %v1559, %v1555
        %v1561 = vmul.f32 1.0, %v1560
        %v1562 = vtanh.pop %v1522
        %v1563 = vxor.u32 %v1523, 2147483648
        %v1564 = vmul.f32 %v1563, 1.442695
        %v1565 = vpow.pop %v1564
        %v1566 = vadd.f32 %v1565, 1.0
        %v1567 = vrcp.pop %v1566
        %v1568 = vmul.f32 %v1566, %v1567
        %v1569 = vsub.f32 1.0, %v1568
        %v1570 = vmul.f32 %v1567, %v1569
        %v1571 = vadd.f32 %v1567, %v1570
        %vm1572 = vweird.f32 %v1566
        %vm1573 = vweird.f32 %v1567
        %vm1574 = vmor %vm1572, %vm1573
        %v1575 = vsel %vm1574, %v1567, %v1571
        %v1576 = vand.u32 2147483647, %v1566
        %vm1577 = vcmp.eq.f32.partialorder %v1576, 8.507059e+37
        %v1578 = vand.u32 %v1566, 2147483648
        %v1579 = vor.u32 1.1754944e-38, %v1578
        %v1580 = vsel %vm1577, %v1579, %v1575
        %v1581 = vmul.f32 1.0, %v1580
        %v1582 = vmul.f32 %v1561, %v1459
        %v1583 = vmul.f32 %v1542, %v1562
        %v1584 = vadd.f32 %v1582, %v1583
        %v1585 = vtanh.pop %v1584
        %v1586 = vmul.f32 %v1581, %v1585
        %s1587 = scalar_lea.vmem [#allocation4], 128
        %v1588 = vld [vmem:[%s1587] sm:$0xff]
        %v1589 = vld [vmem:[%s1587 + $0x8] sm:$0xff]
        %v1590 = vld [vmem:[%s1587 + $0x10] sm:$0xff]
        %v1591 = vld [vmem:[%s1587 + $0x18] sm:$0xff]
        %v1592 = vpack.c.bf16 %v1586, %v1586
        %1593 = vmatpush.bf16.msra.mxu0 %v1057
        %1594 = vmatpush.bf16.msra.mxu0 %v1053
        %1595 = vmatpush.bf16.msra.mxu0 %v1049
        %1596 = vmatpush.bf16.msra.mxu0 %v1045
        %1597 = vmatpush.bf16.msra.mxu0 %v1041
        %1598 = vmatpush.bf16.msra.mxu0 %v1037
        %1599 = vmatpush.bf16.msra.mxu0 %v1033
        %1600 = vmatpush.bf16.msra.mxu0 %v1029
        %1601 = vmatmul.bf16.gmra.mxu0 %v1592
        %v1602 = vpop.f32.mrf.mxu0
        %v1603 = vadd.f32 0.0, %v1602
        %v1604 = vpop.f32.mrf.mxu0
        %1605 = vdwg.mxu0
        %1606 = vmatpush.bf16.msra.mxu0 %v1058
        %1607 = vmatpush.bf16.msra.mxu0 %v1054
        %1608 = vmatpush.bf16.msra.mxu0 %v1050
        %1609 = vmatpush.bf16.msra.mxu0 %v1046
        %1610 = vmatpush.bf16.msra.mxu0 %v1042
        %1611 = vmatpush.bf16.msra.mxu0 %v1038
        %1612 = vmatpush.bf16.msra.mxu0 %v1034
        %1613 = vmatpush.bf16.msra.mxu0 %v1030
        %1614 = vmatmul.bf16.gmra.mxu0 %v1592
        %v1615 = vpop.f32.mrf.mxu0
        %v1616 = vadd.f32 0.0, %v1615
        %v1617 = vpop.f32.mrf.mxu0
        %1618 = vdwg.mxu0
        %1619 = vmatpush.bf16.msra.mxu0 %v1059
        %1620 = vmatpush.bf16.msra.mxu0 %v1055
        %1621 = vmatpush.bf16.msra.mxu0 %v1051
        %1622 = vmatpush.bf16.msra.mxu0 %v1047
        %1623 = vmatpush.bf16.msra.mxu0 %v1043
        %1624 = vmatpush.bf16.msra.mxu0 %v1039
        %1625 = vmatpush.bf16.msra.mxu0 %v1035
        %1626 = vmatpush.bf16.msra.mxu0 %v1031
        %1627 = vmatmul.bf16.gmra.mxu0 %v1592
        %v1628 = vpop.f32.mrf.mxu0
        %v1629 = vadd.f32 0.0, %v1628
        %v1630 = vpop.f32.mrf.mxu0
        %1631 = vdwg.mxu0
        %1632 = vmatpush.bf16.msra.mxu0 %v1060
        %1633 = vmatpush.bf16.msra.mxu0 %v1056
        %1634 = vmatpush.bf16.msra.mxu0 %v1052
        %1635 = vmatpush.bf16.msra.mxu0 %v1048
        %1636 = vmatpush.bf16.msra.mxu0 %v1044
        %1637 = vmatpush.bf16.msra.mxu0 %v1040
        %1638 = vmatpush.bf16.msra.mxu0 %v1036
        %1639 = vmatpush.bf16.msra.mxu0 %v1032
        %1640 = vmatmul.bf16.gmra.mxu0 %v1592
        %v1641 = vpop.f32.mrf.mxu0
        %v1642 = vadd.f32 0.0, %v1641
        %v1643 = vpop.f32.mrf.mxu0
        %1644 = vdwg.mxu0
        %v1645 = vadd.f32 %v1588, %v1603
        %v1646 = vadd.f32 %v1589, %v1616
        %v1647 = vadd.f32 %v1590, %v1629
        %v1648 = vadd.f32 %v1591, %v1642
        %v1649 = vxor.u32 %v1645, 2147483648
        %v1650 = vmul.f32 %v1649, 1.442695
        %v1651 = vpow.pop %v1650
        %v1652 = vadd.f32 %v1651, 1.0
        %v1653 = vrcp.pop %v1652
        %v1654 = vmul.f32 %v1652, %v1653
        %v1655 = vsub.f32 1.0, %v1654
        %v1656 = vmul.f32 %v1653, %v1655
        %v1657 = vadd.f32 %v1653, %v1656
        %vm1658 = vweird.f32 %v1652
        %vm1659 = vweird.f32 %v1653
        %vm1660 = vmor %vm1658, %vm1659
        %v1661 = vsel %vm1660, %v1653, %v1657
        %v1662 = vand.u32 2147483647, %v1652
        %vm1663 = vcmp.eq.f32.partialorder %v1662, 8.507059e+37
        %v1664 = vand.u32 %v1652, 2147483648
        %v1665 = vor.u32 1.1754944e-38, %v1664
        %v1666 = vsel %vm1663, %v1665, %v1661
        %v1667 = vmul.f32 1.0, %v1666
        %v1668 = vxor.u32 %v1646, 2147483648
        %v1669 = vmul.f32 %v1668, 1.442695
        %v1670 = vpow.pop %v1669
        %v1671 = vadd.f32 %v1670, 1.0
        %v1672 = vrcp.pop %v1671
        %v1673 = vmul.f32 %v1671, %v1672
        %v1674 = vsub.f32 1.0, %v1673
        %v1675 = vmul.f32 %v1672, %v1674
        %v1676 = vadd.f32 %v1672, %v1675
        %vm1677 = vweird.f32 %v1671
        %vm1678 = vweird.f32 %v1672
        %vm1679 = vmor %vm1677, %vm1678
        %v1680 = vsel %vm1679, %v1672, %v1676
        %v1681 = vand.u32 2147483647, %v1671
        %vm1682 = vcmp.eq.f32.partialorder %v1681, 8.507059e+37
        %v1683 = vand.u32 %v1671, 2147483648
        %v1684 = vor.u32 1.1754944e-38, %v1683
        %v1685 = vsel %vm1682, %v1684, %v1680
        %v1686 = vmul.f32 1.0, %v1685
        %v1687 = vtanh.pop %v1647
        %v1688 = vxor.u32 %v1648, 2147483648
        %v1689 = vmul.f32 %v1688, 1.442695
        %v1690 = vpow.pop %v1689
        %v1691 = vadd.f32 %v1690, 1.0
        %v1692 = vrcp.pop %v1691
        %v1693 = vmul.f32 %v1691, %v1692
        %v1694 = vsub.f32 1.0, %v1693
        %v1695 = vmul.f32 %v1692, %v1694
        %v1696 = vadd.f32 %v1692, %v1695
        %vm1697 = vweird.f32 %v1691
        %vm1698 = vweird.f32 %v1692
        %vm1699 = vmor %vm1697, %vm1698
        %v1700 = vsel %vm1699, %v1692, %v1696
        %v1701 = vand.u32 2147483647, %v1691
        %vm1702 = vcmp.eq.f32.partialorder %v1701, 8.507059e+37
        %v1703 = vand.u32 %v1691, 2147483648
        %v1704 = vor.u32 1.1754944e-38, %v1703
        %v1705 = vsel %vm1702, %v1704, %v1700
        %v1706 = vmul.f32 1.0, %v1705
        %v1707 = vmul.f32 %v1686, %v1584
        %v1708 = vmul.f32 %v1667, %v1687
        %v1709 = vadd.f32 %v1707, %v1708
        %v1710 = vtanh.pop %v1709
        %v1711 = vmul.f32 %v1706, %v1710
        %s1712 = scalar_lea.vmem [#allocation4], 160
        %v1713 = vld [vmem:[%s1712] sm:$0xff]
        %v1714 = vld [vmem:[%s1712 + $0x8] sm:$0xff]
        %v1715 = vld [vmem:[%s1712 + $0x10] sm:$0xff]
        %v1716 = vld [vmem:[%s1712 + $0x18] sm:$0xff]
        %v1717 = vpack.c.bf16 %v1711, %v1711
        %1718 = vmatpush.bf16.msra.mxu0 %v1057
        %1719 = vmatpush.bf16.msra.mxu0 %v1053
        %1720 = vmatpush.bf16.msra.mxu0 %v1049
        %1721 = vmatpush.bf16.msra.mxu0 %v1045
        %1722 = vmatpush.bf16.msra.mxu0 %v1041
        %1723 = vmatpush.bf16.msra.mxu0 %v1037
        %1724 = vmatpush.bf16.msra.mxu0 %v1033
        %1725 = vmatpush.bf16.msra.mxu0 %v1029
        %1726 = vmatmul.bf16.gmra.mxu0 %v1717
        %v1727 = vpop.f32.mrf.mxu0
        %v1728 = vadd.f32 0.0, %v1727
        %v1729 = vpop.f32.mrf.mxu0
        %1730 = vdwg.mxu0
        %1731 = vmatpush.bf16.msra.mxu0 %v1058
        %1732 = vmatpush.bf16.msra.mxu0 %v1054
        %1733 = vmatpush.bf16.msra.mxu0 %v1050
        %1734 = vmatpush.bf16.msra.mxu0 %v1046
        %1735 = vmatpush.bf16.msra.mxu0 %v1042
        %1736 = vmatpush.bf16.msra.mxu0 %v1038
        %1737 = vmatpush.bf16.msra.mxu0 %v1034
        %1738 = vmatpush.bf16.msra.mxu0 %v1030
        %1739 = vmatmul.bf16.gmra.mxu0 %v1717
        %v1740 = vpop.f32.mrf.mxu0
        %v1741 = vadd.f32 0.0, %v1740
        %v1742 = vpop.f32.mrf.mxu0
        %1743 = vdwg.mxu0
        %1744 = vmatpush.bf16.msra.mxu0 %v1059
        %1745 = vmatpush.bf16.msra.mxu0 %v1055
        %1746 = vmatpush.bf16.msra.mxu0 %v1051
        %1747 = vmatpush.bf16.msra.mxu0 %v1047
        %1748 = vmatpush.bf16.msra.mxu0 %v1043
        %1749 = vmatpush.bf16.msra.mxu0 %v1039
        %1750 = vmatpush.bf16.msra.mxu0 %v1035
        %1751 = vmatpush.bf16.msra.mxu0 %v1031
        %1752 = vmatmul.bf16.gmra.mxu0 %v1717
        %v1753 = vpop.f32.mrf.mxu0
        %v1754 = vadd.f32 0.0, %v1753
        %v1755 = vpop.f32.mrf.mxu0
        %1756 = vdwg.mxu0
        %1757 = vmatpush.bf16.msra.mxu0 %v1060
        %1758 = vmatpush.bf16.msra.mxu0 %v1056
        %1759 = vmatpush.bf16.msra.mxu0 %v1052
        %1760 = vmatpush.bf16.msra.mxu0 %v1048
        %1761 = vmatpush.bf16.msra.mxu0 %v1044
        %1762 = vmatpush.bf16.msra.mxu0 %v1040
        %1763 = vmatpush.bf16.msra.mxu0 %v1036
        %1764 = vmatpush.bf16.msra.mxu0 %v1032
        %1765 = vmatmul.bf16.gmra.mxu0 %v1717
        %v1766 = vpop.f32.mrf.mxu0
        %v1767 = vadd.f32 0.0, %v1766
        %v1768 = vpop.f32.mrf.mxu0
        %1769 = vdwg.mxu0
        %v1770 = vadd.f32 %v1713, %v1728
        %v1771 = vadd.f32 %v1714, %v1741
        %v1772 = vadd.f32 %v1715, %v1754
        %v1773 = vadd.f32 %v1716, %v1767
        %v1774 = vxor.u32 %v1770, 2147483648
        %v1775 = vmul.f32 %v1774, 1.442695
        %v1776 = vpow.pop %v1775
        %v1777 = vadd.f32 %v1776, 1.0
        %v1778 = vrcp.pop %v1777
        %v1779 = vmul.f32 %v1777, %v1778
        %v1780 = vsub.f32 1.0, %v1779
        %v1781 = vmul.f32 %v1778, %v1780
        %v1782 = vadd.f32 %v1778, %v1781
        %vm1783 = vweird.f32 %v1777
        %vm1784 = vweird.f32 %v1778
        %vm1785 = vmor %vm1783, %vm1784
        %v1786 = vsel %vm1785, %v1778, %v1782
        %v1787 = vand.u32 2147483647, %v1777
        %vm1788 = vcmp.eq.f32.partialorder %v1787, 8.507059e+37
        %v1789 = vand.u32 %v1777, 2147483648
        %v1790 = vor.u32 1.1754944e-38, %v1789
        %v1791 = vsel %vm1788, %v1790, %v1786
        %v1792 = vmul.f32 1.0, %v1791
        %v1793 = vxor.u32 %v1771, 2147483648
        %v1794 = vmul.f32 %v1793, 1.442695
        %v1795 = vpow.pop %v1794
        %v1796 = vadd.f32 %v1795, 1.0
        %v1797 = vrcp.pop %v1796
        %v1798 = vmul.f32 %v1796, %v1797
        %v1799 = vsub.f32 1.0, %v1798
        %v1800 = vmul.f32 %v1797, %v1799
        %v1801 = vadd.f32 %v1797, %v1800
        %vm1802 = vweird.f32 %v1796
        %vm1803 = vweird.f32 %v1797
        %vm1804 = vmor %vm1802, %vm1803
        %v1805 = vsel %vm1804, %v1797, %v1801
        %v1806 = vand.u32 2147483647, %v1796
        %vm1807 = vcmp.eq.f32.partialorder %v1806, 8.507059e+37
        %v1808 = vand.u32 %v1796, 2147483648
        %v1809 = vor.u32 1.1754944e-38, %v1808
        %v1810 = vsel %vm1807, %v1809, %v1805
        %v1811 = vmul.f32 1.0, %v1810
        %v1812 = vtanh.pop %v1772
        %v1813 = vxor.u32 %v1773, 2147483648
        %v1814 = vmul.f32 %v1813, 1.442695
        %v1815 = vpow.pop %v1814
        %v1816 = vadd.f32 %v1815, 1.0
        %v1817 = vrcp.pop %v1816
        %v1818 = vmul.f32 %v1816, %v1817
        %v1819 = vsub.f32 1.0, %v1818
        %v1820 = vmul.f32 %v1817, %v1819
        %v1821 = vadd.f32 %v1817, %v1820
        %vm1822 = vweird.f32 %v1816
        %vm1823 = vweird.f32 %v1817
        %vm1824 = vmor %vm1822, %vm1823
        %v1825 = vsel %vm1824, %v1817, %v1821
        %v1826 = vand.u32 2147483647, %v1816
        %vm1827 = vcmp.eq.f32.partialorder %v1826, 8.507059e+37
        %v1828 = vand.u32 %v1816, 2147483648
        %v1829 = vor.u32 1.1754944e-38, %v1828
        %v1830 = vsel %vm1827, %v1829, %v1825
        %v1831 = vmul.f32 1.0, %v1830
        %v1832 = vmul.f32 %v1811, %v1709
        %v1833 = vmul.f32 %v1792, %v1812
        %v1834 = vadd.f32 %v1832, %v1833
        %v1835 = vtanh.pop %v1834
        %v1836 = vmul.f32 %v1831, %v1835
        %s1837 = scalar_lea.vmem [#allocation4], 192
        %v1838 = vld [vmem:[%s1837] sm:$0xff]
        %v1839 = vld [vmem:[%s1837 + $0x8] sm:$0xff]
        %v1840 = vld [vmem:[%s1837 + $0x10] sm:$0xff]
        %v1841 = vld [vmem:[%s1837 + $0x18] sm:$0xff]
        %v1842 = vpack.c.bf16 %v1836, %v1836
        %1843 = vmatpush.bf16.msra.mxu0 %v1057
        %1844 = vmatpush.bf16.msra.mxu0 %v1053
        %1845 = vmatpush.bf16.msra.mxu0 %v1049
        %1846 = vmatpush.bf16.msra.mxu0 %v1045
        %1847 = vmatpush.bf16.msra.mxu0 %v1041
        %1848 = vmatpush.bf16.msra.mxu0 %v1037
        %1849 = vmatpush.bf16.msra.mxu0 %v1033
        %1850 = vmatpush.bf16.msra.mxu0 %v1029
        %1851 = vmatmul.bf16.gmra.mxu0 %v1842
        %v1852 = vpop.f32.mrf.mxu0
        %v1853 = vadd.f32 0.0, %v1852
        %v1854 = vpop.f32.mrf.mxu0
        %1855 = vdwg.mxu0
        %1856 = vmatpush.bf16.msra.mxu0 %v1058
        %1857 = vmatpush.bf16.msra.mxu0 %v1054
        %1858 = vmatpush.bf16.msra.mxu0 %v1050
        %1859 = vmatpush.bf16.msra.mxu0 %v1046
        %1860 = vmatpush.bf16.msra.mxu0 %v1042
        %1861 = vmatpush.bf16.msra.mxu0 %v1038
        %1862 = vmatpush.bf16.msra.mxu0 %v1034
        %1863 = vmatpush.bf16.msra.mxu0 %v1030
        %1864 = vmatmul.bf16.gmra.mxu0 %v1842
        %v1865 = vpop.f32.mrf.mxu0
        %v1866 = vadd.f32 0.0, %v1865
        %v1867 = vpop.f32.mrf.mxu0
        %1868 = vdwg.mxu0
        %1869 = vmatpush.bf16.msra.mxu0 %v1059
        %1870 = vmatpush.bf16.msra.mxu0 %v1055
        %1871 = vmatpush.bf16.msra.mxu0 %v1051
        %1872 = vmatpush.bf16.msra.mxu0 %v1047
        %1873 = vmatpush.bf16.msra.mxu0 %v1043
        %1874 = vmatpush.bf16.msra.mxu0 %v1039
        %1875 = vmatpush.bf16.msra.mxu0 %v1035
        %1876 = vmatpush.bf16.msra.mxu0 %v1031
        %1877 = vmatmul.bf16.gmra.mxu0 %v1842
        %v1878 = vpop.f32.mrf.mxu0
        %v1879 = vadd.f32 0.0, %v1878
        %v1880 = vpop.f32.mrf.mxu0
        %1881 = vdwg.mxu0
        %1882 = vmatpush.bf16.msra.mxu0 %v1060
        %1883 = vmatpush.bf16.msra.mxu0 %v1056
        %1884 = vmatpush.bf16.msra.mxu0 %v1052
        %1885 = vmatpush.bf16.msra.mxu0 %v1048
        %1886 = vmatpush.bf16.msra.mxu0 %v1044
        %1887 = vmatpush.bf16.msra.mxu0 %v1040
        %1888 = vmatpush.bf16.msra.mxu0 %v1036
        %1889 = vmatpush.bf16.msra.mxu0 %v1032
        %1890 = vmatmul.bf16.gmra.mxu0 %v1842
        %v1891 = vpop.f32.mrf.mxu0
        %v1892 = vadd.f32 0.0, %v1891
        %v1893 = vpop.f32.mrf.mxu0
        %1894 = vdwg.mxu0
        %v1895 = vadd.f32 %v1838, %v1853
        %v1896 = vadd.f32 %v1839, %v1866
        %v1897 = vadd.f32 %v1840, %v1879
        %v1898 = vadd.f32 %v1841, %v1892
        %v1899 = vxor.u32 %v1895, 2147483648
        %v1900 = vmul.f32 %v1899, 1.442695
        %v1901 = vpow.pop %v1900
        %v1902 = vadd.f32 %v1901, 1.0
        %v1903 = vrcp.pop %v1902
        %v1904 = vmul.f32 %v1902, %v1903
        %v1905 = vsub.f32 1.0, %v1904
        %v1906 = vmul.f32 %v1903, %v1905
        %v1907 = vadd.f32 %v1903, %v1906
        %vm1908 = vweird.f32 %v1902
        %vm1909 = vweird.f32 %v1903
        %vm1910 = vmor %vm1908, %vm1909
        %v1911 = vsel %vm1910, %v1903, %v1907
        %v1912 = vand.u32 2147483647, %v1902
        %vm1913 = vcmp.eq.f32.partialorder %v1912, 8.507059e+37
        %v1914 = vand.u32 %v1902, 2147483648
        %v1915 = vor.u32 1.1754944e-38, %v1914
        %v1916 = vsel %vm1913, %v1915, %v1911
        %v1917 = vmul.f32 1.0, %v1916
        %v1918 = vxor.u32 %v1896, 2147483648
        %v1919 = vmul.f32 %v1918, 1.442695
        %v1920 = vpow.pop %v1919
        %v1921 = vadd.f32 %v1920, 1.0
        %v1922 = vrcp.pop %v1921
        %v1923 = vmul.f32 %v1921, %v1922
        %v1924 = vsub.f32 1.0, %v1923
        %v1925 = vmul.f32 %v1922, %v1924
        %v1926 = vadd.f32 %v1922, %v1925
        %vm1927 = vweird.f32 %v1921
        %vm1928 = vweird.f32 %v1922
        %vm1929 = vmor %vm1927, %vm1928
        %v1930 = vsel %vm1929, %v1922, %v1926
        %v1931 = vand.u32 2147483647, %v1921
        %vm1932 = vcmp.eq.f32.partialorder %v1931, 8.507059e+37
        %v1933 = vand.u32 %v1921, 2147483648
        %v1934 = vor.u32 1.1754944e-38, %v1933
        %v1935 = vsel %vm1932, %v1934, %v1930
        %v1936 = vmul.f32 1.0, %v1935
        %v1937 = vtanh.pop %v1897
        %v1938 = vxor.u32 %v1898, 2147483648
        %v1939 = vmul.f32 %v1938, 1.442695
        %v1940 = vpow.pop %v1939
        %v1941 = vadd.f32 %v1940, 1.0
        %v1942 = vrcp.pop %v1941
        %v1943 = vmul.f32 %v1941, %v1942
        %v1944 = vsub.f32 1.0, %v1943
        %v1945 = vmul.f32 %v1942, %v1944
        %v1946 = vadd.f32 %v1942, %v1945
        %vm1947 = vweird.f32 %v1941
        %vm1948 = vweird.f32 %v1942
        %vm1949 = vmor %vm1947, %vm1948
        %v1950 = vsel %vm1949, %v1942, %v1946
        %v1951 = vand.u32 2147483647, %v1941
        %vm1952 = vcmp.eq.f32.partialorder %v1951, 8.507059e+37
        %v1953 = vand.u32 %v1941, 2147483648
        %v1954 = vor.u32 1.1754944e-38, %v1953
        %v1955 = vsel %vm1952, %v1954, %v1950
        %v1956 = vmul.f32 1.0, %v1955
        %v1957 = vmul.f32 %v1936, %v1834
        %v1958 = vmul.f32 %v1917, %v1937
        %v1959 = vadd.f32 %v1957, %v1958
        %v1960 = vtanh.pop %v1959
        %v1961 = vmul.f32 %v1956, %v1960
        %s1962 = scalar_lea.vmem [#allocation4], 224
        %v1963 = vld [vmem:[%s1962] sm:$0xff]
        %v1964 = vld [vmem:[%s1962 + $0x8] sm:$0xff]
        %v1965 = vld [vmem:[%s1962 + $0x10] sm:$0xff]
        %v1966 = vld [vmem:[%s1962 + $0x18] sm:$0xff]
        %v1967 = vpack.c.bf16 %v1961, %v1961
        %1968 = vmatpush.bf16.msra.mxu0 %v1057
        %1969 = vmatpush.bf16.msra.mxu0 %v1053
        %1970 = vmatpush.bf16.msra.mxu0 %v1049
        %1971 = vmatpush.bf16.msra.mxu0 %v1045
        %1972 = vmatpush.bf16.msra.mxu0 %v1041
        %1973 = vmatpush.bf16.msra.mxu0 %v1037
        %1974 = vmatpush.bf16.msra.mxu0 %v1033
        %1975 = vmatpush.bf16.msra.mxu0 %v1029
        %1976 = vmatmul.bf16.gmra.mxu0 %v1967
        %v1977 = vpop.f32.mrf.mxu0
        %v1978 = vadd.f32 0.0, %v1977
        %v1979 = vpop.f32.mrf.mxu0
        %1980 = vdwg.mxu0
        %1981 = vmatpush.bf16.msra.mxu0 %v1058
        %1982 = vmatpush.bf16.msra.mxu0 %v1054
        %1983 = vmatpush.bf16.msra.mxu0 %v1050
        %1984 = vmatpush.bf16.msra.mxu0 %v1046
        %1985 = vmatpush.bf16.msra.mxu0 %v1042
        %1986 = vmatpush.bf16.msra.mxu0 %v1038
        %1987 = vmatpush.bf16.msra.mxu0 %v1034
        %1988 = vmatpush.bf16.msra.mxu0 %v1030
        %1989 = vmatmul.bf16.gmra.mxu0 %v1967
        %v1990 = vpop.f32.mrf.mxu0
        %v1991 = vadd.f32 0.0, %v1990
        %v1992 = vpop.f32.mrf.mxu0
        %1993 = vdwg.mxu0
        %1994 = vmatpush.bf16.msra.mxu0 %v1059
        %1995 = vmatpush.bf16.msra.mxu0 %v1055
        %1996 = vmatpush.bf16.msra.mxu0 %v1051
        %1997 = vmatpush.bf16.msra.mxu0 %v1047
        %1998 = vmatpush.bf16.msra.mxu0 %v1043
        %1999 = vmatpush.bf16.msra.mxu0 %v1039
        %2000 = vmatpush.bf16.msra.mxu0 %v1035
        %2001 = vmatpush.bf16.msra.mxu0 %v1031
        %2002 = vmatmul.bf16.gmra.mxu0 %v1967
        %v2003 = vpop.f32.mrf.mxu0
        %v2004 = vadd.f32 0.0, %v2003
        %v2005 = vpop.f32.mrf.mxu0
        %2006 = vdwg.mxu0
        %2007 = vmatpush.bf16.msra.mxu0 %v1060
        %2008 = vmatpush.bf16.msra.mxu0 %v1056
        %2009 = vmatpush.bf16.msra.mxu0 %v1052
        %2010 = vmatpush.bf16.msra.mxu0 %v1048
        %2011 = vmatpush.bf16.msra.mxu0 %v1044
        %2012 = vmatpush.bf16.msra.mxu0 %v1040
        %2013 = vmatpush.bf16.msra.mxu0 %v1036
        %2014 = vmatpush.bf16.msra.mxu0 %v1032
        %2015 = vmatmul.bf16.gmra.mxu0 %v1967
        %v2016 = vpop.f32.mrf.mxu0
        %v2017 = vadd.f32 0.0, %v2016
        %v2018 = vpop.f32.mrf.mxu0
        %2019 = vdwg.mxu0
        %v2020 = vadd.f32 %v1963, %v1978
        %v2021 = vadd.f32 %v1964, %v1991
        %v2022 = vadd.f32 %v1965, %v2004
        %v2023 = vadd.f32 %v1966, %v2017
        %v2024 = vxor.u32 %v2020, 2147483648
        %v2025 = vmul.f32 %v2024, 1.442695
        %v2026 = vpow.pop %v2025
        %v2027 = vadd.f32 %v2026, 1.0
        %v2028 = vrcp.pop %v2027
        %v2029 = vmul.f32 %v2027, %v2028
        %v2030 = vsub.f32 1.0, %v2029
        %v2031 = vmul.f32 %v2028, %v2030
        %v2032 = vadd.f32 %v2028, %v2031
        %vm2033 = vweird.f32 %v2027
        %vm2034 = vweird.f32 %v2028
        %vm2035 = vmor %vm2033, %vm2034
        %v2036 = vsel %vm2035, %v2028, %v2032
        %v2037 = vand.u32 2147483647, %v2027
        %vm2038 = vcmp.eq.f32.partialorder %v2037, 8.507059e+37
        %v2039 = vand.u32 %v2027, 2147483648
        %v2040 = vor.u32 1.1754944e-38, %v2039
        %v2041 = vsel %vm2038, %v2040, %v2036
        %v2042 = vmul.f32 1.0, %v2041
        %v2043 = vxor.u32 %v2021, 2147483648
        %v2044 = vmul.f32 %v2043, 1.442695
        %v2045 = vpow.pop %v2044
        %v2046 = vadd.f32 %v2045, 1.0
        %v2047 = vrcp.pop %v2046
        %v2048 = vmul.f32 %v2046, %v2047
        %v2049 = vsub.f32 1.0, %v2048
        %v2050 = vmul.f32 %v2047, %v2049
        %v2051 = vadd.f32 %v2047, %v2050
        %vm2052 = vweird.f32 %v2046
        %vm2053 = vweird.f32 %v2047
        %vm2054 = vmor %vm2052, %vm2053
        %v2055 = vsel %vm2054, %v2047, %v2051
        %v2056 = vand.u32 2147483647, %v2046
        %vm2057 = vcmp.eq.f32.partialorder %v2056, 8.507059e+37
        %v2058 = vand.u32 %v2046, 2147483648
        %v2059 = vor.u32 1.1754944e-38, %v2058
        %v2060 = vsel %vm2057, %v2059, %v2055
        %v2061 = vmul.f32 1.0, %v2060
        %v2062 = vtanh.pop %v2022
        %v2063 = vxor.u32 %v2023, 2147483648
        %v2064 = vmul.f32 %v2063, 1.442695
        %v2065 = vpow.pop %v2064
        %v2066 = vadd.f32 %v2065, 1.0
        %v2067 = vrcp.pop %v2066
        %v2068 = vmul.f32 %v2066, %v2067
        %v2069 = vsub.f32 1.0, %v2068
        %v2070 = vmul.f32 %v2067, %v2069
        %v2071 = vadd.f32 %v2067, %v2070
        %vm2072 = vweird.f32 %v2066
        %vm2073 = vweird.f32 %v2067
        %vm2074 = vmor %vm2072, %vm2073
        %v2075 = vsel %vm2074, %v2067, %v2071
        %v2076 = vand.u32 2147483647, %v2066
        %vm2077 = vcmp.eq.f32.partialorder %v2076, 8.507059e+37
        %v2078 = vand.u32 %v2066, 2147483648
        %v2079 = vor.u32 1.1754944e-38, %v2078
        %v2080 = vsel %vm2077, %v2079, %v2075
        %v2081 = vmul.f32 1.0, %v2080
        %v2082 = vmul.f32 %v2061, %v1959
        %v2083 = vmul.f32 %v2042, %v2062
        %v2084 = vadd.f32 %v2082, %v2083
        %v2085 = vtanh.pop %v2084
        %v2086 = vmul.f32 %v2081, %v2085
        %2087 = vst [vmem:[#allocation2] sm:$0xff] %v2086
        %2088 = vst [vmem:[#allocation3] sm:$0xff] %v2084
        // Predicated region
        $region98: #{sentiment_rnn_forward.3} parent=88 // pred_check
          %p2089 = pneg %p504
        $region99: #{sentiment_rnn_forward.3} parent=88 // pred_check_branch
          %2091 = sbr.rel (%p2089) target = $region101
        $region100: #{sentiment_rnn_forward.3} parent=88 // pred_region
          %2092 = vst [vmem:[%s495] sm:$0xff] %v2086
          %2093 = vst [vmem:[%s499] sm:$0xff] %v2084
          %v2094 = vld [vmem:[%s6] sm:$0x1]
          %v2096 = vperm.slane %v2094, 0
          %v2098 = vmul.f32 %v2086, %v2096
          %2099 = vadd.xlane.f32.xlu0 %v2098
          %v2100 = vpop.xlane.xlu0 %2099
          %v2101 = vld [vmem:[#allocation5] sm:$0x1]
          %v2103 = vperm.slane %v2101, 0
          %v2105 = vadd.f32 %v2100, %v2103
          %v2106 = vxor.u32 %v2105, 2147483648
          %v2107 = vmul.f32 %v2106, 1.442695
          %v2108 = vpow.pop %v2107
          %v2109 = vadd.f32 %v2108, 1.0
          %v2110 = vrcp.pop %v2109
          %v2111 = vmul.f32 %v2109, %v2110
          %v2112 = vsub.f32 1.0, %v2111
          %v2113 = vmul.f32 %v2110, %v2112
          %v2114 = vadd.f32 %v2110, %v2113
          %vm2115 = vweird.f32 %v2109
          %vm2116 = vweird.f32 %v2110
          %vm2117 = vmor %vm2115, %vm2116
          %v2118 = vsel %vm2117, %v2110, %v2114
          %v2119 = vand.u32 2147483647, %v2109
          %vm2120 = vcmp.eq.f32.partialorder %v2119, 8.507059e+37
          %v2121 = vand.u32 %v2109, 2147483648
          %v2122 = vor.u32 1.1754944e-38, %v2121
          %v2123 = vsel %vm2120, %v2122, %v2118
          %v2124 = vmul.f32 1.0, %v2123
          %vm2125 = vcmask 7168
          %2126 = vst.msk [vmem:[%s503] sm:$0xff] %vm2125, %v2124
        $region101: #{sentiment_rnn_forward.3} parent=88 // pred_fallthru
          _
        %p2127 = scmp.lt.s32.totalorder %s28, 1
        %s2128 = scalar_select %p2127, %s28, 1
        %s2129 = smul.addr %s2128, 8
        %s2130 = scalar_lea.vmem %s8, %s2129
        %p2131 = scmp.lt.s32.totalorder %s28, 1
        %s2132 = scalar_select %p2131, %s28, 1
        %s2133 = smul.addr %s2132, 8
        %s2134 = scalar_lea.vmem %s9, %s2133
        %p2135 = scmp.lt.s32.totalorder %s28, 1
        %s2136 = scalar_select %p2135, %s28, 1
        %s2137 = smul.addr %s2136, 8
        %s2138 = scalar_lea.vmem %s10, %s2137
        // Predicated region
        $region102: #{sentiment_rnn_forward.3} parent=88 // pred_check
          %p2139 = pneg %p239
        $region103: #{sentiment_rnn_forward.3} parent=88 // pred_check_branch
          %2141 = sbr.rel (%p2139) target = $region105
        $region104: #{sentiment_rnn_forward.3} parent=88 // pred_region
          _
        $region105: #{sentiment_rnn_forward.3} parent=88 // pred_fallthru
          _
        // Predicated region
        $region106: #{sentiment_rnn_forward.3} parent=88 // pred_check
          %p2142 = pneg %p265
        $region107: #{sentiment_rnn_forward.3} parent=88 // pred_check_branch
          %2144 = sbr.rel (%p2142) target = $region109
        $region108: #{sentiment_rnn_forward.3} parent=88 // pred_region
          _
        $region109: #{sentiment_rnn_forward.3} parent=88 // pred_fallthru
          _
        // Predicated region
        $region110: #{sentiment_rnn_forward.3} parent=88 // pred_check
          %p2145 = pneg %p291
        $region111: #{sentiment_rnn_forward.3} parent=88 // pred_check_branch
          %2147 = sbr.rel (%p2145) target = $region113
        $region112: #{sentiment_rnn_forward.3} parent=88 // pred_region
          _
        $region113: #{sentiment_rnn_forward.3} parent=88 // pred_fallthru
          _
      $region89: #{sentiment_rnn_forward.3} parent=5 // pred_fallthru
        _
      %p2148 = scmp.le.s32.totalorder 2, %s19
      // Predicated region
      $region114: #{sentiment_rnn_forward.3} parent=5 // pred_check
        %p2149 = pneg %p2148
      $region115: #{sentiment_rnn_forward.3} parent=5 // pred_check_branch
        %2151 = sbr.rel (%p2149) target = $region117
      $region116: #{sentiment_rnn_forward.3} parent=5 // pred_region
        %s2152 = ssub.s32 %s19, 2
        // Predicated region
        $region118: #{sentiment_rnn_forward.3} parent=116 // pred_check
          %p2153 = pneg %p245
        $region119: #{sentiment_rnn_forward.3} parent=116 // pred_check_branch
          %2155 = sbr.rel (%p2153) target = $region121
        $region120: #{sentiment_rnn_forward.3} parent=116 // pred_region
          %p2156 = scmp.lt.s32.totalorder %s30, 1
          %s2157 = scalar_select %p2156, %s30, 1
          %s2158 = smul.addr %s2157, 8
          %s2159 = scalar_lea.vmem %s8, %s2158
        $region121: #{sentiment_rnn_forward.3} parent=116 // pred_fallthru
          _
        // Predicated region
        $region122: #{sentiment_rnn_forward.3} parent=116 // pred_check
          %p2160 = pneg %p271
        $region123: #{sentiment_rnn_forward.3} parent=116 // pred_check_branch
          %2162 = sbr.rel (%p2160) target = $region125
        $region124: #{sentiment_rnn_forward.3} parent=116 // pred_region
          %p2163 = scmp.lt.s32.totalorder %s30, 1
          %s2164 = scalar_select %p2163, %s30, 1
          %s2165 = smul.addr %s2164, 8
          %s2166 = scalar_lea.vmem %s9, %s2165
        $region125: #{sentiment_rnn_forward.3} parent=116 // pred_fallthru
          _
        // Predicated region
        $region126: #{sentiment_rnn_forward.3} parent=116 // pred_check
          %p2167 = pneg %p297
        $region127: #{sentiment_rnn_forward.3} parent=116 // pred_check_branch
          %2169 = sbr.rel (%p2167) target = $region129
        $region128: #{sentiment_rnn_forward.3} parent=116 // pred_region
          %p2170 = scmp.lt.s32.totalorder %s30, 1
          %s2171 = scalar_select %p2170, %s30, 1
          %s2172 = smul.addr %s2171, 8
          %s2173 = scalar_lea.vmem %s10, %s2172
        $region129: #{sentiment_rnn_forward.3} parent=116 // pred_fallthru
          _
      $region117: #{sentiment_rnn_forward.3} parent=5 // pred_fallthru
        _
    $region6: #{sentiment_rnn_forward.3} parent=1 // loop_footer
      %s23 = sadd.s32 1, %s19
    $region7: #{sentiment_rnn_forward.3} parent=1 // loop_footer_branch
      %18 = sbr.rel target = $region3
    $region8: #{sentiment_rnn_forward.3} parent=1 // loop_exit
      _

// kernel: sentiment_rnn_forward.2
$region0: #{sentiment_rnn_forward.2}
  #allocation0 [shape = 'u32[]', space=smem, size = 0x4, offset = 0x4, fixed_abs, tag = 'smem constant byte address 0x4 - core index']
  #allocation1 [shape = 'u32[72,128]{1,0:T(1,128)}', space=vmem, size = 0x9000, scoped, tag = 'internal scratch']
  #allocation2 [shape = 'f32[8,128]{1,0:T(8,128)}', space=vmem, size = 0x1000, scoped, tag = 'scratch operand']
  #allocation3 [shape = 'f32[8,128]{1,0:T(8,128)}', space=vmem, size = 0x1000, scoped, tag = 'scratch operand']
  #allocation4 [shape = 'f32[8,8,512]{2,1,0:T(8,128)}', space=vmem, size = 0x20000, scoped, tag = 'scratch operand']
  %s0 = inlined_call_operand.vmem [shape: bf16[8,16,128], index: 0, kind: input, shape index: {}]
  %s1 = inlined_call_operand.vmem [shape: f32[16,128], index: 1, kind: input, shape index: {}]
  %s2 = inlined_call_operand.vmem [shape: f32[16,128], index: 2, kind: input, shape index: {}]
  %s3 = inlined_call_operand.vmem [shape: bf16[128,512], index: 3, kind: input, shape index: {}]
  %s4 = inlined_call_operand.vmem [shape: bf16[128,512], index: 4, kind: input, shape index: {}]
  %s5 = inlined_call_operand.vmem [shape: f32[1,512], index: 5, kind: input, shape index: {}]
  %s6 = inlined_call_operand.vmem [shape: bf16[8,16,128], index: 6, kind: output, shape index: {0}]
  %s7 = inlined_call_operand.vmem [shape: f32[16,128], index: 7, kind: output, shape index: {1}]
  %s8 = inlined_call_operand.vmem [shape: f32[16,128], index: 8, kind: output, shape index: {2}]
  %9 = xla_tuple %s6, %s7, %s8
  %s10 = sld [smem:[#allocation0]]
  $region159: #{sentiment_rnn_forward.2} parent=0
    _
  %s12 = ssub.s32 1, %s10
  %s13 = scalar_select 0, %s12, %s10
  $region1: #{sentiment_rnn_forward.2} parent=0
    #allocation5 [shape = 'u8[32768]{0}', space=vmem, size = 0x8000, scoped, tag = 'input window, operand 0']
    #allocation6 [shape = 'u8[32768]{0}', space=vmem, size = 0x8000, scoped, tag = 'output window, operand 0']
    loop: start=0, step=1, limit=4
    $region2: #{sentiment_rnn_forward.2} parent=1 // loop_pre_header
      _
    $region3: #{sentiment_rnn_forward.2} parent=1 // loop_header
      %s15 = sphi 0, %s19
      %p16 = scmp.ge.s32.totalorder %s15, 4
      %s22 = sphi 0, %s34
      %s23 = sphi 0, %s30
      %s24 = sphi 0, %s22
      %s25 = sphi 0, %s23
      %s26 = sphi 0, %s24
      %s27 = sphi 0, %s25
      %s39 = sphi 0, %s41
      %s42 = sphi 0, %s39
      %s43 = sphi 0, %s42
      %s59 = sphi 0, %s43
      %s65 = sphi 0, %s67
      %s68 = sphi 0, %s65
      %s69 = sphi 0, %s68
      %s85 = sphi 0, %s69
      %s91 = sphi 0, %s93
      %s94 = sphi 0, %s91
      %s95 = sphi 0, %s94
      %s111 = sphi 0, %s95
      %s115 = sphi 0, %s115
      %s117 = sphi 0, %s115
      %s118 = sphi 0, %s117
      %s132 = sphi 0, %s118
      %s136 = sphi 0, %s136
      %s138 = sphi 0, %s136
      %s139 = sphi 0, %s138
      %s153 = sphi 0, %s139
      %s157 = sphi 0, %s157
      %s159 = sphi 0, %s157
      %s160 = sphi 0, %s159
      %s174 = sphi 0, %s160
      %s182 = sphi 0, %s184
      %s185 = sphi 0, %s182
      %s186 = sphi 0, %s185
      %s202 = sphi 0, %s186
      %s208 = sphi 0, %s210
      %s211 = sphi 0, %s208
      %s212 = sphi 0, %s211
      %s228 = sphi 0, %s212
      %s234 = sphi 0, %s236
      %s237 = sphi 0, %s234
      %s238 = sphi 0, %s237
      %s254 = sphi 0, %s238
    $region4: #{sentiment_rnn_forward.2} parent=1 // loop_header_branch
      %18 = sbr.rel (%p16) target = $region8
    $region5: #{sentiment_rnn_forward.2} parent=1 // loop_body
      %s20 = ssub.s32 %s15, 1
      %s21 = ssub.s32 %s15, 2
      %s28 = sadd.s32 1, %s23
      %p29 = scmp.ge.s32.totalorder %s28, 1
      %s30 = scalar_select %p29, 0, %s28
      %s31 = sadd.s32 1, %s22
      %s32 = scalar_select %p29, %s31, %s22
      %p33 = scmp.ge.s32.totalorder %s32, 2
      %s34 = scalar_select %p33, 0, %s32
      %s35 = ssub.s32 %s23, %s30
      %s36 = ssub.s32 %s22, %s34
      %s37 = sor.u32 %s35, %s36
      %p38 = scmp.eq.s32.totalorder %s37, 0
      %s40 = sadd.s32 %s39, 1
      %s41 = scalar_select %p38, %s39, %s40
      %p44 = pneg %p38
      %p45 = scmp.eq.s32.totalorder %s15, 1
      %p46 = por %p44, %p45
      %p47 = scmp.ne.s32.totalorder %s39, %s42
      %p48 = scmp.eq.s32.totalorder %s15, 0
      %p49 = por %p47, %p48
      %p50 = scmp.ne.s32.totalorder %s39, %s42
      %p51 = scmp.eq.s32.totalorder %s20, 1
      %p52 = por %p50, %p51
      %p53 = scmp.ne.s32.totalorder %s42, %s43
      %p54 = scmp.eq.s32.totalorder %s20, 0
      %p55 = por %p53, %p54
      %p56 = scmp.ne.s32.totalorder %s42, %s43
      %p57 = scmp.eq.s32.totalorder %s21, 1
      %p58 = por %p56, %p57
      %p60 = scmp.ne.s32.totalorder %s43, %s59
      %p61 = scmp.eq.s32.totalorder %s21, 0
      %p62 = por %p60, %p61
      %s63 = ssub.s32 %s22, %s34
      %p64 = scmp.eq.s32.totalorder %s63, 0
      %s66 = sadd.s32 %s65, 1
      %s67 = scalar_select %p64, %s65, %s66
      %p70 = pneg %p64
      %p71 = scmp.eq.s32.totalorder %s15, 1
      %p72 = por %p70, %p71
      %p73 = scmp.ne.s32.totalorder %s65, %s68
      %p74 = scmp.eq.s32.totalorder %s15, 0
      %p75 = por %p73, %p74
      %p76 = scmp.ne.s32.totalorder %s65, %s68
      %p77 = scmp.eq.s32.totalorder %s20, 1
      %p78 = por %p76, %p77
      %p79 = scmp.ne.s32.totalorder %s68, %s69
      %p80 = scmp.eq.s32.totalorder %s20, 0
      %p81 = por %p79, %p80
      %p82 = scmp.ne.s32.totalorder %s68, %s69
      %p83 = scmp.eq.s32.totalorder %s21, 1
      %p84 = por %p82, %p83
      %p86 = scmp.ne.s32.totalorder %s69, %s85
      %p87 = scmp.eq.s32.totalorder %s21, 0
      %p88 = por %p86, %p87
      %s89 = ssub.s32 %s22, %s34
      %p90 = scmp.eq.s32.totalorder %s89, 0
      %s92 = sadd.s32 %s91, 1
      %s93 = scalar_select %p90, %s91, %s92
      %p96 = pneg %p90
      %p97 = scmp.eq.s32.totalorder %s15, 1
      %p98 = por %p96, %p97
      %p99 = scmp.ne.s32.totalorder %s91, %s94
      %p100 = scmp.eq.s32.totalorder %s15, 0
      %p101 = por %p99, %p100
      %p102 = scmp.ne.s32.totalorder %s91, %s94
      %p103 = scmp.eq.s32.totalorder %s20, 1
      %p104 = por %p102, %p103
      %p105 = scmp.ne.s32.totalorder %s94, %s95
      %p106 = scmp.eq.s32.totalorder %s20, 0
      %p107 = por %p105, %p106
      %p108 = scmp.ne.s32.totalorder %s94, %s95
      %p109 = scmp.eq.s32.totalorder %s21, 1
      %p110 = por %p108, %p109
      %p112 = scmp.ne.s32.totalorder %s95, %s111
      %p113 = scmp.eq.s32.totalorder %s21, 0
      %p114 = por %p112, %p113
      %s116 = sadd.s32 %s115, 1
      %p119 = scmp.eq.s32.totalorder %s15, 1
      %p120 = scmp.ne.s32.totalorder %s115, %s117
      %p121 = scmp.eq.s32.totalorder %s15, 0
      %p122 = por %p120, %p121
      %p123 = scmp.ne.s32.totalorder %s115, %s117
      %p124 = scmp.eq.s32.totalorder %s20, 1
      %p125 = por %p123, %p124
      %p126 = scmp.ne.s32.totalorder %s117, %s118
      %p127 = scmp.eq.s32.totalorder %s20, 0
      %p128 = por %p126, %p127
      %p129 = scmp.ne.s32.totalorder %s117, %s118
      %p130 = scmp.eq.s32.totalorder %s21, 1
      %p131 = por %p129, %p130
      %p133 = scmp.ne.s32.totalorder %s118, %s132
      %p134 = scmp.eq.s32.totalorder %s21, 0
      %p135 = por %p133, %p134
      %s137 = sadd.s32 %s136, 1
      %p140 = scmp.eq.s32.totalorder %s15, 1
      %p141 = scmp.ne.s32.totalorder %s136, %s138
      %p142 = scmp.eq.s32.totalorder %s15, 0
      %p143 = por %p141, %p142
      %p144 = scmp.ne.s32.totalorder %s136, %s138
      %p145 = scmp.eq.s32.totalorder %s20, 1
      %p146 = por %p144, %p145
      %p147 = scmp.ne.s32.totalorder %s138, %s139
      %p148 = scmp.eq.s32.totalorder %s20, 0
      %p149 = por %p147, %p148
      %p150 = scmp.ne.s32.totalorder %s138, %s139
      %p151 = scmp.eq.s32.totalorder %s21, 1
      %p152 = por %p150, %p151
      %p154 = scmp.ne.s32.totalorder %s139, %s153
      %p155 = scmp.eq.s32.totalorder %s21, 0
      %p156 = por %p154, %p155
      %s158 = sadd.s32 %s157, 1
      %p161 = scmp.eq.s32.totalorder %s15, 1
      %p162 = scmp.ne.s32.totalorder %s157, %s159
      %p163 = scmp.eq.s32.totalorder %s15, 0
      %p164 = por %p162, %p163
      %p165 = scmp.ne.s32.totalorder %s157, %s159
      %p166 = scmp.eq.s32.totalorder %s20, 1
      %p167 = por %p165, %p166
      %p168 = scmp.ne.s32.totalorder %s159, %s160
      %p169 = scmp.eq.s32.totalorder %s20, 0
      %p170 = por %p168, %p169
      %p171 = scmp.ne.s32.totalorder %s159, %s160
      %p172 = scmp.eq.s32.totalorder %s21, 1
      %p173 = por %p171, %p172
      %p175 = scmp.ne.s32.totalorder %s160, %s174
      %p176 = scmp.eq.s32.totalorder %s21, 0
      %p177 = por %p175, %p176
      %s178 = ssub.s32 %s23, %s30
      %s179 = ssub.s32 %s22, %s34
      %s180 = sor.u32 %s178, %s179
      %p181 = scmp.eq.s32.totalorder %s180, 0
      %s183 = sadd.s32 %s182, 1
      %s184 = scalar_select %p181, %s182, %s183
      %p187 = pneg %p181
      %p188 = scmp.eq.s32.totalorder %s15, 1
      %p189 = por %p187, %p188
      %p190 = scmp.ne.s32.totalorder %s182, %s185
      %p191 = scmp.eq.s32.totalorder %s15, 0
      %p192 = por %p190, %p191
      %p193 = scmp.ne.s32.totalorder %s182, %s185
      %p194 = scmp.eq.s32.totalorder %s20, 1
      %p195 = por %p193, %p194
      %p196 = scmp.ne.s32.totalorder %s185, %s186
      %p197 = scmp.eq.s32.totalorder %s20, 0
      %p198 = por %p196, %p197
      %p199 = scmp.ne.s32.totalorder %s185, %s186
      %p200 = scmp.eq.s32.totalorder %s21, 1
      %p201 = por %p199, %p200
      %p203 = scmp.ne.s32.totalorder %s186, %s202
      %p204 = scmp.eq.s32.totalorder %s21, 0
      %p205 = por %p203, %p204
      %s206 = ssub.s32 %s22, %s34
      %p207 = scmp.eq.s32.totalorder %s206, 0
      %s209 = sadd.s32 %s208, 1
      %s210 = scalar_select %p207, %s208, %s209
      %p213 = pneg %p207
      %p214 = scmp.eq.s32.totalorder %s15, 1
      %p215 = por %p213, %p214
      %p216 = scmp.ne.s32.totalorder %s208, %s211
      %p217 = scmp.eq.s32.totalorder %s15, 0
      %p218 = por %p216, %p217
      %p219 = scmp.ne.s32.totalorder %s208, %s211
      %p220 = scmp.eq.s32.totalorder %s20, 1
      %p221 = por %p219, %p220
      %p222 = scmp.ne.s32.totalorder %s211, %s212
      %p223 = scmp.eq.s32.totalorder %s20, 0
      %p224 = por %p222, %p223
      %p225 = scmp.ne.s32.totalorder %s211, %s212
      %p226 = scmp.eq.s32.totalorder %s21, 1
      %p227 = por %p225, %p226
      %p229 = scmp.ne.s32.totalorder %s212, %s228
      %p230 = scmp.eq.s32.totalorder %s21, 0
      %p231 = por %p229, %p230
      %s232 = ssub.s32 %s22, %s34
      %p233 = scmp.eq.s32.totalorder %s232, 0
      %s235 = sadd.s32 %s234, 1
      %s236 = scalar_select %p233, %s234, %s235
      %p239 = pneg %p233
      %p240 = scmp.eq.s32.totalorder %s15, 1
      %p241 = por %p239, %p240
      %p242 = scmp.ne.s32.totalorder %s234, %s237
      %p243 = scmp.eq.s32.totalorder %s15, 0
      %p244 = por %p242, %p243
      %p245 = scmp.ne.s32.totalorder %s234, %s237
      %p246 = scmp.eq.s32.totalorder %s20, 1
      %p247 = por %p245, %p246
      %p248 = scmp.ne.s32.totalorder %s237, %s238
      %p249 = scmp.eq.s32.totalorder %s20, 0
      %p250 = por %p248, %p249
      %p251 = scmp.ne.s32.totalorder %s237, %s238
      %p252 = scmp.eq.s32.totalorder %s21, 1
      %p253 = por %p251, %p252
      %p255 = scmp.ne.s32.totalorder %s238, %s254
      %p256 = scmp.eq.s32.totalorder %s21, 0
      %p257 = por %p255, %p256
      %p258 = scmp.le.s32.totalorder 1, %s15
      %p259 = scmp.lt.s32.totalorder %s15, 3
      %p260 = pnand %p258, %p259
      %p261 = pneg %p260
      // Predicated region
      $region9: #{sentiment_rnn_forward.2} parent=5 // pred_check
        _
      $region10: #{sentiment_rnn_forward.2} parent=5 // pred_check_branch
        %263 = sbr.rel (%p260) target = $region12
      $region11: #{sentiment_rnn_forward.2} parent=5 // pred_region
        %s264 = ssub.s32 %s15, 1
        // Predicated region
        $region13: #{sentiment_rnn_forward.2} parent=11 // pred_check
          %p265 = pneg %p128
        $region14: #{sentiment_rnn_forward.2} parent=11 // pred_check_branch
          %267 = sbr.rel (%p265) target = $region16
        $region15: #{sentiment_rnn_forward.2} parent=11 // pred_region
          _
        $region16: #{sentiment_rnn_forward.2} parent=11 // pred_fallthru
          _
        // Predicated region
        $region17: #{sentiment_rnn_forward.2} parent=11 // pred_check
          %p268 = pneg %p149
        $region18: #{sentiment_rnn_forward.2} parent=11 // pred_check_branch
          %270 = sbr.rel (%p268) target = $region20
        $region19: #{sentiment_rnn_forward.2} parent=11 // pred_region
          _
        $region20: #{sentiment_rnn_forward.2} parent=11 // pred_fallthru
          _
        // Predicated region
        $region21: #{sentiment_rnn_forward.2} parent=11 // pred_check
          %p271 = pneg %p170
        $region22: #{sentiment_rnn_forward.2} parent=11 // pred_check_branch
          %273 = sbr.rel (%p271) target = $region24
        $region23: #{sentiment_rnn_forward.2} parent=11 // pred_region
          _
        $region24: #{sentiment_rnn_forward.2} parent=11 // pred_fallthru
          _
      $region12: #{sentiment_rnn_forward.2} parent=5 // pred_fallthru
        _
      %p274 = scmp.lt.s32.totalorder %s15, 2
      // Predicated region
      $region25: #{sentiment_rnn_forward.2} parent=5 // pred_check
        %p275 = pneg %p274
      $region26: #{sentiment_rnn_forward.2} parent=5 // pred_check_branch
        %277 = sbr.rel (%p275) target = $region28
      $region27: #{sentiment_rnn_forward.2} parent=5 // pred_region
        // Predicated region
        $region29: #{sentiment_rnn_forward.2} parent=27 // pred_check
          %p278 = pneg %p49
        $region30: #{sentiment_rnn_forward.2} parent=27 // pred_check_branch
          %280 = sbr.rel (%p278) target = $region32
        $region31: #{sentiment_rnn_forward.2} parent=27 // pred_region
          %s281 = sand.u32 %s39, 1
          %s282 = sand.u32 %s39, 1
          %s283 = smul.addr %s282, 32
          %s284 = scalar_lea.vmem [#allocation5], %s283
          %s285 = smul.u32 8, %s23
          %s286 = smul.addr %s285, 2
          %s287 = sadd.s32 %s22, %s286
          %s288 = smul.addr %s287, 4
          %s289 = scalar_lea.vmem %s0, %s288
          // Predicated region
          $region33: #{sentiment_rnn_forward.2} parent=31 // pred_check
            _
          $region34: #{sentiment_rnn_forward.2} parent=31 // pred_check_branch
            %291 = sbr.rel (0) target = $region36
          $region35: #{sentiment_rnn_forward.2} parent=31 // pred_region
            // Predicated region
            $region37: #{sentiment_rnn_forward.2} parent=35 // pred_check
              _
            $region38: #{sentiment_rnn_forward.2} parent=35 // pred_check_branch
              %293 = sbr.rel target = $region40
            $region39: #{sentiment_rnn_forward.2} parent=35 // pred_region
              // Predicated region
              $region52: #{sentiment_rnn_forward.2} parent=39 // pred_check
                _
              $region53: #{sentiment_rnn_forward.2} parent=39 // pred_check_branch
                %323 = sbr.rel (0) target = $region55
              $region54: #{sentiment_rnn_forward.2} parent=39 // pred_region
                loop: start=0, step=1, limit=1
                $region56: #{sentiment_rnn_forward.2} parent=54 // loop_pre_header
                  _
                $region57: #{sentiment_rnn_forward.2} parent=54 // loop_header
                  %s325 = sphi 0, %s329
                  %p326 = scmp.ge.s32.totalorder %s325, 1
                  %s330 = sphi %s289, %s289
                  %s331 = sphi %s284, %s284
                $region58: #{sentiment_rnn_forward.2} parent=54 // loop_header_branch
                  %328 = sbr.rel (%p326) target = $region62
                $region59: #{sentiment_rnn_forward.2} parent=54 // loop_body
                  _
                $region60: #{sentiment_rnn_forward.2} parent=54 // loop_footer
                  %s329 = sadd.s32 1, %s325
                $region61: #{sentiment_rnn_forward.2} parent=54 // loop_footer_branch
                  %324 = sbr.rel target = $region57
                $region62: #{sentiment_rnn_forward.2} parent=54 // loop_exit
                  _
                %s333 = ssub.s32 16, 1
                loop: start=0, step=1, limit=1
                $region63: #{sentiment_rnn_forward.2} parent=54 // loop_pre_header
                  _
                $region64: #{sentiment_rnn_forward.2} parent=54 // loop_header
                  %s335 = sphi 0, %s339
                  %p336 = scmp.ge.s32.totalorder %s335, 1
                  %s340 = sphi %s289, %s289
                  %s341 = sphi %s284, %s284
                $region65: #{sentiment_rnn_forward.2} parent=54 // loop_header_branch
                  %338 = sbr.rel (%p336) target = $region69
                $region66: #{sentiment_rnn_forward.2} parent=54 // loop_body
                  %v342 = vld [vmem:[%s340] sm:%s333]
                  %343 = vst [vmem:[%s341] sm:%s333] %v342
                  %v344 = vld [vmem:[%s340 + $0x8] sm:%s333]
                  %345 = vst [vmem:[%s341 + $0x4] sm:%s333] %v344
                  %v346 = vld [vmem:[%s340 + $0x10] sm:%s333]
                  %347 = vst [vmem:[%s341 + $0x8] sm:%s333] %v346
                  %v348 = vld [vmem:[%s340 + $0x18] sm:%s333]
                  %349 = vst [vmem:[%s341 + $0xc] sm:%s333] %v348
                  %v350 = vld [vmem:[%s340 + $0x20] sm:%s333]
                  %351 = vst [vmem:[%s341 + $0x10] sm:%s333] %v350
                  %v352 = vld [vmem:[%s340 + $0x28] sm:%s333]
                  %353 = vst [vmem:[%s341 + $0x14] sm:%s333] %v352
                  %v354 = vld [vmem:[%s340 + $0x30] sm:%s333]
                  %355 = vst [vmem:[%s341 + $0x18] sm:%s333] %v354
                  %v356 = vld [vmem:[%s340 + $0x38] sm:%s333]
                  %357 = vst [vmem:[%s341 + $0x1c] sm:%s333] %v356
                $region67: #{sentiment_rnn_forward.2} parent=54 // loop_footer
                  %s339 = sadd.s32 1, %s335
                $region68: #{sentiment_rnn_forward.2} parent=54 // loop_footer_branch
                  %334 = sbr.rel target = $region64
                $region69: #{sentiment_rnn_forward.2} parent=54 // loop_exit
                  _
              $region55: #{sentiment_rnn_forward.2} parent=39 // pred_fallthru
                _
            $region40: #{sentiment_rnn_forward.2} parent=35 // pred_fallthru
              _
            // Predicated region
            $region41: #{sentiment_rnn_forward.2} parent=35 // pred_check
              _
            $region42: #{sentiment_rnn_forward.2} parent=35 // pred_check_branch
              %295 = sbr.rel (0) target = $region44
            $region43: #{sentiment_rnn_forward.2} parent=35 // pred_region
              %s297 = ssub.s32 16, 1
              loop: start=0, step=1, limit=1
              $region45: #{sentiment_rnn_forward.2} parent=43 // loop_pre_header
                _
              $region46: #{sentiment_rnn_forward.2} parent=43 // loop_header
                %s299 = sphi 0, %s303
                %p300 = scmp.ge.s32.totalorder %s299, 1
                %s304 = sphi %s289, %s289
                %s305 = sphi %s284, %s284
              $region47: #{sentiment_rnn_forward.2} parent=43 // loop_header_branch
                %302 = sbr.rel (%p300) target = $region51
              $region48: #{sentiment_rnn_forward.2} parent=43 // loop_body
                %v306 = vld [vmem:[%s304] sm:%s297]
                %307 = vst [vmem:[%s305] sm:%s297] %v306
                %v308 = vld [vmem:[%s304 + $0x8] sm:%s297]
                %309 = vst [vmem:[%s305 + $0x4] sm:%s297] %v308
                %v310 = vld [vmem:[%s304 + $0x10] sm:%s297]
                %311 = vst [vmem:[%s305 + $0x8] sm:%s297] %v310
                %v312 = vld [vmem:[%s304 + $0x18] sm:%s297]
                %313 = vst [vmem:[%s305 + $0xc] sm:%s297] %v312
                %v314 = vld [vmem:[%s304 + $0x20] sm:%s297]
                %315 = vst [vmem:[%s305 + $0x10] sm:%s297] %v314
                %v316 = vld [vmem:[%s304 + $0x28] sm:%s297]
                %317 = vst [vmem:[%s305 + $0x14] sm:%s297] %v316
                %v318 = vld [vmem:[%s304 + $0x30] sm:%s297]
                %319 = vst [vmem:[%s305 + $0x18] sm:%s297] %v318
                %v320 = vld [vmem:[%s304 + $0x38] sm:%s297]
                %321 = vst [vmem:[%s305 + $0x1c] sm:%s297] %v320
              $region49: #{sentiment_rnn_forward.2} parent=43 // loop_footer
                %s303 = sadd.s32 1, %s299
              $region50: #{sentiment_rnn_forward.2} parent=43 // loop_footer_branch
                %298 = sbr.rel target = $region46
              $region51: #{sentiment_rnn_forward.2} parent=43 // loop_exit
                _
            $region44: #{sentiment_rnn_forward.2} parent=35 // pred_fallthru
              _
          $region36: #{sentiment_rnn_forward.2} parent=31 // pred_fallthru
            _
          %358 = vnop
        $region32: #{sentiment_rnn_forward.2} parent=27 // pred_fallthru
          _
        // Predicated region
        $region70: #{sentiment_rnn_forward.2} parent=27 // pred_check
          %p359 = pneg %p75
        $region71: #{sentiment_rnn_forward.2} parent=27 // pred_check_branch
          %361 = sbr.rel (%p359) target = $region73
        $region72: #{sentiment_rnn_forward.2} parent=27 // pred_region
          %p362 = scmp.lt.s32.totalorder %s22, 1
          %s363 = scalar_select %p362, %s22, 1
          %s364 = smul.addr %s363, 8
          %s365 = scalar_lea.vmem %s1, %s364
        $region73: #{sentiment_rnn_forward.2} parent=27 // pred_fallthru
          _
        // Predicated region
        $region74: #{sentiment_rnn_forward.2} parent=27 // pred_check
          %p366 = pneg %p101
        $region75: #{sentiment_rnn_forward.2} parent=27 // pred_check_branch
          %368 = sbr.rel (%p366) target = $region77
        $region76: #{sentiment_rnn_forward.2} parent=27 // pred_region
          %p369 = scmp.lt.s32.totalorder %s22, 1
          %s370 = scalar_select %p369, %s22, 1
          %s371 = smul.addr %s370, 8
          %s372 = scalar_lea.vmem %s2, %s371
        $region77: #{sentiment_rnn_forward.2} parent=27 // pred_fallthru
          _
      $region28: #{sentiment_rnn_forward.2} parent=5 // pred_fallthru
        _
      %p373 = scmp.le.s32.totalorder 1, %s15
      %p374 = scmp.lt.s32.totalorder %s15, 3
      %p375 = pnand %p373, %p374
      %p376 = pneg %p375
      // Predicated region
      $region78: #{sentiment_rnn_forward.2} parent=5 // pred_check
        _
      $region79: #{sentiment_rnn_forward.2} parent=5 // pred_check_branch
        %378 = sbr.rel (%p375) target = $region81
      $region80: #{sentiment_rnn_forward.2} parent=5 // pred_region
        %s379 = ssub.s32 %s15, 1
        %s380 = sand.u32 %s42, 1
        %s381 = sand.u32 %s42, 1
        %s382 = smul.addr %s381, 32
        %s383 = scalar_lea.vmem [#allocation5], %s382
        // Predicated region
        $region82: #{sentiment_rnn_forward.2} parent=80 // pred_check
          %p384 = pneg %p55
        $region83: #{sentiment_rnn_forward.2} parent=80 // pred_check_branch
          %386 = sbr.rel (%p384) target = $region85
        $region84: #{sentiment_rnn_forward.2} parent=80 // pred_region
          _
        $region85: #{sentiment_rnn_forward.2} parent=80 // pred_fallthru
          _
        %s387 = sand.u32 %s42, 1
        %s388 = sand.u32 %s42, 1
        %s389 = smul.addr %s388, 32
        %s390 = scalar_lea.vmem [#allocation5], %s389
        %p391 = pneg %p55
        %p392 = pneg %p52
        %p393 = scmp.lt.s32.totalorder %s24, 1
        %s394 = scalar_select %p393, %s24, 1
        %s395 = smul.addr %s394, 8
        %s396 = scalar_lea.vmem %s1, %s395
        %p397 = pneg %p81
        %p398 = pneg %p78
        %p399 = scmp.lt.s32.totalorder %s24, 1
        %s400 = scalar_select %p399, %s24, 1
        %s401 = smul.addr %s400, 8
        %s402 = scalar_lea.vmem %s2, %s401
        %p403 = pneg %p107
        %p404 = pneg %p104
        %p405 = pneg %p128
        %p406 = pneg %p125
        %p407 = pneg %p149
        %p408 = pneg %p146
        %p409 = pneg %p170
        %p410 = pneg %p167
        %p411 = pneg %p198
        %p412 = pneg %p195
        %s413 = sand.u32 %s185, 1
        %s414 = sand.u32 %s185, 1
        %s415 = smul.addr %s414, 32
        %s416 = scalar_lea.vmem [#allocation6], %s415
        %p417 = pneg %p224
        %p418 = pneg %p221
        %p419 = scmp.lt.s32.totalorder %s24, 1
        %s420 = scalar_select %p419, %s24, 1
        %s421 = smul.addr %s420, 8
        %s422 = scalar_lea.vmem %s7, %s421
        %p423 = pneg %p250
        %p424 = pneg %p247
        %p425 = scmp.lt.s32.totalorder %s24, 1
        %s426 = scalar_select %p425, %s24, 1
        %s427 = smul.addr %s426, 8
        %s428 = scalar_lea.vmem %s8, %s427
        %s429 = smul.u32 8, %s25
        %p430 = scmp.lt.s32.totalorder %s24, 1
        %s431 = scalar_select %p430, %s24, 1
        %s432 = smul.addr %s431, 8
        %s433 = scalar_lea.vmem %s1, %s432
        %p434 = scmp.lt.s32.totalorder %s24, 1
        %s435 = scalar_select %p434, %s24, 1
        %s436 = smul.addr %s435, 8
        %s437 = scalar_lea.vmem %s2, %s436
        %s438 = smul.u32 8, %s25
        %p439 = scmp.lt.s32.totalorder %s24, 1
        %s440 = scalar_select %p439, %s24, 1
        %s441 = smul.addr %s440, 8
        %s442 = scalar_lea.vmem %s7, %s441
        %p443 = scmp.lt.s32.totalorder %s24, 1
        %s444 = scalar_select %p443, %s24, 1
        %s445 = smul.addr %s444, 8
        %s446 = scalar_lea.vmem %s8, %s445
        %p447 = scmp.eq.s32.totalorder %s25, 0
        // Predicated region
        $region86: #{sentiment_rnn_forward.2} parent=80 // pred_check
          %p448 = pneg %p447
        $region87: #{sentiment_rnn_forward.2} parent=80 // pred_check_branch
          %450 = sbr.rel (%p448) target = $region89
        $region88: #{sentiment_rnn_forward.2} parent=80 // pred_region
          %v451 = vld [vmem:[%s433] sm:$0xff]
          %452 = vst [vmem:[#allocation2] sm:$0xff] %v451
          %v453 = vld [vmem:[%s437] sm:$0xff]
          %454 = vst [vmem:[#allocation3] sm:$0xff] %v453
        $region89: #{sentiment_rnn_forward.2} parent=80 // pred_fallthru
          _
        %v455 = vld [vmem:[%s383] sm:$0xf]
        %v456 = vld [vmem:[%s383 + $0x4] sm:$0xf]
        %v457 = vld [vmem:[%s383 + $0x8] sm:$0xf]
        %v458 = vld [vmem:[%s383 + $0xc] sm:$0xf]
        %v459 = vld [vmem:[%s383 + $0x10] sm:$0xf]
        %v460 = vld [vmem:[%s383 + $0x14] sm:$0xf]
        %v461 = vld [vmem:[%s383 + $0x18] sm:$0xf]
        %v462 = vld [vmem:[%s383 + $0x1c] sm:$0xf]
        %v463 = vld [vmem:[%s3] sm:$0xff]
        %v464 = vld [vmem:[%s3 + $0x8] sm:$0xff]
        %v465 = vld [vmem:[%s3 + $0x10] sm:$0xff]
        %v466 = vld [vmem:[%s3 + $0x18] sm:$0xff]
        %v467 = vld [vmem:[%s3 + $0x20] sm:$0xff]
        %v468 = vld [vmem:[%s3 + $0x28] sm:$0xff]
        %v469 = vld [vmem:[%s3 + $0x30] sm:$0xff]
        %v470 = vld [vmem:[%s3 + $0x38] sm:$0xff]
        %v471 = vld [vmem:[%s3 + $0x40] sm:$0xff]
        %v472 = vld [vmem:[%s3 + $0x48] sm:$0xff]
        %v473 = vld [vmem:[%s3 + $0x50] sm:$0xff]
        %v474 = vld [vmem:[%s3 + $0x58] sm:$0xff]
        %v475 = vld [vmem:[%s3 + $0x60] sm:$0xff]
        %v476 = vld [vmem:[%s3 + $0x68] sm:$0xff]
        %v477 = vld [vmem:[%s3 + $0x70] sm:$0xff]
        %v478 = vld [vmem:[%s3 + $0x78] sm:$0xff]
        %v479 = vld [vmem:[%s3 + $0x80] sm:$0xff]
        %v480 = vld [vmem:[%s3 + $0x88] sm:$0xff]
        %v481 = vld [vmem:[%s3 + $0x90] sm:$0xff]
        %v482 = vld [vmem:[%s3 + $0x98] sm:$0xff]
        %v483 = vld [vmem:[%s3 + $0xa0] sm:$0xff]
        %v484 = vld [vmem:[%s3 + $0xa8] sm:$0xff]
        %v485 = vld [vmem:[%s3 + $0xb0] sm:$0xff]
        %v486 = vld [vmem:[%s3 + $0xb8] sm:$0xff]
        %v487 = vld [vmem:[%s3 + $0xc0] sm:$0xff]
        %v488 = vld [vmem:[%s3 + $0xc8] sm:$0xff]
        %v489 = vld [vmem:[%s3 + $0xd0] sm:$0xff]
        %v490 = vld [vmem:[%s3 + $0xd8] sm:$0xff]
        %v491 = vld [vmem:[%s3 + $0xe0] sm:$0xff]
        %v492 = vld [vmem:[%s3 + $0xe8] sm:$0xff]
        %v493 = vld [vmem:[%s3 + $0xf0] sm:$0xff]
        %v494 = vld [vmem:[%s3 + $0xf8] sm:$0xff]
        %v495 = vld [vmem:[%s5] sm:$0xf]
        %v497 = vperm.slane %v495, 0
        %v498 = vperm.slane %v495, 1
        %v499 = vperm.slane %v495, 2
        %v500 = vperm.slane %v495, 3
        %v513 = vunpack.c.l.b16 %v455
        %v514 = vunpack.c.l.b16 %v456
        %v515 = vunpack.c.l.b16 %v457
        %v516 = vunpack.c.l.b16 %v458
        %v517 = vunpack.c.l.b16 %v459
        %v518 = vunpack.c.l.b16 %v460
        %v519 = vunpack.c.l.b16 %v461
        %v520 = vunpack.c.l.b16 %v462
        %v521 = vpack.c.b16 %v514, %v513
        %v522 = vpack.c.b16 %v516, %v515
        %v523 = vpack.c.b16 %v518, %v517
        %v524 = vpack.c.b16 %v520, %v519
        %v561 = vunpack.c.l.b16 %v463
        %v562 = vunpack.c.h.b16 %v463
        %v563 = vunpack.c.l.b16 %v464
        %v564 = vunpack.c.h.b16 %v464
        %v565 = vunpack.c.l.b16 %v465
        %v566 = vunpack.c.h.b16 %v465
        %v567 = vunpack.c.l.b16 %v466
        %v568 = vunpack.c.h.b16 %v466
        %v569 = vunpack.c.l.b16 %v467
        %v570 = vunpack.c.h.b16 %v467
        %v571 = vunpack.c.l.b16 %v468
        %v572 = vunpack.c.h.b16 %v468
        %v573 = vunpack.c.l.b16 %v469
        %v574 = vunpack.c.h.b16 %v469
        %v575 = vunpack.c.l.b16 %v470
        %v576 = vunpack.c.h.b16 %v470
        %v577 = vunpack.c.l.b16 %v471
        %v578 = vunpack.c.h.b16 %v471
        %v579 = vunpack.c.l.b16 %v472
        %v580 = vunpack.c.h.b16 %v472
        %v581 = vunpack.c.l.b16 %v473
        %v582 = vunpack.c.h.b16 %v473
        %v583 = vunpack.c.l.b16 %v474
        %v584 = vunpack.c.h.b16 %v474
        %v585 = vunpack.c.l.b16 %v475
        %v586 = vunpack.c.h.b16 %v475
        %v587 = vunpack.c.l.b16 %v476
        %v588 = vunpack.c.h.b16 %v476
        %v589 = vunpack.c.l.b16 %v477
        %v590 = vunpack.c.h.b16 %v477
        %v591 = vunpack.c.l.b16 %v478
        %v592 = vunpack.c.h.b16 %v478
        %v593 = vunpack.c.l.b16 %v479
        %v594 = vunpack.c.h.b16 %v479
        %v595 = vunpack.c.l.b16 %v480
        %v596 = vunpack.c.h.b16 %v480
        %v597 = vunpack.c.l.b16 %v481
        %v598 = vunpack.c.h.b16 %v481
        %v599 = vunpack.c.l.b16 %v482
        %v600 = vunpack.c.h.b16 %v482
        %v601 = vunpack.c.l.b16 %v483
        %v602 = vunpack.c.h.b16 %v483
        %v603 = vunpack.c.l.b16 %v484
        %v604 = vunpack.c.h.b16 %v484
        %v605 = vunpack.c.l.b16 %v485
        %v606 = vunpack.c.h.b16 %v485
        %v607 = vunpack.c.l.b16 %v486
        %v608 = vunpack.c.h.b16 %v486
        %v609 = vunpack.c.l.b16 %v487
        %v610 = vunpack.c.h.b16 %v487
        %v611 = vunpack.c.l.b16 %v488
        %v612 = vunpack.c.h.b16 %v488
        %v613 = vunpack.c.l.b16 %v489
        %v614 = vunpack.c.h.b16 %v489
        %v615 = vunpack.c.l.b16 %v490
        %v616 = vunpack.c.h.b16 %v490
        %v617 = vunpack.c.l.b16 %v491
        %v618 = vunpack.c.h.b16 %v491
        %v619 = vunpack.c.l.b16 %v492
        %v620 = vunpack.c.h.b16 %v492
        %v621 = vunpack.c.l.b16 %v493
        %v622 = vunpack.c.h.b16 %v493
        %v623 = vunpack.c.l.b16 %v494
        %v624 = vunpack.c.h.b16 %v494
        %v625 = vpack.c.b16 %v565, %v561
        %v626 = vpack.c.b16 %v566, %v562
        %v627 = vpack.c.b16 %v567, %v563
        %v628 = vpack.c.b16 %v568, %v564
        %v629 = vpack.c.b16 %v573, %v569
        %v630 = vpack.c.b16 %v574, %v570
        %v631 = vpack.c.b16 %v575, %v571
        %v632 = vpack.c.b16 %v576, %v572
        %v633 = vpack.c.b16 %v581, %v577
        %v634 = vpack.c.b16 %v582, %v578
        %v635 = vpack.c.b16 %v583, %v579
        %v636 = vpack.c.b16 %v584, %v580
        %v637 = vpack.c.b16 %v589, %v585
        %v638 = vpack.c.b16 %v590, %v586
        %v639 = vpack.c.b16 %v591, %v587
        %v640 = vpack.c.b16 %v592, %v588
        %v641 = vpack.c.b16 %v597, %v593
        %v642 = vpack.c.b16 %v598, %v594
        %v643 = vpack.c.b16 %v599, %v595
        %v644 = vpack.c.b16 %v600, %v596
        %v645 = vpack.c.b16 %v605, %v601
        %v646 = vpack.c.b16 %v606, %v602
        %v647 = vpack.c.b16 %v607, %v603
        %v648 = vpack.c.b16 %v608, %v604
        %v649 = vpack.c.b16 %v613, %v609
        %v650 = vpack.c.b16 %v614, %v610
        %v651 = vpack.c.b16 %v615, %v611
        %v652 = vpack.c.b16 %v616, %v612
        %v653 = vpack.c.b16 %v621, %v617
        %v654 = vpack.c.b16 %v622, %v618
        %v655 = vpack.c.b16 %v623, %v619
        %v656 = vpack.c.b16 %v624, %v620
        %689 = vmatpush.bf16.msra.mxu0 %v653
        %690 = vmatpush.bf16.msra.mxu0 %v649
        %691 = vmatpush.bf16.msra.mxu0 %v645
        %692 = vmatpush.bf16.msra.mxu0 %v641
        %693 = vmatpush.bf16.msra.mxu0 %v637
        %694 = vmatpush.bf16.msra.mxu0 %v633
        %695 = vmatpush.bf16.msra.mxu0 %v629
        %696 = vmatpush.bf16.msra.mxu0 %v625
        %697 = vmatmul.bf16.gmra.mxu0 %v521
        %v698 = vpop.f32.mrf.mxu0
        %v699 = vadd.f32 %v497, %v698
        %v700 = vpop.f32.mrf.mxu0
        %v701 = vadd.f32 %v497, %v700
        %702 = vmatmul.bf16.gmra.mxu0 %v522
        %v703 = vpop.f32.mrf.mxu0
        %v704 = vadd.f32 %v497, %v703
        %v705 = vpop.f32.mrf.mxu0
        %v706 = vadd.f32 %v497, %v705
        %707 = vmatmul.bf16.gmra.mxu0 %v523
        %v708 = vpop.f32.mrf.mxu0
        %v709 = vadd.f32 %v497, %v708
        %v710 = vpop.f32.mrf.mxu0
        %v711 = vadd.f32 %v497, %v710
        %712 = vmatmul.bf16.gmra.mxu0 %v524
        %v713 = vpop.f32.mrf.mxu0
        %v714 = vadd.f32 %v497, %v713
        %v715 = vpop.f32.mrf.mxu0
        %v716 = vadd.f32 %v497, %v715
        %717 = vdwg.mxu0
        %718 = vmatpush.bf16.msra.mxu0 %v654
        %719 = vmatpush.bf16.msra.mxu0 %v650
        %720 = vmatpush.bf16.msra.mxu0 %v646
        %721 = vmatpush.bf16.msra.mxu0 %v642
        %722 = vmatpush.bf16.msra.mxu0 %v638
        %723 = vmatpush.bf16.msra.mxu0 %v634
        %724 = vmatpush.bf16.msra.mxu0 %v630
        %725 = vmatpush.bf16.msra.mxu0 %v626
        %726 = vmatmul.bf16.gmra.mxu0 %v521
        %v727 = vpop.f32.mrf.mxu0
        %v728 = vadd.f32 %v498, %v727
        %v729 = vpop.f32.mrf.mxu0
        %v730 = vadd.f32 %v498, %v729
        %731 = vmatmul.bf16.gmra.mxu0 %v522
        %v732 = vpop.f32.mrf.mxu0
        %v733 = vadd.f32 %v498, %v732
        %v734 = vpop.f32.mrf.mxu0
        %v735 = vadd.f32 %v498, %v734
        %736 = vmatmul.bf16.gmra.mxu0 %v523
        %v737 = vpop.f32.mrf.mxu0
        %v738 = vadd.f32 %v498, %v737
        %v739 = vpop.f32.mrf.mxu0
        %v740 = vadd.f32 %v498, %v739
        %741 = vmatmul.bf16.gmra.mxu0 %v524
        %v742 = vpop.f32.mrf.mxu0
        %v743 = vadd.f32 %v498, %v742
        %v744 = vpop.f32.mrf.mxu0
        %v745 = vadd.f32 %v498, %v744
        %746 = vdwg.mxu0
        %747 = vmatpush.bf16.msra.mxu0 %v655
        %748 = vmatpush.bf16.msra.mxu0 %v651
        %749 = vmatpush.bf16.msra.mxu0 %v647
        %750 = vmatpush.bf16.msra.mxu0 %v643
        %751 = vmatpush.bf16.msra.mxu0 %v639
        %752 = vmatpush.bf16.msra.mxu0 %v635
        %753 = vmatpush.bf16.msra.mxu0 %v631
        %754 = vmatpush.bf16.msra.mxu0 %v627
        %755 = vmatmul.bf16.gmra.mxu0 %v521
        %v756 = vpop.f32.mrf.mxu0
        %v757 = vadd.f32 %v499, %v756
        %v758 = vpop.f32.mrf.mxu0
        %v759 = vadd.f32 %v499, %v758
        %760 = vmatmul.bf16.gmra.mxu0 %v522
        %v761 = vpop.f32.mrf.mxu0
        %v762 = vadd.f32 %v499, %v761
        %v763 = vpop.f32.mrf.mxu0
        %v764 = vadd.f32 %v499, %v763
        %765 = vmatmul.bf16.gmra.mxu0 %v523
        %v766 = vpop.f32.mrf.mxu0
        %v767 = vadd.f32 %v499, %v766
        %v768 = vpop.f32.mrf.mxu0
        %v769 = vadd.f32 %v499, %v768
        %770 = vmatmul.bf16.gmra.mxu0 %v524
        %v771 = vpop.f32.mrf.mxu0
        %v772 = vadd.f32 %v499, %v771
        %v773 = vpop.f32.mrf.mxu0
        %v774 = vadd.f32 %v499, %v773
        %775 = vdwg.mxu0
        %776 = vmatpush.bf16.msra.mxu0 %v656
        %777 = vmatpush.bf16.msra.mxu0 %v652
        %778 = vmatpush.bf16.msra.mxu0 %v648
        %779 = vmatpush.bf16.msra.mxu0 %v644
        %780 = vmatpush.bf16.msra.mxu0 %v640
        %781 = vmatpush.bf16.msra.mxu0 %v636
        %782 = vmatpush.bf16.msra.mxu0 %v632
        %783 = vmatpush.bf16.msra.mxu0 %v628
        %784 = vmatmul.bf16.gmra.mxu0 %v521
        %v785 = vpop.f32.mrf.mxu0
        %v786 = vadd.f32 %v500, %v785
        %v787 = vpop.f32.mrf.mxu0
        %v788 = vadd.f32 %v500, %v787
        %789 = vmatmul.bf16.gmra.mxu0 %v522
        %v790 = vpop.f32.mrf.mxu0
        %v791 = vadd.f32 %v500, %v790
        %v792 = vpop.f32.mrf.mxu0
        %v793 = vadd.f32 %v500, %v792
        %794 = vmatmul.bf16.gmra.mxu0 %v523
        %v795 = vpop.f32.mrf.mxu0
        %v796 = vadd.f32 %v500, %v795
        %v797 = vpop.f32.mrf.mxu0
        %v798 = vadd.f32 %v500, %v797
        %799 = vmatmul.bf16.gmra.mxu0 %v524
        %v800 = vpop.f32.mrf.mxu0
        %v801 = vadd.f32 %v500, %v800
        %v802 = vpop.f32.mrf.mxu0
        %v803 = vadd.f32 %v500, %v802
        %804 = vdwg.mxu0
        %805 = vst [vmem:[#allocation4] sm:$0xff] %v699
        %806 = vst [vmem:[#allocation4 + $0x8] sm:$0xff] %v728
        %807 = vst [vmem:[#allocation4 + $0x10] sm:$0xff] %v757
        %808 = vst [vmem:[#allocation4 + $0x18] sm:$0xff] %v786
        %809 = vst [vmem:[#allocation4 + $0x20] sm:$0xff] %v701
        %810 = vst [vmem:[#allocation4 + $0x28] sm:$0xff] %v730
        %811 = vst [vmem:[#allocation4 + $0x30] sm:$0xff] %v759
        %812 = vst [vmem:[#allocation4 + $0x38] sm:$0xff] %v788
        %813 = vst [vmem:[#allocation4 + $0x40] sm:$0xff] %v704
        %814 = vst [vmem:[#allocation4 + $0x48] sm:$0xff] %v733
        %815 = vst [vmem:[#allocation4 + $0x50] sm:$0xff] %v762
        %816 = vst [vmem:[#allocation4 + $0x58] sm:$0xff] %v791
        %817 = vst [vmem:[#allocation4 + $0x60] sm:$0xff] %v706
        %818 = vst [vmem:[#allocation4 + $0x68] sm:$0xff] %v735
        %819 = vst [vmem:[#allocation4 + $0x70] sm:$0xff] %v764
        %820 = vst [vmem:[#allocation4 + $0x78] sm:$0xff] %v793
        %821 = vst [vmem:[#allocation4 + $0x80] sm:$0xff] %v709
        %822 = vst [vmem:[#allocation4 + $0x88] sm:$0xff] %v738
        %823 = vst [vmem:[#allocation4 + $0x90] sm:$0xff] %v767
        %824 = vst [vmem:[#allocation4 + $0x98] sm:$0xff] %v796
        %825 = vst [vmem:[#allocation4 + $0xa0] sm:$0xff] %v711
        %826 = vst [vmem:[#allocation4 + $0xa8] sm:$0xff] %v740
        %827 = vst [vmem:[#allocation4 + $0xb0] sm:$0xff] %v769
        %828 = vst [vmem:[#allocation4 + $0xb8] sm:$0xff] %v798
        %829 = vst [vmem:[#allocation4 + $0xc0] sm:$0xff] %v714
        %830 = vst [vmem:[#allocation4 + $0xc8] sm:$0xff] %v743
        %831 = vst [vmem:[#allocation4 + $0xd0] sm:$0xff] %v772
        %832 = vst [vmem:[#allocation4 + $0xd8] sm:$0xff] %v801
        %833 = vst [vmem:[#allocation4 + $0xe0] sm:$0xff] %v716
        %834 = vst [vmem:[#allocation4 + $0xe8] sm:$0xff] %v745
        %835 = vst [vmem:[#allocation4 + $0xf0] sm:$0xff] %v774
        %836 = vst [vmem:[#allocation4 + $0xf8] sm:$0xff] %v803
        %v837 = vld [vmem:[#allocation2] sm:$0xff]
        %v838 = vld [vmem:[#allocation3] sm:$0xff]
        %v839 = vld [vmem:[#allocation4] sm:$0xff]
        %v840 = vld [vmem:[#allocation4 + $0x8] sm:$0xff]
        %v841 = vld [vmem:[#allocation4 + $0x10] sm:$0xff]
        %v842 = vld [vmem:[#allocation4 + $0x18] sm:$0xff]
        %v843 = vpack.c.bf16 %v837, %v837
        %v844 = vld [vmem:[%s4] sm:$0xff]
        %v845 = vld [vmem:[%s4 + $0x8] sm:$0xff]
        %v846 = vld [vmem:[%s4 + $0x10] sm:$0xff]
        %v847 = vld [vmem:[%s4 + $0x18] sm:$0xff]
        %v848 = vld [vmem:[%s4 + $0x20] sm:$0xff]
        %v849 = vld [vmem:[%s4 + $0x28] sm:$0xff]
        %v850 = vld [vmem:[%s4 + $0x30] sm:$0xff]
        %v851 = vld [vmem:[%s4 + $0x38] sm:$0xff]
        %v852 = vld [vmem:[%s4 + $0x40] sm:$0xff]
        %v853 = vld [vmem:[%s4 + $0x48] sm:$0xff]
        %v854 = vld [vmem:[%s4 + $0x50] sm:$0xff]
        %v855 = vld [vmem:[%s4 + $0x58] sm:$0xff]
        %v856 = vld [vmem:[%s4 + $0x60] sm:$0xff]
        %v857 = vld [vmem:[%s4 + $0x68] sm:$0xff]
        %v858 = vld [vmem:[%s4 + $0x70] sm:$0xff]
        %v859 = vld [vmem:[%s4 + $0x78] sm:$0xff]
        %v860 = vld [vmem:[%s4 + $0x80] sm:$0xff]
        %v861 = vld [vmem:[%s4 + $0x88] sm:$0xff]
        %v862 = vld [vmem:[%s4 + $0x90] sm:$0xff]
        %v863 = vld [vmem:[%s4 + $0x98] sm:$0xff]
        %v864 = vld [vmem:[%s4 + $0xa0] sm:$0xff]
        %v865 = vld [vmem:[%s4 + $0xa8] sm:$0xff]
        %v866 = vld [vmem:[%s4 + $0xb0] sm:$0xff]
        %v867 = vld [vmem:[%s4 + $0xb8] sm:$0xff]
        %v868 = vld [vmem:[%s4 + $0xc0] sm:$0xff]
        %v869 = vld [vmem:[%s4 + $0xc8] sm:$0xff]
        %v870 = vld [vmem:[%s4 + $0xd0] sm:$0xff]
        %v871 = vld [vmem:[%s4 + $0xd8] sm:$0xff]
        %v872 = vld [vmem:[%s4 + $0xe0] sm:$0xff]
        %v873 = vld [vmem:[%s4 + $0xe8] sm:$0xff]
        %v874 = vld [vmem:[%s4 + $0xf0] sm:$0xff]
        %v875 = vld [vmem:[%s4 + $0xf8] sm:$0xff]
        %v908 = vunpack.c.l.b16 %v844
        %v909 = vunpack.c.h.b16 %v844
        %v910 = vunpack.c.l.b16 %v845
        %v911 = vunpack.c.h.b16 %v845
        %v912 = vunpack.c.l.b16 %v846
        %v913 = vunpack.c.h.b16 %v846
        %v914 = vunpack.c.l.b16 %v847
        %v915 = vunpack.c.h.b16 %v847
        %v916 = vunpack.c.l.b16 %v848
        %v917 = vunpack.c.h.b16 %v848
        %v918 = vunpack.c.l.b16 %v849
        %v919 = vunpack.c.h.b16 %v849
        %v920 = vunpack.c.l.b16 %v850
        %v921 = vunpack.c.h.b16 %v850
        %v922 = vunpack.c.l.b16 %v851
        %v923 = vunpack.c.h.b16 %v851
        %v924 = vunpack.c.l.b16 %v852
        %v925 = vunpack.c.h.b16 %v852
        %v926 = vunpack.c.l.b16 %v853
        %v927 = vunpack.c.h.b16 %v853
        %v928 = vunpack.c.l.b16 %v854
        %v929 = vunpack.c.h.b16 %v854
        %v930 = vunpack.c.l.b16 %v855
        %v931 = vunpack.c.h.b16 %v855
        %v932 = vunpack.c.l.b16 %v856
        %v933 = vunpack.c.h.b16 %v856
        %v934 = vunpack.c.l.b16 %v857
        %v935 = vunpack.c.h.b16 %v857
        %v936 = vunpack.c.l.b16 %v858
        %v937 = vunpack.c.h.b16 %v858
        %v938 = vunpack.c.l.b16 %v859
        %v939 = vunpack.c.h.b16 %v859
        %v940 = vunpack.c.l.b16 %v860
        %v941 = vunpack.c.h.b16 %v860
        %v942 = vunpack.c.l.b16 %v861
        %v943 = vunpack.c.h.b16 %v861
        %v944 = vunpack.c.l.b16 %v862
        %v945 = vunpack.c.h.b16 %v862
        %v946 = vunpack.c.l.b16 %v863
        %v947 = vunpack.c.h.b16 %v863
        %v948 = vunpack.c.l.b16 %v864
        %v949 = vunpack.c.h.b16 %v864
        %v950 = vunpack.c.l.b16 %v865
        %v951 = vunpack.c.h.b16 %v865
        %v952 = vunpack.c.l.b16 %v866
        %v953 = vunpack.c.h.b16 %v866
        %v954 = vunpack.c.l.b16 %v867
        %v955 = vunpack.c.h.b16 %v867
        %v956 = vunpack.c.l.b16 %v868
        %v957 = vunpack.c.h.b16 %v868
        %v958 = vunpack.c.l.b16 %v869
        %v959 = vunpack.c.h.b16 %v869
        %v960 = vunpack.c.l.b16 %v870
        %v961 = vunpack.c.h.b16 %v870
        %v962 = vunpack.c.l.b16 %v871
        %v963 = vunpack.c.h.b16 %v871
        %v964 = vunpack.c.l.b16 %v872
        %v965 = vunpack.c.h.b16 %v872
        %v966 = vunpack.c.l.b16 %v873
        %v967 = vunpack.c.h.b16 %v873
        %v968 = vunpack.c.l.b16 %v874
        %v969 = vunpack.c.h.b16 %v874
        %v970 = vunpack.c.l.b16 %v875
        %v971 = vunpack.c.h.b16 %v875
        %v972 = vpack.c.b16 %v912, %v908
        %v973 = vpack.c.b16 %v913, %v909
        %v974 = vpack.c.b16 %v914, %v910
        %v975 = vpack.c.b16 %v915, %v911
        %v976 = vpack.c.b16 %v920, %v916
        %v977 = vpack.c.b16 %v921, %v917
        %v978 = vpack.c.b16 %v922, %v918
        %v979 = vpack.c.b16 %v923, %v919
        %v980 = vpack.c.b16 %v928, %v924
        %v981 = vpack.c.b16 %v929, %v925
        %v982 = vpack.c.b16 %v930, %v926
        %v983 = vpack.c.b16 %v931, %v927
        %v984 = vpack.c.b16 %v936, %v932
        %v985 = vpack.c.b16 %v937, %v933
        %v986 = vpack.c.b16 %v938, %v934
        %v987 = vpack.c.b16 %v939, %v935
        %v988 = vpack.c.b16 %v944, %v940
        %v989 = vpack.c.b16 %v945, %v941
        %v990 = vpack.c.b16 %v946, %v942
        %v991 = vpack.c.b16 %v947, %v943
        %v992 = vpack.c.b16 %v952, %v948
        %v993 = vpack.c.b16 %v953, %v949
        %v994 = vpack.c.b16 %v954, %v950
        %v995 = vpack.c.b16 %v955, %v951
        %v996 = vpack.c.b16 %v960, %v956
        %v997 = vpack.c.b16 %v961, %v957
        %v998 = vpack.c.b16 %v962, %v958
        %v999 = vpack.c.b16 %v963, %v959
        %v1000 = vpack.c.b16 %v968, %v964
        %v1001 = vpack.c.b16 %v969, %v965
        %v1002 = vpack.c.b16 %v970, %v966
        %v1003 = vpack.c.b16 %v971, %v967
        %1036 = vmatpush.bf16.msra.mxu0 %v1000
        %1037 = vmatpush.bf16.msra.mxu0 %v996
        %1038 = vmatpush.bf16.msra.mxu0 %v992
        %1039 = vmatpush.bf16.msra.mxu0 %v988
        %1040 = vmatpush.bf16.msra.mxu0 %v984
        %1041 = vmatpush.bf16.msra.mxu0 %v980
        %1042 = vmatpush.bf16.msra.mxu0 %v976
        %1043 = vmatpush.bf16.msra.mxu0 %v972
        %1044 = vmatmul.bf16.gmra.mxu0 %v843
        %v1045 = vpop.f32.mrf.mxu0
        %v1046 = vadd.f32 0.0, %v1045
        %v1047 = vpop.f32.mrf.mxu0
        %1048 = vdwg.mxu0
        %1049 = vmatpush.bf16.msra.mxu0 %v1001
        %1050 = vmatpush.bf16.msra.mxu0 %v997
        %1051 = vmatpush.bf16.msra.mxu0 %v993
        %1052 = vmatpush.bf16.msra.mxu0 %v989
        %1053 = vmatpush.bf16.msra.mxu0 %v985
        %1054 = vmatpush.bf16.msra.mxu0 %v981
        %1055 = vmatpush.bf16.msra.mxu0 %v977
        %1056 = vmatpush.bf16.msra.mxu0 %v973
        %1057 = vmatmul.bf16.gmra.mxu0 %v843
        %v1058 = vpop.f32.mrf.mxu0
        %v1059 = vadd.f32 0.0, %v1058
        %v1060 = vpop.f32.mrf.mxu0
        %1061 = vdwg.mxu0
        %1062 = vmatpush.bf16.msra.mxu0 %v1002
        %1063 = vmatpush.bf16.msra.mxu0 %v998
        %1064 = vmatpush.bf16.msra.mxu0 %v994
        %1065 = vmatpush.bf16.msra.mxu0 %v990
        %1066 = vmatpush.bf16.msra.mxu0 %v986
        %1067 = vmatpush.bf16.msra.mxu0 %v982
        %1068 = vmatpush.bf16.msra.mxu0 %v978
        %1069 = vmatpush.bf16.msra.mxu0 %v974
        %1070 = vmatmul.bf16.gmra.mxu0 %v843
        %v1071 = vpop.f32.mrf.mxu0
        %v1072 = vadd.f32 0.0, %v1071
        %v1073 = vpop.f32.mrf.mxu0
        %1074 = vdwg.mxu0
        %1075 = vmatpush.bf16.msra.mxu0 %v1003
        %1076 = vmatpush.bf16.msra.mxu0 %v999
        %1077 = vmatpush.bf16.msra.mxu0 %v995
        %1078 = vmatpush.bf16.msra.mxu0 %v991
        %1079 = vmatpush.bf16.msra.mxu0 %v987
        %1080 = vmatpush.bf16.msra.mxu0 %v983
        %1081 = vmatpush.bf16.msra.mxu0 %v979
        %1082 = vmatpush.bf16.msra.mxu0 %v975
        %1083 = vmatmul.bf16.gmra.mxu0 %v843
        %v1084 = vpop.f32.mrf.mxu0
        %v1085 = vadd.f32 0.0, %v1084
        %v1086 = vpop.f32.mrf.mxu0
        %1087 = vdwg.mxu0
        %v1088 = vadd.f32 %v839, %v1046
        %v1089 = vadd.f32 %v840, %v1059
        %v1090 = vadd.f32 %v841, %v1072
        %v1091 = vadd.f32 %v842, %v1085
        %v1092 = vxor.u32 %v1088, 2147483648
        %v1093 = vmul.f32 %v1092, 1.442695
        %v1094 = vpow.pop %v1093
        %v1095 = vadd.f32 %v1094, 1.0
        %v1096 = vrcp.pop %v1095
        %v1097 = vmul.f32 %v1095, %v1096
        %v1098 = vsub.f32 1.0, %v1097
        %v1099 = vmul.f32 %v1096, %v1098
        %v1100 = vadd.f32 %v1096, %v1099
        %vm1101 = vweird.f32 %v1095
        %vm1102 = vweird.f32 %v1096
        %vm1103 = vmor %vm1101, %vm1102
        %v1104 = vsel %vm1103, %v1096, %v1100
        %v1105 = vand.u32 2147483647, %v1095
        %vm1106 = vcmp.eq.f32.partialorder %v1105, 8.507059e+37
        %v1107 = vand.u32 %v1095, 2147483648
        %v1108 = vor.u32 1.1754944e-38, %v1107
        %v1109 = vsel %vm1106, %v1108, %v1104
        %v1110 = vmul.f32 1.0, %v1109
        %v1111 = vxor.u32 %v1089, 2147483648
        %v1112 = vmul.f32 %v1111, 1.442695
        %v1113 = vpow.pop %v1112
        %v1114 = vadd.f32 %v1113, 1.0
        %v1115 = vrcp.pop %v1114
        %v1116 = vmul.f32 %v1114, %v1115
        %v1117 = vsub.f32 1.0, %v1116
        %v1118 = vmul.f32 %v1115, %v1117
        %v1119 = vadd.f32 %v1115, %v1118
        %vm1120 = vweird.f32 %v1114
        %vm1121 = vweird.f32 %v1115
        %vm1122 = vmor %vm1120, %vm1121
        %v1123 = vsel %vm1122, %v1115, %v1119
        %v1124 = vand.u32 2147483647, %v1114
        %vm1125 = vcmp.eq.f32.partialorder %v1124, 8.507059e+37
        %v1126 = vand.u32 %v1114, 2147483648
        %v1127 = vor.u32 1.1754944e-38, %v1126
        %v1128 = vsel %vm1125, %v1127, %v1123
        %v1129 = vmul.f32 1.0, %v1128
        %v1130 = vtanh.pop %v1090
        %v1131 = vxor.u32 %v1091, 2147483648
        %v1132 = vmul.f32 %v1131, 1.442695
        %v1133 = vpow.pop %v1132
        %v1134 = vadd.f32 %v1133, 1.0
        %v1135 = vrcp.pop %v1134
        %v1136 = vmul.f32 %v1134, %v1135
        %v1137 = vsub.f32 1.0, %v1136
        %v1138 = vmul.f32 %v1135, %v1137
        %v1139 = vadd.f32 %v1135, %v1138
        %vm1140 = vweird.f32 %v1134
        %vm1141 = vweird.f32 %v1135
        %vm1142 = vmor %vm1140, %vm1141
        %v1143 = vsel %vm1142, %v1135, %v1139
        %v1144 = vand.u32 2147483647, %v1134
        %vm1145 = vcmp.eq.f32.partialorder %v1144, 8.507059e+37
        %v1146 = vand.u32 %v1134, 2147483648
        %v1147 = vor.u32 1.1754944e-38, %v1146
        %v1148 = vsel %vm1145, %v1147, %v1143
        %v1149 = vmul.f32 1.0, %v1148
        %v1150 = vmul.f32 %v1129, %v838
        %v1151 = vmul.f32 %v1110, %v1130
        %v1152 = vadd.f32 %v1150, %v1151
        %v1153 = vtanh.pop %v1152
        %v1154 = vmul.f32 %v1149, %v1153
        %v1155 = vpack.c.bf16 %v1154, %v1154
        %1156 = vst [vmem:[%s416] sm:$0xf] %v1155
        %s1157 = scalar_lea.vmem [#allocation4], 32
        %v1158 = vld [vmem:[%s1157] sm:$0xff]
        %v1159 = vld [vmem:[%s1157 + $0x8] sm:$0xff]
        %v1160 = vld [vmem:[%s1157 + $0x10] sm:$0xff]
        %v1161 = vld [vmem:[%s1157 + $0x18] sm:$0xff]
        %v1162 = vld [vmem:[%s4] sm:$0xff]
        %v1163 = vld [vmem:[%s4 + $0x8] sm:$0xff]
        %v1164 = vld [vmem:[%s4 + $0x10] sm:$0xff]
        %v1165 = vld [vmem:[%s4 + $0x18] sm:$0xff]
        %v1166 = vld [vmem:[%s4 + $0x20] sm:$0xff]
        %v1167 = vld [vmem:[%s4 + $0x28] sm:$0xff]
        %v1168 = vld [vmem:[%s4 + $0x30] sm:$0xff]
        %v1169 = vld [vmem:[%s4 + $0x38] sm:$0xff]
        %v1170 = vld [vmem:[%s4 + $0x40] sm:$0xff]
        %v1171 = vld [vmem:[%s4 + $0x48] sm:$0xff]
        %v1172 = vld [vmem:[%s4 + $0x50] sm:$0xff]
        %v1173 = vld [vmem:[%s4 + $0x58] sm:$0xff]
        %v1174 = vld [vmem:[%s4 + $0x60] sm:$0xff]
        %v1175 = vld [vmem:[%s4 + $0x68] sm:$0xff]
        %v1176 = vld [vmem:[%s4 + $0x70] sm:$0xff]
        %v1177 = vld [vmem:[%s4 + $0x78] sm:$0xff]
        %v1178 = vld [vmem:[%s4 + $0x80] sm:$0xff]
        %v1179 = vld [vmem:[%s4 + $0x88] sm:$0xff]
        %v1180 = vld [vmem:[%s4 + $0x90] sm:$0xff]
        %v1181 = vld [vmem:[%s4 + $0x98] sm:$0xff]
        %v1182 = vld [vmem:[%s4 + $0xa0] sm:$0xff]
        %v1183 = vld [vmem:[%s4 + $0xa8] sm:$0xff]
        %v1184 = vld [vmem:[%s4 + $0xb0] sm:$0xff]
        %v1185 = vld [vmem:[%s4 + $0xb8] sm:$0xff]
        %v1186 = vld [vmem:[%s4 + $0xc0] sm:$0xff]
        %v1187 = vld [vmem:[%s4 + $0xc8] sm:$0xff]
        %v1188 = vld [vmem:[%s4 + $0xd0] sm:$0xff]
        %v1189 = vld [vmem:[%s4 + $0xd8] sm:$0xff]
        %v1190 = vld [vmem:[%s4 + $0xe0] sm:$0xff]
        %v1191 = vld [vmem:[%s4 + $0xe8] sm:$0xff]
        %v1192 = vld [vmem:[%s4 + $0xf0] sm:$0xff]
        %v1193 = vld [vmem:[%s4 + $0xf8] sm:$0xff]
        %v1226 = vunpack.c.l.b16 %v1162
        %v1227 = vunpack.c.h.b16 %v1162
        %v1228 = vunpack.c.l.b16 %v1163
        %v1229 = vunpack.c.h.b16 %v1163
        %v1230 = vunpack.c.l.b16 %v1164
        %v1231 = vunpack.c.h.b16 %v1164
        %v1232 = vunpack.c.l.b16 %v1165
        %v1233 = vunpack.c.h.b16 %v1165
        %v1234 = vunpack.c.l.b16 %v1166
        %v1235 = vunpack.c.h.b16 %v1166
        %v1236 = vunpack.c.l.b16 %v1167
        %v1237 = vunpack.c.h.b16 %v1167
        %v1238 = vunpack.c.l.b16 %v1168
        %v1239 = vunpack.c.h.b16 %v1168
        %v1240 = vunpack.c.l.b16 %v1169
        %v1241 = vunpack.c.h.b16 %v1169
        %v1242 = vunpack.c.l.b16 %v1170
        %v1243 = vunpack.c.h.b16 %v1170
        %v1244 = vunpack.c.l.b16 %v1171
        %v1245 = vunpack.c.h.b16 %v1171
        %v1246 = vunpack.c.l.b16 %v1172
        %v1247 = vunpack.c.h.b16 %v1172
        %v1248 = vunpack.c.l.b16 %v1173
        %v1249 = vunpack.c.h.b16 %v1173
        %v1250 = vunpack.c.l.b16 %v1174
        %v1251 = vunpack.c.h.b16 %v1174
        %v1252 = vunpack.c.l.b16 %v1175
        %v1253 = vunpack.c.h.b16 %v1175
        %v1254 = vunpack.c.l.b16 %v1176
        %v1255 = vunpack.c.h.b16 %v1176
        %v1256 = vunpack.c.l.b16 %v1177
        %v1257 = vunpack.c.h.b16 %v1177
        %v1258 = vunpack.c.l.b16 %v1178
        %v1259 = vunpack.c.h.b16 %v1178
        %v1260 = vunpack.c.l.b16 %v1179
        %v1261 = vunpack.c.h.b16 %v1179
        %v1262 = vunpack.c.l.b16 %v1180
        %v1263 = vunpack.c.h.b16 %v1180
        %v1264 = vunpack.c.l.b16 %v1181
        %v1265 = vunpack.c.h.b16 %v1181
        %v1266 = vunpack.c.l.b16 %v1182
        %v1267 = vunpack.c.h.b16 %v1182
        %v1268 = vunpack.c.l.b16 %v1183
        %v1269 = vunpack.c.h.b16 %v1183
        %v1270 = vunpack.c.l.b16 %v1184
        %v1271 = vunpack.c.h.b16 %v1184
        %v1272 = vunpack.c.l.b16 %v1185
        %v1273 = vunpack.c.h.b16 %v1185
        %v1274 = vunpack.c.l.b16 %v1186
        %v1275 = vunpack.c.h.b16 %v1186
        %v1276 = vunpack.c.l.b16 %v1187
        %v1277 = vunpack.c.h.b16 %v1187
        %v1278 = vunpack.c.l.b16 %v1188
        %v1279 = vunpack.c.h.b16 %v1188
        %v1280 = vunpack.c.l.b16 %v1189
        %v1281 = vunpack.c.h.b16 %v1189
        %v1282 = vunpack.c.l.b16 %v1190
        %v1283 = vunpack.c.h.b16 %v1190
        %v1284 = vunpack.c.l.b16 %v1191
        %v1285 = vunpack.c.h.b16 %v1191
        %v1286 = vunpack.c.l.b16 %v1192
        %v1287 = vunpack.c.h.b16 %v1192
        %v1288 = vunpack.c.l.b16 %v1193
        %v1289 = vunpack.c.h.b16 %v1193
        %v1290 = vpack.c.b16 %v1230, %v1226
        %v1291 = vpack.c.b16 %v1231, %v1227
        %v1292 = vpack.c.b16 %v1232, %v1228
        %v1293 = vpack.c.b16 %v1233, %v1229
        %v1294 = vpack.c.b16 %v1238, %v1234
        %v1295 = vpack.c.b16 %v1239, %v1235
        %v1296 = vpack.c.b16 %v1240, %v1236
        %v1297 = vpack.c.b16 %v1241, %v1237
        %v1298 = vpack.c.b16 %v1246, %v1242
        %v1299 = vpack.c.b16 %v1247, %v1243
        %v1300 = vpack.c.b16 %v1248, %v1244
        %v1301 = vpack.c.b16 %v1249, %v1245
        %v1302 = vpack.c.b16 %v1254, %v1250
        %v1303 = vpack.c.b16 %v1255, %v1251
        %v1304 = vpack.c.b16 %v1256, %v1252
        %v1305 = vpack.c.b16 %v1257, %v1253
        %v1306 = vpack.c.b16 %v1262, %v1258
        %v1307 = vpack.c.b16 %v1263, %v1259
        %v1308 = vpack.c.b16 %v1264, %v1260
        %v1309 = vpack.c.b16 %v1265, %v1261
        %v1310 = vpack.c.b16 %v1270, %v1266
        %v1311 = vpack.c.b16 %v1271, %v1267
        %v1312 = vpack.c.b16 %v1272, %v1268
        %v1313 = vpack.c.b16 %v1273, %v1269
        %v1314 = vpack.c.b16 %v1278, %v1274
        %v1315 = vpack.c.b16 %v1279, %v1275
        %v1316 = vpack.c.b16 %v1280, %v1276
        %v1317 = vpack.c.b16 %v1281, %v1277
        %v1318 = vpack.c.b16 %v1286, %v1282
        %v1319 = vpack.c.b16 %v1287, %v1283
        %v1320 = vpack.c.b16 %v1288, %v1284
        %v1321 = vpack.c.b16 %v1289, %v1285
        %1354 = vmatpush.bf16.msra.mxu0 %v1318
        %1355 = vmatpush.bf16.msra.mxu0 %v1314
        %1356 = vmatpush.bf16.msra.mxu0 %v1310
        %1357 = vmatpush.bf16.msra.mxu0 %v1306
        %1358 = vmatpush.bf16.msra.mxu0 %v1302
        %1359 = vmatpush.bf16.msra.mxu0 %v1298
        %1360 = vmatpush.bf16.msra.mxu0 %v1294
        %1361 = vmatpush.bf16.msra.mxu0 %v1290
        %1362 = vmatmul.bf16.gmra.mxu0 %v1155
        %v1363 = vpop.f32.mrf.mxu0
        %v1364 = vadd.f32 0.0, %v1363
        %v1365 = vpop.f32.mrf.mxu0
        %1366 = vdwg.mxu0
        %1367 = vmatpush.bf16.msra.mxu0 %v1319
        %1368 = vmatpush.bf16.msra.mxu0 %v1315
        %1369 = vmatpush.bf16.msra.mxu0 %v1311
        %1370 = vmatpush.bf16.msra.mxu0 %v1307
        %1371 = vmatpush.bf16.msra.mxu0 %v1303
        %1372 = vmatpush.bf16.msra.mxu0 %v1299
        %1373 = vmatpush.bf16.msra.mxu0 %v1295
        %1374 = vmatpush.bf16.msra.mxu0 %v1291
        %1375 = vmatmul.bf16.gmra.mxu0 %v1155
        %v1376 = vpop.f32.mrf.mxu0
        %v1377 = vadd.f32 0.0, %v1376
        %v1378 = vpop.f32.mrf.mxu0
        %1379 = vdwg.mxu0
        %1380 = vmatpush.bf16.msra.mxu0 %v1320
        %1381 = vmatpush.bf16.msra.mxu0 %v1316
        %1382 = vmatpush.bf16.msra.mxu0 %v1312
        %1383 = vmatpush.bf16.msra.mxu0 %v1308
        %1384 = vmatpush.bf16.msra.mxu0 %v1304
        %1385 = vmatpush.bf16.msra.mxu0 %v1300
        %1386 = vmatpush.bf16.msra.mxu0 %v1296
        %1387 = vmatpush.bf16.msra.mxu0 %v1292
        %1388 = vmatmul.bf16.gmra.mxu0 %v1155
        %v1389 = vpop.f32.mrf.mxu0
        %v1390 = vadd.f32 0.0, %v1389
        %v1391 = vpop.f32.mrf.mxu0
        %1392 = vdwg.mxu0
        %1393 = vmatpush.bf16.msra.mxu0 %v1321
        %1394 = vmatpush.bf16.msra.mxu0 %v1317
        %1395 = vmatpush.bf16.msra.mxu0 %v1313
        %1396 = vmatpush.bf16.msra.mxu0 %v1309
        %1397 = vmatpush.bf16.msra.mxu0 %v1305
        %1398 = vmatpush.bf16.msra.mxu0 %v1301
        %1399 = vmatpush.bf16.msra.mxu0 %v1297
        %1400 = vmatpush.bf16.msra.mxu0 %v1293
        %1401 = vmatmul.bf16.gmra.mxu0 %v1155
        %v1402 = vpop.f32.mrf.mxu0
        %v1403 = vadd.f32 0.0, %v1402
        %v1404 = vpop.f32.mrf.mxu0
        %1405 = vdwg.mxu0
        %v1406 = vadd.f32 %v1158, %v1364
        %v1407 = vadd.f32 %v1159, %v1377
        %v1408 = vadd.f32 %v1160, %v1390
        %v1409 = vadd.f32 %v1161, %v1403
        %v1410 = vxor.u32 %v1406, 2147483648
        %v1411 = vmul.f32 %v1410, 1.442695
        %v1412 = vpow.pop %v1411
        %v1413 = vadd.f32 %v1412, 1.0
        %v1414 = vrcp.pop %v1413
        %v1415 = vmul.f32 %v1413, %v1414
        %v1416 = vsub.f32 1.0, %v1415
        %v1417 = vmul.f32 %v1414, %v1416
        %v1418 = vadd.f32 %v1414, %v1417
        %vm1419 = vweird.f32 %v1413
        %vm1420 = vweird.f32 %v1414
        %vm1421 = vmor %vm1419, %vm1420
        %v1422 = vsel %vm1421, %v1414, %v1418
        %v1423 = vand.u32 2147483647, %v1413
        %vm1424 = vcmp.eq.f32.partialorder %v1423, 8.507059e+37
        %v1425 = vand.u32 %v1413, 2147483648
        %v1426 = vor.u32 1.1754944e-38, %v1425
        %v1427 = vsel %vm1424, %v1426, %v1422
        %v1428 = vmul.f32 1.0, %v1427
        %v1429 = vxor.u32 %v1407, 2147483648
        %v1430 = vmul.f32 %v1429, 1.442695
        %v1431 = vpow.pop %v1430
        %v1432 = vadd.f32 %v1431, 1.0
        %v1433 = vrcp.pop %v1432
        %v1434 = vmul.f32 %v1432, %v1433
        %v1435 = vsub.f32 1.0, %v1434
        %v1436 = vmul.f32 %v1433, %v1435
        %v1437 = vadd.f32 %v1433, %v1436
        %vm1438 = vweird.f32 %v1432
        %vm1439 = vweird.f32 %v1433
        %vm1440 = vmor %vm1438, %vm1439
        %v1441 = vsel %vm1440, %v1433, %v1437
        %v1442 = vand.u32 2147483647, %v1432
        %vm1443 = vcmp.eq.f32.partialorder %v1442, 8.507059e+37
        %v1444 = vand.u32 %v1432, 2147483648
        %v1445 = vor.u32 1.1754944e-38, %v1444
        %v1446 = vsel %vm1443, %v1445, %v1441
        %v1447 = vmul.f32 1.0, %v1446
        %v1448 = vtanh.pop %v1408
        %v1449 = vxor.u32 %v1409, 2147483648
        %v1450 = vmul.f32 %v1449, 1.442695
        %v1451 = vpow.pop %v1450
        %v1452 = vadd.f32 %v1451, 1.0
        %v1453 = vrcp.pop %v1452
        %v1454 = vmul.f32 %v1452, %v1453
        %v1455 = vsub.f32 1.0, %v1454
        %v1456 = vmul.f32 %v1453, %v1455
        %v1457 = vadd.f32 %v1453, %v1456
        %vm1458 = vweird.f32 %v1452
        %vm1459 = vweird.f32 %v1453
        %vm1460 = vmor %vm1458, %vm1459
        %v1461 = vsel %vm1460, %v1453, %v1457
        %v1462 = vand.u32 2147483647, %v1452
        %vm1463 = vcmp.eq.f32.partialorder %v1462, 8.507059e+37
        %v1464 = vand.u32 %v1452, 2147483648
        %v1465 = vor.u32 1.1754944e-38, %v1464
        %v1466 = vsel %vm1463, %v1465, %v1461
        %v1467 = vmul.f32 1.0, %v1466
        %v1468 = vmul.f32 %v1447, %v1152
        %v1469 = vmul.f32 %v1428, %v1448
        %v1470 = vadd.f32 %v1468, %v1469
        %v1471 = vtanh.pop %v1470
        %v1472 = vmul.f32 %v1467, %v1471
        %v1473 = vpack.c.bf16 %v1472, %v1472
        %s1474 = scalar_lea.vmem %s416, 4 [#allocation6]
        %1475 = vst [vmem:[%s1474] sm:$0xf] %v1473
        %s1476 = scalar_lea.vmem [#allocation4], 64
        %v1477 = vld [vmem:[%s1476] sm:$0xff]
        %v1478 = vld [vmem:[%s1476 + $0x8] sm:$0xff]
        %v1479 = vld [vmem:[%s1476 + $0x10] sm:$0xff]
        %v1480 = vld [vmem:[%s1476 + $0x18] sm:$0xff]
        %v1481 = vld [vmem:[%s4] sm:$0xff]
        %v1482 = vld [vmem:[%s4 + $0x8] sm:$0xff]
        %v1483 = vld [vmem:[%s4 + $0x10] sm:$0xff]
        %v1484 = vld [vmem:[%s4 + $0x18] sm:$0xff]
        %v1485 = vld [vmem:[%s4 + $0x20] sm:$0xff]
        %v1486 = vld [vmem:[%s4 + $0x28] sm:$0xff]
        %v1487 = vld [vmem:[%s4 + $0x30] sm:$0xff]
        %v1488 = vld [vmem:[%s4 + $0x38] sm:$0xff]
        %v1489 = vld [vmem:[%s4 + $0x40] sm:$0xff]
        %v1490 = vld [vmem:[%s4 + $0x48] sm:$0xff]
        %v1491 = vld [vmem:[%s4 + $0x50] sm:$0xff]
        %v1492 = vld [vmem:[%s4 + $0x58] sm:$0xff]
        %v1493 = vld [vmem:[%s4 + $0x60] sm:$0xff]
        %v1494 = vld [vmem:[%s4 + $0x68] sm:$0xff]
        %v1495 = vld [vmem:[%s4 + $0x70] sm:$0xff]
        %v1496 = vld [vmem:[%s4 + $0x78] sm:$0xff]
        %v1497 = vld [vmem:[%s4 + $0x80] sm:$0xff]
        %v1498 = vld [vmem:[%s4 + $0x88] sm:$0xff]
        %v1499 = vld [vmem:[%s4 + $0x90] sm:$0xff]
        %v1500 = vld [vmem:[%s4 + $0x98] sm:$0xff]
        %v1501 = vld [vmem:[%s4 + $0xa0] sm:$0xff]
        %v1502 = vld [vmem:[%s4 + $0xa8] sm:$0xff]
        %v1503 = vld [vmem:[%s4 + $0xb0] sm:$0xff]
        %v1504 = vld [vmem:[%s4 + $0xb8] sm:$0xff]
        %v1505 = vld [vmem:[%s4 + $0xc0] sm:$0xff]
        %v1506 = vld [vmem:[%s4 + $0xc8] sm:$0xff]
        %v1507 = vld [vmem:[%s4 + $0xd0] sm:$0xff]
        %v1508 = vld [vmem:[%s4 + $0xd8] sm:$0xff]
        %v1509 = vld [vmem:[%s4 + $0xe0] sm:$0xff]
        %v1510 = vld [vmem:[%s4 + $0xe8] sm:$0xff]
        %v1511 = vld [vmem:[%s4 + $0xf0] sm:$0xff]
        %v1512 = vld [vmem:[%s4 + $0xf8] sm:$0xff]
        %v1545 = vunpack.c.l.b16 %v1481
        %v1546 = vunpack.c.h.b16 %v1481
        %v1547 = vunpack.c.l.b16 %v1482
        %v1548 = vunpack.c.h.b16 %v1482
        %v1549 = vunpack.c.l.b16 %v1483
        %v1550 = vunpack.c.h.b16 %v1483
        %v1551 = vunpack.c.l.b16 %v1484
        %v1552 = vunpack.c.h.b16 %v1484
        %v1553 = vunpack.c.l.b16 %v1485
        %v1554 = vunpack.c.h.b16 %v1485
        %v1555 = vunpack.c.l.b16 %v1486
        %v1556 = vunpack.c.h.b16 %v1486
        %v1557 = vunpack.c.l.b16 %v1487
        %v1558 = vunpack.c.h.b16 %v1487
        %v1559 = vunpack.c.l.b16 %v1488
        %v1560 = vunpack.c.h.b16 %v1488
        %v1561 = vunpack.c.l.b16 %v1489
        %v1562 = vunpack.c.h.b16 %v1489
        %v1563 = vunpack.c.l.b16 %v1490
        %v1564 = vunpack.c.h.b16 %v1490
        %v1565 = vunpack.c.l.b16 %v1491
        %v1566 = vunpack.c.h.b16 %v1491
        %v1567 = vunpack.c.l.b16 %v1492
        %v1568 = vunpack.c.h.b16 %v1492
        %v1569 = vunpack.c.l.b16 %v1493
        %v1570 = vunpack.c.h.b16 %v1493
        %v1571 = vunpack.c.l.b16 %v1494
        %v1572 = vunpack.c.h.b16 %v1494
        %v1573 = vunpack.c.l.b16 %v1495
        %v1574 = vunpack.c.h.b16 %v1495
        %v1575 = vunpack.c.l.b16 %v1496
        %v1576 = vunpack.c.h.b16 %v1496
        %v1577 = vunpack.c.l.b16 %v1497
        %v1578 = vunpack.c.h.b16 %v1497
        %v1579 = vunpack.c.l.b16 %v1498
        %v1580 = vunpack.c.h.b16 %v1498
        %v1581 = vunpack.c.l.b16 %v1499
        %v1582 = vunpack.c.h.b16 %v1499
        %v1583 = vunpack.c.l.b16 %v1500
        %v1584 = vunpack.c.h.b16 %v1500
        %v1585 = vunpack.c.l.b16 %v1501
        %v1586 = vunpack.c.h.b16 %v1501
        %v1587 = vunpack.c.l.b16 %v1502
        %v1588 = vunpack.c.h.b16 %v1502
        %v1589 = vunpack.c.l.b16 %v1503
        %v1590 = vunpack.c.h.b16 %v1503
        %v1591 = vunpack.c.l.b16 %v1504
        %v1592 = vunpack.c.h.b16 %v1504
        %v1593 = vunpack.c.l.b16 %v1505
        %v1594 = vunpack.c.h.b16 %v1505
        %v1595 = vunpack.c.l.b16 %v1506
        %v1596 = vunpack.c.h.b16 %v1506
        %v1597 = vunpack.c.l.b16 %v1507
        %v1598 = vunpack.c.h.b16 %v1507
        %v1599 = vunpack.c.l.b16 %v1508
        %v1600 = vunpack.c.h.b16 %v1508
        %v1601 = vunpack.c.l.b16 %v1509
        %v1602 = vunpack.c.h.b16 %v1509
        %v1603 = vunpack.c.l.b16 %v1510
        %v1604 = vunpack.c.h.b16 %v1510
        %v1605 = vunpack.c.l.b16 %v1511
        %v1606 = vunpack.c.h.b16 %v1511
        %v1607 = vunpack.c.l.b16 %v1512
        %v1608 = vunpack.c.h.b16 %v1512
        %v1609 = vpack.c.b16 %v1549, %v1545
        %v1610 = vpack.c.b16 %v1550, %v1546
        %v1611 = vpack.c.b16 %v1551, %v1547
        %v1612 = vpack.c.b16 %v1552, %v1548
        %v1613 = vpack.c.b16 %v1557, %v1553
        %v1614 = vpack.c.b16 %v1558, %v1554
        %v1615 = vpack.c.b16 %v1559, %v1555
        %v1616 = vpack.c.b16 %v1560, %v1556
        %v1617 = vpack.c.b16 %v1565, %v1561
        %v1618 = vpack.c.b16 %v1566, %v1562
        %v1619 = vpack.c.b16 %v1567, %v1563
        %v1620 = vpack.c.b16 %v1568, %v1564
        %v1621 = vpack.c.b16 %v1573, %v1569
        %v1622 = vpack.c.b16 %v1574, %v1570
        %v1623 = vpack.c.b16 %v1575, %v1571
        %v1624 = vpack.c.b16 %v1576, %v1572
        %v1625 = vpack.c.b16 %v1581, %v1577
        %v1626 = vpack.c.b16 %v1582, %v1578
        %v1627 = vpack.c.b16 %v1583, %v1579
        %v1628 = vpack.c.b16 %v1584, %v1580
        %v1629 = vpack.c.b16 %v1589, %v1585
        %v1630 = vpack.c.b16 %v1590, %v1586
        %v1631 = vpack.c.b16 %v1591, %v1587
        %v1632 = vpack.c.b16 %v1592, %v1588
        %v1633 = vpack.c.b16 %v1597, %v1593
        %v1634 = vpack.c.b16 %v1598, %v1594
        %v1635 = vpack.c.b16 %v1599, %v1595
        %v1636 = vpack.c.b16 %v1600, %v1596
        %v1637 = vpack.c.b16 %v1605, %v1601
        %v1638 = vpack.c.b16 %v1606, %v1602
        %v1639 = vpack.c.b16 %v1607, %v1603
        %v1640 = vpack.c.b16 %v1608, %v1604
        %1673 = vmatpush.bf16.msra.mxu0 %v1637
        %1674 = vmatpush.bf16.msra.mxu0 %v1633
        %1675 = vmatpush.bf16.msra.mxu0 %v1629
        %1676 = vmatpush.bf16.msra.mxu0 %v1625
        %1677 = vmatpush.bf16.msra.mxu0 %v1621
        %1678 = vmatpush.bf16.msra.mxu0 %v1617
        %1679 = vmatpush.bf16.msra.mxu0 %v1613
        %1680 = vmatpush.bf16.msra.mxu0 %v1609
        %1681 = vmatmul.bf16.gmra.mxu0 %v1473
        %v1682 = vpop.f32.mrf.mxu0
        %v1683 = vadd.f32 0.0, %v1682
        %v1684 = vpop.f32.mrf.mxu0
        %1685 = vdwg.mxu0
        %1686 = vmatpush.bf16.msra.mxu0 %v1638
        %1687 = vmatpush.bf16.msra.mxu0 %v1634
        %1688 = vmatpush.bf16.msra.mxu0 %v1630
        %1689 = vmatpush.bf16.msra.mxu0 %v1626
        %1690 = vmatpush.bf16.msra.mxu0 %v1622
        %1691 = vmatpush.bf16.msra.mxu0 %v1618
        %1692 = vmatpush.bf16.msra.mxu0 %v1614
        %1693 = vmatpush.bf16.msra.mxu0 %v1610
        %1694 = vmatmul.bf16.gmra.mxu0 %v1473
        %v1695 = vpop.f32.mrf.mxu0
        %v1696 = vadd.f32 0.0, %v1695
        %v1697 = vpop.f32.mrf.mxu0
        %1698 = vdwg.mxu0
        %1699 = vmatpush.bf16.msra.mxu0 %v1639
        %1700 = vmatpush.bf16.msra.mxu0 %v1635
        %1701 = vmatpush.bf16.msra.mxu0 %v1631
        %1702 = vmatpush.bf16.msra.mxu0 %v1627
        %1703 = vmatpush.bf16.msra.mxu0 %v1623
        %1704 = vmatpush.bf16.msra.mxu0 %v1619
        %1705 = vmatpush.bf16.msra.mxu0 %v1615
        %1706 = vmatpush.bf16.msra.mxu0 %v1611
        %1707 = vmatmul.bf16.gmra.mxu0 %v1473
        %v1708 = vpop.f32.mrf.mxu0
        %v1709 = vadd.f32 0.0, %v1708
        %v1710 = vpop.f32.mrf.mxu0
        %1711 = vdwg.mxu0
        %1712 = vmatpush.bf16.msra.mxu0 %v1640
        %1713 = vmatpush.bf16.msra.mxu0 %v1636
        %1714 = vmatpush.bf16.msra.mxu0 %v1632
        %1715 = vmatpush.bf16.msra.mxu0 %v1628
        %1716 = vmatpush.bf16.msra.mxu0 %v1624
        %1717 = vmatpush.bf16.msra.mxu0 %v1620
        %1718 = vmatpush.bf16.msra.mxu0 %v1616
        %1719 = vmatpush.bf16.msra.mxu0 %v1612
        %1720 = vmatmul.bf16.gmra.mxu0 %v1473
        %v1721 = vpop.f32.mrf.mxu0
        %v1722 = vadd.f32 0.0, %v1721
        %v1723 = vpop.f32.mrf.mxu0
        %1724 = vdwg.mxu0
        %v1725 = vadd.f32 %v1477, %v1683
        %v1726 = vadd.f32 %v1478, %v1696
        %v1727 = vadd.f32 %v1479, %v1709
        %v1728 = vadd.f32 %v1480, %v1722
        %v1729 = vxor.u32 %v1725, 2147483648
        %v1730 = vmul.f32 %v1729, 1.442695
        %v1731 = vpow.pop %v1730
        %v1732 = vadd.f32 %v1731, 1.0
        %v1733 = vrcp.pop %v1732
        %v1734 = vmul.f32 %v1732, %v1733
        %v1735 = vsub.f32 1.0, %v1734
        %v1736 = vmul.f32 %v1733, %v1735
        %v1737 = vadd.f32 %v1733, %v1736
        %vm1738 = vweird.f32 %v1732
        %vm1739 = vweird.f32 %v1733
        %vm1740 = vmor %vm1738, %vm1739
        %v1741 = vsel %vm1740, %v1733, %v1737
        %v1742 = vand.u32 2147483647, %v1732
        %vm1743 = vcmp.eq.f32.partialorder %v1742, 8.507059e+37
        %v1744 = vand.u32 %v1732, 2147483648
        %v1745 = vor.u32 1.1754944e-38, %v1744
        %v1746 = vsel %vm1743, %v1745, %v1741
        %v1747 = vmul.f32 1.0, %v1746
        %v1748 = vxor.u32 %v1726, 2147483648
        %v1749 = vmul.f32 %v1748, 1.442695
        %v1750 = vpow.pop %v1749
        %v1751 = vadd.f32 %v1750, 1.0
        %v1752 = vrcp.pop %v1751
        %v1753 = vmul.f32 %v1751, %v1752
        %v1754 = vsub.f32 1.0, %v1753
        %v1755 = vmul.f32 %v1752, %v1754
        %v1756 = vadd.f32 %v1752, %v1755
        %vm1757 = vweird.f32 %v1751
        %vm1758 = vweird.f32 %v1752
        %vm1759 = vmor %vm1757, %vm1758
        %v1760 = vsel %vm1759, %v1752, %v1756
        %v1761 = vand.u32 2147483647, %v1751
        %vm1762 = vcmp.eq.f32.partialorder %v1761, 8.507059e+37
        %v1763 = vand.u32 %v1751, 2147483648
        %v1764 = vor.u32 1.1754944e-38, %v1763
        %v1765 = vsel %vm1762, %v1764, %v1760
        %v1766 = vmul.f32 1.0, %v1765
        %v1767 = vtanh.pop %v1727
        %v1768 = vxor.u32 %v1728, 2147483648
        %v1769 = vmul.f32 %v1768, 1.442695
        %v1770 = vpow.pop %v1769
        %v1771 = vadd.f32 %v1770, 1.0
        %v1772 = vrcp.pop %v1771
        %v1773 = vmul.f32 %v1771, %v1772
        %v1774 = vsub.f32 1.0, %v1773
        %v1775 = vmul.f32 %v1772, %v1774
        %v1776 = vadd.f32 %v1772, %v1775
        %vm1777 = vweird.f32 %v1771
        %vm1778 = vweird.f32 %v1772
        %vm1779 = vmor %vm1777, %vm1778
        %v1780 = vsel %vm1779, %v1772, %v1776
        %v1781 = vand.u32 2147483647, %v1771
        %vm1782 = vcmp.eq.f32.partialorder %v1781, 8.507059e+37
        %v1783 = vand.u32 %v1771, 2147483648
        %v1784 = vor.u32 1.1754944e-38, %v1783
        %v1785 = vsel %vm1782, %v1784, %v1780
        %v1786 = vmul.f32 1.0, %v1785
        %v1787 = vmul.f32 %v1766, %v1470
        %v1788 = vmul.f32 %v1747, %v1767
        %v1789 = vadd.f32 %v1787, %v1788
        %v1790 = vtanh.pop %v1789
        %v1791 = vmul.f32 %v1786, %v1790
        %v1792 = vpack.c.bf16 %v1791, %v1791
        %s1793 = scalar_lea.vmem %s416, 8 [#allocation6]
        %1794 = vst [vmem:[%s1793] sm:$0xf] %v1792
        %s1795 = scalar_lea.vmem [#allocation4], 96
        %v1796 = vld [vmem:[%s1795] sm:$0xff]
        %v1797 = vld [vmem:[%s1795 + $0x8] sm:$0xff]
        %v1798 = vld [vmem:[%s1795 + $0x10] sm:$0xff]
        %v1799 = vld [vmem:[%s1795 + $0x18] sm:$0xff]
        %v1800 = vld [vmem:[%s4] sm:$0xff]
        %v1801 = vld [vmem:[%s4 + $0x8] sm:$0xff]
        %v1802 = vld [vmem:[%s4 + $0x10] sm:$0xff]
        %v1803 = vld [vmem:[%s4 + $0x18] sm:$0xff]
        %v1804 = vld [vmem:[%s4 + $0x20] sm:$0xff]
        %v1805 = vld [vmem:[%s4 + $0x28] sm:$0xff]
        %v1806 = vld [vmem:[%s4 + $0x30] sm:$0xff]
        %v1807 = vld [vmem:[%s4 + $0x38] sm:$0xff]
        %v1808 = vld [vmem:[%s4 + $0x40] sm:$0xff]
        %v1809 = vld [vmem:[%s4 + $0x48] sm:$0xff]
        %v1810 = vld [vmem:[%s4 + $0x50] sm:$0xff]
        %v1811 = vld [vmem:[%s4 + $0x58] sm:$0xff]
        %v1812 = vld [vmem:[%s4 + $0x60] sm:$0xff]
        %v1813 = vld [vmem:[%s4 + $0x68] sm:$0xff]
        %v1814 = vld [vmem:[%s4 + $0x70] sm:$0xff]
        %v1815 = vld [vmem:[%s4 + $0x78] sm:$0xff]
        %v1816 = vld [vmem:[%s4 + $0x80] sm:$0xff]
        %v1817 = vld [vmem:[%s4 + $0x88] sm:$0xff]
        %v1818 = vld [vmem:[%s4 + $0x90] sm:$0xff]
        %v1819 = vld [vmem:[%s4 + $0x98] sm:$0xff]
        %v1820 = vld [vmem:[%s4 + $0xa0] sm:$0xff]
        %v1821 = vld [vmem:[%s4 + $0xa8] sm:$0xff]
        %v1822 = vld [vmem:[%s4 + $0xb0] sm:$0xff]
        %v1823 = vld [vmem:[%s4 + $0xb8] sm:$0xff]
        %v1824 = vld [vmem:[%s4 + $0xc0] sm:$0xff]
        %v1825 = vld [vmem:[%s4 + $0xc8] sm:$0xff]
        %v1826 = vld [vmem:[%s4 + $0xd0] sm:$0xff]
        %v1827 = vld [vmem:[%s4 + $0xd8] sm:$0xff]
        %v1828 = vld [vmem:[%s4 + $0xe0] sm:$0xff]
        %v1829 = vld [vmem:[%s4 + $0xe8] sm:$0xff]
        %v1830 = vld [vmem:[%s4 + $0xf0] sm:$0xff]
        %v1831 = vld [vmem:[%s4 + $0xf8] sm:$0xff]
        %v1864 = vunpack.c.l.b16 %v1800
        %v1865 = vunpack.c.h.b16 %v1800
        %v1866 = vunpack.c.l.b16 %v1801
        %v1867 = vunpack.c.h.b16 %v1801
        %v1868 = vunpack.c.l.b16 %v1802
        %v1869 = vunpack.c.h.b16 %v1802
        %v1870 = vunpack.c.l.b16 %v1803
        %v1871 = vunpack.c.h.b16 %v1803
        %v1872 = vunpack.c.l.b16 %v1804
        %v1873 = vunpack.c.h.b16 %v1804
        %v1874 = vunpack.c.l.b16 %v1805
        %v1875 = vunpack.c.h.b16 %v1805
        %v1876 = vunpack.c.l.b16 %v1806
        %v1877 = vunpack.c.h.b16 %v1806
        %v1878 = vunpack.c.l.b16 %v1807
        %v1879 = vunpack.c.h.b16 %v1807
        %v1880 = vunpack.c.l.b16 %v1808
        %v1881 = vunpack.c.h.b16 %v1808
        %v1882 = vunpack.c.l.b16 %v1809
        %v1883 = vunpack.c.h.b16 %v1809
        %v1884 = vunpack.c.l.b16 %v1810
        %v1885 = vunpack.c.h.b16 %v1810
        %v1886 = vunpack.c.l.b16 %v1811
        %v1887 = vunpack.c.h.b16 %v1811
        %v1888 = vunpack.c.l.b16 %v1812
        %v1889 = vunpack.c.h.b16 %v1812
        %v1890 = vunpack.c.l.b16 %v1813
        %v1891 = vunpack.c.h.b16 %v1813
        %v1892 = vunpack.c.l.b16 %v1814
        %v1893 = vunpack.c.h.b16 %v1814
        %v1894 = vunpack.c.l.b16 %v1815
        %v1895 = vunpack.c.h.b16 %v1815
        %v1896 = vunpack.c.l.b16 %v1816
        %v1897 = vunpack.c.h.b16 %v1816
        %v1898 = vunpack.c.l.b16 %v1817
        %v1899 = vunpack.c.h.b16 %v1817
        %v1900 = vunpack.c.l.b16 %v1818
        %v1901 = vunpack.c.h.b16 %v1818
        %v1902 = vunpack.c.l.b16 %v1819
        %v1903 = vunpack.c.h.b16 %v1819
        %v1904 = vunpack.c.l.b16 %v1820
        %v1905 = vunpack.c.h.b16 %v1820
        %v1906 = vunpack.c.l.b16 %v1821
        %v1907 = vunpack.c.h.b16 %v1821
        %v1908 = vunpack.c.l.b16 %v1822
        %v1909 = vunpack.c.h.b16 %v1822
        %v1910 = vunpack.c.l.b16 %v1823
        %v1911 = vunpack.c.h.b16 %v1823
        %v1912 = vunpack.c.l.b16 %v1824
        %v1913 = vunpack.c.h.b16 %v1824
        %v1914 = vunpack.c.l.b16 %v1825
        %v1915 = vunpack.c.h.b16 %v1825
        %v1916 = vunpack.c.l.b16 %v1826
        %v1917 = vunpack.c.h.b16 %v1826
        %v1918 = vunpack.c.l.b16 %v1827
        %v1919 = vunpack.c.h.b16 %v1827
        %v1920 = vunpack.c.l.b16 %v1828
        %v1921 = vunpack.c.h.b16 %v1828
        %v1922 = vunpack.c.l.b16 %v1829
        %v1923 = vunpack.c.h.b16 %v1829
        %v1924 = vunpack.c.l.b16 %v1830
        %v1925 = vunpack.c.h.b16 %v1830
        %v1926 = vunpack.c.l.b16 %v1831
        %v1927 = vunpack.c.h.b16 %v1831
        %v1928 = vpack.c.b16 %v1868, %v1864
        %v1929 = vpack.c.b16 %v1869, %v1865
        %v1930 = vpack.c.b16 %v1870, %v1866
        %v1931 = vpack.c.b16 %v1871, %v1867
        %v1932 = vpack.c.b16 %v1876, %v1872
        %v1933 = vpack.c.b16 %v1877, %v1873
        %v1934 = vpack.c.b16 %v1878, %v1874
        %v1935 = vpack.c.b16 %v1879, %v1875
        %v1936 = vpack.c.b16 %v1884, %v1880
        %v1937 = vpack.c.b16 %v1885, %v1881
        %v1938 = vpack.c.b16 %v1886, %v1882
        %v1939 = vpack.c.b16 %v1887, %v1883
        %v1940 = vpack.c.b16 %v1892, %v1888
        %v1941 = vpack.c.b16 %v1893, %v1889
        %v1942 = vpack.c.b16 %v1894, %v1890
        %v1943 = vpack.c.b16 %v1895, %v1891
        %v1944 = vpack.c.b16 %v1900, %v1896
        %v1945 = vpack.c.b16 %v1901, %v1897
        %v1946 = vpack.c.b16 %v1902, %v1898
        %v1947 = vpack.c.b16 %v1903, %v1899
        %v1948 = vpack.c.b16 %v1908, %v1904
        %v1949 = vpack.c.b16 %v1909, %v1905
        %v1950 = vpack.c.b16 %v1910, %v1906
        %v1951 = vpack.c.b16 %v1911, %v1907
        %v1952 = vpack.c.b16 %v1916, %v1912
        %v1953 = vpack.c.b16 %v1917, %v1913
        %v1954 = vpack.c.b16 %v1918, %v1914
        %v1955 = vpack.c.b16 %v1919, %v1915
        %v1956 = vpack.c.b16 %v1924, %v1920
        %v1957 = vpack.c.b16 %v1925, %v1921
        %v1958 = vpack.c.b16 %v1926, %v1922
        %v1959 = vpack.c.b16 %v1927, %v1923
        %1992 = vmatpush.bf16.msra.mxu0 %v1956
        %1993 = vmatpush.bf16.msra.mxu0 %v1952
        %1994 = vmatpush.bf16.msra.mxu0 %v1948
        %1995 = vmatpush.bf16.msra.mxu0 %v1944
        %1996 = vmatpush.bf16.msra.mxu0 %v1940
        %1997 = vmatpush.bf16.msra.mxu0 %v1936
        %1998 = vmatpush.bf16.msra.mxu0 %v1932
        %1999 = vmatpush.bf16.msra.mxu0 %v1928
        %2000 = vmatmul.bf16.gmra.mxu0 %v1792
        %v2001 = vpop.f32.mrf.mxu0
        %v2002 = vadd.f32 0.0, %v2001
        %v2003 = vpop.f32.mrf.mxu0
        %2004 = vdwg.mxu0
        %2005 = vmatpush.bf16.msra.mxu0 %v1957
        %2006 = vmatpush.bf16.msra.mxu0 %v1953
        %2007 = vmatpush.bf16.msra.mxu0 %v1949
        %2008 = vmatpush.bf16.msra.mxu0 %v1945
        %2009 = vmatpush.bf16.msra.mxu0 %v1941
        %2010 = vmatpush.bf16.msra.mxu0 %v1937
        %2011 = vmatpush.bf16.msra.mxu0 %v1933
        %2012 = vmatpush.bf16.msra.mxu0 %v1929
        %2013 = vmatmul.bf16.gmra.mxu0 %v1792
        %v2014 = vpop.f32.mrf.mxu0
        %v2015 = vadd.f32 0.0, %v2014
        %v2016 = vpop.f32.mrf.mxu0
        %2017 = vdwg.mxu0
        %2018 = vmatpush.bf16.msra.mxu0 %v1958
        %2019 = vmatpush.bf16.msra.mxu0 %v1954
        %2020 = vmatpush.bf16.msra.mxu0 %v1950
        %2021 = vmatpush.bf16.msra.mxu0 %v1946
        %2022 = vmatpush.bf16.msra.mxu0 %v1942
        %2023 = vmatpush.bf16.msra.mxu0 %v1938
        %2024 = vmatpush.bf16.msra.mxu0 %v1934
        %2025 = vmatpush.bf16.msra.mxu0 %v1930
        %2026 = vmatmul.bf16.gmra.mxu0 %v1792
        %v2027 = vpop.f32.mrf.mxu0
        %v2028 = vadd.f32 0.0, %v2027
        %v2029 = vpop.f32.mrf.mxu0
        %2030 = vdwg.mxu0
        %2031 = vmatpush.bf16.msra.mxu0 %v1959
        %2032 = vmatpush.bf16.msra.mxu0 %v1955
        %2033 = vmatpush.bf16.msra.mxu0 %v1951
        %2034 = vmatpush.bf16.msra.mxu0 %v1947
        %2035 = vmatpush.bf16.msra.mxu0 %v1943
        %2036 = vmatpush.bf16.msra.mxu0 %v1939
        %2037 = vmatpush.bf16.msra.mxu0 %v1935
        %2038 = vmatpush.bf16.msra.mxu0 %v1931
        %2039 = vmatmul.bf16.gmra.mxu0 %v1792
        %v2040 = vpop.f32.mrf.mxu0
        %v2041 = vadd.f32 0.0, %v2040
        %v2042 = vpop.f32.mrf.mxu0
        %2043 = vdwg.mxu0
        %v2044 = vadd.f32 %v1796, %v2002
        %v2045 = vadd.f32 %v1797, %v2015
        %v2046 = vadd.f32 %v1798, %v2028
        %v2047 = vadd.f32 %v1799, %v2041
        %v2048 = vxor.u32 %v2044, 2147483648
        %v2049 = vmul.f32 %v2048, 1.442695
        %v2050 = vpow.pop %v2049
        %v2051 = vadd.f32 %v2050, 1.0
        %v2052 = vrcp.pop %v2051
        %v2053 = vmul.f32 %v2051, %v2052
        %v2054 = vsub.f32 1.0, %v2053
        %v2055 = vmul.f32 %v2052, %v2054
        %v2056 = vadd.f32 %v2052, %v2055
        %vm2057 = vweird.f32 %v2051
        %vm2058 = vweird.f32 %v2052
        %vm2059 = vmor %vm2057, %vm2058
        %v2060 = vsel %vm2059, %v2052, %v2056
        %v2061 = vand.u32 2147483647, %v2051
        %vm2062 = vcmp.eq.f32.partialorder %v2061, 8.507059e+37
        %v2063 = vand.u32 %v2051, 2147483648
        %v2064 = vor.u32 1.1754944e-38, %v2063
        %v2065 = vsel %vm2062, %v2064, %v2060
        %v2066 = vmul.f32 1.0, %v2065
        %v2067 = vxor.u32 %v2045, 2147483648
        %v2068 = vmul.f32 %v2067, 1.442695
        %v2069 = vpow.pop %v2068
        %v2070 = vadd.f32 %v2069, 1.0
        %v2071 = vrcp.pop %v2070
        %v2072 = vmul.f32 %v2070, %v2071
        %v2073 = vsub.f32 1.0, %v2072
        %v2074 = vmul.f32 %v2071, %v2073
        %v2075 = vadd.f32 %v2071, %v2074
        %vm2076 = vweird.f32 %v2070
        %vm2077 = vweird.f32 %v2071
        %vm2078 = vmor %vm2076, %vm2077
        %v2079 = vsel %vm2078, %v2071, %v2075
        %v2080 = vand.u32 2147483647, %v2070
        %vm2081 = vcmp.eq.f32.partialorder %v2080, 8.507059e+37
        %v2082 = vand.u32 %v2070, 2147483648
        %v2083 = vor.u32 1.1754944e-38, %v2082
        %v2084 = vsel %vm2081, %v2083, %v2079
        %v2085 = vmul.f32 1.0, %v2084
        %v2086 = vtanh.pop %v2046
        %v2087 = vxor.u32 %v2047, 2147483648
        %v2088 = vmul.f32 %v2087, 1.442695
        %v2089 = vpow.pop %v2088
        %v2090 = vadd.f32 %v2089, 1.0
        %v2091 = vrcp.pop %v2090
        %v2092 = vmul.f32 %v2090, %v2091
        %v2093 = vsub.f32 1.0, %v2092
        %v2094 = vmul.f32 %v2091, %v2093
        %v2095 = vadd.f32 %v2091, %v2094
        %vm2096 = vweird.f32 %v2090
        %vm2097 = vweird.f32 %v2091
        %vm2098 = vmor %vm2096, %vm2097
        %v2099 = vsel %vm2098, %v2091, %v2095
        %v2100 = vand.u32 2147483647, %v2090
        %vm2101 = vcmp.eq.f32.partialorder %v2100, 8.507059e+37
        %v2102 = vand.u32 %v2090, 2147483648
        %v2103 = vor.u32 1.1754944e-38, %v2102
        %v2104 = vsel %vm2101, %v2103, %v2099
        %v2105 = vmul.f32 1.0, %v2104
        %v2106 = vmul.f32 %v2085, %v1789
        %v2107 = vmul.f32 %v2066, %v2086
        %v2108 = vadd.f32 %v2106, %v2107
        %v2109 = vtanh.pop %v2108
        %v2110 = vmul.f32 %v2105, %v2109
        %v2111 = vpack.c.bf16 %v2110, %v2110
        %s2112 = scalar_lea.vmem %s416, 12 [#allocation6]
        %2113 = vst [vmem:[%s2112] sm:$0xf] %v2111
        %s2114 = scalar_lea.vmem [#allocation4], 128
        %v2115 = vld [vmem:[%s2114] sm:$0xff]
        %v2116 = vld [vmem:[%s2114 + $0x8] sm:$0xff]
        %v2117 = vld [vmem:[%s2114 + $0x10] sm:$0xff]
        %v2118 = vld [vmem:[%s2114 + $0x18] sm:$0xff]
        %v2119 = vld [vmem:[%s4] sm:$0xff]
        %v2120 = vld [vmem:[%s4 + $0x8] sm:$0xff]
        %v2121 = vld [vmem:[%s4 + $0x10] sm:$0xff]
        %v2122 = vld [vmem:[%s4 + $0x18] sm:$0xff]
        %v2123 = vld [vmem:[%s4 + $0x20] sm:$0xff]
        %v2124 = vld [vmem:[%s4 + $0x28] sm:$0xff]
        %v2125 = vld [vmem:[%s4 + $0x30] sm:$0xff]
        %v2126 = vld [vmem:[%s4 + $0x38] sm:$0xff]
        %v2127 = vld [vmem:[%s4 + $0x40] sm:$0xff]
        %v2128 = vld [vmem:[%s4 + $0x48] sm:$0xff]
        %v2129 = vld [vmem:[%s4 + $0x50] sm:$0xff]
        %v2130 = vld [vmem:[%s4 + $0x58] sm:$0xff]
        %v2131 = vld [vmem:[%s4 + $0x60] sm:$0xff]
        %v2132 = vld [vmem:[%s4 + $0x68] sm:$0xff]
        %v2133 = vld [vmem:[%s4 + $0x70] sm:$0xff]
        %v2134 = vld [vmem:[%s4 + $0x78] sm:$0xff]
        %v2135 = vld [vmem:[%s4 + $0x80] sm:$0xff]
        %v2136 = vld [vmem:[%s4 + $0x88] sm:$0xff]
        %v2137 = vld [vmem:[%s4 + $0x90] sm:$0xff]
        %v2138 = vld [vmem:[%s4 + $0x98] sm:$0xff]
        %v2139 = vld [vmem:[%s4 + $0xa0] sm:$0xff]
        %v2140 = vld [vmem:[%s4 + $0xa8] sm:$0xff]
        %v2141 = vld [vmem:[%s4 + $0xb0] sm:$0xff]
        %v2142 = vld [vmem:[%s4 + $0xb8] sm:$0xff]
        %v2143 = vld [vmem:[%s4 + $0xc0] sm:$0xff]
        %v2144 = vld [vmem:[%s4 + $0xc8] sm:$0xff]
        %v2145 = vld [vmem:[%s4 + $0xd0] sm:$0xff]
        %v2146 = vld [vmem:[%s4 + $0xd8] sm:$0xff]
        %v2147 = vld [vmem:[%s4 + $0xe0] sm:$0xff]
        %v2148 = vld [vmem:[%s4 + $0xe8] sm:$0xff]
        %v2149 = vld [vmem:[%s4 + $0xf0] sm:$0xff]
        %v2150 = vld [vmem:[%s4 + $0xf8] sm:$0xff]
        %v2183 = vunpack.c.l.b16 %v2119
        %v2184 = vunpack.c.h.b16 %v2119
        %v2185 = vunpack.c.l.b16 %v2120
        %v2186 = vunpack.c.h.b16 %v2120
        %v2187 = vunpack.c.l.b16 %v2121
        %v2188 = vunpack.c.h.b16 %v2121
        %v2189 = vunpack.c.l.b16 %v2122
        %v2190 = vunpack.c.h.b16 %v2122
        %v2191 = vunpack.c.l.b16 %v2123
        %v2192 = vunpack.c.h.b16 %v2123
        %v2193 = vunpack.c.l.b16 %v2124
        %v2194 = vunpack.c.h.b16 %v2124
        %v2195 = vunpack.c.l.b16 %v2125
        %v2196 = vunpack.c.h.b16 %v2125
        %v2197 = vunpack.c.l.b16 %v2126
        %v2198 = vunpack.c.h.b16 %v2126
        %v2199 = vunpack.c.l.b16 %v2127
        %v2200 = vunpack.c.h.b16 %v2127
        %v2201 = vunpack.c.l.b16 %v2128
        %v2202 = vunpack.c.h.b16 %v2128
        %v2203 = vunpack.c.l.b16 %v2129
        %v2204 = vunpack.c.h.b16 %v2129
        %v2205 = vunpack.c.l.b16 %v2130
        %v2206 = vunpack.c.h.b16 %v2130
        %v2207 = vunpack.c.l.b16 %v2131
        %v2208 = vunpack.c.h.b16 %v2131
        %v2209 = vunpack.c.l.b16 %v2132
        %v2210 = vunpack.c.h.b16 %v2132
        %v2211 = vunpack.c.l.b16 %v2133
        %v2212 = vunpack.c.h.b16 %v2133
        %v2213 = vunpack.c.l.b16 %v2134
        %v2214 = vunpack.c.h.b16 %v2134
        %v2215 = vunpack.c.l.b16 %v2135
        %v2216 = vunpack.c.h.b16 %v2135
        %v2217 = vunpack.c.l.b16 %v2136
        %v2218 = vunpack.c.h.b16 %v2136
        %v2219 = vunpack.c.l.b16 %v2137
        %v2220 = vunpack.c.h.b16 %v2137
        %v2221 = vunpack.c.l.b16 %v2138
        %v2222 = vunpack.c.h.b16 %v2138
        %v2223 = vunpack.c.l.b16 %v2139
        %v2224 = vunpack.c.h.b16 %v2139
        %v2225 = vunpack.c.l.b16 %v2140
        %v2226 = vunpack.c.h.b16 %v2140
        %v2227 = vunpack.c.l.b16 %v2141
        %v2228 = vunpack.c.h.b16 %v2141
        %v2229 = vunpack.c.l.b16 %v2142
        %v2230 = vunpack.c.h.b16 %v2142
        %v2231 = vunpack.c.l.b16 %v2143
        %v2232 = vunpack.c.h.b16 %v2143
        %v2233 = vunpack.c.l.b16 %v2144
        %v2234 = vunpack.c.h.b16 %v2144
        %v2235 = vunpack.c.l.b16 %v2145
        %v2236 = vunpack.c.h.b16 %v2145
        %v2237 = vunpack.c.l.b16 %v2146
        %v2238 = vunpack.c.h.b16 %v2146
        %v2239 = vunpack.c.l.b16 %v2147
        %v2240 = vunpack.c.h.b16 %v2147
        %v2241 = vunpack.c.l.b16 %v2148
        %v2242 = vunpack.c.h.b16 %v2148
        %v2243 = vunpack.c.l.b16 %v2149
        %v2244 = vunpack.c.h.b16 %v2149
        %v2245 = vunpack.c.l.b16 %v2150
        %v2246 = vunpack.c.h.b16 %v2150
        %v2247 = vpack.c.b16 %v2187, %v2183
        %v2248 = vpack.c.b16 %v2188, %v2184
        %v2249 = vpack.c.b16 %v2189, %v2185
        %v2250 = vpack.c.b16 %v2190, %v2186
        %v2251 = vpack.c.b16 %v2195, %v2191
        %v2252 = vpack.c.b16 %v2196, %v2192
        %v2253 = vpack.c.b16 %v2197, %v2193
        %v2254 = vpack.c.b16 %v2198, %v2194
        %v2255 = vpack.c.b16 %v2203, %v2199
        %v2256 = vpack.c.b16 %v2204, %v2200
        %v2257 = vpack.c.b16 %v2205, %v2201
        %v2258 = vpack.c.b16 %v2206, %v2202
        %v2259 = vpack.c.b16 %v2211, %v2207
        %v2260 = vpack.c.b16 %v2212, %v2208
        %v2261 = vpack.c.b16 %v2213, %v2209
        %v2262 = vpack.c.b16 %v2214, %v2210
        %v2263 = vpack.c.b16 %v2219, %v2215
        %v2264 = vpack.c.b16 %v2220, %v2216
        %v2265 = vpack.c.b16 %v2221, %v2217
        %v2266 = vpack.c.b16 %v2222, %v2218
        %v2267 = vpack.c.b16 %v2227, %v2223
        %v2268 = vpack.c.b16 %v2228, %v2224
        %v2269 = vpack.c.b16 %v2229, %v2225
        %v2270 = vpack.c.b16 %v2230, %v2226
        %v2271 = vpack.c.b16 %v2235, %v2231
        %v2272 = vpack.c.b16 %v2236, %v2232
        %v2273 = vpack.c.b16 %v2237, %v2233
        %v2274 = vpack.c.b16 %v2238, %v2234
        %v2275 = vpack.c.b16 %v2243, %v2239
        %v2276 = vpack.c.b16 %v2244, %v2240
        %v2277 = vpack.c.b16 %v2245, %v2241
        %v2278 = vpack.c.b16 %v2246, %v2242
        %2311 = vmatpush.bf16.msra.mxu0 %v2275
        %2312 = vmatpush.bf16.msra.mxu0 %v2271
        %2313 = vmatpush.bf16.msra.mxu0 %v2267
        %2314 = vmatpush.bf16.msra.mxu0 %v2263
        %2315 = vmatpush.bf16.msra.mxu0 %v2259
        %2316 = vmatpush.bf16.msra.mxu0 %v2255
        %2317 = vmatpush.bf16.msra.mxu0 %v2251
        %2318 = vmatpush.bf16.msra.mxu0 %v2247
        %2319 = vmatmul.bf16.gmra.mxu0 %v2111
        %v2320 = vpop.f32.mrf.mxu0
        %v2321 = vadd.f32 0.0, %v2320
        %v2322 = vpop.f32.mrf.mxu0
        %2323 = vdwg.mxu0
        %2324 = vmatpush.bf16.msra.mxu0 %v2276
        %2325 = vmatpush.bf16.msra.mxu0 %v2272
        %2326 = vmatpush.bf16.msra.mxu0 %v2268
        %2327 = vmatpush.bf16.msra.mxu0 %v2264
        %2328 = vmatpush.bf16.msra.mxu0 %v2260
        %2329 = vmatpush.bf16.msra.mxu0 %v2256
        %2330 = vmatpush.bf16.msra.mxu0 %v2252
        %2331 = vmatpush.bf16.msra.mxu0 %v2248
        %2332 = vmatmul.bf16.gmra.mxu0 %v2111
        %v2333 = vpop.f32.mrf.mxu0
        %v2334 = vadd.f32 0.0, %v2333
        %v2335 = vpop.f32.mrf.mxu0
        %2336 = vdwg.mxu0
        %2337 = vmatpush.bf16.msra.mxu0 %v2277
        %2338 = vmatpush.bf16.msra.mxu0 %v2273
        %2339 = vmatpush.bf16.msra.mxu0 %v2269
        %2340 = vmatpush.bf16.msra.mxu0 %v2265
        %2341 = vmatpush.bf16.msra.mxu0 %v2261
        %2342 = vmatpush.bf16.msra.mxu0 %v2257
        %2343 = vmatpush.bf16.msra.mxu0 %v2253
        %2344 = vmatpush.bf16.msra.mxu0 %v2249
        %2345 = vmatmul.bf16.gmra.mxu0 %v2111
        %v2346 = vpop.f32.mrf.mxu0
        %v2347 = vadd.f32 0.0, %v2346
        %v2348 = vpop.f32.mrf.mxu0
        %2349 = vdwg.mxu0
        %2350 = vmatpush.bf16.msra.mxu0 %v2278
        %2351 = vmatpush.bf16.msra.mxu0 %v2274
        %2352 = vmatpush.bf16.msra.mxu0 %v2270
        %2353 = vmatpush.bf16.msra.mxu0 %v2266
        %2354 = vmatpush.bf16.msra.mxu0 %v2262
        %2355 = vmatpush.bf16.msra.mxu0 %v2258
        %2356 = vmatpush.bf16.msra.mxu0 %v2254
        %2357 = vmatpush.bf16.msra.mxu0 %v2250
        %2358 = vmatmul.bf16.gmra.mxu0 %v2111
        %v2359 = vpop.f32.mrf.mxu0
        %v2360 = vadd.f32 0.0, %v2359
        %v2361 = vpop.f32.mrf.mxu0
        %2362 = vdwg.mxu0
        %v2363 = vadd.f32 %v2115, %v2321
        %v2364 = vadd.f32 %v2116, %v2334
        %v2365 = vadd.f32 %v2117, %v2347
        %v2366 = vadd.f32 %v2118, %v2360
        %v2367 = vxor.u32 %v2363, 2147483648
        %v2368 = vmul.f32 %v2367, 1.442695
        %v2369 = vpow.pop %v2368
        %v2370 = vadd.f32 %v2369, 1.0
        %v2371 = vrcp.pop %v2370
        %v2372 = vmul.f32 %v2370, %v2371
        %v2373 = vsub.f32 1.0, %v2372
        %v2374 = vmul.f32 %v2371, %v2373
        %v2375 = vadd.f32 %v2371, %v2374
        %vm2376 = vweird.f32 %v2370
        %vm2377 = vweird.f32 %v2371
        %vm2378 = vmor %vm2376, %vm2377
        %v2379 = vsel %vm2378, %v2371, %v2375
        %v2380 = vand.u32 2147483647, %v2370
        %vm2381 = vcmp.eq.f32.partialorder %v2380, 8.507059e+37
        %v2382 = vand.u32 %v2370, 2147483648
        %v2383 = vor.u32 1.1754944e-38, %v2382
        %v2384 = vsel %vm2381, %v2383, %v2379
        %v2385 = vmul.f32 1.0, %v2384
        %v2386 = vxor.u32 %v2364, 2147483648
        %v2387 = vmul.f32 %v2386, 1.442695
        %v2388 = vpow.pop %v2387
        %v2389 = vadd.f32 %v2388, 1.0
        %v2390 = vrcp.pop %v2389
        %v2391 = vmul.f32 %v2389, %v2390
        %v2392 = vsub.f32 1.0, %v2391
        %v2393 = vmul.f32 %v2390, %v2392
        %v2394 = vadd.f32 %v2390, %v2393
        %vm2395 = vweird.f32 %v2389
        %vm2396 = vweird.f32 %v2390
        %vm2397 = vmor %vm2395, %vm2396
        %v2398 = vsel %vm2397, %v2390, %v2394
        %v2399 = vand.u32 2147483647, %v2389
        %vm2400 = vcmp.eq.f32.partialorder %v2399, 8.507059e+37
        %v2401 = vand.u32 %v2389, 2147483648
        %v2402 = vor.u32 1.1754944e-38, %v2401
        %v2403 = vsel %vm2400, %v2402, %v2398
        %v2404 = vmul.f32 1.0, %v2403
        %v2405 = vtanh.pop %v2365
        %v2406 = vxor.u32 %v2366, 2147483648
        %v2407 = vmul.f32 %v2406, 1.442695
        %v2408 = vpow.pop %v2407
        %v2409 = vadd.f32 %v2408, 1.0
        %v2410 = vrcp.pop %v2409
        %v2411 = vmul.f32 %v2409, %v2410
        %v2412 = vsub.f32 1.0, %v2411
        %v2413 = vmul.f32 %v2410, %v2412
        %v2414 = vadd.f32 %v2410, %v2413
        %vm2415 = vweird.f32 %v2409
        %vm2416 = vweird.f32 %v2410
        %vm2417 = vmor %vm2415, %vm2416
        %v2418 = vsel %vm2417, %v2410, %v2414
        %v2419 = vand.u32 2147483647, %v2409
        %vm2420 = vcmp.eq.f32.partialorder %v2419, 8.507059e+37
        %v2421 = vand.u32 %v2409, 2147483648
        %v2422 = vor.u32 1.1754944e-38, %v2421
        %v2423 = vsel %vm2420, %v2422, %v2418
        %v2424 = vmul.f32 1.0, %v2423
        %v2425 = vmul.f32 %v2404, %v2108
        %v2426 = vmul.f32 %v2385, %v2405
        %v2427 = vadd.f32 %v2425, %v2426
        %v2428 = vtanh.pop %v2427
        %v2429 = vmul.f32 %v2424, %v2428
        %v2430 = vpack.c.bf16 %v2429, %v2429
        %s2431 = scalar_lea.vmem %s416, 16 [#allocation6]
        %2432 = vst [vmem:[%s2431] sm:$0xf] %v2430
        %s2433 = scalar_lea.vmem [#allocation4], 160
        %v2434 = vld [vmem:[%s2433] sm:$0xff]
        %v2435 = vld [vmem:[%s2433 + $0x8] sm:$0xff]
        %v2436 = vld [vmem:[%s2433 + $0x10] sm:$0xff]
        %v2437 = vld [vmem:[%s2433 + $0x18] sm:$0xff]
        %v2438 = vld [vmem:[%s4] sm:$0xff]
        %v2439 = vld [vmem:[%s4 + $0x8] sm:$0xff]
        %v2440 = vld [vmem:[%s4 + $0x10] sm:$0xff]
        %v2441 = vld [vmem:[%s4 + $0x18] sm:$0xff]
        %v2442 = vld [vmem:[%s4 + $0x20] sm:$0xff]
        %v2443 = vld [vmem:[%s4 + $0x28] sm:$0xff]
        %v2444 = vld [vmem:[%s4 + $0x30] sm:$0xff]
        %v2445 = vld [vmem:[%s4 + $0x38] sm:$0xff]
        %v2446 = vld [vmem:[%s4 + $0x40] sm:$0xff]
        %v2447 = vld [vmem:[%s4 + $0x48] sm:$0xff]
        %v2448 = vld [vmem:[%s4 + $0x50] sm:$0xff]
        %v2449 = vld [vmem:[%s4 + $0x58] sm:$0xff]
        %v2450 = vld [vmem:[%s4 + $0x60] sm:$0xff]
        %v2451 = vld [vmem:[%s4 + $0x68] sm:$0xff]
        %v2452 = vld [vmem:[%s4 + $0x70] sm:$0xff]
        %v2453 = vld [vmem:[%s4 + $0x78] sm:$0xff]
        %v2454 = vld [vmem:[%s4 + $0x80] sm:$0xff]
        %v2455 = vld [vmem:[%s4 + $0x88] sm:$0xff]
        %v2456 = vld [vmem:[%s4 + $0x90] sm:$0xff]
        %v2457 = vld [vmem:[%s4 + $0x98] sm:$0xff]
        %v2458 = vld [vmem:[%s4 + $0xa0] sm:$0xff]
        %v2459 = vld [vmem:[%s4 + $0xa8] sm:$0xff]
        %v2460 = vld [vmem:[%s4 + $0xb0] sm:$0xff]
        %v2461 = vld [vmem:[%s4 + $0xb8] sm:$0xff]
        %v2462 = vld [vmem:[%s4 + $0xc0] sm:$0xff]
        %v2463 = vld [vmem:[%s4 + $0xc8] sm:$0xff]
        %v2464 = vld [vmem:[%s4 + $0xd0] sm:$0xff]
        %v2465 = vld [vmem:[%s4 + $0xd8] sm:$0xff]
        %v2466 = vld [vmem:[%s4 + $0xe0] sm:$0xff]
        %v2467 = vld [vmem:[%s4 + $0xe8] sm:$0xff]
        %v2468 = vld [vmem:[%s4 + $0xf0] sm:$0xff]
        %v2469 = vld [vmem:[%s4 + $0xf8] sm:$0xff]
        %v2502 = vunpack.c.l.b16 %v2438
        %v2503 = vunpack.c.h.b16 %v2438
        %v2504 = vunpack.c.l.b16 %v2439
        %v2505 = vunpack.c.h.b16 %v2439
        %v2506 = vunpack.c.l.b16 %v2440
        %v2507 = vunpack.c.h.b16 %v2440
        %v2508 = vunpack.c.l.b16 %v2441
        %v2509 = vunpack.c.h.b16 %v2441
        %v2510 = vunpack.c.l.b16 %v2442
        %v2511 = vunpack.c.h.b16 %v2442
        %v2512 = vunpack.c.l.b16 %v2443
        %v2513 = vunpack.c.h.b16 %v2443
        %v2514 = vunpack.c.l.b16 %v2444
        %v2515 = vunpack.c.h.b16 %v2444
        %v2516 = vunpack.c.l.b16 %v2445
        %v2517 = vunpack.c.h.b16 %v2445
        %v2518 = vunpack.c.l.b16 %v2446
        %v2519 = vunpack.c.h.b16 %v2446
        %v2520 = vunpack.c.l.b16 %v2447
        %v2521 = vunpack.c.h.b16 %v2447
        %v2522 = vunpack.c.l.b16 %v2448
        %v2523 = vunpack.c.h.b16 %v2448
        %v2524 = vunpack.c.l.b16 %v2449
        %v2525 = vunpack.c.h.b16 %v2449
        %v2526 = vunpack.c.l.b16 %v2450
        %v2527 = vunpack.c.h.b16 %v2450
        %v2528 = vunpack.c.l.b16 %v2451
        %v2529 = vunpack.c.h.b16 %v2451
        %v2530 = vunpack.c.l.b16 %v2452
        %v2531 = vunpack.c.h.b16 %v2452
        %v2532 = vunpack.c.l.b16 %v2453
        %v2533 = vunpack.c.h.b16 %v2453
        %v2534 = vunpack.c.l.b16 %v2454
        %v2535 = vunpack.c.h.b16 %v2454
        %v2536 = vunpack.c.l.b16 %v2455
        %v2537 = vunpack.c.h.b16 %v2455
        %v2538 = vunpack.c.l.b16 %v2456
        %v2539 = vunpack.c.h.b16 %v2456
        %v2540 = vunpack.c.l.b16 %v2457
        %v2541 = vunpack.c.h.b16 %v2457
        %v2542 = vunpack.c.l.b16 %v2458
        %v2543 = vunpack.c.h.b16 %v2458
        %v2544 = vunpack.c.l.b16 %v2459
        %v2545 = vunpack.c.h.b16 %v2459
        %v2546 = vunpack.c.l.b16 %v2460
        %v2547 = vunpack.c.h.b16 %v2460
        %v2548 = vunpack.c.l.b16 %v2461
        %v2549 = vunpack.c.h.b16 %v2461
        %v2550 = vunpack.c.l.b16 %v2462
        %v2551 = vunpack.c.h.b16 %v2462
        %v2552 = vunpack.c.l.b16 %v2463
        %v2553 = vunpack.c.h.b16 %v2463
        %v2554 = vunpack.c.l.b16 %v2464
        %v2555 = vunpack.c.h.b16 %v2464
        %v2556 = vunpack.c.l.b16 %v2465
        %v2557 = vunpack.c.h.b16 %v2465
        %v2558 = vunpack.c.l.b16 %v2466
        %v2559 = vunpack.c.h.b16 %v2466
        %v2560 = vunpack.c.l.b16 %v2467
        %v2561 = vunpack.c.h.b16 %v2467
        %v2562 = vunpack.c.l.b16 %v2468
        %v2563 = vunpack.c.h.b16 %v2468
        %v2564 = vunpack.c.l.b16 %v2469
        %v2565 = vunpack.c.h.b16 %v2469
        %v2566 = vpack.c.b16 %v2506, %v2502
        %v2567 = vpack.c.b16 %v2507, %v2503
        %v2568 = vpack.c.b16 %v2508, %v2504
        %v2569 = vpack.c.b16 %v2509, %v2505
        %v2570 = vpack.c.b16 %v2514, %v2510
        %v2571 = vpack.c.b16 %v2515, %v2511
        %v2572 = vpack.c.b16 %v2516, %v2512
        %v2573 = vpack.c.b16 %v2517, %v2513
        %v2574 = vpack.c.b16 %v2522, %v2518
        %v2575 = vpack.c.b16 %v2523, %v2519
        %v2576 = vpack.c.b16 %v2524, %v2520
        %v2577 = vpack.c.b16 %v2525, %v2521
        %v2578 = vpack.c.b16 %v2530, %v2526
        %v2579 = vpack.c.b16 %v2531, %v2527
        %v2580 = vpack.c.b16 %v2532, %v2528
        %v2581 = vpack.c.b16 %v2533, %v2529
        %v2582 = vpack.c.b16 %v2538, %v2534
        %v2583 = vpack.c.b16 %v2539, %v2535
        %v2584 = vpack.c.b16 %v2540, %v2536
        %v2585 = vpack.c.b16 %v2541, %v2537
        %v2586 = vpack.c.b16 %v2546, %v2542
        %v2587 = vpack.c.b16 %v2547, %v2543
        %v2588 = vpack.c.b16 %v2548, %v2544
        %v2589 = vpack.c.b16 %v2549, %v2545
        %v2590 = vpack.c.b16 %v2554, %v2550
        %v2591 = vpack.c.b16 %v2555, %v2551
        %v2592 = vpack.c.b16 %v2556, %v2552
        %v2593 = vpack.c.b16 %v2557, %v2553
        %v2594 = vpack.c.b16 %v2562, %v2558
        %v2595 = vpack.c.b16 %v2563, %v2559
        %v2596 = vpack.c.b16 %v2564, %v2560
        %v2597 = vpack.c.b16 %v2565, %v2561
        %2630 = vmatpush.bf16.msra.mxu0 %v2594
        %2631 = vmatpush.bf16.msra.mxu0 %v2590
        %2632 = vmatpush.bf16.msra.mxu0 %v2586
        %2633 = vmatpush.bf16.msra.mxu0 %v2582
        %2634 = vmatpush.bf16.msra.mxu0 %v2578
        %2635 = vmatpush.bf16.msra.mxu0 %v2574
        %2636 = vmatpush.bf16.msra.mxu0 %v2570
        %2637 = vmatpush.bf16.msra.mxu0 %v2566
        %2638 = vmatmul.bf16.gmra.mxu0 %v2430
        %v2639 = vpop.f32.mrf.mxu0
        %v2640 = vadd.f32 0.0, %v2639
        %v2641 = vpop.f32.mrf.mxu0
        %2642 = vdwg.mxu0
        %2643 = vmatpush.bf16.msra.mxu0 %v2595
        %2644 = vmatpush.bf16.msra.mxu0 %v2591
        %2645 = vmatpush.bf16.msra.mxu0 %v2587
        %2646 = vmatpush.bf16.msra.mxu0 %v2583
        %2647 = vmatpush.bf16.msra.mxu0 %v2579
        %2648 = vmatpush.bf16.msra.mxu0 %v2575
        %2649 = vmatpush.bf16.msra.mxu0 %v2571
        %2650 = vmatpush.bf16.msra.mxu0 %v2567
        %2651 = vmatmul.bf16.gmra.mxu0 %v2430
        %v2652 = vpop.f32.mrf.mxu0
        %v2653 = vadd.f32 0.0, %v2652
        %v2654 = vpop.f32.mrf.mxu0
        %2655 = vdwg.mxu0
        %2656 = vmatpush.bf16.msra.mxu0 %v2596
        %2657 = vmatpush.bf16.msra.mxu0 %v2592
        %2658 = vmatpush.bf16.msra.mxu0 %v2588
        %2659 = vmatpush.bf16.msra.mxu0 %v2584
        %2660 = vmatpush.bf16.msra.mxu0 %v2580
        %2661 = vmatpush.bf16.msra.mxu0 %v2576
        %2662 = vmatpush.bf16.msra.mxu0 %v2572
        %2663 = vmatpush.bf16.msra.mxu0 %v2568
        %2664 = vmatmul.bf16.gmra.mxu0 %v2430
        %v2665 = vpop.f32.mrf.mxu0
        %v2666 = vadd.f32 0.0, %v2665
        %v2667 = vpop.f32.mrf.mxu0
        %2668 = vdwg.mxu0
        %2669 = vmatpush.bf16.msra.mxu0 %v2597
        %2670 = vmatpush.bf16.msra.mxu0 %v2593
        %2671 = vmatpush.bf16.msra.mxu0 %v2589
        %2672 = vmatpush.bf16.msra.mxu0 %v2585
        %2673 = vmatpush.bf16.msra.mxu0 %v2581
        %2674 = vmatpush.bf16.msra.mxu0 %v2577
        %2675 = vmatpush.bf16.msra.mxu0 %v2573
        %2676 = vmatpush.bf16.msra.mxu0 %v2569
        %2677 = vmatmul.bf16.gmra.mxu0 %v2430
        %v2678 = vpop.f32.mrf.mxu0
        %v2679 = vadd.f32 0.0, %v2678
        %v2680 = vpop.f32.mrf.mxu0
        %2681 = vdwg.mxu0
        %v2682 = vadd.f32 %v2434, %v2640
        %v2683 = vadd.f32 %v2435, %v2653
        %v2684 = vadd.f32 %v2436, %v2666
        %v2685 = vadd.f32 %v2437, %v2679
        %v2686 = vxor.u32 %v2682, 2147483648
        %v2687 = vmul.f32 %v2686, 1.442695
        %v2688 = vpow.pop %v2687
        %v2689 = vadd.f32 %v2688, 1.0
        %v2690 = vrcp.pop %v2689
        %v2691 = vmul.f32 %v2689, %v2690
        %v2692 = vsub.f32 1.0, %v2691
        %v2693 = vmul.f32 %v2690, %v2692
        %v2694 = vadd.f32 %v2690, %v2693
        %vm2695 = vweird.f32 %v2689
        %vm2696 = vweird.f32 %v2690
        %vm2697 = vmor %vm2695, %vm2696
        %v2698 = vsel %vm2697, %v2690, %v2694
        %v2699 = vand.u32 2147483647, %v2689
        %vm2700 = vcmp.eq.f32.partialorder %v2699, 8.507059e+37
        %v2701 = vand.u32 %v2689, 2147483648
        %v2702 = vor.u32 1.1754944e-38, %v2701
        %v2703 = vsel %vm2700, %v2702, %v2698
        %v2704 = vmul.f32 1.0, %v2703
        %v2705 = vxor.u32 %v2683, 2147483648
        %v2706 = vmul.f32 %v2705, 1.442695
        %v2707 = vpow.pop %v2706
        %v2708 = vadd.f32 %v2707, 1.0
        %v2709 = vrcp.pop %v2708
        %v2710 = vmul.f32 %v2708, %v2709
        %v2711 = vsub.f32 1.0, %v2710
        %v2712 = vmul.f32 %v2709, %v2711
        %v2713 = vadd.f32 %v2709, %v2712
        %vm2714 = vweird.f32 %v2708
        %vm2715 = vweird.f32 %v2709
        %vm2716 = vmor %vm2714, %vm2715
        %v2717 = vsel %vm2716, %v2709, %v2713
        %v2718 = vand.u32 2147483647, %v2708
        %vm2719 = vcmp.eq.f32.partialorder %v2718, 8.507059e+37
        %v2720 = vand.u32 %v2708, 2147483648
        %v2721 = vor.u32 1.1754944e-38, %v2720
        %v2722 = vsel %vm2719, %v2721, %v2717
        %v2723 = vmul.f32 1.0, %v2722
        %v2724 = vtanh.pop %v2684
        %v2725 = vxor.u32 %v2685, 2147483648
        %v2726 = vmul.f32 %v2725, 1.442695
        %v2727 = vpow.pop %v2726
        %v2728 = vadd.f32 %v2727, 1.0
        %v2729 = vrcp.pop %v2728
        %v2730 = vmul.f32 %v2728, %v2729
        %v2731 = vsub.f32 1.0, %v2730
        %v2732 = vmul.f32 %v2729, %v2731
        %v2733 = vadd.f32 %v2729, %v2732
        %vm2734 = vweird.f32 %v2728
        %vm2735 = vweird.f32 %v2729
        %vm2736 = vmor %vm2734, %vm2735
        %v2737 = vsel %vm2736, %v2729, %v2733
        %v2738 = vand.u32 2147483647, %v2728
        %vm2739 = vcmp.eq.f32.partialorder %v2738, 8.507059e+37
        %v2740 = vand.u32 %v2728, 2147483648
        %v2741 = vor.u32 1.1754944e-38, %v2740
        %v2742 = vsel %vm2739, %v2741, %v2737
        %v2743 = vmul.f32 1.0, %v2742
        %v2744 = vmul.f32 %v2723, %v2427
        %v2745 = vmul.f32 %v2704, %v2724
        %v2746 = vadd.f32 %v2744, %v2745
        %v2747 = vtanh.pop %v2746
        %v2748 = vmul.f32 %v2743, %v2747
        %v2749 = vpack.c.bf16 %v2748, %v2748
        %s2750 = scalar_lea.vmem %s416, 20 [#allocation6]
        %2751 = vst [vmem:[%s2750] sm:$0xf] %v2749
        %s2752 = scalar_lea.vmem [#allocation4], 192
        %v2753 = vld [vmem:[%s2752] sm:$0xff]
        %v2754 = vld [vmem:[%s2752 + $0x8] sm:$0xff]
        %v2755 = vld [vmem:[%s2752 + $0x10] sm:$0xff]
        %v2756 = vld [vmem:[%s2752 + $0x18] sm:$0xff]
        %v2757 = vld [vmem:[%s4] sm:$0xff]
        %v2758 = vld [vmem:[%s4 + $0x8] sm:$0xff]
        %v2759 = vld [vmem:[%s4 + $0x10] sm:$0xff]
        %v2760 = vld [vmem:[%s4 + $0x18] sm:$0xff]
        %v2761 = vld [vmem:[%s4 + $0x20] sm:$0xff]
        %v2762 = vld [vmem:[%s4 + $0x28] sm:$0xff]
        %v2763 = vld [vmem:[%s4 + $0x30] sm:$0xff]
        %v2764 = vld [vmem:[%s4 + $0x38] sm:$0xff]
        %v2765 = vld [vmem:[%s4 + $0x40] sm:$0xff]
        %v2766 = vld [vmem:[%s4 + $0x48] sm:$0xff]
        %v2767 = vld [vmem:[%s4 + $0x50] sm:$0xff]
        %v2768 = vld [vmem:[%s4 + $0x58] sm:$0xff]
        %v2769 = vld [vmem:[%s4 + $0x60] sm:$0xff]
        %v2770 = vld [vmem:[%s4 + $0x68] sm:$0xff]
        %v2771 = vld [vmem:[%s4 + $0x70] sm:$0xff]
        %v2772 = vld [vmem:[%s4 + $0x78] sm:$0xff]
        %v2773 = vld [vmem:[%s4 + $0x80] sm:$0xff]
        %v2774 = vld [vmem:[%s4 + $0x88] sm:$0xff]
        %v2775 = vld [vmem:[%s4 + $0x90] sm:$0xff]
        %v2776 = vld [vmem:[%s4 + $0x98] sm:$0xff]
        %v2777 = vld [vmem:[%s4 + $0xa0] sm:$0xff]
        %v2778 = vld [vmem:[%s4 + $0xa8] sm:$0xff]
        %v2779 = vld [vmem:[%s4 + $0xb0] sm:$0xff]
        %v2780 = vld [vmem:[%s4 + $0xb8] sm:$0xff]
        %v2781 = vld [vmem:[%s4 + $0xc0] sm:$0xff]
        %v2782 = vld [vmem:[%s4 + $0xc8] sm:$0xff]
        %v2783 = vld [vmem:[%s4 + $0xd0] sm:$0xff]
        %v2784 = vld [vmem:[%s4 + $0xd8] sm:$0xff]
        %v2785 = vld [vmem:[%s4 + $0xe0] sm:$0xff]
        %v2786 = vld [vmem:[%s4 + $0xe8] sm:$0xff]
        %v2787 = vld [vmem:[%s4 + $0xf0] sm:$0xff]
        %v2788 = vld [vmem:[%s4 + $0xf8] sm:$0xff]
        %v2821 = vunpack.c.l.b16 %v2757
        %v2822 = vunpack.c.h.b16 %v2757
        %v2823 = vunpack.c.l.b16 %v2758
        %v2824 = vunpack.c.h.b16 %v2758
        %v2825 = vunpack.c.l.b16 %v2759
        %v2826 = vunpack.c.h.b16 %v2759
        %v2827 = vunpack.c.l.b16 %v2760
        %v2828 = vunpack.c.h.b16 %v2760
        %v2829 = vunpack.c.l.b16 %v2761
        %v2830 = vunpack.c.h.b16 %v2761
        %v2831 = vunpack.c.l.b16 %v2762
        %v2832 = vunpack.c.h.b16 %v2762
        %v2833 = vunpack.c.l.b16 %v2763
        %v2834 = vunpack.c.h.b16 %v2763
        %v2835 = vunpack.c.l.b16 %v2764
        %v2836 = vunpack.c.h.b16 %v2764
        %v2837 = vunpack.c.l.b16 %v2765
        %v2838 = vunpack.c.h.b16 %v2765
        %v2839 = vunpack.c.l.b16 %v2766
        %v2840 = vunpack.c.h.b16 %v2766
        %v2841 = vunpack.c.l.b16 %v2767
        %v2842 = vunpack.c.h.b16 %v2767
        %v2843 = vunpack.c.l.b16 %v2768
        %v2844 = vunpack.c.h.b16 %v2768
        %v2845 = vunpack.c.l.b16 %v2769
        %v2846 = vunpack.c.h.b16 %v2769
        %v2847 = vunpack.c.l.b16 %v2770
        %v2848 = vunpack.c.h.b16 %v2770
        %v2849 = vunpack.c.l.b16 %v2771
        %v2850 = vunpack.c.h.b16 %v2771
        %v2851 = vunpack.c.l.b16 %v2772
        %v2852 = vunpack.c.h.b16 %v2772
        %v2853 = vunpack.c.l.b16 %v2773
        %v2854 = vunpack.c.h.b16 %v2773
        %v2855 = vunpack.c.l.b16 %v2774
        %v2856 = vunpack.c.h.b16 %v2774
        %v2857 = vunpack.c.l.b16 %v2775
        %v2858 = vunpack.c.h.b16 %v2775
        %v2859 = vunpack.c.l.b16 %v2776
        %v2860 = vunpack.c.h.b16 %v2776
        %v2861 = vunpack.c.l.b16 %v2777
        %v2862 = vunpack.c.h.b16 %v2777
        %v2863 = vunpack.c.l.b16 %v2778
        %v2864 = vunpack.c.h.b16 %v2778
        %v2865 = vunpack.c.l.b16 %v2779
        %v2866 = vunpack.c.h.b16 %v2779
        %v2867 = vunpack.c.l.b16 %v2780
        %v2868 = vunpack.c.h.b16 %v2780
        %v2869 = vunpack.c.l.b16 %v2781
        %v2870 = vunpack.c.h.b16 %v2781
        %v2871 = vunpack.c.l.b16 %v2782
        %v2872 = vunpack.c.h.b16 %v2782
        %v2873 = vunpack.c.l.b16 %v2783
        %v2874 = vunpack.c.h.b16 %v2783
        %v2875 = vunpack.c.l.b16 %v2784
        %v2876 = vunpack.c.h.b16 %v2784
        %v2877 = vunpack.c.l.b16 %v2785
        %v2878 = vunpack.c.h.b16 %v2785
        %v2879 = vunpack.c.l.b16 %v2786
        %v2880 = vunpack.c.h.b16 %v2786
        %v2881 = vunpack.c.l.b16 %v2787
        %v2882 = vunpack.c.h.b16 %v2787
        %v2883 = vunpack.c.l.b16 %v2788
        %v2884 = vunpack.c.h.b16 %v2788
        %v2885 = vpack.c.b16 %v2825, %v2821
        %v2886 = vpack.c.b16 %v2826, %v2822
        %v2887 = vpack.c.b16 %v2827, %v2823
        %v2888 = vpack.c.b16 %v2828, %v2824
        %v2889 = vpack.c.b16 %v2833, %v2829
        %v2890 = vpack.c.b16 %v2834, %v2830
        %v2891 = vpack.c.b16 %v2835, %v2831
        %v2892 = vpack.c.b16 %v2836, %v2832
        %v2893 = vpack.c.b16 %v2841, %v2837
        %v2894 = vpack.c.b16 %v2842, %v2838
        %v2895 = vpack.c.b16 %v2843, %v2839
        %v2896 = vpack.c.b16 %v2844, %v2840
        %v2897 = vpack.c.b16 %v2849, %v2845
        %v2898 = vpack.c.b16 %v2850, %v2846
        %v2899 = vpack.c.b16 %v2851, %v2847
        %v2900 = vpack.c.b16 %v2852, %v2848
        %v2901 = vpack.c.b16 %v2857, %v2853
        %v2902 = vpack.c.b16 %v2858, %v2854
        %v2903 = vpack.c.b16 %v2859, %v2855
        %v2904 = vpack.c.b16 %v2860, %v2856
        %v2905 = vpack.c.b16 %v2865, %v2861
        %v2906 = vpack.c.b16 %v2866, %v2862
        %v2907 = vpack.c.b16 %v2867, %v2863
        %v2908 = vpack.c.b16 %v2868, %v2864
        %v2909 = vpack.c.b16 %v2873, %v2869
        %v2910 = vpack.c.b16 %v2874, %v2870
        %v2911 = vpack.c.b16 %v2875, %v2871
        %v2912 = vpack.c.b16 %v2876, %v2872
        %v2913 = vpack.c.b16 %v2881, %v2877
        %v2914 = vpack.c.b16 %v2882, %v2878
        %v2915 = vpack.c.b16 %v2883, %v2879
        %v2916 = vpack.c.b16 %v2884, %v2880
        %2949 = vmatpush.bf16.msra.mxu0 %v2913
        %2950 = vmatpush.bf16.msra.mxu0 %v2909
        %2951 = vmatpush.bf16.msra.mxu0 %v2905
        %2952 = vmatpush.bf16.msra.mxu0 %v2901
        %2953 = vmatpush.bf16.msra.mxu0 %v2897
        %2954 = vmatpush.bf16.msra.mxu0 %v2893
        %2955 = vmatpush.bf16.msra.mxu0 %v2889
        %2956 = vmatpush.bf16.msra.mxu0 %v2885
        %2957 = vmatmul.bf16.gmra.mxu0 %v2749
        %v2958 = vpop.f32.mrf.mxu0
        %v2959 = vadd.f32 0.0, %v2958
        %v2960 = vpop.f32.mrf.mxu0
        %2961 = vdwg.mxu0
        %2962 = vmatpush.bf16.msra.mxu0 %v2914
        %2963 = vmatpush.bf16.msra.mxu0 %v2910
        %2964 = vmatpush.bf16.msra.mxu0 %v2906
        %2965 = vmatpush.bf16.msra.mxu0 %v2902
        %2966 = vmatpush.bf16.msra.mxu0 %v2898
        %2967 = vmatpush.bf16.msra.mxu0 %v2894
        %2968 = vmatpush.bf16.msra.mxu0 %v2890
        %2969 = vmatpush.bf16.msra.mxu0 %v2886
        %2970 = vmatmul.bf16.gmra.mxu0 %v2749
        %v2971 = vpop.f32.mrf.mxu0
        %v2972 = vadd.f32 0.0, %v2971
        %v2973 = vpop.f32.mrf.mxu0
        %2974 = vdwg.mxu0
        %2975 = vmatpush.bf16.msra.mxu0 %v2915
        %2976 = vmatpush.bf16.msra.mxu0 %v2911
        %2977 = vmatpush.bf16.msra.mxu0 %v2907
        %2978 = vmatpush.bf16.msra.mxu0 %v2903
        %2979 = vmatpush.bf16.msra.mxu0 %v2899
        %2980 = vmatpush.bf16.msra.mxu0 %v2895
        %2981 = vmatpush.bf16.msra.mxu0 %v2891
        %2982 = vmatpush.bf16.msra.mxu0 %v2887
        %2983 = vmatmul.bf16.gmra.mxu0 %v2749
        %v2984 = vpop.f32.mrf.mxu0
        %v2985 = vadd.f32 0.0, %v2984
        %v2986 = vpop.f32.mrf.mxu0
        %2987 = vdwg.mxu0
        %2988 = vmatpush.bf16.msra.mxu0 %v2916
        %2989 = vmatpush.bf16.msra.mxu0 %v2912
        %2990 = vmatpush.bf16.msra.mxu0 %v2908
        %2991 = vmatpush.bf16.msra.mxu0 %v2904
        %2992 = vmatpush.bf16.msra.mxu0 %v2900
        %2993 = vmatpush.bf16.msra.mxu0 %v2896
        %2994 = vmatpush.bf16.msra.mxu0 %v2892
        %2995 = vmatpush.bf16.msra.mxu0 %v2888
        %2996 = vmatmul.bf16.gmra.mxu0 %v2749
        %v2997 = vpop.f32.mrf.mxu0
        %v2998 = vadd.f32 0.0, %v2997
        %v2999 = vpop.f32.mrf.mxu0
        %3000 = vdwg.mxu0
        %v3001 = vadd.f32 %v2753, %v2959
        %v3002 = vadd.f32 %v2754, %v2972
        %v3003 = vadd.f32 %v2755, %v2985
        %v3004 = vadd.f32 %v2756, %v2998
        %v3005 = vxor.u32 %v3001, 2147483648
        %v3006 = vmul.f32 %v3005, 1.442695
        %v3007 = vpow.pop %v3006
        %v3008 = vadd.f32 %v3007, 1.0
        %v3009 = vrcp.pop %v3008
        %v3010 = vmul.f32 %v3008, %v3009
        %v3011 = vsub.f32 1.0, %v3010
        %v3012 = vmul.f32 %v3009, %v3011
        %v3013 = vadd.f32 %v3009, %v3012
        %vm3014 = vweird.f32 %v3008
        %vm3015 = vweird.f32 %v3009
        %vm3016 = vmor %vm3014, %vm3015
        %v3017 = vsel %vm3016, %v3009, %v3013
        %v3018 = vand.u32 2147483647, %v3008
        %vm3019 = vcmp.eq.f32.partialorder %v3018, 8.507059e+37
        %v3020 = vand.u32 %v3008, 2147483648
        %v3021 = vor.u32 1.1754944e-38, %v3020
        %v3022 = vsel %vm3019, %v3021, %v3017
        %v3023 = vmul.f32 1.0, %v3022
        %v3024 = vxor.u32 %v3002, 2147483648
        %v3025 = vmul.f32 %v3024, 1.442695
        %v3026 = vpow.pop %v3025
        %v3027 = vadd.f32 %v3026, 1.0
        %v3028 = vrcp.pop %v3027
        %v3029 = vmul.f32 %v3027, %v3028
        %v3030 = vsub.f32 1.0, %v3029
        %v3031 = vmul.f32 %v3028, %v3030
        %v3032 = vadd.f32 %v3028, %v3031
        %vm3033 = vweird.f32 %v3027
        %vm3034 = vweird.f32 %v3028
        %vm3035 = vmor %vm3033, %vm3034
        %v3036 = vsel %vm3035, %v3028, %v3032
        %v3037 = vand.u32 2147483647, %v3027
        %vm3038 = vcmp.eq.f32.partialorder %v3037, 8.507059e+37
        %v3039 = vand.u32 %v3027, 2147483648
        %v3040 = vor.u32 1.1754944e-38, %v3039
        %v3041 = vsel %vm3038, %v3040, %v3036
        %v3042 = vmul.f32 1.0, %v3041
        %v3043 = vtanh.pop %v3003
        %v3044 = vxor.u32 %v3004, 2147483648
        %v3045 = vmul.f32 %v3044, 1.442695
        %v3046 = vpow.pop %v3045
        %v3047 = vadd.f32 %v3046, 1.0
        %v3048 = vrcp.pop %v3047
        %v3049 = vmul.f32 %v3047, %v3048
        %v3050 = vsub.f32 1.0, %v3049
        %v3051 = vmul.f32 %v3048, %v3050
        %v3052 = vadd.f32 %v3048, %v3051
        %vm3053 = vweird.f32 %v3047
        %vm3054 = vweird.f32 %v3048
        %vm3055 = vmor %vm3053, %vm3054
        %v3056 = vsel %vm3055, %v3048, %v3052
        %v3057 = vand.u32 2147483647, %v3047
        %vm3058 = vcmp.eq.f32.partialorder %v3057, 8.507059e+37
        %v3059 = vand.u32 %v3047, 2147483648
        %v3060 = vor.u32 1.1754944e-38, %v3059
        %v3061 = vsel %vm3058, %v3060, %v3056
        %v3062 = vmul.f32 1.0, %v3061
        %v3063 = vmul.f32 %v3042, %v2746
        %v3064 = vmul.f32 %v3023, %v3043
        %v3065 = vadd.f32 %v3063, %v3064
        %v3066 = vtanh.pop %v3065
        %v3067 = vmul.f32 %v3062, %v3066
        %v3068 = vpack.c.bf16 %v3067, %v3067
        %s3069 = scalar_lea.vmem %s416, 24 [#allocation6]
        %3070 = vst [vmem:[%s3069] sm:$0xf] %v3068
        %s3071 = scalar_lea.vmem [#allocation4], 224
        %v3072 = vld [vmem:[%s3071] sm:$0xff]
        %v3073 = vld [vmem:[%s3071 + $0x8] sm:$0xff]
        %v3074 = vld [vmem:[%s3071 + $0x10] sm:$0xff]
        %v3075 = vld [vmem:[%s3071 + $0x18] sm:$0xff]
        %v3076 = vld [vmem:[%s4] sm:$0xff]
        %v3077 = vld [vmem:[%s4 + $0x8] sm:$0xff]
        %v3078 = vld [vmem:[%s4 + $0x10] sm:$0xff]
        %v3079 = vld [vmem:[%s4 + $0x18] sm:$0xff]
        %v3080 = vld [vmem:[%s4 + $0x20] sm:$0xff]
        %v3081 = vld [vmem:[%s4 + $0x28] sm:$0xff]
        %v3082 = vld [vmem:[%s4 + $0x30] sm:$0xff]
        %v3083 = vld [vmem:[%s4 + $0x38] sm:$0xff]
        %v3084 = vld [vmem:[%s4 + $0x40] sm:$0xff]
        %v3085 = vld [vmem:[%s4 + $0x48] sm:$0xff]
        %v3086 = vld [vmem:[%s4 + $0x50] sm:$0xff]
        %v3087 = vld [vmem:[%s4 + $0x58] sm:$0xff]
        %v3088 = vld [vmem:[%s4 + $0x60] sm:$0xff]
        %v3089 = vld [vmem:[%s4 + $0x68] sm:$0xff]
        %v3090 = vld [vmem:[%s4 + $0x70] sm:$0xff]
        %v3091 = vld [vmem:[%s4 + $0x78] sm:$0xff]
        %v3092 = vld [vmem:[%s4 + $0x80] sm:$0xff]
        %v3093 = vld [vmem:[%s4 + $0x88] sm:$0xff]
        %v3094 = vld [vmem:[%s4 + $0x90] sm:$0xff]
        %v3095 = vld [vmem:[%s4 + $0x98] sm:$0xff]
        %v3096 = vld [vmem:[%s4 + $0xa0] sm:$0xff]
        %v3097 = vld [vmem:[%s4 + $0xa8] sm:$0xff]
        %v3098 = vld [vmem:[%s4 + $0xb0] sm:$0xff]
        %v3099 = vld [vmem:[%s4 + $0xb8] sm:$0xff]
        %v3100 = vld [vmem:[%s4 + $0xc0] sm:$0xff]
        %v3101 = vld [vmem:[%s4 + $0xc8] sm:$0xff]
        %v3102 = vld [vmem:[%s4 + $0xd0] sm:$0xff]
        %v3103 = vld [vmem:[%s4 + $0xd8] sm:$0xff]
        %v3104 = vld [vmem:[%s4 + $0xe0] sm:$0xff]
        %v3105 = vld [vmem:[%s4 + $0xe8] sm:$0xff]
        %v3106 = vld [vmem:[%s4 + $0xf0] sm:$0xff]
        %v3107 = vld [vmem:[%s4 + $0xf8] sm:$0xff]
        %v3140 = vunpack.c.l.b16 %v3076
        %v3141 = vunpack.c.h.b16 %v3076
        %v3142 = vunpack.c.l.b16 %v3077
        %v3143 = vunpack.c.h.b16 %v3077
        %v3144 = vunpack.c.l.b16 %v3078
        %v3145 = vunpack.c.h.b16 %v3078
        %v3146 = vunpack.c.l.b16 %v3079
        %v3147 = vunpack.c.h.b16 %v3079
        %v3148 = vunpack.c.l.b16 %v3080
        %v3149 = vunpack.c.h.b16 %v3080
        %v3150 = vunpack.c.l.b16 %v3081
        %v3151 = vunpack.c.h.b16 %v3081
        %v3152 = vunpack.c.l.b16 %v3082
        %v3153 = vunpack.c.h.b16 %v3082
        %v3154 = vunpack.c.l.b16 %v3083
        %v3155 = vunpack.c.h.b16 %v3083
        %v3156 = vunpack.c.l.b16 %v3084
        %v3157 = vunpack.c.h.b16 %v3084
        %v3158 = vunpack.c.l.b16 %v3085
        %v3159 = vunpack.c.h.b16 %v3085
        %v3160 = vunpack.c.l.b16 %v3086
        %v3161 = vunpack.c.h.b16 %v3086
        %v3162 = vunpack.c.l.b16 %v3087
        %v3163 = vunpack.c.h.b16 %v3087
        %v3164 = vunpack.c.l.b16 %v3088
        %v3165 = vunpack.c.h.b16 %v3088
        %v3166 = vunpack.c.l.b16 %v3089
        %v3167 = vunpack.c.h.b16 %v3089
        %v3168 = vunpack.c.l.b16 %v3090
        %v3169 = vunpack.c.h.b16 %v3090
        %v3170 = vunpack.c.l.b16 %v3091
        %v3171 = vunpack.c.h.b16 %v3091
        %v3172 = vunpack.c.l.b16 %v3092
        %v3173 = vunpack.c.h.b16 %v3092
        %v3174 = vunpack.c.l.b16 %v3093
        %v3175 = vunpack.c.h.b16 %v3093
        %v3176 = vunpack.c.l.b16 %v3094
        %v3177 = vunpack.c.h.b16 %v3094
        %v3178 = vunpack.c.l.b16 %v3095
        %v3179 = vunpack.c.h.b16 %v3095
        %v3180 = vunpack.c.l.b16 %v3096
        %v3181 = vunpack.c.h.b16 %v3096
        %v3182 = vunpack.c.l.b16 %v3097
        %v3183 = vunpack.c.h.b16 %v3097
        %v3184 = vunpack.c.l.b16 %v3098
        %v3185 = vunpack.c.h.b16 %v3098
        %v3186 = vunpack.c.l.b16 %v3099
        %v3187 = vunpack.c.h.b16 %v3099
        %v3188 = vunpack.c.l.b16 %v3100
        %v3189 = vunpack.c.h.b16 %v3100
        %v3190 = vunpack.c.l.b16 %v3101
        %v3191 = vunpack.c.h.b16 %v3101
        %v3192 = vunpack.c.l.b16 %v3102
        %v3193 = vunpack.c.h.b16 %v3102
        %v3194 = vunpack.c.l.b16 %v3103
        %v3195 = vunpack.c.h.b16 %v3103
        %v3196 = vunpack.c.l.b16 %v3104
        %v3197 = vunpack.c.h.b16 %v3104
        %v3198 = vunpack.c.l.b16 %v3105
        %v3199 = vunpack.c.h.b16 %v3105
        %v3200 = vunpack.c.l.b16 %v3106
        %v3201 = vunpack.c.h.b16 %v3106
        %v3202 = vunpack.c.l.b16 %v3107
        %v3203 = vunpack.c.h.b16 %v3107
        %v3204 = vpack.c.b16 %v3144, %v3140
        %v3205 = vpack.c.b16 %v3145, %v3141
        %v3206 = vpack.c.b16 %v3146, %v3142
        %v3207 = vpack.c.b16 %v3147, %v3143
        %v3208 = vpack.c.b16 %v3152, %v3148
        %v3209 = vpack.c.b16 %v3153, %v3149
        %v3210 = vpack.c.b16 %v3154, %v3150
        %v3211 = vpack.c.b16 %v3155, %v3151
        %v3212 = vpack.c.b16 %v3160, %v3156
        %v3213 = vpack.c.b16 %v3161, %v3157
        %v3214 = vpack.c.b16 %v3162, %v3158
        %v3215 = vpack.c.b16 %v3163, %v3159
        %v3216 = vpack.c.b16 %v3168, %v3164
        %v3217 = vpack.c.b16 %v3169, %v3165
        %v3218 = vpack.c.b16 %v3170, %v3166
        %v3219 = vpack.c.b16 %v3171, %v3167
        %v3220 = vpack.c.b16 %v3176, %v3172
        %v3221 = vpack.c.b16 %v3177, %v3173
        %v3222 = vpack.c.b16 %v3178, %v3174
        %v3223 = vpack.c.b16 %v3179, %v3175
        %v3224 = vpack.c.b16 %v3184, %v3180
        %v3225 = vpack.c.b16 %v3185, %v3181
        %v3226 = vpack.c.b16 %v3186, %v3182
        %v3227 = vpack.c.b16 %v3187, %v3183
        %v3228 = vpack.c.b16 %v3192, %v3188
        %v3229 = vpack.c.b16 %v3193, %v3189
        %v3230 = vpack.c.b16 %v3194, %v3190
        %v3231 = vpack.c.b16 %v3195, %v3191
        %v3232 = vpack.c.b16 %v3200, %v3196
        %v3233 = vpack.c.b16 %v3201, %v3197
        %v3234 = vpack.c.b16 %v3202, %v3198
        %v3235 = vpack.c.b16 %v3203, %v3199
        %3268 = vmatpush.bf16.msra.mxu0 %v3232
        %3269 = vmatpush.bf16.msra.mxu0 %v3228
        %3270 = vmatpush.bf16.msra.mxu0 %v3224
        %3271 = vmatpush.bf16.msra.mxu0 %v3220
        %3272 = vmatpush.bf16.msra.mxu0 %v3216
        %3273 = vmatpush.bf16.msra.mxu0 %v3212
        %3274 = vmatpush.bf16.msra.mxu0 %v3208
        %3275 = vmatpush.bf16.msra.mxu0 %v3204
        %3276 = vmatmul.bf16.gmra.mxu0 %v3068
        %v3277 = vpop.f32.mrf.mxu0
        %v3278 = vadd.f32 0.0, %v3277
        %v3279 = vpop.f32.mrf.mxu0
        %3280 = vdwg.mxu0
        %3281 = vmatpush.bf16.msra.mxu0 %v3233
        %3282 = vmatpush.bf16.msra.mxu0 %v3229
        %3283 = vmatpush.bf16.msra.mxu0 %v3225
        %3284 = vmatpush.bf16.msra.mxu0 %v3221
        %3285 = vmatpush.bf16.msra.mxu0 %v3217
        %3286 = vmatpush.bf16.msra.mxu0 %v3213
        %3287 = vmatpush.bf16.msra.mxu0 %v3209
        %3288 = vmatpush.bf16.msra.mxu0 %v3205
        %3289 = vmatmul.bf16.gmra.mxu0 %v3068
        %v3290 = vpop.f32.mrf.mxu0
        %v3291 = vadd.f32 0.0, %v3290
        %v3292 = vpop.f32.mrf.mxu0
        %3293 = vdwg.mxu0
        %3294 = vmatpush.bf16.msra.mxu0 %v3234
        %3295 = vmatpush.bf16.msra.mxu0 %v3230
        %3296 = vmatpush.bf16.msra.mxu0 %v3226
        %3297 = vmatpush.bf16.msra.mxu0 %v3222
        %3298 = vmatpush.bf16.msra.mxu0 %v3218
        %3299 = vmatpush.bf16.msra.mxu0 %v3214
        %3300 = vmatpush.bf16.msra.mxu0 %v3210
        %3301 = vmatpush.bf16.msra.mxu0 %v3206
        %3302 = vmatmul.bf16.gmra.mxu0 %v3068
        %v3303 = vpop.f32.mrf.mxu0
        %v3304 = vadd.f32 0.0, %v3303
        %v3305 = vpop.f32.mrf.mxu0
        %3306 = vdwg.mxu0
        %3307 = vmatpush.bf16.msra.mxu0 %v3235
        %3308 = vmatpush.bf16.msra.mxu0 %v3231
        %3309 = vmatpush.bf16.msra.mxu0 %v3227
        %3310 = vmatpush.bf16.msra.mxu0 %v3223
        %3311 = vmatpush.bf16.msra.mxu0 %v3219
        %3312 = vmatpush.bf16.msra.mxu0 %v3215
        %3313 = vmatpush.bf16.msra.mxu0 %v3211
        %3314 = vmatpush.bf16.msra.mxu0 %v3207
        %3315 = vmatmul.bf16.gmra.mxu0 %v3068
        %v3316 = vpop.f32.mrf.mxu0
        %v3317 = vadd.f32 0.0, %v3316
        %v3318 = vpop.f32.mrf.mxu0
        %3319 = vdwg.mxu0
        %v3320 = vadd.f32 %v3072, %v3278
        %v3321 = vadd.f32 %v3073, %v3291
        %v3322 = vadd.f32 %v3074, %v3304
        %v3323 = vadd.f32 %v3075, %v3317
        %v3324 = vxor.u32 %v3320, 2147483648
        %v3325 = vmul.f32 %v3324, 1.442695
        %v3326 = vpow.pop %v3325
        %v3327 = vadd.f32 %v3326, 1.0
        %v3328 = vrcp.pop %v3327
        %v3329 = vmul.f32 %v3327, %v3328
        %v3330 = vsub.f32 1.0, %v3329
        %v3331 = vmul.f32 %v3328, %v3330
        %v3332 = vadd.f32 %v3328, %v3331
        %vm3333 = vweird.f32 %v3327
        %vm3334 = vweird.f32 %v3328
        %vm3335 = vmor %vm3333, %vm3334
        %v3336 = vsel %vm3335, %v3328, %v3332
        %v3337 = vand.u32 2147483647, %v3327
        %vm3338 = vcmp.eq.f32.partialorder %v3337, 8.507059e+37
        %v3339 = vand.u32 %v3327, 2147483648
        %v3340 = vor.u32 1.1754944e-38, %v3339
        %v3341 = vsel %vm3338, %v3340, %v3336
        %v3342 = vmul.f32 1.0, %v3341
        %v3343 = vxor.u32 %v3321, 2147483648
        %v3344 = vmul.f32 %v3343, 1.442695
        %v3345 = vpow.pop %v3344
        %v3346 = vadd.f32 %v3345, 1.0
        %v3347 = vrcp.pop %v3346
        %v3348 = vmul.f32 %v3346, %v3347
        %v3349 = vsub.f32 1.0, %v3348
        %v3350 = vmul.f32 %v3347, %v3349
        %v3351 = vadd.f32 %v3347, %v3350
        %vm3352 = vweird.f32 %v3346
        %vm3353 = vweird.f32 %v3347
        %vm3354 = vmor %vm3352, %vm3353
        %v3355 = vsel %vm3354, %v3347, %v3351
        %v3356 = vand.u32 2147483647, %v3346
        %vm3357 = vcmp.eq.f32.partialorder %v3356, 8.507059e+37
        %v3358 = vand.u32 %v3346, 2147483648
        %v3359 = vor.u32 1.1754944e-38, %v3358
        %v3360 = vsel %vm3357, %v3359, %v3355
        %v3361 = vmul.f32 1.0, %v3360
        %v3362 = vtanh.pop %v3322
        %v3363 = vxor.u32 %v3323, 2147483648
        %v3364 = vmul.f32 %v3363, 1.442695
        %v3365 = vpow.pop %v3364
        %v3366 = vadd.f32 %v3365, 1.0
        %v3367 = vrcp.pop %v3366
        %v3368 = vmul.f32 %v3366, %v3367
        %v3369 = vsub.f32 1.0, %v3368
        %v3370 = vmul.f32 %v3367, %v3369
        %v3371 = vadd.f32 %v3367, %v3370
        %vm3372 = vweird.f32 %v3366
        %vm3373 = vweird.f32 %v3367
        %vm3374 = vmor %vm3372, %vm3373
        %v3375 = vsel %vm3374, %v3367, %v3371
        %v3376 = vand.u32 2147483647, %v3366
        %vm3377 = vcmp.eq.f32.partialorder %v3376, 8.507059e+37
        %v3378 = vand.u32 %v3366, 2147483648
        %v3379 = vor.u32 1.1754944e-38, %v3378
        %v3380 = vsel %vm3377, %v3379, %v3375
        %v3381 = vmul.f32 1.0, %v3380
        %v3382 = vmul.f32 %v3361, %v3065
        %v3383 = vmul.f32 %v3342, %v3362
        %v3384 = vadd.f32 %v3382, %v3383
        %v3385 = vtanh.pop %v3384
        %v3386 = vmul.f32 %v3381, %v3385
        %v3387 = vpack.c.bf16 %v3386, %v3386
        %s3388 = scalar_lea.vmem %s416, 28 [#allocation6]
        %3389 = vst [vmem:[%s3388] sm:$0xf] %v3387
        %3390 = vst [vmem:[#allocation2] sm:$0xff] %v3386
        %3391 = vst [vmem:[#allocation3] sm:$0xff] %v3384
        // Predicated region
        $region90: #{sentiment_rnn_forward.2} parent=80 // pred_check
          %p3392 = pneg %p447
        $region91: #{sentiment_rnn_forward.2} parent=80 // pred_check_branch
          %3394 = sbr.rel (%p3392) target = $region93
        $region92: #{sentiment_rnn_forward.2} parent=80 // pred_region
          %3395 = vst [vmem:[%s442] sm:$0xff] %v3386
          %3396 = vst [vmem:[%s446] sm:$0xff] %v3384
        $region93: #{sentiment_rnn_forward.2} parent=80 // pred_fallthru
          _
        %s3397 = sand.u32 %s185, 1
        %s3398 = sand.u32 %s185, 1
        %s3399 = smul.addr %s3398, 32
        %s3400 = scalar_lea.vmem [#allocation6], %s3399
        %p3401 = scmp.lt.s32.totalorder %s24, 1
        %s3402 = scalar_select %p3401, %s24, 1
        %s3403 = smul.addr %s3402, 8
        %s3404 = scalar_lea.vmem %s7, %s3403
        %p3405 = scmp.lt.s32.totalorder %s24, 1
        %s3406 = scalar_select %p3405, %s24, 1
        %s3407 = smul.addr %s3406, 8
        %s3408 = scalar_lea.vmem %s8, %s3407
        // Predicated region
        $region94: #{sentiment_rnn_forward.2} parent=80 // pred_check
          %p3409 = pneg %p195
        $region95: #{sentiment_rnn_forward.2} parent=80 // pred_check_branch
          %3411 = sbr.rel (%p3409) target = $region97
        $region96: #{sentiment_rnn_forward.2} parent=80 // pred_region
          %s3412 = smul.u32 8, %s25
          %s3413 = smul.addr %s3412, 2
          %s3414 = sadd.s32 %s24, %s3413
          %s3415 = smul.addr %s3414, 4
          %s3416 = scalar_lea.vmem %s6, %s3415
          // Predicated region
          $region98: #{sentiment_rnn_forward.2} parent=96 // pred_check
            _
          $region99: #{sentiment_rnn_forward.2} parent=96 // pred_check_branch
            %3418 = sbr.rel (0) target = $region101
          $region100: #{sentiment_rnn_forward.2} parent=96 // pred_region
            // Predicated region
            $region102: #{sentiment_rnn_forward.2} parent=100 // pred_check
              _
            $region103: #{sentiment_rnn_forward.2} parent=100 // pred_check_branch
              %3420 = sbr.rel target = $region105
            $region104: #{sentiment_rnn_forward.2} parent=100 // pred_region
              // Predicated region
              $region117: #{sentiment_rnn_forward.2} parent=104 // pred_check
                _
              $region118: #{sentiment_rnn_forward.2} parent=104 // pred_check_branch
                %3450 = sbr.rel (0) target = $region120
              $region119: #{sentiment_rnn_forward.2} parent=104 // pred_region
                loop: start=0, step=1, limit=1
                $region121: #{sentiment_rnn_forward.2} parent=119 // loop_pre_header
                  _
                $region122: #{sentiment_rnn_forward.2} parent=119 // loop_header
                  %s3452 = sphi 0, %s3456
                  %p3453 = scmp.ge.s32.totalorder %s3452, 1
                  %s3457 = sphi %s3400, %s3400
                  %s3458 = sphi %s3416, %s3416
                $region123: #{sentiment_rnn_forward.2} parent=119 // loop_header_branch
                  %3455 = sbr.rel (%p3453) target = $region127
                $region124: #{sentiment_rnn_forward.2} parent=119 // loop_body
                  _
                $region125: #{sentiment_rnn_forward.2} parent=119 // loop_footer
                  %s3456 = sadd.s32 1, %s3452
                $region126: #{sentiment_rnn_forward.2} parent=119 // loop_footer_branch
                  %3451 = sbr.rel target = $region122
                $region127: #{sentiment_rnn_forward.2} parent=119 // loop_exit
                  _
                %s3460 = ssub.s32 16, 1
                loop: start=0, step=1, limit=1
                $region128: #{sentiment_rnn_forward.2} parent=119 // loop_pre_header
                  _
                $region129: #{sentiment_rnn_forward.2} parent=119 // loop_header
                  %s3462 = sphi 0, %s3466
                  %p3463 = scmp.ge.s32.totalorder %s3462, 1
                  %s3467 = sphi %s3400, %s3400
                  %s3468 = sphi %s3416, %s3416
                $region130: #{sentiment_rnn_forward.2} parent=119 // loop_header_branch
                  %3465 = sbr.rel (%p3463) target = $region134
                $region131: #{sentiment_rnn_forward.2} parent=119 // loop_body
                  %v3469 = vld [vmem:[%s3467] sm:%s3460]
                  %3470 = vst [vmem:[%s3468] sm:%s3460] %v3469
                  %v3471 = vld [vmem:[%s3467 + $0x4] sm:%s3460]
                  %3472 = vst [vmem:[%s3468 + $0x8] sm:%s3460] %v3471
                  %v3473 = vld [vmem:[%s3467 + $0x8] sm:%s3460]
                  %3474 = vst [vmem:[%s3468 + $0x10] sm:%s3460] %v3473
                  %v3475 = vld [vmem:[%s3467 + $0xc] sm:%s3460]
                  %3476 = vst [vmem:[%s3468 + $0x18] sm:%s3460] %v3475
                  %v3477 = vld [vmem:[%s3467 + $0x10] sm:%s3460]
                  %3478 = vst [vmem:[%s3468 + $0x20] sm:%s3460] %v3477
                  %v3479 = vld [vmem:[%s3467 + $0x14] sm:%s3460]
                  %3480 = vst [vmem:[%s3468 + $0x28] sm:%s3460] %v3479
                  %v3481 = vld [vmem:[%s3467 + $0x18] sm:%s3460]
                  %3482 = vst [vmem:[%s3468 + $0x30] sm:%s3460] %v3481
                  %v3483 = vld [vmem:[%s3467 + $0x1c] sm:%s3460]
                  %3484 = vst [vmem:[%s3468 + $0x38] sm:%s3460] %v3483
                $region132: #{sentiment_rnn_forward.2} parent=119 // loop_footer
                  %s3466 = sadd.s32 1, %s3462
                $region133: #{sentiment_rnn_forward.2} parent=119 // loop_footer_branch
                  %3461 = sbr.rel target = $region129
                $region134: #{sentiment_rnn_forward.2} parent=119 // loop_exit
                  _
              $region120: #{sentiment_rnn_forward.2} parent=104 // pred_fallthru
                _
            $region105: #{sentiment_rnn_forward.2} parent=100 // pred_fallthru
              _
            // Predicated region
            $region106: #{sentiment_rnn_forward.2} parent=100 // pred_check
              _
            $region107: #{sentiment_rnn_forward.2} parent=100 // pred_check_branch
              %3422 = sbr.rel (0) target = $region109
            $region108: #{sentiment_rnn_forward.2} parent=100 // pred_region
              %s3424 = ssub.s32 16, 1
              loop: start=0, step=1, limit=1
              $region110: #{sentiment_rnn_forward.2} parent=108 // loop_pre_header
                _
              $region111: #{sentiment_rnn_forward.2} parent=108 // loop_header
                %s3426 = sphi 0, %s3430
                %p3427 = scmp.ge.s32.totalorder %s3426, 1
                %s3431 = sphi %s3400, %s3400
                %s3432 = sphi %s3416, %s3416
              $region112: #{sentiment_rnn_forward.2} parent=108 // loop_header_branch
                %3429 = sbr.rel (%p3427) target = $region116
              $region113: #{sentiment_rnn_forward.2} parent=108 // loop_body
                %v3433 = vld [vmem:[%s3431] sm:%s3424]
                %3434 = vst [vmem:[%s3432] sm:%s3424] %v3433
                %v3435 = vld [vmem:[%s3431 + $0x4] sm:%s3424]
                %3436 = vst [vmem:[%s3432 + $0x8] sm:%s3424] %v3435
                %v3437 = vld [vmem:[%s3431 + $0x8] sm:%s3424]
                %3438 = vst [vmem:[%s3432 + $0x10] sm:%s3424] %v3437
                %v3439 = vld [vmem:[%s3431 + $0xc] sm:%s3424]
                %3440 = vst [vmem:[%s3432 + $0x18] sm:%s3424] %v3439
                %v3441 = vld [vmem:[%s3431 + $0x10] sm:%s3424]
                %3442 = vst [vmem:[%s3432 + $0x20] sm:%s3424] %v3441
                %v3443 = vld [vmem:[%s3431 + $0x14] sm:%s3424]
                %3444 = vst [vmem:[%s3432 + $0x28] sm:%s3424] %v3443
                %v3445 = vld [vmem:[%s3431 + $0x18] sm:%s3424]
                %3446 = vst [vmem:[%s3432 + $0x30] sm:%s3424] %v3445
                %v3447 = vld [vmem:[%s3431 + $0x1c] sm:%s3424]
                %3448 = vst [vmem:[%s3432 + $0x38] sm:%s3424] %v3447
              $region114: #{sentiment_rnn_forward.2} parent=108 // loop_footer
                %s3430 = sadd.s32 1, %s3426
              $region115: #{sentiment_rnn_forward.2} parent=108 // loop_footer_branch
                %3425 = sbr.rel target = $region111
              $region116: #{sentiment_rnn_forward.2} parent=108 // loop_exit
                _
            $region109: #{sentiment_rnn_forward.2} parent=100 // pred_fallthru
              _
          $region101: #{sentiment_rnn_forward.2} parent=96 // pred_fallthru
            _
          %3485 = vnop
        $region97: #{sentiment_rnn_forward.2} parent=80 // pred_fallthru
          _
        // Predicated region
        $region135: #{sentiment_rnn_forward.2} parent=80 // pred_check
          %p3486 = pneg %p221
        $region136: #{sentiment_rnn_forward.2} parent=80 // pred_check_branch
          %3488 = sbr.rel (%p3486) target = $region138
        $region137: #{sentiment_rnn_forward.2} parent=80 // pred_region
          _
        $region138: #{sentiment_rnn_forward.2} parent=80 // pred_fallthru
          _
        // Predicated region
        $region139: #{sentiment_rnn_forward.2} parent=80 // pred_check
          %p3489 = pneg %p247
        $region140: #{sentiment_rnn_forward.2} parent=80 // pred_check_branch
          %3491 = sbr.rel (%p3489) target = $region142
        $region141: #{sentiment_rnn_forward.2} parent=80 // pred_region
          _
        $region142: #{sentiment_rnn_forward.2} parent=80 // pred_fallthru
          _
      $region81: #{sentiment_rnn_forward.2} parent=5 // pred_fallthru
        _
      %p3492 = scmp.le.s32.totalorder 2, %s15
      // Predicated region
      $region143: #{sentiment_rnn_forward.2} parent=5 // pred_check
        %p3493 = pneg %p3492
      $region144: #{sentiment_rnn_forward.2} parent=5 // pred_check_branch
        %3495 = sbr.rel (%p3493) target = $region146
      $region145: #{sentiment_rnn_forward.2} parent=5 // pred_region
        %s3496 = ssub.s32 %s15, 2
        // Predicated region
        $region147: #{sentiment_rnn_forward.2} parent=145 // pred_check
          %p3497 = pneg %p201
        $region148: #{sentiment_rnn_forward.2} parent=145 // pred_check_branch
          %3499 = sbr.rel (%p3497) target = $region150
        $region149: #{sentiment_rnn_forward.2} parent=145 // pred_region
          %s3500 = sand.u32 %s186, 1
          %s3501 = sand.u32 %s186, 1
          %s3502 = smul.addr %s3501, 32
          %s3503 = scalar_lea.vmem [#allocation6], %s3502
        $region150: #{sentiment_rnn_forward.2} parent=145 // pred_fallthru
          _
        // Predicated region
        $region151: #{sentiment_rnn_forward.2} parent=145 // pred_check
          %p3504 = pneg %p227
        $region152: #{sentiment_rnn_forward.2} parent=145 // pred_check_branch
          %3506 = sbr.rel (%p3504) target = $region154
        $region153: #{sentiment_rnn_forward.2} parent=145 // pred_region
          %p3507 = scmp.lt.s32.totalorder %s26, 1
          %s3508 = scalar_select %p3507, %s26, 1
          %s3509 = smul.addr %s3508, 8
          %s3510 = scalar_lea.vmem %s7, %s3509
        $region154: #{sentiment_rnn_forward.2} parent=145 // pred_fallthru
          _
        // Predicated region
        $region155: #{sentiment_rnn_forward.2} parent=145 // pred_check
          %p3511 = pneg %p253
        $region156: #{sentiment_rnn_forward.2} parent=145 // pred_check_branch
          %3513 = sbr.rel (%p3511) target = $region158
        $region157: #{sentiment_rnn_forward.2} parent=145 // pred_region
          %p3514 = scmp.lt.s32.totalorder %s26, 1
          %s3515 = scalar_select %p3514, %s26, 1
          %s3516 = smul.addr %s3515, 8
          %s3517 = scalar_lea.vmem %s8, %s3516
        $region158: #{sentiment_rnn_forward.2} parent=145 // pred_fallthru
          _
      $region146: #{sentiment_rnn_forward.2} parent=5 // pred_fallthru
        _
    $region6: #{sentiment_rnn_forward.2} parent=1 // loop_footer
      %s19 = sadd.s32 1, %s15
    $region7: #{sentiment_rnn_forward.2} parent=1 // loop_footer_branch
      %14 = sbr.rel target = $region3
    $region8: #{sentiment_rnn_forward.2} parent=1 // loop_exit
      _

</llo_original>
